<compile_context>
chip_gen: v7x
topology: tpu7x:2x2x1
jax: 0.10.0
libtpu: 0.0.40
codegen_flags: <defaults>
</compile_context>

<pallas_src>
import jax
import jax.numpy as jnp
from jax.experimental import pallas as pl
from jax.experimental.pallas import tpu as pltpu

IN_FEATURES = 78448     # from Linear(78448, 2)
OUT_FEATURES = 2
BATCH = 8               # small batch, sublane aligned
K_CHUNK = 8192          # static in-kernel K slice (multiple of 128 lanes)


def _linear_softmax_kernel(x_ref, w_ref, b_ref, o_ref):
    """Single-shot fused Linear + softmax.

    x_ref : (B, K)  f32  VMEM   activations
    w_ref : (2, K)  f32  VMEM   weight in native PyTorch [out, in] layout
    b_ref : (2,)    f32  SMEM   bias scalars
    o_ref : (B, 2)  f32  VMEM   softmax probabilities
    """
    n, k = x_ref.shape

    acc0 = jnp.zeros((n, 1), jnp.float32)
    acc1 = jnp.zeros((n, 1), jnp.float32)
    # Static (unrolled) chunked reduction over K: each chunk slice is a
    # zero-cost ref view; VPU broadcast-multiply + XLU lane-reduce with f32
    # accumulation.  Chunking bounds live vector temporaries (no 2.4 MiB
    # full-row intermediates), so the kernel fits default scoped VMEM on
    # every TPU generation.
    for start in range(0, k, K_CHUNK):
        stop = min(start + K_CHUNK, k)
        xs = x_ref[:, start:stop]                                       # (n, c)
        acc0 += jnp.sum(xs * w_ref[0:1, start:stop], axis=-1, keepdims=True)
        acc1 += jnp.sum(xs * w_ref[1:2, start:stop], axis=-1, keepdims=True)

    l0 = acc0 + b_ref[0]
    l1 = acc1 + b_ref[1]

    # numerically-stable 2-class softmax
    m = jnp.maximum(l0, l1)
    e0 = jnp.exp(l0 - m)
    e1 = jnp.exp(l1 - m)
    inv = pl.reciprocal(e0 + e1, approx=False)   # exact: keep f32 parity
    o_ref[:, 0:1] = e0 * inv
    o_ref[:, 1:2] = e1 * inv


def net_forward(x, w, b):
    """x: [B, 78448] f32; w: [2, 78448] f32 (PyTorch Linear layout); b: [2] f32."""
    n, kdim = x.shape
    assert kdim == IN_FEATURES and w.shape == (OUT_FEATURES, IN_FEATURES)

    return pl.pallas_call(
        _linear_softmax_kernel,
        out_shape=jax.ShapeDtypeStruct((n, OUT_FEATURES), jnp.float32),
        in_specs=[
            pl.BlockSpec(memory_space=pltpu.MemorySpace.VMEM),   # x  (whole array)
            pl.BlockSpec(memory_space=pltpu.MemorySpace.VMEM),   # w  (whole array)
            pl.BlockSpec(memory_space=pltpu.MemorySpace.SMEM),   # bias scalars
        ],
        out_specs=pl.BlockSpec(memory_space=pltpu.MemorySpace.VMEM),
        compiler_params=pltpu.CompilerParams(
            vmem_limit_bytes=32 * 1024 * 1024),  # headroom; safe on v5e/v6e/v7x
    )(x, w, b)


if __name__ == "__main__":
    key = jax.random.PRNGKey(0)
    kx, kw, kb = jax.random.split(key, 3)

    # deterministic synthetic parameters (shapes from Linear(78448, 2))
    x = jax.random.normal(kx, (BATCH, IN_FEATURES), dtype=jnp.float32)
    scale = 1.0 / jnp.sqrt(jnp.float32(IN_FEATURES))
    w = jax.random.normal(kw, (OUT_FEATURES, IN_FEATURES), dtype=jnp.float32) * scale
    b = jax.random.normal(kb, (OUT_FEATURES,), dtype=jnp.float32) * scale

    fwd = jax.jit(net_forward)
    out = jax.block_until_ready(fwd(x, w, b))

    # reference (plain JAX, full-f32 matmul precision) of the same forward
    logits = jnp.einsum("bk,ok->bo", x, w,
                        precision=jax.lax.Precision.HIGHEST) + b
    ref = jax.nn.softmax(logits, axis=1)

    assert out.shape == (BATCH, OUT_FEATURES)
    assert jnp.allclose(out, ref, atol=2e-5, rtol=2e-5), (out, ref)

    print("KERNEL_OK")
</pallas_src>

<mosaic_0001>
module attributes {stable_mosaic.version = 11 : i64} {
  func.func @_linear_softmax_kernel(%arg0: memref<8x78448xf32, #tpu.memory_space<vmem>>, %arg1: memref<2x78448xf32, #tpu.memory_space<vmem>>, %arg2: memref<2xf32, #tpu.memory_space<smem>>, %arg3: memref<8x2xf32, #tpu.memory_space<vmem>>) attributes {dimension_semantics = [], scalar_prefetch = 0 : i64, scratch_operands = 0 : i64, tpu.core_type = #tpu.core_type<tc>} {
    %cst = arith.constant 0.000000e+00 : f32
    %0 = vector.broadcast %cst : f32 to vector<8x1xf32>
    %cst_0 = arith.constant 0.000000e+00 : f32
    %1 = vector.broadcast %cst_0 : f32 to vector<8x1xf32>
    %c0 = arith.constant 0 : index
    %c0_1 = arith.constant 0 : index
    %2 = vector.load %arg0[%c0, %c0_1] : memref<8x78448xf32, #tpu.memory_space<vmem>>, vector<8x8192xf32>
    %c0_2 = arith.constant 0 : index
    %c0_3 = arith.constant 0 : index
    %3 = vector.load %arg1[%c0_2, %c0_3] : memref<2x78448xf32, #tpu.memory_space<vmem>>, vector<1x8192xf32>
    %4 = vector.broadcast %3 : vector<1x8192xf32> to vector<8x8192xf32>
    %5 = arith.mulf %2, %4 : vector<8x8192xf32>
    %cst_4 = arith.constant dense<0.000000e+00> : vector<8xf32>
    %6 = vector.multi_reduction <add>, %5, %cst_4 [1] : vector<8x8192xf32> to vector<8xf32>
    %7 = vector.shape_cast %6 : vector<8xf32> to vector<8x1xf32>
    %8 = arith.addf %0, %7 : vector<8x1xf32>
    %c1 = arith.constant 1 : index
    %c0_5 = arith.constant 0 : index
    %9 = vector.load %arg1[%c1, %c0_5] : memref<2x78448xf32, #tpu.memory_space<vmem>>, vector<1x8192xf32>
    %10 = vector.broadcast %9 : vector<1x8192xf32> to vector<8x8192xf32>
    %11 = arith.mulf %2, %10 : vector<8x8192xf32>
    %cst_6 = arith.constant dense<0.000000e+00> : vector<8xf32>
    %12 = vector.multi_reduction <add>, %11, %cst_6 [1] : vector<8x8192xf32> to vector<8xf32>
    %13 = vector.shape_cast %12 : vector<8xf32> to vector<8x1xf32>
    %14 = arith.addf %1, %13 : vector<8x1xf32>
    %c0_7 = arith.constant 0 : index
    %c8192 = arith.constant 8192 : index
    %15 = vector.load %arg0[%c0_7, %c8192] : memref<8x78448xf32, #tpu.memory_space<vmem>>, vector<8x8192xf32>
    %c0_8 = arith.constant 0 : index
    %c8192_9 = arith.constant 8192 : index
    %16 = vector.load %arg1[%c0_8, %c8192_9] : memref<2x78448xf32, #tpu.memory_space<vmem>>, vector<1x8192xf32>
    %17 = vector.broadcast %16 : vector<1x8192xf32> to vector<8x8192xf32>
    %18 = arith.mulf %15, %17 : vector<8x8192xf32>
    %cst_10 = arith.constant dense<0.000000e+00> : vector<8xf32>
    %19 = vector.multi_reduction <add>, %18, %cst_10 [1] : vector<8x8192xf32> to vector<8xf32>
    %20 = vector.shape_cast %19 : vector<8xf32> to vector<8x1xf32>
    %21 = arith.addf %8, %20 : vector<8x1xf32>
    %c1_11 = arith.constant 1 : index
    %c8192_12 = arith.constant 8192 : index
    %22 = vector.load %arg1[%c1_11, %c8192_12] : memref<2x78448xf32, #tpu.memory_space<vmem>>, vector<1x8192xf32>
    %23 = vector.broadcast %22 : vector<1x8192xf32> to vector<8x8192xf32>
    %24 = arith.mulf %15, %23 : vector<8x8192xf32>
    %cst_13 = arith.constant dense<0.000000e+00> : vector<8xf32>
    %25 = vector.multi_reduction <add>, %24, %cst_13 [1] : vector<8x8192xf32> to vector<8xf32>
    %26 = vector.shape_cast %25 : vector<8xf32> to vector<8x1xf32>
    %27 = arith.addf %14, %26 : vector<8x1xf32>
    %c0_14 = arith.constant 0 : index
    %c16384 = arith.constant 16384 : index
    %28 = vector.load %arg0[%c0_14, %c16384] : memref<8x78448xf32, #tpu.memory_space<vmem>>, vector<8x8192xf32>
    %c0_15 = arith.constant 0 : index
    %c16384_16 = arith.constant 16384 : index
    %29 = vector.load %arg1[%c0_15, %c16384_16] : memref<2x78448xf32, #tpu.memory_space<vmem>>, vector<1x8192xf32>
    %30 = vector.broadcast %29 : vector<1x8192xf32> to vector<8x8192xf32>
    %31 = arith.mulf %28, %30 : vector<8x8192xf32>
    %cst_17 = arith.constant dense<0.000000e+00> : vector<8xf32>
    %32 = vector.multi_reduction <add>, %31, %cst_17 [1] : vector<8x8192xf32> to vector<8xf32>
    %33 = vector.shape_cast %32 : vector<8xf32> to vector<8x1xf32>
    %34 = arith.addf %21, %33 : vector<8x1xf32>
    %c1_18 = arith.constant 1 : index
    %c16384_19 = arith.constant 16384 : index
    %35 = vector.load %arg1[%c1_18, %c16384_19] : memref<2x78448xf32, #tpu.memory_space<vmem>>, vector<1x8192xf32>
    %36 = vector.broadcast %35 : vector<1x8192xf32> to vector<8x8192xf32>
    %37 = arith.mulf %28, %36 : vector<8x8192xf32>
    %cst_20 = arith.constant dense<0.000000e+00> : vector<8xf32>
    %38 = vector.multi_reduction <add>, %37, %cst_20 [1] : vector<8x8192xf32> to vector<8xf32>
    %39 = vector.shape_cast %38 : vector<8xf32> to vector<8x1xf32>
    %40 = arith.addf %27, %39 : vector<8x1xf32>
    %c0_21 = arith.constant 0 : index
    %c24576 = arith.constant 24576 : index
    %41 = vector.load %arg0[%c0_21, %c24576] : memref<8x78448xf32, #tpu.memory_space<vmem>>, vector<8x8192xf32>
    %c0_22 = arith.constant 0 : index
    %c24576_23 = arith.constant 24576 : index
    %42 = vector.load %arg1[%c0_22, %c24576_23] : memref<2x78448xf32, #tpu.memory_space<vmem>>, vector<1x8192xf32>
    %43 = vector.broadcast %42 : vector<1x8192xf32> to vector<8x8192xf32>
    %44 = arith.mulf %41, %43 : vector<8x8192xf32>
    %cst_24 = arith.constant dense<0.000000e+00> : vector<8xf32>
    %45 = vector.multi_reduction <add>, %44, %cst_24 [1] : vector<8x8192xf32> to vector<8xf32>
    %46 = vector.shape_cast %45 : vector<8xf32> to vector<8x1xf32>
    %47 = arith.addf %34, %46 : vector<8x1xf32>
    %c1_25 = arith.constant 1 : index
    %c24576_26 = arith.constant 24576 : index
    %48 = vector.load %arg1[%c1_25, %c24576_26] : memref<2x78448xf32, #tpu.memory_space<vmem>>, vector<1x8192xf32>
    %49 = vector.broadcast %48 : vector<1x8192xf32> to vector<8x8192xf32>
    %50 = arith.mulf %41, %49 : vector<8x8192xf32>
    %cst_27 = arith.constant dense<0.000000e+00> : vector<8xf32>
    %51 = vector.multi_reduction <add>, %50, %cst_27 [1] : vector<8x8192xf32> to vector<8xf32>
    %52 = vector.shape_cast %51 : vector<8xf32> to vector<8x1xf32>
    %53 = arith.addf %40, %52 : vector<8x1xf32>
    %c0_28 = arith.constant 0 : index
    %c32768 = arith.constant 32768 : index
    %54 = vector.load %arg0[%c0_28, %c32768] : memref<8x78448xf32, #tpu.memory_space<vmem>>, vector<8x8192xf32>
    %c0_29 = arith.constant 0 : index
    %c32768_30 = arith.constant 32768 : index
    %55 = vector.load %arg1[%c0_29, %c32768_30] : memref<2x78448xf32, #tpu.memory_space<vmem>>, vector<1x8192xf32>
    %56 = vector.broadcast %55 : vector<1x8192xf32> to vector<8x8192xf32>
    %57 = arith.mulf %54, %56 : vector<8x8192xf32>
    %cst_31 = arith.constant dense<0.000000e+00> : vector<8xf32>
    %58 = vector.multi_reduction <add>, %57, %cst_31 [1] : vector<8x8192xf32> to vector<8xf32>
    %59 = vector.shape_cast %58 : vector<8xf32> to vector<8x1xf32>
    %60 = arith.addf %47, %59 : vector<8x1xf32>
    %c1_32 = arith.constant 1 : index
    %c32768_33 = arith.constant 32768 : index
    %61 = vector.load %arg1[%c1_32, %c32768_33] : memref<2x78448xf32, #tpu.memory_space<vmem>>, vector<1x8192xf32>
    %62 = vector.broadcast %61 : vector<1x8192xf32> to vector<8x8192xf32>
    %63 = arith.mulf %54, %62 : vector<8x8192xf32>
    %cst_34 = arith.constant dense<0.000000e+00> : vector<8xf32>
    %64 = vector.multi_reduction <add>, %63, %cst_34 [1] : vector<8x8192xf32> to vector<8xf32>
    %65 = vector.shape_cast %64 : vector<8xf32> to vector<8x1xf32>
    %66 = arith.addf %53, %65 : vector<8x1xf32>
    %c0_35 = arith.constant 0 : index
    %c40960 = arith.constant 40960 : index
    %67 = vector.load %arg0[%c0_35, %c40960] : memref<8x78448xf32, #tpu.memory_space<vmem>>, vector<8x8192xf32>
    %c0_36 = arith.constant 0 : index
    %c40960_37 = arith.constant 40960 : index
    %68 = vector.load %arg1[%c0_36, %c40960_37] : memref<2x78448xf32, #tpu.memory_space<vmem>>, vector<1x8192xf32>
    %69 = vector.broadcast %68 : vector<1x8192xf32> to vector<8x8192xf32>
    %70 = arith.mulf %67, %69 : vector<8x8192xf32>
    %cst_38 = arith.constant dense<0.000000e+00> : vector<8xf32>
    %71 = vector.multi_reduction <add>, %70, %cst_38 [1] : vector<8x8192xf32> to vector<8xf32>
    %72 = vector.shape_cast %71 : vector<8xf32> to vector<8x1xf32>
    %73 = arith.addf %60, %72 : vector<8x1xf32>
    %c1_39 = arith.constant 1 : index
    %c40960_40 = arith.constant 40960 : index
    %74 = vector.load %arg1[%c1_39, %c40960_40] : memref<2x78448xf32, #tpu.memory_space<vmem>>, vector<1x8192xf32>
    %75 = vector.broadcast %74 : vector<1x8192xf32> to vector<8x8192xf32>
    %76 = arith.mulf %67, %75 : vector<8x8192xf32>
    %cst_41 = arith.constant dense<0.000000e+00> : vector<8xf32>
    %77 = vector.multi_reduction <add>, %76, %cst_41 [1] : vector<8x8192xf32> to vector<8xf32>
    %78 = vector.shape_cast %77 : vector<8xf32> to vector<8x1xf32>
    %79 = arith.addf %66, %78 : vector<8x1xf32>
    %c0_42 = arith.constant 0 : index
    %c49152 = arith.constant 49152 : index
    %80 = vector.load %arg0[%c0_42, %c49152] : memref<8x78448xf32, #tpu.memory_space<vmem>>, vector<8x8192xf32>
    %c0_43 = arith.constant 0 : index
    %c49152_44 = arith.constant 49152 : index
    %81 = vector.load %arg1[%c0_43, %c49152_44] : memref<2x78448xf32, #tpu.memory_space<vmem>>, vector<1x8192xf32>
    %82 = vector.broadcast %81 : vector<1x8192xf32> to vector<8x8192xf32>
    %83 = arith.mulf %80, %82 : vector<8x8192xf32>
    %cst_45 = arith.constant dense<0.000000e+00> : vector<8xf32>
    %84 = vector.multi_reduction <add>, %83, %cst_45 [1] : vector<8x8192xf32> to vector<8xf32>
    %85 = vector.shape_cast %84 : vector<8xf32> to vector<8x1xf32>
    %86 = arith.addf %73, %85 : vector<8x1xf32>
    %c1_46 = arith.constant 1 : index
    %c49152_47 = arith.constant 49152 : index
    %87 = vector.load %arg1[%c1_46, %c49152_47] : memref<2x78448xf32, #tpu.memory_space<vmem>>, vector<1x8192xf32>
    %88 = vector.broadcast %87 : vector<1x8192xf32> to vector<8x8192xf32>
    %89 = arith.mulf %80, %88 : vector<8x8192xf32>
    %cst_48 = arith.constant dense<0.000000e+00> : vector<8xf32>
    %90 = vector.multi_reduction <add>, %89, %cst_48 [1] : vector<8x8192xf32> to vector<8xf32>
    %91 = vector.shape_cast %90 : vector<8xf32> to vector<8x1xf32>
    %92 = arith.addf %79, %91 : vector<8x1xf32>
    %c0_49 = arith.constant 0 : index
    %c57344 = arith.constant 57344 : index
    %93 = vector.load %arg0[%c0_49, %c57344] : memref<8x78448xf32, #tpu.memory_space<vmem>>, vector<8x8192xf32>
    %c0_50 = arith.constant 0 : index
    %c57344_51 = arith.constant 57344 : index
    %94 = vector.load %arg1[%c0_50, %c57344_51] : memref<2x78448xf32, #tpu.memory_space<vmem>>, vector<1x8192xf32>
    %95 = vector.broadcast %94 : vector<1x8192xf32> to vector<8x8192xf32>
    %96 = arith.mulf %93, %95 : vector<8x8192xf32>
    %cst_52 = arith.constant dense<0.000000e+00> : vector<8xf32>
    %97 = vector.multi_reduction <add>, %96, %cst_52 [1] : vector<8x8192xf32> to vector<8xf32>
    %98 = vector.shape_cast %97 : vector<8xf32> to vector<8x1xf32>
    %99 = arith.addf %86, %98 : vector<8x1xf32>
    %c1_53 = arith.constant 1 : index
    %c57344_54 = arith.constant 57344 : index
    %100 = vector.load %arg1[%c1_53, %c57344_54] : memref<2x78448xf32, #tpu.memory_space<vmem>>, vector<1x8192xf32>
    %101 = vector.broadcast %100 : vector<1x8192xf32> to vector<8x8192xf32>
    %102 = arith.mulf %93, %101 : vector<8x8192xf32>
    %cst_55 = arith.constant dense<0.000000e+00> : vector<8xf32>
    %103 = vector.multi_reduction <add>, %102, %cst_55 [1] : vector<8x8192xf32> to vector<8xf32>
    %104 = vector.shape_cast %103 : vector<8xf32> to vector<8x1xf32>
    %105 = arith.addf %92, %104 : vector<8x1xf32>
    %c0_56 = arith.constant 0 : index
    %c65536 = arith.constant 65536 : index
    %106 = vector.load %arg0[%c0_56, %c65536] : memref<8x78448xf32, #tpu.memory_space<vmem>>, vector<8x8192xf32>
    %c0_57 = arith.constant 0 : index
    %c65536_58 = arith.constant 65536 : index
    %107 = vector.load %arg1[%c0_57, %c65536_58] : memref<2x78448xf32, #tpu.memory_space<vmem>>, vector<1x8192xf32>
    %108 = vector.broadcast %107 : vector<1x8192xf32> to vector<8x8192xf32>
    %109 = arith.mulf %106, %108 : vector<8x8192xf32>
    %cst_59 = arith.constant dense<0.000000e+00> : vector<8xf32>
    %110 = vector.multi_reduction <add>, %109, %cst_59 [1] : vector<8x8192xf32> to vector<8xf32>
    %111 = vector.shape_cast %110 : vector<8xf32> to vector<8x1xf32>
    %112 = arith.addf %99, %111 : vector<8x1xf32>
    %c1_60 = arith.constant 1 : index
    %c65536_61 = arith.constant 65536 : index
    %113 = vector.load %arg1[%c1_60, %c65536_61] : memref<2x78448xf32, #tpu.memory_space<vmem>>, vector<1x8192xf32>
    %114 = vector.broadcast %113 : vector<1x8192xf32> to vector<8x8192xf32>
    %115 = arith.mulf %106, %114 : vector<8x8192xf32>
    %cst_62 = arith.constant dense<0.000000e+00> : vector<8xf32>
    %116 = vector.multi_reduction <add>, %115, %cst_62 [1] : vector<8x8192xf32> to vector<8xf32>
    %117 = vector.shape_cast %116 : vector<8xf32> to vector<8x1xf32>
    %118 = arith.addf %105, %117 : vector<8x1xf32>
    %c0_63 = arith.constant 0 : index
    %c73728 = arith.constant 73728 : index
    %119 = vector.load %arg0[%c0_63, %c73728] : memref<8x78448xf32, #tpu.memory_space<vmem>>, vector<8x4720xf32>
    %c0_64 = arith.constant 0 : index
    %c73728_65 = arith.constant 73728 : index
    %120 = vector.load %arg1[%c0_64, %c73728_65] : memref<2x78448xf32, #tpu.memory_space<vmem>>, vector<1x4720xf32>
    %121 = vector.broadcast %120 : vector<1x4720xf32> to vector<8x4720xf32>
    %122 = arith.mulf %119, %121 : vector<8x4720xf32>
    %cst_66 = arith.constant dense<0.000000e+00> : vector<8xf32>
    %123 = vector.multi_reduction <add>, %122, %cst_66 [1] : vector<8x4720xf32> to vector<8xf32>
    %124 = vector.shape_cast %123 : vector<8xf32> to vector<8x1xf32>
    %125 = arith.addf %112, %124 : vector<8x1xf32>
    %c1_67 = arith.constant 1 : index
    %c73728_68 = arith.constant 73728 : index
    %126 = vector.load %arg1[%c1_67, %c73728_68] : memref<2x78448xf32, #tpu.memory_space<vmem>>, vector<1x4720xf32>
    %127 = vector.broadcast %126 : vector<1x4720xf32> to vector<8x4720xf32>
    %128 = arith.mulf %119, %127 : vector<8x4720xf32>
    %cst_69 = arith.constant dense<0.000000e+00> : vector<8xf32>
    %129 = vector.multi_reduction <add>, %128, %cst_69 [1] : vector<8x4720xf32> to vector<8xf32>
    %130 = vector.shape_cast %129 : vector<8xf32> to vector<8x1xf32>
    %131 = arith.addf %118, %130 : vector<8x1xf32>
    %c0_70 = arith.constant 0 : index
    %132 = memref.load %arg2[%c0_70] : memref<2xf32, #tpu.memory_space<smem>>
    %133 = vector.broadcast %132 : f32 to vector<8x1xf32>
    %134 = arith.addf %125, %133 : vector<8x1xf32>
    %c1_71 = arith.constant 1 : index
    %135 = memref.load %arg2[%c1_71] : memref<2xf32, #tpu.memory_space<smem>>
    %136 = vector.broadcast %135 : f32 to vector<8x1xf32>
    %137 = arith.addf %131, %136 : vector<8x1xf32>
    %138 = arith.maximumf %134, %137 : vector<8x1xf32>
    %139 = arith.subf %134, %138 : vector<8x1xf32>
    %140 = math.exp %139 : vector<8x1xf32>
    %141 = arith.subf %137, %138 : vector<8x1xf32>
    %142 = math.exp %141 : vector<8x1xf32>
    %143 = arith.addf %140, %142 : vector<8x1xf32>
    %144 = tpu.reciprocal %143 : vector<8x1xf32> -> vector<8x1xf32>
    %145 = arith.mulf %140, %144 : vector<8x1xf32>
    %c0_72 = arith.constant 0 : index
    %c0_73 = arith.constant 0 : index
    %146 = vector.load %arg3[%c0_72, %c0_73] : memref<8x2xf32, #tpu.memory_space<vmem>>, vector<8x1xf32>
    tpu.vector_store %arg3[%c0_72, %c0_73], %145 {strides = array<i32>} : memref<8x2xf32, #tpu.memory_space<vmem>>, vector<8x1xf32>,
    %147 = arith.mulf %142, %144 : vector<8x1xf32>
    %c0_74 = arith.constant 0 : index
    %c1_75 = arith.constant 1 : index
    %148 = vector.load %arg3[%c0_74, %c1_75] : memref<8x2xf32, #tpu.memory_space<vmem>>, vector<8x1xf32>
    tpu.vector_store %arg3[%c0_74, %c1_75], %147 {strides = array<i32>} : memref<8x2xf32, #tpu.memory_space<vmem>>, vector<8x1xf32>,
    return
  }
}

</mosaic_0001>

<llo_original>
// kernel: net_forward.1
$region0: #{net_forward.1}
  #allocation0 [shape = 'u32[]', space=smem, size = 0x4, offset = 0x4, fixed_abs, tag = 'smem constant byte address 0x4 - core index']
  #allocation1 [shape = 'u32[144,128]{1,0:T(1,128)}', space=vmem, size = 0x12000, scoped, tag = 'internal scratch']
  %s0 = inlined_call_operand.hbm [shape: f32[8,78448], index: 0, kind: input, shape index: {}]
  %s1 = inlined_call_operand.hbm [shape: f32[2,78448], index: 1, kind: input, shape index: {}]
  %s2 = inlined_call_operand.hbm [shape: f32[2], index: 2, kind: input, shape index: {}]
  %s3 = inlined_call_operand.vmem [shape: f32[8,2], index: 3, kind: output, shape index: {}]
  %s4 = sld [smem:[#allocation0]]
  $region34: #{net_forward.1} parent=0
    _
  %s6 = ssub.s32 1, %s4
  %s7 = scalar_select 0, %s6, %s4
  $region1: #{net_forward.1} parent=0
    #allocation2 [shape = 'u8[2510848]{0}', space=vmem, size = 0x265000, scoped, tag = 'input window, operand 0, single buffered']
    #allocation3 [shape = 's32[1]{0}', space=sflag, size = 0x4, scoped, tag = 'scoped memory for net_forward.1']
    #allocation4 [shape = 's32[1]{0}', space=sflag, size = 0x4, scoped, tag = 'scoped memory for net_forward.1']
    #allocation5 [shape = 'u8[627712]{0}', space=vmem, size = 0x99400, scoped, tag = 'input window, operand 1, single buffered']
    #allocation6 [shape = 's32[1]{0}', space=sflag, size = 0x4, scoped, tag = 'scoped memory for net_forward.1']
    #allocation7 [shape = 'u8[512]{0}', space=smem, size = 0x200, scoped, tag = 'input window, operand 2, single buffered']
    %8 = vsyncpa [#allocation3], 0
    %9 = vsyncpa [#allocation6], 0
    %10 = vsyncpa [#allocation4], 0
    // Predicated region
    $region2: #{net_forward.1} parent=1 // pred_check
      _
    $region3: #{net_forward.1} parent=1 // pred_check_branch
      %12 = sbr.rel (0) target = $region5
    $region4: #{net_forward.1} parent=1 // pred_region
      %s14 = ssub.s32 78464, 78464
      %15 = vsyncadd [#allocation3], %s14
      %s17 = sshll.u32 [#allocation2], 4
      %s18 = int_to_ptr.vmem [resolvable:$true] %s17
      %20 = dma.hbm_to_vmem [thread:$0]  %s0, 78464, %s18, [#allocation3]
    $region5: #{net_forward.1} parent=1 // pred_fallthru
      _
    // Predicated region
    $region6: #{net_forward.1} parent=1 // pred_check
      _
    $region7: #{net_forward.1} parent=1 // pred_check_branch
      %22 = sbr.rel (0) target = $region9
    $region8: #{net_forward.1} parent=1 // pred_region
      %s24 = ssub.s32 19616, 19616
      %25 = vsyncadd [#allocation6], %s24
      %s27 = sshll.u32 [#allocation5], 4
      %s28 = int_to_ptr.vmem [resolvable:$true] %s27
      %30 = dma.hbm_to_vmem [thread:$0]  %s1, 19616, %s28, [#allocation6]
    $region9: #{net_forward.1} parent=1 // pred_fallthru
      _
    // Predicated region
    $region10: #{net_forward.1} parent=1 // pred_check
      _
    $region11: #{net_forward.1} parent=1 // pred_check_branch
      %32 = sbr.rel (0) target = $region13
    $region12: #{net_forward.1} parent=1 // pred_region
      %s34 = ssub.s32 16, 16
      %35 = vsyncadd [#allocation4], %s34
      %38 = dma.hbm_to_smem %s2, 16, [#allocation7], [#allocation4]
    $region13: #{net_forward.1} parent=1 // pred_fallthru
      _
    // Predicated region
    $region14: #{net_forward.1} parent=1 // pred_check
      _
    $region15: #{net_forward.1} parent=1 // pred_check_branch
      %40 = sbr.rel (0) target = $region17
    $region16: #{net_forward.1} parent=1 // pred_region
      %41 = dma.done [#allocation3], 78464
    $region17: #{net_forward.1} parent=1 // pred_fallthru
      _
    // Predicated region
    $region18: #{net_forward.1} parent=1 // pred_check
      _
    $region19: #{net_forward.1} parent=1 // pred_check_branch
      %43 = sbr.rel (0) target = $region21
    $region20: #{net_forward.1} parent=1 // pred_region
      %44 = dma.done [#allocation6], 19616
    $region21: #{net_forward.1} parent=1 // pred_fallthru
      _
    // Predicated region
    $region22: #{net_forward.1} parent=1 // pred_check
      _
    $region23: #{net_forward.1} parent=1 // pred_check_branch
      %46 = sbr.rel (0) target = $region25
    $region24: #{net_forward.1} parent=1 // pred_region
      %47 = dma.done [#allocation4], 16
    $region25: #{net_forward.1} parent=1 // pred_fallthru
      _
    %48 = sfence
    %v49 = vld [vmem:[#allocation2] sm:$0xff]
    %v50 = vld [vmem:[#allocation2 + $0x8] sm:$0xff]
    %v51 = vld [vmem:[#allocation2 + $0x10] sm:$0xff]
    %v52 = vld [vmem:[#allocation2 + $0x18] sm:$0xff]
    %v53 = vld [vmem:[#allocation2 + $0x20] sm:$0xff]
    %v54 = vld [vmem:[#allocation2 + $0x28] sm:$0xff]
    %v55 = vld [vmem:[#allocation2 + $0x30] sm:$0xff]
    %v56 = vld [vmem:[#allocation2 + $0x38] sm:$0xff]
    %v57 = vld [vmem:[#allocation2 + $0x40] sm:$0xff]
    %v58 = vld [vmem:[#allocation2 + $0x48] sm:$0xff]
    %v59 = vld [vmem:[#allocation2 + $0x50] sm:$0xff]
    %v60 = vld [vmem:[#allocation2 + $0x58] sm:$0xff]
    %v61 = vld [vmem:[#allocation2 + $0x60] sm:$0xff]
    %v62 = vld [vmem:[#allocation2 + $0x68] sm:$0xff]
    %v63 = vld [vmem:[#allocation2 + $0x70] sm:$0xff]
    %v64 = vld [vmem:[#allocation2 + $0x78] sm:$0xff]
    %v65 = vld [vmem:[#allocation2 + $0x80] sm:$0xff]
    %v66 = vld [vmem:[#allocation2 + $0x88] sm:$0xff]
    %v67 = vld [vmem:[#allocation2 + $0x90] sm:$0xff]
    %v68 = vld [vmem:[#allocation2 + $0x98] sm:$0xff]
    %v69 = vld [vmem:[#allocation2 + $0xa0] sm:$0xff]
    %v70 = vld [vmem:[#allocation2 + $0xa8] sm:$0xff]
    %v71 = vld [vmem:[#allocation2 + $0xb0] sm:$0xff]
    %v72 = vld [vmem:[#allocation2 + $0xb8] sm:$0xff]
    %v73 = vld [vmem:[#allocation2 + $0xc0] sm:$0xff]
    %v74 = vld [vmem:[#allocation2 + $0xc8] sm:$0xff]
    %v75 = vld [vmem:[#allocation2 + $0xd0] sm:$0xff]
    %v76 = vld [vmem:[#allocation2 + $0xd8] sm:$0xff]
    %v77 = vld [vmem:[#allocation2 + $0xe0] sm:$0xff]
    %v78 = vld [vmem:[#allocation2 + $0xe8] sm:$0xff]
    %v79 = vld [vmem:[#allocation2 + $0xf0] sm:$0xff]
    %v80 = vld [vmem:[#allocation2 + $0xf8] sm:$0xff]
    %v81 = vld [vmem:[#allocation2 + $0x100] sm:$0xff]
    %v82 = vld [vmem:[#allocation2 + $0x108] sm:$0xff]
    %v83 = vld [vmem:[#allocation2 + $0x110] sm:$0xff]
    %v84 = vld [vmem:[#allocation2 + $0x118] sm:$0xff]
    %v85 = vld [vmem:[#allocation2 + $0x120] sm:$0xff]
    %v86 = vld [vmem:[#allocation2 + $0x128] sm:$0xff]
    %v87 = vld [vmem:[#allocation2 + $0x130] sm:$0xff]
    %v88 = vld [vmem:[#allocation2 + $0x138] sm:$0xff]
    %v89 = vld [vmem:[#allocation2 + $0x140] sm:$0xff]
    %v90 = vld [vmem:[#allocation2 + $0x148] sm:$0xff]
    %v91 = vld [vmem:[#allocation2 + $0x150] sm:$0xff]
    %v92 = vld [vmem:[#allocation2 + $0x158] sm:$0xff]
    %v93 = vld [vmem:[#allocation2 + $0x160] sm:$0xff]
    %v94 = vld [vmem:[#allocation2 + $0x168] sm:$0xff]
    %v95 = vld [vmem:[#allocation2 + $0x170] sm:$0xff]
    %v96 = vld [vmem:[#allocation2 + $0x178] sm:$0xff]
    %v97 = vld [vmem:[#allocation2 + $0x180] sm:$0xff]
    %v98 = vld [vmem:[#allocation2 + $0x188] sm:$0xff]
    %v99 = vld [vmem:[#allocation2 + $0x190] sm:$0xff]
    %v100 = vld [vmem:[#allocation2 + $0x198] sm:$0xff]
    %v101 = vld [vmem:[#allocation2 + $0x1a0] sm:$0xff]
    %v102 = vld [vmem:[#allocation2 + $0x1a8] sm:$0xff]
    %v103 = vld [vmem:[#allocation2 + $0x1b0] sm:$0xff]
    %v104 = vld [vmem:[#allocation2 + $0x1b8] sm:$0xff]
    %v105 = vld [vmem:[#allocation2 + $0x1c0] sm:$0xff]
    %v106 = vld [vmem:[#allocation2 + $0x1c8] sm:$0xff]
    %v107 = vld [vmem:[#allocation2 + $0x1d0] sm:$0xff]
    %v108 = vld [vmem:[#allocation2 + $0x1d8] sm:$0xff]
    %v109 = vld [vmem:[#allocation2 + $0x1e0] sm:$0xff]
    %v110 = vld [vmem:[#allocation2 + $0x1e8] sm:$0xff]
    %v111 = vld [vmem:[#allocation2 + $0x1f0] sm:$0xff]
    %v112 = vld [vmem:[#allocation2 + $0x1f8] sm:$0xff]
    %v113 = vld [vmem:[#allocation5] ss:$2 sm:$0xff]
    %s114 = scalar_lea.vmem [#allocation5], 16
    %v115 = vld [vmem:[%s114] ss:$2 sm:$0xff]
    %s116 = scalar_lea.vmem [#allocation5], 32
    %v117 = vld [vmem:[%s116] ss:$2 sm:$0xff]
    %s118 = scalar_lea.vmem [#allocation5], 48
    %v119 = vld [vmem:[%s118] ss:$2 sm:$0xff]
    %s120 = scalar_lea.vmem [#allocation5], 64
    %v121 = vld [vmem:[%s120] ss:$2 sm:$0xff]
    %s122 = scalar_lea.vmem [#allocation5], 80
    %v123 = vld [vmem:[%s122] ss:$2 sm:$0xff]
    %s124 = scalar_lea.vmem [#allocation5], 96
    %v125 = vld [vmem:[%s124] ss:$2 sm:$0xff]
    %s126 = scalar_lea.vmem [#allocation5], 112
    %v127 = vld [vmem:[%s126] ss:$2 sm:$0xff]
    %v136 = vlaneseq
    %v137 = vshrl.u32 %v136, 7
    %v138 = vsub.s32 0, %v137
    %v139 = vrot.slane %v113, %v138
    %v140 = vlaneseq
    %v141 = vshrl.u32 %v140, 7
    %v142 = vsub.s32 1, %v141
    %v143 = vrot.slane %v113, %v142
    %v144 = vlaneseq
    %v145 = vshrl.u32 %v144, 7
    %v146 = vsub.s32 2, %v145
    %v147 = vrot.slane %v113, %v146
    %v148 = vlaneseq
    %v149 = vshrl.u32 %v148, 7
    %v150 = vsub.s32 3, %v149
    %v151 = vrot.slane %v113, %v150
    %v152 = vlaneseq
    %v153 = vshrl.u32 %v152, 7
    %v154 = vsub.s32 4, %v153
    %v155 = vrot.slane %v113, %v154
    %v156 = vlaneseq
    %v157 = vshrl.u32 %v156, 7
    %v158 = vsub.s32 5, %v157
    %v159 = vrot.slane %v113, %v158
    %v160 = vlaneseq
    %v161 = vshrl.u32 %v160, 7
    %v162 = vsub.s32 6, %v161
    %v163 = vrot.slane %v113, %v162
    %v164 = vlaneseq
    %v165 = vshrl.u32 %v164, 7
    %v166 = vsub.s32 7, %v165
    %v167 = vrot.slane %v113, %v166
    %v168 = vlaneseq
    %v169 = vshrl.u32 %v168, 7
    %v170 = vsub.s32 0, %v169
    %v171 = vrot.slane %v115, %v170
    %v172 = vlaneseq
    %v173 = vshrl.u32 %v172, 7
    %v174 = vsub.s32 1, %v173
    %v175 = vrot.slane %v115, %v174
    %v176 = vlaneseq
    %v177 = vshrl.u32 %v176, 7
    %v178 = vsub.s32 2, %v177
    %v179 = vrot.slane %v115, %v178
    %v180 = vlaneseq
    %v181 = vshrl.u32 %v180, 7
    %v182 = vsub.s32 3, %v181
    %v183 = vrot.slane %v115, %v182
    %v184 = vlaneseq
    %v185 = vshrl.u32 %v184, 7
    %v186 = vsub.s32 4, %v185
    %v187 = vrot.slane %v115, %v186
    %v188 = vlaneseq
    %v189 = vshrl.u32 %v188, 7
    %v190 = vsub.s32 5, %v189
    %v191 = vrot.slane %v115, %v190
    %v192 = vlaneseq
    %v193 = vshrl.u32 %v192, 7
    %v194 = vsub.s32 6, %v193
    %v195 = vrot.slane %v115, %v194
    %v196 = vlaneseq
    %v197 = vshrl.u32 %v196, 7
    %v198 = vsub.s32 7, %v197
    %v199 = vrot.slane %v115, %v198
    %v200 = vlaneseq
    %v201 = vshrl.u32 %v200, 7
    %v202 = vsub.s32 0, %v201
    %v203 = vrot.slane %v117, %v202
    %v204 = vlaneseq
    %v205 = vshrl.u32 %v204, 7
    %v206 = vsub.s32 1, %v205
    %v207 = vrot.slane %v117, %v206
    %v208 = vlaneseq
    %v209 = vshrl.u32 %v208, 7
    %v210 = vsub.s32 2, %v209
    %v211 = vrot.slane %v117, %v210
    %v212 = vlaneseq
    %v213 = vshrl.u32 %v212, 7
    %v214 = vsub.s32 3, %v213
    %v215 = vrot.slane %v117, %v214
    %v216 = vlaneseq
    %v217 = vshrl.u32 %v216, 7
    %v218 = vsub.s32 4, %v217
    %v219 = vrot.slane %v117, %v218
    %v220 = vlaneseq
    %v221 = vshrl.u32 %v220, 7
    %v222 = vsub.s32 5, %v221
    %v223 = vrot.slane %v117, %v222
    %v224 = vlaneseq
    %v225 = vshrl.u32 %v224, 7
    %v226 = vsub.s32 6, %v225
    %v227 = vrot.slane %v117, %v226
    %v228 = vlaneseq
    %v229 = vshrl.u32 %v228, 7
    %v230 = vsub.s32 7, %v229
    %v231 = vrot.slane %v117, %v230
    %v232 = vlaneseq
    %v233 = vshrl.u32 %v232, 7
    %v234 = vsub.s32 0, %v233
    %v235 = vrot.slane %v119, %v234
    %v236 = vlaneseq
    %v237 = vshrl.u32 %v236, 7
    %v238 = vsub.s32 1, %v237
    %v239 = vrot.slane %v119, %v238
    %v240 = vlaneseq
    %v241 = vshrl.u32 %v240, 7
    %v242 = vsub.s32 2, %v241
    %v243 = vrot.slane %v119, %v242
    %v244 = vlaneseq
    %v245 = vshrl.u32 %v244, 7
    %v246 = vsub.s32 3, %v245
    %v247 = vrot.slane %v119, %v246
    %v248 = vlaneseq
    %v249 = vshrl.u32 %v248, 7
    %v250 = vsub.s32 4, %v249
    %v251 = vrot.slane %v119, %v250
    %v252 = vlaneseq
    %v253 = vshrl.u32 %v252, 7
    %v254 = vsub.s32 5, %v253
    %v255 = vrot.slane %v119, %v254
    %v256 = vlaneseq
    %v257 = vshrl.u32 %v256, 7
    %v258 = vsub.s32 6, %v257
    %v259 = vrot.slane %v119, %v258
    %v260 = vlaneseq
    %v261 = vshrl.u32 %v260, 7
    %v262 = vsub.s32 7, %v261
    %v263 = vrot.slane %v119, %v262
    %v264 = vlaneseq
    %v265 = vshrl.u32 %v264, 7
    %v266 = vsub.s32 0, %v265
    %v267 = vrot.slane %v121, %v266
    %v268 = vlaneseq
    %v269 = vshrl.u32 %v268, 7
    %v270 = vsub.s32 1, %v269
    %v271 = vrot.slane %v121, %v270
    %v272 = vlaneseq
    %v273 = vshrl.u32 %v272, 7
    %v274 = vsub.s32 2, %v273
    %v275 = vrot.slane %v121, %v274
    %v276 = vlaneseq
    %v277 = vshrl.u32 %v276, 7
    %v278 = vsub.s32 3, %v277
    %v279 = vrot.slane %v121, %v278
    %v280 = vlaneseq
    %v281 = vshrl.u32 %v280, 7
    %v282 = vsub.s32 4, %v281
    %v283 = vrot.slane %v121, %v282
    %v284 = vlaneseq
    %v285 = vshrl.u32 %v284, 7
    %v286 = vsub.s32 5, %v285
    %v287 = vrot.slane %v121, %v286
    %v288 = vlaneseq
    %v289 = vshrl.u32 %v288, 7
    %v290 = vsub.s32 6, %v289
    %v291 = vrot.slane %v121, %v290
    %v292 = vlaneseq
    %v293 = vshrl.u32 %v292, 7
    %v294 = vsub.s32 7, %v293
    %v295 = vrot.slane %v121, %v294
    %v296 = vlaneseq
    %v297 = vshrl.u32 %v296, 7
    %v298 = vsub.s32 0, %v297
    %v299 = vrot.slane %v123, %v298
    %v300 = vlaneseq
    %v301 = vshrl.u32 %v300, 7
    %v302 = vsub.s32 1, %v301
    %v303 = vrot.slane %v123, %v302
    %v304 = vlaneseq
    %v305 = vshrl.u32 %v304, 7
    %v306 = vsub.s32 2, %v305
    %v307 = vrot.slane %v123, %v306
    %v308 = vlaneseq
    %v309 = vshrl.u32 %v308, 7
    %v310 = vsub.s32 3, %v309
    %v311 = vrot.slane %v123, %v310
    %v312 = vlaneseq
    %v313 = vshrl.u32 %v312, 7
    %v314 = vsub.s32 4, %v313
    %v315 = vrot.slane %v123, %v314
    %v316 = vlaneseq
    %v317 = vshrl.u32 %v316, 7
    %v318 = vsub.s32 5, %v317
    %v319 = vrot.slane %v123, %v318
    %v320 = vlaneseq
    %v321 = vshrl.u32 %v320, 7
    %v322 = vsub.s32 6, %v321
    %v323 = vrot.slane %v123, %v322
    %v324 = vlaneseq
    %v325 = vshrl.u32 %v324, 7
    %v326 = vsub.s32 7, %v325
    %v327 = vrot.slane %v123, %v326
    %v328 = vlaneseq
    %v329 = vshrl.u32 %v328, 7
    %v330 = vsub.s32 0, %v329
    %v331 = vrot.slane %v125, %v330
    %v332 = vlaneseq
    %v333 = vshrl.u32 %v332, 7
    %v334 = vsub.s32 1, %v333
    %v335 = vrot.slane %v125, %v334
    %v336 = vlaneseq
    %v337 = vshrl.u32 %v336, 7
    %v338 = vsub.s32 2, %v337
    %v339 = vrot.slane %v125, %v338
    %v340 = vlaneseq
    %v341 = vshrl.u32 %v340, 7
    %v342 = vsub.s32 3, %v341
    %v343 = vrot.slane %v125, %v342
    %v344 = vlaneseq
    %v345 = vshrl.u32 %v344, 7
    %v346 = vsub.s32 4, %v345
    %v347 = vrot.slane %v125, %v346
    %v348 = vlaneseq
    %v349 = vshrl.u32 %v348, 7
    %v350 = vsub.s32 5, %v349
    %v351 = vrot.slane %v125, %v350
    %v352 = vlaneseq
    %v353 = vshrl.u32 %v352, 7
    %v354 = vsub.s32 6, %v353
    %v355 = vrot.slane %v125, %v354
    %v356 = vlaneseq
    %v357 = vshrl.u32 %v356, 7
    %v358 = vsub.s32 7, %v357
    %v359 = vrot.slane %v125, %v358
    %v360 = vlaneseq
    %v361 = vshrl.u32 %v360, 7
    %v362 = vsub.s32 0, %v361
    %v363 = vrot.slane %v127, %v362
    %v364 = vlaneseq
    %v365 = vshrl.u32 %v364, 7
    %v366 = vsub.s32 1, %v365
    %v367 = vrot.slane %v127, %v366
    %v368 = vlaneseq
    %v369 = vshrl.u32 %v368, 7
    %v370 = vsub.s32 2, %v369
    %v371 = vrot.slane %v127, %v370
    %v372 = vlaneseq
    %v373 = vshrl.u32 %v372, 7
    %v374 = vsub.s32 3, %v373
    %v375 = vrot.slane %v127, %v374
    %v376 = vlaneseq
    %v377 = vshrl.u32 %v376, 7
    %v378 = vsub.s32 4, %v377
    %v379 = vrot.slane %v127, %v378
    %v380 = vlaneseq
    %v381 = vshrl.u32 %v380, 7
    %v382 = vsub.s32 5, %v381
    %v383 = vrot.slane %v127, %v382
    %v384 = vlaneseq
    %v385 = vshrl.u32 %v384, 7
    %v386 = vsub.s32 6, %v385
    %v387 = vrot.slane %v127, %v386
    %v388 = vlaneseq
    %v389 = vshrl.u32 %v388, 7
    %v390 = vsub.s32 7, %v389
    %v391 = vrot.slane %v127, %v390
    %v456 = vmul.f32 %v49, %v139
    %v457 = vmul.f32 %v50, %v143
    %v458 = vmul.f32 %v51, %v147
    %v459 = vmul.f32 %v52, %v151
    %v460 = vmul.f32 %v53, %v155
    %v461 = vmul.f32 %v54, %v159
    %v462 = vmul.f32 %v55, %v163
    %v463 = vmul.f32 %v56, %v167
    %v464 = vmul.f32 %v57, %v171
    %v465 = vmul.f32 %v58, %v175
    %v466 = vmul.f32 %v59, %v179
    %v467 = vmul.f32 %v60, %v183
    %v468 = vmul.f32 %v61, %v187
    %v469 = vmul.f32 %v62, %v191
    %v470 = vmul.f32 %v63, %v195
    %v471 = vmul.f32 %v64, %v199
    %v472 = vmul.f32 %v65, %v203
    %v473 = vmul.f32 %v66, %v207
    %v474 = vmul.f32 %v67, %v211
    %v475 = vmul.f32 %v68, %v215
    %v476 = vmul.f32 %v69, %v219
    %v477 = vmul.f32 %v70, %v223
    %v478 = vmul.f32 %v71, %v227
    %v479 = vmul.f32 %v72, %v231
    %v480 = vmul.f32 %v73, %v235
    %v481 = vmul.f32 %v74, %v239
    %v482 = vmul.f32 %v75, %v243
    %v483 = vmul.f32 %v76, %v247
    %v484 = vmul.f32 %v77, %v251
    %v485 = vmul.f32 %v78, %v255
    %v486 = vmul.f32 %v79, %v259
    %v487 = vmul.f32 %v80, %v263
    %v488 = vmul.f32 %v81, %v267
    %v489 = vmul.f32 %v82, %v271
    %v490 = vmul.f32 %v83, %v275
    %v491 = vmul.f32 %v84, %v279
    %v492 = vmul.f32 %v85, %v283
    %v493 = vmul.f32 %v86, %v287
    %v494 = vmul.f32 %v87, %v291
    %v495 = vmul.f32 %v88, %v295
    %v496 = vmul.f32 %v89, %v299
    %v497 = vmul.f32 %v90, %v303
    %v498 = vmul.f32 %v91, %v307
    %v499 = vmul.f32 %v92, %v311
    %v500 = vmul.f32 %v93, %v315
    %v501 = vmul.f32 %v94, %v319
    %v502 = vmul.f32 %v95, %v323
    %v503 = vmul.f32 %v96, %v327
    %v504 = vmul.f32 %v97, %v331
    %v505 = vmul.f32 %v98, %v335
    %v506 = vmul.f32 %v99, %v339
    %v507 = vmul.f32 %v100, %v343
    %v508 = vmul.f32 %v101, %v347
    %v509 = vmul.f32 %v102, %v351
    %v510 = vmul.f32 %v103, %v355
    %v511 = vmul.f32 %v104, %v359
    %v512 = vmul.f32 %v105, %v363
    %v513 = vmul.f32 %v106, %v367
    %v514 = vmul.f32 %v107, %v371
    %v515 = vmul.f32 %v108, %v375
    %v516 = vmul.f32 %v109, %v379
    %v517 = vmul.f32 %v110, %v383
    %v518 = vmul.f32 %v111, %v387
    %v519 = vmul.f32 %v112, %v391
    %v520 = vadd.f32 %v456, %v457
    %v521 = vadd.f32 %v520, %v458
    %v522 = vadd.f32 %v521, %v459
    %v523 = vadd.f32 %v522, %v460
    %v524 = vadd.f32 %v523, %v461
    %v525 = vadd.f32 %v524, %v462
    %v526 = vadd.f32 %v525, %v463
    %v527 = vadd.f32 %v526, %v464
    %v528 = vadd.f32 %v527, %v465
    %v529 = vadd.f32 %v528, %v466
    %v530 = vadd.f32 %v529, %v467
    %v531 = vadd.f32 %v530, %v468
    %v532 = vadd.f32 %v531, %v469
    %v533 = vadd.f32 %v532, %v470
    %v534 = vadd.f32 %v533, %v471
    %v535 = vadd.f32 %v534, %v472
    %v536 = vadd.f32 %v535, %v473
    %v537 = vadd.f32 %v536, %v474
    %v538 = vadd.f32 %v537, %v475
    %v539 = vadd.f32 %v538, %v476
    %v540 = vadd.f32 %v539, %v477
    %v541 = vadd.f32 %v540, %v478
    %v542 = vadd.f32 %v541, %v479
    %v543 = vadd.f32 %v542, %v480
    %v544 = vadd.f32 %v543, %v481
    %v545 = vadd.f32 %v544, %v482
    %v546 = vadd.f32 %v545, %v483
    %v547 = vadd.f32 %v546, %v484
    %v548 = vadd.f32 %v547, %v485
    %v549 = vadd.f32 %v548, %v486
    %v550 = vadd.f32 %v549, %v487
    %v551 = vadd.f32 %v550, %v488
    %v552 = vadd.f32 %v551, %v489
    %v553 = vadd.f32 %v552, %v490
    %v554 = vadd.f32 %v553, %v491
    %v555 = vadd.f32 %v554, %v492
    %v556 = vadd.f32 %v555, %v493
    %v557 = vadd.f32 %v556, %v494
    %v558 = vadd.f32 %v557, %v495
    %v559 = vadd.f32 %v558, %v496
    %v560 = vadd.f32 %v559, %v497
    %v561 = vadd.f32 %v560, %v498
    %v562 = vadd.f32 %v561, %v499
    %v563 = vadd.f32 %v562, %v500
    %v564 = vadd.f32 %v563, %v501
    %v565 = vadd.f32 %v564, %v502
    %v566 = vadd.f32 %v565, %v503
    %v567 = vadd.f32 %v566, %v504
    %v568 = vadd.f32 %v567, %v505
    %v569 = vadd.f32 %v568, %v506
    %v570 = vadd.f32 %v569, %v507
    %v571 = vadd.f32 %v570, %v508
    %v572 = vadd.f32 %v571, %v509
    %v573 = vadd.f32 %v572, %v510
    %v574 = vadd.f32 %v573, %v511
    %v575 = vadd.f32 %v574, %v512
    %v576 = vadd.f32 %v575, %v513
    %v577 = vadd.f32 %v576, %v514
    %v578 = vadd.f32 %v577, %v515
    %v579 = vadd.f32 %v578, %v516
    %v580 = vadd.f32 %v579, %v517
    %v581 = vadd.f32 %v580, %v518
    %v582 = vadd.f32 %v581, %v519
    %583 = vadd.xlane.f32.xlu0 %v582
    %v584 = vpop.xlane.xlu0 %583
    %v585 = vadd.f32 %v584, 0.0
    %s586 = scalar_lea.vmem [#allocation5], 1
    %v587 = vld [vmem:[%s586] ss:$2 sm:$0xff]
    %s588 = scalar_lea.vmem [#allocation5], 17
    %v589 = vld [vmem:[%s588] ss:$2 sm:$0xff]
    %s590 = scalar_lea.vmem [#allocation5], 33
    %v591 = vld [vmem:[%s590] ss:$2 sm:$0xff]
    %s592 = scalar_lea.vmem [#allocation5], 49
    %v593 = vld [vmem:[%s592] ss:$2 sm:$0xff]
    %s594 = scalar_lea.vmem [#allocation5], 65
    %v595 = vld [vmem:[%s594] ss:$2 sm:$0xff]
    %s596 = scalar_lea.vmem [#allocation5], 81
    %v597 = vld [vmem:[%s596] ss:$2 sm:$0xff]
    %s598 = scalar_lea.vmem [#allocation5], 97
    %v599 = vld [vmem:[%s598] ss:$2 sm:$0xff]
    %s600 = scalar_lea.vmem [#allocation5], 113
    %v601 = vld [vmem:[%s600] ss:$2 sm:$0xff]
    %v610 = vlaneseq
    %v611 = vshrl.u32 %v610, 7
    %v612 = vsub.s32 0, %v611
    %v613 = vrot.slane %v587, %v612
    %v614 = vlaneseq
    %v615 = vshrl.u32 %v614, 7
    %v616 = vsub.s32 1, %v615
    %v617 = vrot.slane %v587, %v616
    %v618 = vlaneseq
    %v619 = vshrl.u32 %v618, 7
    %v620 = vsub.s32 2, %v619
    %v621 = vrot.slane %v587, %v620
    %v622 = vlaneseq
    %v623 = vshrl.u32 %v622, 7
    %v624 = vsub.s32 3, %v623
    %v625 = vrot.slane %v587, %v624
    %v626 = vlaneseq
    %v627 = vshrl.u32 %v626, 7
    %v628 = vsub.s32 4, %v627
    %v629 = vrot.slane %v587, %v628
    %v630 = vlaneseq
    %v631 = vshrl.u32 %v630, 7
    %v632 = vsub.s32 5, %v631
    %v633 = vrot.slane %v587, %v632
    %v634 = vlaneseq
    %v635 = vshrl.u32 %v634, 7
    %v636 = vsub.s32 6, %v635
    %v637 = vrot.slane %v587, %v636
    %v638 = vlaneseq
    %v639 = vshrl.u32 %v638, 7
    %v640 = vsub.s32 7, %v639
    %v641 = vrot.slane %v587, %v640
    %v642 = vlaneseq
    %v643 = vshrl.u32 %v642, 7
    %v644 = vsub.s32 0, %v643
    %v645 = vrot.slane %v589, %v644
    %v646 = vlaneseq
    %v647 = vshrl.u32 %v646, 7
    %v648 = vsub.s32 1, %v647
    %v649 = vrot.slane %v589, %v648
    %v650 = vlaneseq
    %v651 = vshrl.u32 %v650, 7
    %v652 = vsub.s32 2, %v651
    %v653 = vrot.slane %v589, %v652
    %v654 = vlaneseq
    %v655 = vshrl.u32 %v654, 7
    %v656 = vsub.s32 3, %v655
    %v657 = vrot.slane %v589, %v656
    %v658 = vlaneseq
    %v659 = vshrl.u32 %v658, 7
    %v660 = vsub.s32 4, %v659
    %v661 = vrot.slane %v589, %v660
    %v662 = vlaneseq
    %v663 = vshrl.u32 %v662, 7
    %v664 = vsub.s32 5, %v663
    %v665 = vrot.slane %v589, %v664
    %v666 = vlaneseq
    %v667 = vshrl.u32 %v666, 7
    %v668 = vsub.s32 6, %v667
    %v669 = vrot.slane %v589, %v668
    %v670 = vlaneseq
    %v671 = vshrl.u32 %v670, 7
    %v672 = vsub.s32 7, %v671
    %v673 = vrot.slane %v589, %v672
    %v674 = vlaneseq
    %v675 = vshrl.u32 %v674, 7
    %v676 = vsub.s32 0, %v675
    %v677 = vrot.slane %v591, %v676
    %v678 = vlaneseq
    %v679 = vshrl.u32 %v678, 7
    %v680 = vsub.s32 1, %v679
    %v681 = vrot.slane %v591, %v680
    %v682 = vlaneseq
    %v683 = vshrl.u32 %v682, 7
    %v684 = vsub.s32 2, %v683
    %v685 = vrot.slane %v591, %v684
    %v686 = vlaneseq
    %v687 = vshrl.u32 %v686, 7
    %v688 = vsub.s32 3, %v687
    %v689 = vrot.slane %v591, %v688
    %v690 = vlaneseq
    %v691 = vshrl.u32 %v690, 7
    %v692 = vsub.s32 4, %v691
    %v693 = vrot.slane %v591, %v692
    %v694 = vlaneseq
    %v695 = vshrl.u32 %v694, 7
    %v696 = vsub.s32 5, %v695
    %v697 = vrot.slane %v591, %v696
    %v698 = vlaneseq
    %v699 = vshrl.u32 %v698, 7
    %v700 = vsub.s32 6, %v699
    %v701 = vrot.slane %v591, %v700
    %v702 = vlaneseq
    %v703 = vshrl.u32 %v702, 7
    %v704 = vsub.s32 7, %v703
    %v705 = vrot.slane %v591, %v704
    %v706 = vlaneseq
    %v707 = vshrl.u32 %v706, 7
    %v708 = vsub.s32 0, %v707
    %v709 = vrot.slane %v593, %v708
    %v710 = vlaneseq
    %v711 = vshrl.u32 %v710, 7
    %v712 = vsub.s32 1, %v711
    %v713 = vrot.slane %v593, %v712
    %v714 = vlaneseq
    %v715 = vshrl.u32 %v714, 7
    %v716 = vsub.s32 2, %v715
    %v717 = vrot.slane %v593, %v716
    %v718 = vlaneseq
    %v719 = vshrl.u32 %v718, 7
    %v720 = vsub.s32 3, %v719
    %v721 = vrot.slane %v593, %v720
    %v722 = vlaneseq
    %v723 = vshrl.u32 %v722, 7
    %v724 = vsub.s32 4, %v723
    %v725 = vrot.slane %v593, %v724
    %v726 = vlaneseq
    %v727 = vshrl.u32 %v726, 7
    %v728 = vsub.s32 5, %v727
    %v729 = vrot.slane %v593, %v728
    %v730 = vlaneseq
    %v731 = vshrl.u32 %v730, 7
    %v732 = vsub.s32 6, %v731
    %v733 = vrot.slane %v593, %v732
    %v734 = vlaneseq
    %v735 = vshrl.u32 %v734, 7
    %v736 = vsub.s32 7, %v735
    %v737 = vrot.slane %v593, %v736
    %v738 = vlaneseq
    %v739 = vshrl.u32 %v738, 7
    %v740 = vsub.s32 0, %v739
    %v741 = vrot.slane %v595, %v740
    %v742 = vlaneseq
    %v743 = vshrl.u32 %v742, 7
    %v744 = vsub.s32 1, %v743
    %v745 = vrot.slane %v595, %v744
    %v746 = vlaneseq
    %v747 = vshrl.u32 %v746, 7
    %v748 = vsub.s32 2, %v747
    %v749 = vrot.slane %v595, %v748
    %v750 = vlaneseq
    %v751 = vshrl.u32 %v750, 7
    %v752 = vsub.s32 3, %v751
    %v753 = vrot.slane %v595, %v752
    %v754 = vlaneseq
    %v755 = vshrl.u32 %v754, 7
    %v756 = vsub.s32 4, %v755
    %v757 = vrot.slane %v595, %v756
    %v758 = vlaneseq
    %v759 = vshrl.u32 %v758, 7
    %v760 = vsub.s32 5, %v759
    %v761 = vrot.slane %v595, %v760
    %v762 = vlaneseq
    %v763 = vshrl.u32 %v762, 7
    %v764 = vsub.s32 6, %v763
    %v765 = vrot.slane %v595, %v764
    %v766 = vlaneseq
    %v767 = vshrl.u32 %v766, 7
    %v768 = vsub.s32 7, %v767
    %v769 = vrot.slane %v595, %v768
    %v770 = vlaneseq
    %v771 = vshrl.u32 %v770, 7
    %v772 = vsub.s32 0, %v771
    %v773 = vrot.slane %v597, %v772
    %v774 = vlaneseq
    %v775 = vshrl.u32 %v774, 7
    %v776 = vsub.s32 1, %v775
    %v777 = vrot.slane %v597, %v776
    %v778 = vlaneseq
    %v779 = vshrl.u32 %v778, 7
    %v780 = vsub.s32 2, %v779
    %v781 = vrot.slane %v597, %v780
    %v782 = vlaneseq
    %v783 = vshrl.u32 %v782, 7
    %v784 = vsub.s32 3, %v783
    %v785 = vrot.slane %v597, %v784
    %v786 = vlaneseq
    %v787 = vshrl.u32 %v786, 7
    %v788 = vsub.s32 4, %v787
    %v789 = vrot.slane %v597, %v788
    %v790 = vlaneseq
    %v791 = vshrl.u32 %v790, 7
    %v792 = vsub.s32 5, %v791
    %v793 = vrot.slane %v597, %v792
    %v794 = vlaneseq
    %v795 = vshrl.u32 %v794, 7
    %v796 = vsub.s32 6, %v795
    %v797 = vrot.slane %v597, %v796
    %v798 = vlaneseq
    %v799 = vshrl.u32 %v798, 7
    %v800 = vsub.s32 7, %v799
    %v801 = vrot.slane %v597, %v800
    %v802 = vlaneseq
    %v803 = vshrl.u32 %v802, 7
    %v804 = vsub.s32 0, %v803
    %v805 = vrot.slane %v599, %v804
    %v806 = vlaneseq
    %v807 = vshrl.u32 %v806, 7
    %v808 = vsub.s32 1, %v807
    %v809 = vrot.slane %v599, %v808
    %v810 = vlaneseq
    %v811 = vshrl.u32 %v810, 7
    %v812 = vsub.s32 2, %v811
    %v813 = vrot.slane %v599, %v812
    %v814 = vlaneseq
    %v815 = vshrl.u32 %v814, 7
    %v816 = vsub.s32 3, %v815
    %v817 = vrot.slane %v599, %v816
    %v818 = vlaneseq
    %v819 = vshrl.u32 %v818, 7
    %v820 = vsub.s32 4, %v819
    %v821 = vrot.slane %v599, %v820
    %v822 = vlaneseq
    %v823 = vshrl.u32 %v822, 7
    %v824 = vsub.s32 5, %v823
    %v825 = vrot.slane %v599, %v824
    %v826 = vlaneseq
    %v827 = vshrl.u32 %v826, 7
    %v828 = vsub.s32 6, %v827
    %v829 = vrot.slane %v599, %v828
    %v830 = vlaneseq
    %v831 = vshrl.u32 %v830, 7
    %v832 = vsub.s32 7, %v831
    %v833 = vrot.slane %v599, %v832
    %v834 = vlaneseq
    %v835 = vshrl.u32 %v834, 7
    %v836 = vsub.s32 0, %v835
    %v837 = vrot.slane %v601, %v836
    %v838 = vlaneseq
    %v839 = vshrl.u32 %v838, 7
    %v840 = vsub.s32 1, %v839
    %v841 = vrot.slane %v601, %v840
    %v842 = vlaneseq
    %v843 = vshrl.u32 %v842, 7
    %v844 = vsub.s32 2, %v843
    %v845 = vrot.slane %v601, %v844
    %v846 = vlaneseq
    %v847 = vshrl.u32 %v846, 7
    %v848 = vsub.s32 3, %v847
    %v849 = vrot.slane %v601, %v848
    %v850 = vlaneseq
    %v851 = vshrl.u32 %v850, 7
    %v852 = vsub.s32 4, %v851
    %v853 = vrot.slane %v601, %v852
    %v854 = vlaneseq
    %v855 = vshrl.u32 %v854, 7
    %v856 = vsub.s32 5, %v855
    %v857 = vrot.slane %v601, %v856
    %v858 = vlaneseq
    %v859 = vshrl.u32 %v858, 7
    %v860 = vsub.s32 6, %v859
    %v861 = vrot.slane %v601, %v860
    %v862 = vlaneseq
    %v863 = vshrl.u32 %v862, 7
    %v864 = vsub.s32 7, %v863
    %v865 = vrot.slane %v601, %v864
    %v930 = vmul.f32 %v49, %v613
    %v931 = vmul.f32 %v50, %v617
    %v932 = vmul.f32 %v51, %v621
    %v933 = vmul.f32 %v52, %v625
    %v934 = vmul.f32 %v53, %v629
    %v935 = vmul.f32 %v54, %v633
    %v936 = vmul.f32 %v55, %v637
    %v937 = vmul.f32 %v56, %v641
    %v938 = vmul.f32 %v57, %v645
    %v939 = vmul.f32 %v58, %v649
    %v940 = vmul.f32 %v59, %v653
    %v941 = vmul.f32 %v60, %v657
    %v942 = vmul.f32 %v61, %v661
    %v943 = vmul.f32 %v62, %v665
    %v944 = vmul.f32 %v63, %v669
    %v945 = vmul.f32 %v64, %v673
    %v946 = vmul.f32 %v65, %v677
    %v947 = vmul.f32 %v66, %v681
    %v948 = vmul.f32 %v67, %v685
    %v949 = vmul.f32 %v68, %v689
    %v950 = vmul.f32 %v69, %v693
    %v951 = vmul.f32 %v70, %v697
    %v952 = vmul.f32 %v71, %v701
    %v953 = vmul.f32 %v72, %v705
    %v954 = vmul.f32 %v73, %v709
    %v955 = vmul.f32 %v74, %v713
    %v956 = vmul.f32 %v75, %v717
    %v957 = vmul.f32 %v76, %v721
    %v958 = vmul.f32 %v77, %v725
    %v959 = vmul.f32 %v78, %v729
    %v960 = vmul.f32 %v79, %v733
    %v961 = vmul.f32 %v80, %v737
    %v962 = vmul.f32 %v81, %v741
    %v963 = vmul.f32 %v82, %v745
    %v964 = vmul.f32 %v83, %v749
    %v965 = vmul.f32 %v84, %v753
    %v966 = vmul.f32 %v85, %v757
    %v967 = vmul.f32 %v86, %v761
    %v968 = vmul.f32 %v87, %v765
    %v969 = vmul.f32 %v88, %v769
    %v970 = vmul.f32 %v89, %v773
    %v971 = vmul.f32 %v90, %v777
    %v972 = vmul.f32 %v91, %v781
    %v973 = vmul.f32 %v92, %v785
    %v974 = vmul.f32 %v93, %v789
    %v975 = vmul.f32 %v94, %v793
    %v976 = vmul.f32 %v95, %v797
    %v977 = vmul.f32 %v96, %v801
    %v978 = vmul.f32 %v97, %v805
    %v979 = vmul.f32 %v98, %v809
    %v980 = vmul.f32 %v99, %v813
    %v981 = vmul.f32 %v100, %v817
    %v982 = vmul.f32 %v101, %v821
    %v983 = vmul.f32 %v102, %v825
    %v984 = vmul.f32 %v103, %v829
    %v985 = vmul.f32 %v104, %v833
    %v986 = vmul.f32 %v105, %v837
    %v987 = vmul.f32 %v106, %v841
    %v988 = vmul.f32 %v107, %v845
    %v989 = vmul.f32 %v108, %v849
    %v990 = vmul.f32 %v109, %v853
    %v991 = vmul.f32 %v110, %v857
    %v992 = vmul.f32 %v111, %v861
    %v993 = vmul.f32 %v112, %v865
    %v994 = vadd.f32 %v930, %v931
    %v995 = vadd.f32 %v994, %v932
    %v996 = vadd.f32 %v995, %v933
    %v997 = vadd.f32 %v996, %v934
    %v998 = vadd.f32 %v997, %v935
    %v999 = vadd.f32 %v998, %v936
    %v1000 = vadd.f32 %v999, %v937
    %v1001 = vadd.f32 %v1000, %v938
    %v1002 = vadd.f32 %v1001, %v939
    %v1003 = vadd.f32 %v1002, %v940
    %v1004 = vadd.f32 %v1003, %v941
    %v1005 = vadd.f32 %v1004, %v942
    %v1006 = vadd.f32 %v1005, %v943
    %v1007 = vadd.f32 %v1006, %v944
    %v1008 = vadd.f32 %v1007, %v945
    %v1009 = vadd.f32 %v1008, %v946
    %v1010 = vadd.f32 %v1009, %v947
    %v1011 = vadd.f32 %v1010, %v948
    %v1012 = vadd.f32 %v1011, %v949
    %v1013 = vadd.f32 %v1012, %v950
    %v1014 = vadd.f32 %v1013, %v951
    %v1015 = vadd.f32 %v1014, %v952
    %v1016 = vadd.f32 %v1015, %v953
    %v1017 = vadd.f32 %v1016, %v954
    %v1018 = vadd.f32 %v1017, %v955
    %v1019 = vadd.f32 %v1018, %v956
    %v1020 = vadd.f32 %v1019, %v957
    %v1021 = vadd.f32 %v1020, %v958
    %v1022 = vadd.f32 %v1021, %v959
    %v1023 = vadd.f32 %v1022, %v960
    %v1024 = vadd.f32 %v1023, %v961
    %v1025 = vadd.f32 %v1024, %v962
    %v1026 = vadd.f32 %v1025, %v963
    %v1027 = vadd.f32 %v1026, %v964
    %v1028 = vadd.f32 %v1027, %v965
    %v1029 = vadd.f32 %v1028, %v966
    %v1030 = vadd.f32 %v1029, %v967
    %v1031 = vadd.f32 %v1030, %v968
    %v1032 = vadd.f32 %v1031, %v969
    %v1033 = vadd.f32 %v1032, %v970
    %v1034 = vadd.f32 %v1033, %v971
    %v1035 = vadd.f32 %v1034, %v972
    %v1036 = vadd.f32 %v1035, %v973
    %v1037 = vadd.f32 %v1036, %v974
    %v1038 = vadd.f32 %v1037, %v975
    %v1039 = vadd.f32 %v1038, %v976
    %v1040 = vadd.f32 %v1039, %v977
    %v1041 = vadd.f32 %v1040, %v978
    %v1042 = vadd.f32 %v1041, %v979
    %v1043 = vadd.f32 %v1042, %v980
    %v1044 = vadd.f32 %v1043, %v981
    %v1045 = vadd.f32 %v1044, %v982
    %v1046 = vadd.f32 %v1045, %v983
    %v1047 = vadd.f32 %v1046, %v984
    %v1048 = vadd.f32 %v1047, %v985
    %v1049 = vadd.f32 %v1048, %v986
    %v1050 = vadd.f32 %v1049, %v987
    %v1051 = vadd.f32 %v1050, %v988
    %v1052 = vadd.f32 %v1051, %v989
    %v1053 = vadd.f32 %v1052, %v990
    %v1054 = vadd.f32 %v1053, %v991
    %v1055 = vadd.f32 %v1054, %v992
    %v1056 = vadd.f32 %v1055, %v993
    %1057 = vadd.xlane.f32.xlu0 %v1056
    %v1058 = vpop.xlane.xlu0 %1057
    %v1059 = vadd.f32 %v1058, 0.0
    %v1060 = vld [vmem:[#allocation2 + $0x200] sm:$0xff]
    %v1061 = vld [vmem:[#allocation2 + $0x208] sm:$0xff]
    %v1062 = vld [vmem:[#allocation2 + $0x210] sm:$0xff]
    %v1063 = vld [vmem:[#allocation2 + $0x218] sm:$0xff]
    %v1064 = vld [vmem:[#allocation2 + $0x220] sm:$0xff]
    %v1065 = vld [vmem:[#allocation2 + $0x228] sm:$0xff]
    %v1066 = vld [vmem:[#allocation2 + $0x230] sm:$0xff]
    %v1067 = vld [vmem:[#allocation2 + $0x238] sm:$0xff]
    %v1068 = vld [vmem:[#allocation2 + $0x240] sm:$0xff]
    %v1069 = vld [vmem:[#allocation2 + $0x248] sm:$0xff]
    %v1070 = vld [vmem:[#allocation2 + $0x250] sm:$0xff]
    %v1071 = vld [vmem:[#allocation2 + $0x258] sm:$0xff]
    %v1072 = vld [vmem:[#allocation2 + $0x260] sm:$0xff]
    %v1073 = vld [vmem:[#allocation2 + $0x268] sm:$0xff]
    %v1074 = vld [vmem:[#allocation2 + $0x270] sm:$0xff]
    %v1075 = vld [vmem:[#allocation2 + $0x278] sm:$0xff]
    %v1076 = vld [vmem:[#allocation2 + $0x280] sm:$0xff]
    %v1077 = vld [vmem:[#allocation2 + $0x288] sm:$0xff]
    %v1078 = vld [vmem:[#allocation2 + $0x290] sm:$0xff]
    %v1079 = vld [vmem:[#allocation2 + $0x298] sm:$0xff]
    %v1080 = vld [vmem:[#allocation2 + $0x2a0] sm:$0xff]
    %v1081 = vld [vmem:[#allocation2 + $0x2a8] sm:$0xff]
    %v1082 = vld [vmem:[#allocation2 + $0x2b0] sm:$0xff]
    %v1083 = vld [vmem:[#allocation2 + $0x2b8] sm:$0xff]
    %v1084 = vld [vmem:[#allocation2 + $0x2c0] sm:$0xff]
    %v1085 = vld [vmem:[#allocation2 + $0x2c8] sm:$0xff]
    %v1086 = vld [vmem:[#allocation2 + $0x2d0] sm:$0xff]
    %v1087 = vld [vmem:[#allocation2 + $0x2d8] sm:$0xff]
    %v1088 = vld [vmem:[#allocation2 + $0x2e0] sm:$0xff]
    %v1089 = vld [vmem:[#allocation2 + $0x2e8] sm:$0xff]
    %v1090 = vld [vmem:[#allocation2 + $0x2f0] sm:$0xff]
    %v1091 = vld [vmem:[#allocation2 + $0x2f8] sm:$0xff]
    %v1092 = vld [vmem:[#allocation2 + $0x300] sm:$0xff]
    %v1093 = vld [vmem:[#allocation2 + $0x308] sm:$0xff]
    %v1094 = vld [vmem:[#allocation2 + $0x310] sm:$0xff]
    %v1095 = vld [vmem:[#allocation2 + $0x318] sm:$0xff]
    %v1096 = vld [vmem:[#allocation2 + $0x320] sm:$0xff]
    %v1097 = vld [vmem:[#allocation2 + $0x328] sm:$0xff]
    %v1098 = vld [vmem:[#allocation2 + $0x330] sm:$0xff]
    %v1099 = vld [vmem:[#allocation2 + $0x338] sm:$0xff]
    %v1100 = vld [vmem:[#allocation2 + $0x340] sm:$0xff]
    %v1101 = vld [vmem:[#allocation2 + $0x348] sm:$0xff]
    %v1102 = vld [vmem:[#allocation2 + $0x350] sm:$0xff]
    %v1103 = vld [vmem:[#allocation2 + $0x358] sm:$0xff]
    %v1104 = vld [vmem:[#allocation2 + $0x360] sm:$0xff]
    %v1105 = vld [vmem:[#allocation2 + $0x368] sm:$0xff]
    %v1106 = vld [vmem:[#allocation2 + $0x370] sm:$0xff]
    %v1107 = vld [vmem:[#allocation2 + $0x378] sm:$0xff]
    %v1108 = vld [vmem:[#allocation2 + $0x380] sm:$0xff]
    %v1109 = vld [vmem:[#allocation2 + $0x388] sm:$0xff]
    %v1110 = vld [vmem:[#allocation2 + $0x390] sm:$0xff]
    %v1111 = vld [vmem:[#allocation2 + $0x398] sm:$0xff]
    %v1112 = vld [vmem:[#allocation2 + $0x3a0] sm:$0xff]
    %v1113 = vld [vmem:[#allocation2 + $0x3a8] sm:$0xff]
    %v1114 = vld [vmem:[#allocation2 + $0x3b0] sm:$0xff]
    %v1115 = vld [vmem:[#allocation2 + $0x3b8] sm:$0xff]
    %v1116 = vld [vmem:[#allocation2 + $0x3c0] sm:$0xff]
    %v1117 = vld [vmem:[#allocation2 + $0x3c8] sm:$0xff]
    %v1118 = vld [vmem:[#allocation2 + $0x3d0] sm:$0xff]
    %v1119 = vld [vmem:[#allocation2 + $0x3d8] sm:$0xff]
    %v1120 = vld [vmem:[#allocation2 + $0x3e0] sm:$0xff]
    %v1121 = vld [vmem:[#allocation2 + $0x3e8] sm:$0xff]
    %v1122 = vld [vmem:[#allocation2 + $0x3f0] sm:$0xff]
    %v1123 = vld [vmem:[#allocation2 + $0x3f8] sm:$0xff]
    %s1124 = scalar_lea.vmem [#allocation5], 128
    %v1125 = vld [vmem:[%s1124] ss:$2 sm:$0xff]
    %s1126 = scalar_lea.vmem [#allocation5], 144
    %v1127 = vld [vmem:[%s1126] ss:$2 sm:$0xff]
    %s1128 = scalar_lea.vmem [#allocation5], 160
    %v1129 = vld [vmem:[%s1128] ss:$2 sm:$0xff]
    %s1130 = scalar_lea.vmem [#allocation5], 176
    %v1131 = vld [vmem:[%s1130] ss:$2 sm:$0xff]
    %s1132 = scalar_lea.vmem [#allocation5], 192
    %v1133 = vld [vmem:[%s1132] ss:$2 sm:$0xff]
    %s1134 = scalar_lea.vmem [#allocation5], 208
    %v1135 = vld [vmem:[%s1134] ss:$2 sm:$0xff]
    %s1136 = scalar_lea.vmem [#allocation5], 224
    %v1137 = vld [vmem:[%s1136] ss:$2 sm:$0xff]
    %s1138 = scalar_lea.vmem [#allocation5], 240
    %v1139 = vld [vmem:[%s1138] ss:$2 sm:$0xff]
    %v1148 = vlaneseq
    %v1149 = vshrl.u32 %v1148, 7
    %v1150 = vsub.s32 0, %v1149
    %v1151 = vrot.slane %v1125, %v1150
    %v1152 = vlaneseq
    %v1153 = vshrl.u32 %v1152, 7
    %v1154 = vsub.s32 1, %v1153
    %v1155 = vrot.slane %v1125, %v1154
    %v1156 = vlaneseq
    %v1157 = vshrl.u32 %v1156, 7
    %v1158 = vsub.s32 2, %v1157
    %v1159 = vrot.slane %v1125, %v1158
    %v1160 = vlaneseq
    %v1161 = vshrl.u32 %v1160, 7
    %v1162 = vsub.s32 3, %v1161
    %v1163 = vrot.slane %v1125, %v1162
    %v1164 = vlaneseq
    %v1165 = vshrl.u32 %v1164, 7
    %v1166 = vsub.s32 4, %v1165
    %v1167 = vrot.slane %v1125, %v1166
    %v1168 = vlaneseq
    %v1169 = vshrl.u32 %v1168, 7
    %v1170 = vsub.s32 5, %v1169
    %v1171 = vrot.slane %v1125, %v1170
    %v1172 = vlaneseq
    %v1173 = vshrl.u32 %v1172, 7
    %v1174 = vsub.s32 6, %v1173
    %v1175 = vrot.slane %v1125, %v1174
    %v1176 = vlaneseq
    %v1177 = vshrl.u32 %v1176, 7
    %v1178 = vsub.s32 7, %v1177
    %v1179 = vrot.slane %v1125, %v1178
    %v1180 = vlaneseq
    %v1181 = vshrl.u32 %v1180, 7
    %v1182 = vsub.s32 0, %v1181
    %v1183 = vrot.slane %v1127, %v1182
    %v1184 = vlaneseq
    %v1185 = vshrl.u32 %v1184, 7
    %v1186 = vsub.s32 1, %v1185
    %v1187 = vrot.slane %v1127, %v1186
    %v1188 = vlaneseq
    %v1189 = vshrl.u32 %v1188, 7
    %v1190 = vsub.s32 2, %v1189
    %v1191 = vrot.slane %v1127, %v1190
    %v1192 = vlaneseq
    %v1193 = vshrl.u32 %v1192, 7
    %v1194 = vsub.s32 3, %v1193
    %v1195 = vrot.slane %v1127, %v1194
    %v1196 = vlaneseq
    %v1197 = vshrl.u32 %v1196, 7
    %v1198 = vsub.s32 4, %v1197
    %v1199 = vrot.slane %v1127, %v1198
    %v1200 = vlaneseq
    %v1201 = vshrl.u32 %v1200, 7
    %v1202 = vsub.s32 5, %v1201
    %v1203 = vrot.slane %v1127, %v1202
    %v1204 = vlaneseq
    %v1205 = vshrl.u32 %v1204, 7
    %v1206 = vsub.s32 6, %v1205
    %v1207 = vrot.slane %v1127, %v1206
    %v1208 = vlaneseq
    %v1209 = vshrl.u32 %v1208, 7
    %v1210 = vsub.s32 7, %v1209
    %v1211 = vrot.slane %v1127, %v1210
    %v1212 = vlaneseq
    %v1213 = vshrl.u32 %v1212, 7
    %v1214 = vsub.s32 0, %v1213
    %v1215 = vrot.slane %v1129, %v1214
    %v1216 = vlaneseq
    %v1217 = vshrl.u32 %v1216, 7
    %v1218 = vsub.s32 1, %v1217
    %v1219 = vrot.slane %v1129, %v1218
    %v1220 = vlaneseq
    %v1221 = vshrl.u32 %v1220, 7
    %v1222 = vsub.s32 2, %v1221
    %v1223 = vrot.slane %v1129, %v1222
    %v1224 = vlaneseq
    %v1225 = vshrl.u32 %v1224, 7
    %v1226 = vsub.s32 3, %v1225
    %v1227 = vrot.slane %v1129, %v1226
    %v1228 = vlaneseq
    %v1229 = vshrl.u32 %v1228, 7
    %v1230 = vsub.s32 4, %v1229
    %v1231 = vrot.slane %v1129, %v1230
    %v1232 = vlaneseq
    %v1233 = vshrl.u32 %v1232, 7
    %v1234 = vsub.s32 5, %v1233
    %v1235 = vrot.slane %v1129, %v1234
    %v1236 = vlaneseq
    %v1237 = vshrl.u32 %v1236, 7
    %v1238 = vsub.s32 6, %v1237
    %v1239 = vrot.slane %v1129, %v1238
    %v1240 = vlaneseq
    %v1241 = vshrl.u32 %v1240, 7
    %v1242 = vsub.s32 7, %v1241
    %v1243 = vrot.slane %v1129, %v1242
    %v1244 = vlaneseq
    %v1245 = vshrl.u32 %v1244, 7
    %v1246 = vsub.s32 0, %v1245
    %v1247 = vrot.slane %v1131, %v1246
    %v1248 = vlaneseq
    %v1249 = vshrl.u32 %v1248, 7
    %v1250 = vsub.s32 1, %v1249
    %v1251 = vrot.slane %v1131, %v1250
    %v1252 = vlaneseq
    %v1253 = vshrl.u32 %v1252, 7
    %v1254 = vsub.s32 2, %v1253
    %v1255 = vrot.slane %v1131, %v1254
    %v1256 = vlaneseq
    %v1257 = vshrl.u32 %v1256, 7
    %v1258 = vsub.s32 3, %v1257
    %v1259 = vrot.slane %v1131, %v1258
    %v1260 = vlaneseq
    %v1261 = vshrl.u32 %v1260, 7
    %v1262 = vsub.s32 4, %v1261
    %v1263 = vrot.slane %v1131, %v1262
    %v1264 = vlaneseq
    %v1265 = vshrl.u32 %v1264, 7
    %v1266 = vsub.s32 5, %v1265
    %v1267 = vrot.slane %v1131, %v1266
    %v1268 = vlaneseq
    %v1269 = vshrl.u32 %v1268, 7
    %v1270 = vsub.s32 6, %v1269
    %v1271 = vrot.slane %v1131, %v1270
    %v1272 = vlaneseq
    %v1273 = vshrl.u32 %v1272, 7
    %v1274 = vsub.s32 7, %v1273
    %v1275 = vrot.slane %v1131, %v1274
    %v1276 = vlaneseq
    %v1277 = vshrl.u32 %v1276, 7
    %v1278 = vsub.s32 0, %v1277
    %v1279 = vrot.slane %v1133, %v1278
    %v1280 = vlaneseq
    %v1281 = vshrl.u32 %v1280, 7
    %v1282 = vsub.s32 1, %v1281
    %v1283 = vrot.slane %v1133, %v1282
    %v1284 = vlaneseq
    %v1285 = vshrl.u32 %v1284, 7
    %v1286 = vsub.s32 2, %v1285
    %v1287 = vrot.slane %v1133, %v1286
    %v1288 = vlaneseq
    %v1289 = vshrl.u32 %v1288, 7
    %v1290 = vsub.s32 3, %v1289
    %v1291 = vrot.slane %v1133, %v1290
    %v1292 = vlaneseq
    %v1293 = vshrl.u32 %v1292, 7
    %v1294 = vsub.s32 4, %v1293
    %v1295 = vrot.slane %v1133, %v1294
    %v1296 = vlaneseq
    %v1297 = vshrl.u32 %v1296, 7
    %v1298 = vsub.s32 5, %v1297
    %v1299 = vrot.slane %v1133, %v1298
    %v1300 = vlaneseq
    %v1301 = vshrl.u32 %v1300, 7
    %v1302 = vsub.s32 6, %v1301
    %v1303 = vrot.slane %v1133, %v1302
    %v1304 = vlaneseq
    %v1305 = vshrl.u32 %v1304, 7
    %v1306 = vsub.s32 7, %v1305
    %v1307 = vrot.slane %v1133, %v1306
    %v1308 = vlaneseq
    %v1309 = vshrl.u32 %v1308, 7
    %v1310 = vsub.s32 0, %v1309
    %v1311 = vrot.slane %v1135, %v1310
    %v1312 = vlaneseq
    %v1313 = vshrl.u32 %v1312, 7
    %v1314 = vsub.s32 1, %v1313
    %v1315 = vrot.slane %v1135, %v1314
    %v1316 = vlaneseq
    %v1317 = vshrl.u32 %v1316, 7
    %v1318 = vsub.s32 2, %v1317
    %v1319 = vrot.slane %v1135, %v1318
    %v1320 = vlaneseq
    %v1321 = vshrl.u32 %v1320, 7
    %v1322 = vsub.s32 3, %v1321
    %v1323 = vrot.slane %v1135, %v1322
    %v1324 = vlaneseq
    %v1325 = vshrl.u32 %v1324, 7
    %v1326 = vsub.s32 4, %v1325
    %v1327 = vrot.slane %v1135, %v1326
    %v1328 = vlaneseq
    %v1329 = vshrl.u32 %v1328, 7
    %v1330 = vsub.s32 5, %v1329
    %v1331 = vrot.slane %v1135, %v1330
    %v1332 = vlaneseq
    %v1333 = vshrl.u32 %v1332, 7
    %v1334 = vsub.s32 6, %v1333
    %v1335 = vrot.slane %v1135, %v1334
    %v1336 = vlaneseq
    %v1337 = vshrl.u32 %v1336, 7
    %v1338 = vsub.s32 7, %v1337
    %v1339 = vrot.slane %v1135, %v1338
    %v1340 = vlaneseq
    %v1341 = vshrl.u32 %v1340, 7
    %v1342 = vsub.s32 0, %v1341
    %v1343 = vrot.slane %v1137, %v1342
    %v1344 = vlaneseq
    %v1345 = vshrl.u32 %v1344, 7
    %v1346 = vsub.s32 1, %v1345
    %v1347 = vrot.slane %v1137, %v1346
    %v1348 = vlaneseq
    %v1349 = vshrl.u32 %v1348, 7
    %v1350 = vsub.s32 2, %v1349
    %v1351 = vrot.slane %v1137, %v1350
    %v1352 = vlaneseq
    %v1353 = vshrl.u32 %v1352, 7
    %v1354 = vsub.s32 3, %v1353
    %v1355 = vrot.slane %v1137, %v1354
    %v1356 = vlaneseq
    %v1357 = vshrl.u32 %v1356, 7
    %v1358 = vsub.s32 4, %v1357
    %v1359 = vrot.slane %v1137, %v1358
    %v1360 = vlaneseq
    %v1361 = vshrl.u32 %v1360, 7
    %v1362 = vsub.s32 5, %v1361
    %v1363 = vrot.slane %v1137, %v1362
    %v1364 = vlaneseq
    %v1365 = vshrl.u32 %v1364, 7
    %v1366 = vsub.s32 6, %v1365
    %v1367 = vrot.slane %v1137, %v1366
    %v1368 = vlaneseq
    %v1369 = vshrl.u32 %v1368, 7
    %v1370 = vsub.s32 7, %v1369
    %v1371 = vrot.slane %v1137, %v1370
    %v1372 = vlaneseq
    %v1373 = vshrl.u32 %v1372, 7
    %v1374 = vsub.s32 0, %v1373
    %v1375 = vrot.slane %v1139, %v1374
    %v1376 = vlaneseq
    %v1377 = vshrl.u32 %v1376, 7
    %v1378 = vsub.s32 1, %v1377
    %v1379 = vrot.slane %v1139, %v1378
    %v1380 = vlaneseq
    %v1381 = vshrl.u32 %v1380, 7
    %v1382 = vsub.s32 2, %v1381
    %v1383 = vrot.slane %v1139, %v1382
    %v1384 = vlaneseq
    %v1385 = vshrl.u32 %v1384, 7
    %v1386 = vsub.s32 3, %v1385
    %v1387 = vrot.slane %v1139, %v1386
    %v1388 = vlaneseq
    %v1389 = vshrl.u32 %v1388, 7
    %v1390 = vsub.s32 4, %v1389
    %v1391 = vrot.slane %v1139, %v1390
    %v1392 = vlaneseq
    %v1393 = vshrl.u32 %v1392, 7
    %v1394 = vsub.s32 5, %v1393
    %v1395 = vrot.slane %v1139, %v1394
    %v1396 = vlaneseq
    %v1397 = vshrl.u32 %v1396, 7
    %v1398 = vsub.s32 6, %v1397
    %v1399 = vrot.slane %v1139, %v1398
    %v1400 = vlaneseq
    %v1401 = vshrl.u32 %v1400, 7
    %v1402 = vsub.s32 7, %v1401
    %v1403 = vrot.slane %v1139, %v1402
    %v1468 = vmul.f32 %v1060, %v1151
    %v1469 = vmul.f32 %v1061, %v1155
    %v1470 = vmul.f32 %v1062, %v1159
    %v1471 = vmul.f32 %v1063, %v1163
    %v1472 = vmul.f32 %v1064, %v1167
    %v1473 = vmul.f32 %v1065, %v1171
    %v1474 = vmul.f32 %v1066, %v1175
    %v1475 = vmul.f32 %v1067, %v1179
    %v1476 = vmul.f32 %v1068, %v1183
    %v1477 = vmul.f32 %v1069, %v1187
    %v1478 = vmul.f32 %v1070, %v1191
    %v1479 = vmul.f32 %v1071, %v1195
    %v1480 = vmul.f32 %v1072, %v1199
    %v1481 = vmul.f32 %v1073, %v1203
    %v1482 = vmul.f32 %v1074, %v1207
    %v1483 = vmul.f32 %v1075, %v1211
    %v1484 = vmul.f32 %v1076, %v1215
    %v1485 = vmul.f32 %v1077, %v1219
    %v1486 = vmul.f32 %v1078, %v1223
    %v1487 = vmul.f32 %v1079, %v1227
    %v1488 = vmul.f32 %v1080, %v1231
    %v1489 = vmul.f32 %v1081, %v1235
    %v1490 = vmul.f32 %v1082, %v1239
    %v1491 = vmul.f32 %v1083, %v1243
    %v1492 = vmul.f32 %v1084, %v1247
    %v1493 = vmul.f32 %v1085, %v1251
    %v1494 = vmul.f32 %v1086, %v1255
    %v1495 = vmul.f32 %v1087, %v1259
    %v1496 = vmul.f32 %v1088, %v1263
    %v1497 = vmul.f32 %v1089, %v1267
    %v1498 = vmul.f32 %v1090, %v1271
    %v1499 = vmul.f32 %v1091, %v1275
    %v1500 = vmul.f32 %v1092, %v1279
    %v1501 = vmul.f32 %v1093, %v1283
    %v1502 = vmul.f32 %v1094, %v1287
    %v1503 = vmul.f32 %v1095, %v1291
    %v1504 = vmul.f32 %v1096, %v1295
    %v1505 = vmul.f32 %v1097, %v1299
    %v1506 = vmul.f32 %v1098, %v1303
    %v1507 = vmul.f32 %v1099, %v1307
    %v1508 = vmul.f32 %v1100, %v1311
    %v1509 = vmul.f32 %v1101, %v1315
    %v1510 = vmul.f32 %v1102, %v1319
    %v1511 = vmul.f32 %v1103, %v1323
    %v1512 = vmul.f32 %v1104, %v1327
    %v1513 = vmul.f32 %v1105, %v1331
    %v1514 = vmul.f32 %v1106, %v1335
    %v1515 = vmul.f32 %v1107, %v1339
    %v1516 = vmul.f32 %v1108, %v1343
    %v1517 = vmul.f32 %v1109, %v1347
    %v1518 = vmul.f32 %v1110, %v1351
    %v1519 = vmul.f32 %v1111, %v1355
    %v1520 = vmul.f32 %v1112, %v1359
    %v1521 = vmul.f32 %v1113, %v1363
    %v1522 = vmul.f32 %v1114, %v1367
    %v1523 = vmul.f32 %v1115, %v1371
    %v1524 = vmul.f32 %v1116, %v1375
    %v1525 = vmul.f32 %v1117, %v1379
    %v1526 = vmul.f32 %v1118, %v1383
    %v1527 = vmul.f32 %v1119, %v1387
    %v1528 = vmul.f32 %v1120, %v1391
    %v1529 = vmul.f32 %v1121, %v1395
    %v1530 = vmul.f32 %v1122, %v1399
    %v1531 = vmul.f32 %v1123, %v1403
    %v1532 = vadd.f32 %v1468, %v1469
    %v1533 = vadd.f32 %v1532, %v1470
    %v1534 = vadd.f32 %v1533, %v1471
    %v1535 = vadd.f32 %v1534, %v1472
    %v1536 = vadd.f32 %v1535, %v1473
    %v1537 = vadd.f32 %v1536, %v1474
    %v1538 = vadd.f32 %v1537, %v1475
    %v1539 = vadd.f32 %v1538, %v1476
    %v1540 = vadd.f32 %v1539, %v1477
    %v1541 = vadd.f32 %v1540, %v1478
    %v1542 = vadd.f32 %v1541, %v1479
    %v1543 = vadd.f32 %v1542, %v1480
    %v1544 = vadd.f32 %v1543, %v1481
    %v1545 = vadd.f32 %v1544, %v1482
    %v1546 = vadd.f32 %v1545, %v1483
    %v1547 = vadd.f32 %v1546, %v1484
    %v1548 = vadd.f32 %v1547, %v1485
    %v1549 = vadd.f32 %v1548, %v1486
    %v1550 = vadd.f32 %v1549, %v1487
    %v1551 = vadd.f32 %v1550, %v1488
    %v1552 = vadd.f32 %v1551, %v1489
    %v1553 = vadd.f32 %v1552, %v1490
    %v1554 = vadd.f32 %v1553, %v1491
    %v1555 = vadd.f32 %v1554, %v1492
    %v1556 = vadd.f32 %v1555, %v1493
    %v1557 = vadd.f32 %v1556, %v1494
    %v1558 = vadd.f32 %v1557, %v1495
    %v1559 = vadd.f32 %v1558, %v1496
    %v1560 = vadd.f32 %v1559, %v1497
    %v1561 = vadd.f32 %v1560, %v1498
    %v1562 = vadd.f32 %v1561, %v1499
    %v1563 = vadd.f32 %v1562, %v1500
    %v1564 = vadd.f32 %v1563, %v1501
    %v1565 = vadd.f32 %v1564, %v1502
    %v1566 = vadd.f32 %v1565, %v1503
    %v1567 = vadd.f32 %v1566, %v1504
    %v1568 = vadd.f32 %v1567, %v1505
    %v1569 = vadd.f32 %v1568, %v1506
    %v1570 = vadd.f32 %v1569, %v1507
    %v1571 = vadd.f32 %v1570, %v1508
    %v1572 = vadd.f32 %v1571, %v1509
    %v1573 = vadd.f32 %v1572, %v1510
    %v1574 = vadd.f32 %v1573, %v1511
    %v1575 = vadd.f32 %v1574, %v1512
    %v1576 = vadd.f32 %v1575, %v1513
    %v1577 = vadd.f32 %v1576, %v1514
    %v1578 = vadd.f32 %v1577, %v1515
    %v1579 = vadd.f32 %v1578, %v1516
    %v1580 = vadd.f32 %v1579, %v1517
    %v1581 = vadd.f32 %v1580, %v1518
    %v1582 = vadd.f32 %v1581, %v1519
    %v1583 = vadd.f32 %v1582, %v1520
    %v1584 = vadd.f32 %v1583, %v1521
    %v1585 = vadd.f32 %v1584, %v1522
    %v1586 = vadd.f32 %v1585, %v1523
    %v1587 = vadd.f32 %v1586, %v1524
    %v1588 = vadd.f32 %v1587, %v1525
    %v1589 = vadd.f32 %v1588, %v1526
    %v1590 = vadd.f32 %v1589, %v1527
    %v1591 = vadd.f32 %v1590, %v1528
    %v1592 = vadd.f32 %v1591, %v1529
    %v1593 = vadd.f32 %v1592, %v1530
    %v1594 = vadd.f32 %v1593, %v1531
    %1595 = vadd.xlane.f32.xlu0 %v1594
    %v1596 = vpop.xlane.xlu0 %1595
    %v1597 = vadd.f32 %v585, %v1596
    %s1598 = scalar_lea.vmem [#allocation5], 129
    %v1599 = vld [vmem:[%s1598] ss:$2 sm:$0xff]
    %s1600 = scalar_lea.vmem [#allocation5], 145
    %v1601 = vld [vmem:[%s1600] ss:$2 sm:$0xff]
    %s1602 = scalar_lea.vmem [#allocation5], 161
    %v1603 = vld [vmem:[%s1602] ss:$2 sm:$0xff]
    %s1604 = scalar_lea.vmem [#allocation5], 177
    %v1605 = vld [vmem:[%s1604] ss:$2 sm:$0xff]
    %s1606 = scalar_lea.vmem [#allocation5], 193
    %v1607 = vld [vmem:[%s1606] ss:$2 sm:$0xff]
    %s1608 = scalar_lea.vmem [#allocation5], 209
    %v1609 = vld [vmem:[%s1608] ss:$2 sm:$0xff]
    %s1610 = scalar_lea.vmem [#allocation5], 225
    %v1611 = vld [vmem:[%s1610] ss:$2 sm:$0xff]
    %s1612 = scalar_lea.vmem [#allocation5], 241
    %v1613 = vld [vmem:[%s1612] ss:$2 sm:$0xff]
    %v1622 = vlaneseq
    %v1623 = vshrl.u32 %v1622, 7
    %v1624 = vsub.s32 0, %v1623
    %v1625 = vrot.slane %v1599, %v1624
    %v1626 = vlaneseq
    %v1627 = vshrl.u32 %v1626, 7
    %v1628 = vsub.s32 1, %v1627
    %v1629 = vrot.slane %v1599, %v1628
    %v1630 = vlaneseq
    %v1631 = vshrl.u32 %v1630, 7
    %v1632 = vsub.s32 2, %v1631
    %v1633 = vrot.slane %v1599, %v1632
    %v1634 = vlaneseq
    %v1635 = vshrl.u32 %v1634, 7
    %v1636 = vsub.s32 3, %v1635
    %v1637 = vrot.slane %v1599, %v1636
    %v1638 = vlaneseq
    %v1639 = vshrl.u32 %v1638, 7
    %v1640 = vsub.s32 4, %v1639
    %v1641 = vrot.slane %v1599, %v1640
    %v1642 = vlaneseq
    %v1643 = vshrl.u32 %v1642, 7
    %v1644 = vsub.s32 5, %v1643
    %v1645 = vrot.slane %v1599, %v1644
    %v1646 = vlaneseq
    %v1647 = vshrl.u32 %v1646, 7
    %v1648 = vsub.s32 6, %v1647
    %v1649 = vrot.slane %v1599, %v1648
    %v1650 = vlaneseq
    %v1651 = vshrl.u32 %v1650, 7
    %v1652 = vsub.s32 7, %v1651
    %v1653 = vrot.slane %v1599, %v1652
    %v1654 = vlaneseq
    %v1655 = vshrl.u32 %v1654, 7
    %v1656 = vsub.s32 0, %v1655
    %v1657 = vrot.slane %v1601, %v1656
    %v1658 = vlaneseq
    %v1659 = vshrl.u32 %v1658, 7
    %v1660 = vsub.s32 1, %v1659
    %v1661 = vrot.slane %v1601, %v1660
    %v1662 = vlaneseq
    %v1663 = vshrl.u32 %v1662, 7
    %v1664 = vsub.s32 2, %v1663
    %v1665 = vrot.slane %v1601, %v1664
    %v1666 = vlaneseq
    %v1667 = vshrl.u32 %v1666, 7
    %v1668 = vsub.s32 3, %v1667
    %v1669 = vrot.slane %v1601, %v1668
    %v1670 = vlaneseq
    %v1671 = vshrl.u32 %v1670, 7
    %v1672 = vsub.s32 4, %v1671
    %v1673 = vrot.slane %v1601, %v1672
    %v1674 = vlaneseq
    %v1675 = vshrl.u32 %v1674, 7
    %v1676 = vsub.s32 5, %v1675
    %v1677 = vrot.slane %v1601, %v1676
    %v1678 = vlaneseq
    %v1679 = vshrl.u32 %v1678, 7
    %v1680 = vsub.s32 6, %v1679
    %v1681 = vrot.slane %v1601, %v1680
    %v1682 = vlaneseq
    %v1683 = vshrl.u32 %v1682, 7
    %v1684 = vsub.s32 7, %v1683
    %v1685 = vrot.slane %v1601, %v1684
    %v1686 = vlaneseq
    %v1687 = vshrl.u32 %v1686, 7
    %v1688 = vsub.s32 0, %v1687
    %v1689 = vrot.slane %v1603, %v1688
    %v1690 = vlaneseq
    %v1691 = vshrl.u32 %v1690, 7
    %v1692 = vsub.s32 1, %v1691
    %v1693 = vrot.slane %v1603, %v1692
    %v1694 = vlaneseq
    %v1695 = vshrl.u32 %v1694, 7
    %v1696 = vsub.s32 2, %v1695
    %v1697 = vrot.slane %v1603, %v1696
    %v1698 = vlaneseq
    %v1699 = vshrl.u32 %v1698, 7
    %v1700 = vsub.s32 3, %v1699
    %v1701 = vrot.slane %v1603, %v1700
    %v1702 = vlaneseq
    %v1703 = vshrl.u32 %v1702, 7
    %v1704 = vsub.s32 4, %v1703
    %v1705 = vrot.slane %v1603, %v1704
    %v1706 = vlaneseq
    %v1707 = vshrl.u32 %v1706, 7
    %v1708 = vsub.s32 5, %v1707
    %v1709 = vrot.slane %v1603, %v1708
    %v1710 = vlaneseq
    %v1711 = vshrl.u32 %v1710, 7
    %v1712 = vsub.s32 6, %v1711
    %v1713 = vrot.slane %v1603, %v1712
    %v1714 = vlaneseq
    %v1715 = vshrl.u32 %v1714, 7
    %v1716 = vsub.s32 7, %v1715
    %v1717 = vrot.slane %v1603, %v1716
    %v1718 = vlaneseq
    %v1719 = vshrl.u32 %v1718, 7
    %v1720 = vsub.s32 0, %v1719
    %v1721 = vrot.slane %v1605, %v1720
    %v1722 = vlaneseq
    %v1723 = vshrl.u32 %v1722, 7
    %v1724 = vsub.s32 1, %v1723
    %v1725 = vrot.slane %v1605, %v1724
    %v1726 = vlaneseq
    %v1727 = vshrl.u32 %v1726, 7
    %v1728 = vsub.s32 2, %v1727
    %v1729 = vrot.slane %v1605, %v1728
    %v1730 = vlaneseq
    %v1731 = vshrl.u32 %v1730, 7
    %v1732 = vsub.s32 3, %v1731
    %v1733 = vrot.slane %v1605, %v1732
    %v1734 = vlaneseq
    %v1735 = vshrl.u32 %v1734, 7
    %v1736 = vsub.s32 4, %v1735
    %v1737 = vrot.slane %v1605, %v1736
    %v1738 = vlaneseq
    %v1739 = vshrl.u32 %v1738, 7
    %v1740 = vsub.s32 5, %v1739
    %v1741 = vrot.slane %v1605, %v1740
    %v1742 = vlaneseq
    %v1743 = vshrl.u32 %v1742, 7
    %v1744 = vsub.s32 6, %v1743
    %v1745 = vrot.slane %v1605, %v1744
    %v1746 = vlaneseq
    %v1747 = vshrl.u32 %v1746, 7
    %v1748 = vsub.s32 7, %v1747
    %v1749 = vrot.slane %v1605, %v1748
    %v1750 = vlaneseq
    %v1751 = vshrl.u32 %v1750, 7
    %v1752 = vsub.s32 0, %v1751
    %v1753 = vrot.slane %v1607, %v1752
    %v1754 = vlaneseq
    %v1755 = vshrl.u32 %v1754, 7
    %v1756 = vsub.s32 1, %v1755
    %v1757 = vrot.slane %v1607, %v1756
    %v1758 = vlaneseq
    %v1759 = vshrl.u32 %v1758, 7
    %v1760 = vsub.s32 2, %v1759
    %v1761 = vrot.slane %v1607, %v1760
    %v1762 = vlaneseq
    %v1763 = vshrl.u32 %v1762, 7
    %v1764 = vsub.s32 3, %v1763
    %v1765 = vrot.slane %v1607, %v1764
    %v1766 = vlaneseq
    %v1767 = vshrl.u32 %v1766, 7
    %v1768 = vsub.s32 4, %v1767
    %v1769 = vrot.slane %v1607, %v1768
    %v1770 = vlaneseq
    %v1771 = vshrl.u32 %v1770, 7
    %v1772 = vsub.s32 5, %v1771
    %v1773 = vrot.slane %v1607, %v1772
    %v1774 = vlaneseq
    %v1775 = vshrl.u32 %v1774, 7
    %v1776 = vsub.s32 6, %v1775
    %v1777 = vrot.slane %v1607, %v1776
    %v1778 = vlaneseq
    %v1779 = vshrl.u32 %v1778, 7
    %v1780 = vsub.s32 7, %v1779
    %v1781 = vrot.slane %v1607, %v1780
    %v1782 = vlaneseq
    %v1783 = vshrl.u32 %v1782, 7
    %v1784 = vsub.s32 0, %v1783
    %v1785 = vrot.slane %v1609, %v1784
    %v1786 = vlaneseq
    %v1787 = vshrl.u32 %v1786, 7
    %v1788 = vsub.s32 1, %v1787
    %v1789 = vrot.slane %v1609, %v1788
    %v1790 = vlaneseq
    %v1791 = vshrl.u32 %v1790, 7
    %v1792 = vsub.s32 2, %v1791
    %v1793 = vrot.slane %v1609, %v1792
    %v1794 = vlaneseq
    %v1795 = vshrl.u32 %v1794, 7
    %v1796 = vsub.s32 3, %v1795
    %v1797 = vrot.slane %v1609, %v1796
    %v1798 = vlaneseq
    %v1799 = vshrl.u32 %v1798, 7
    %v1800 = vsub.s32 4, %v1799
    %v1801 = vrot.slane %v1609, %v1800
    %v1802 = vlaneseq
    %v1803 = vshrl.u32 %v1802, 7
    %v1804 = vsub.s32 5, %v1803
    %v1805 = vrot.slane %v1609, %v1804
    %v1806 = vlaneseq
    %v1807 = vshrl.u32 %v1806, 7
    %v1808 = vsub.s32 6, %v1807
    %v1809 = vrot.slane %v1609, %v1808
    %v1810 = vlaneseq
    %v1811 = vshrl.u32 %v1810, 7
    %v1812 = vsub.s32 7, %v1811
    %v1813 = vrot.slane %v1609, %v1812
    %v1814 = vlaneseq
    %v1815 = vshrl.u32 %v1814, 7
    %v1816 = vsub.s32 0, %v1815
    %v1817 = vrot.slane %v1611, %v1816
    %v1818 = vlaneseq
    %v1819 = vshrl.u32 %v1818, 7
    %v1820 = vsub.s32 1, %v1819
    %v1821 = vrot.slane %v1611, %v1820
    %v1822 = vlaneseq
    %v1823 = vshrl.u32 %v1822, 7
    %v1824 = vsub.s32 2, %v1823
    %v1825 = vrot.slane %v1611, %v1824
    %v1826 = vlaneseq
    %v1827 = vshrl.u32 %v1826, 7
    %v1828 = vsub.s32 3, %v1827
    %v1829 = vrot.slane %v1611, %v1828
    %v1830 = vlaneseq
    %v1831 = vshrl.u32 %v1830, 7
    %v1832 = vsub.s32 4, %v1831
    %v1833 = vrot.slane %v1611, %v1832
    %v1834 = vlaneseq
    %v1835 = vshrl.u32 %v1834, 7
    %v1836 = vsub.s32 5, %v1835
    %v1837 = vrot.slane %v1611, %v1836
    %v1838 = vlaneseq
    %v1839 = vshrl.u32 %v1838, 7
    %v1840 = vsub.s32 6, %v1839
    %v1841 = vrot.slane %v1611, %v1840
    %v1842 = vlaneseq
    %v1843 = vshrl.u32 %v1842, 7
    %v1844 = vsub.s32 7, %v1843
    %v1845 = vrot.slane %v1611, %v1844
    %v1846 = vlaneseq
    %v1847 = vshrl.u32 %v1846, 7
    %v1848 = vsub.s32 0, %v1847
    %v1849 = vrot.slane %v1613, %v1848
    %v1850 = vlaneseq
    %v1851 = vshrl.u32 %v1850, 7
    %v1852 = vsub.s32 1, %v1851
    %v1853 = vrot.slane %v1613, %v1852
    %v1854 = vlaneseq
    %v1855 = vshrl.u32 %v1854, 7
    %v1856 = vsub.s32 2, %v1855
    %v1857 = vrot.slane %v1613, %v1856
    %v1858 = vlaneseq
    %v1859 = vshrl.u32 %v1858, 7
    %v1860 = vsub.s32 3, %v1859
    %v1861 = vrot.slane %v1613, %v1860
    %v1862 = vlaneseq
    %v1863 = vshrl.u32 %v1862, 7
    %v1864 = vsub.s32 4, %v1863
    %v1865 = vrot.slane %v1613, %v1864
    %v1866 = vlaneseq
    %v1867 = vshrl.u32 %v1866, 7
    %v1868 = vsub.s32 5, %v1867
    %v1869 = vrot.slane %v1613, %v1868
    %v1870 = vlaneseq
    %v1871 = vshrl.u32 %v1870, 7
    %v1872 = vsub.s32 6, %v1871
    %v1873 = vrot.slane %v1613, %v1872
    %v1874 = vlaneseq
    %v1875 = vshrl.u32 %v1874, 7
    %v1876 = vsub.s32 7, %v1875
    %v1877 = vrot.slane %v1613, %v1876
    %v1942 = vmul.f32 %v1060, %v1625
    %v1943 = vmul.f32 %v1061, %v1629
    %v1944 = vmul.f32 %v1062, %v1633
    %v1945 = vmul.f32 %v1063, %v1637
    %v1946 = vmul.f32 %v1064, %v1641
    %v1947 = vmul.f32 %v1065, %v1645
    %v1948 = vmul.f32 %v1066, %v1649
    %v1949 = vmul.f32 %v1067, %v1653
    %v1950 = vmul.f32 %v1068, %v1657
    %v1951 = vmul.f32 %v1069, %v1661
    %v1952 = vmul.f32 %v1070, %v1665
    %v1953 = vmul.f32 %v1071, %v1669
    %v1954 = vmul.f32 %v1072, %v1673
    %v1955 = vmul.f32 %v1073, %v1677
    %v1956 = vmul.f32 %v1074, %v1681
    %v1957 = vmul.f32 %v1075, %v1685
    %v1958 = vmul.f32 %v1076, %v1689
    %v1959 = vmul.f32 %v1077, %v1693
    %v1960 = vmul.f32 %v1078, %v1697
    %v1961 = vmul.f32 %v1079, %v1701
    %v1962 = vmul.f32 %v1080, %v1705
    %v1963 = vmul.f32 %v1081, %v1709
    %v1964 = vmul.f32 %v1082, %v1713
    %v1965 = vmul.f32 %v1083, %v1717
    %v1966 = vmul.f32 %v1084, %v1721
    %v1967 = vmul.f32 %v1085, %v1725
    %v1968 = vmul.f32 %v1086, %v1729
    %v1969 = vmul.f32 %v1087, %v1733
    %v1970 = vmul.f32 %v1088, %v1737
    %v1971 = vmul.f32 %v1089, %v1741
    %v1972 = vmul.f32 %v1090, %v1745
    %v1973 = vmul.f32 %v1091, %v1749
    %v1974 = vmul.f32 %v1092, %v1753
    %v1975 = vmul.f32 %v1093, %v1757
    %v1976 = vmul.f32 %v1094, %v1761
    %v1977 = vmul.f32 %v1095, %v1765
    %v1978 = vmul.f32 %v1096, %v1769
    %v1979 = vmul.f32 %v1097, %v1773
    %v1980 = vmul.f32 %v1098, %v1777
    %v1981 = vmul.f32 %v1099, %v1781
    %v1982 = vmul.f32 %v1100, %v1785
    %v1983 = vmul.f32 %v1101, %v1789
    %v1984 = vmul.f32 %v1102, %v1793
    %v1985 = vmul.f32 %v1103, %v1797
    %v1986 = vmul.f32 %v1104, %v1801
    %v1987 = vmul.f32 %v1105, %v1805
    %v1988 = vmul.f32 %v1106, %v1809
    %v1989 = vmul.f32 %v1107, %v1813
    %v1990 = vmul.f32 %v1108, %v1817
    %v1991 = vmul.f32 %v1109, %v1821
    %v1992 = vmul.f32 %v1110, %v1825
    %v1993 = vmul.f32 %v1111, %v1829
    %v1994 = vmul.f32 %v1112, %v1833
    %v1995 = vmul.f32 %v1113, %v1837
    %v1996 = vmul.f32 %v1114, %v1841
    %v1997 = vmul.f32 %v1115, %v1845
    %v1998 = vmul.f32 %v1116, %v1849
    %v1999 = vmul.f32 %v1117, %v1853
    %v2000 = vmul.f32 %v1118, %v1857
    %v2001 = vmul.f32 %v1119, %v1861
    %v2002 = vmul.f32 %v1120, %v1865
    %v2003 = vmul.f32 %v1121, %v1869
    %v2004 = vmul.f32 %v1122, %v1873
    %v2005 = vmul.f32 %v1123, %v1877
    %v2006 = vadd.f32 %v1942, %v1943
    %v2007 = vadd.f32 %v2006, %v1944
    %v2008 = vadd.f32 %v2007, %v1945
    %v2009 = vadd.f32 %v2008, %v1946
    %v2010 = vadd.f32 %v2009, %v1947
    %v2011 = vadd.f32 %v2010, %v1948
    %v2012 = vadd.f32 %v2011, %v1949
    %v2013 = vadd.f32 %v2012, %v1950
    %v2014 = vadd.f32 %v2013, %v1951
    %v2015 = vadd.f32 %v2014, %v1952
    %v2016 = vadd.f32 %v2015, %v1953
    %v2017 = vadd.f32 %v2016, %v1954
    %v2018 = vadd.f32 %v2017, %v1955
    %v2019 = vadd.f32 %v2018, %v1956
    %v2020 = vadd.f32 %v2019, %v1957
    %v2021 = vadd.f32 %v2020, %v1958
    %v2022 = vadd.f32 %v2021, %v1959
    %v2023 = vadd.f32 %v2022, %v1960
    %v2024 = vadd.f32 %v2023, %v1961
    %v2025 = vadd.f32 %v2024, %v1962
    %v2026 = vadd.f32 %v2025, %v1963
    %v2027 = vadd.f32 %v2026, %v1964
    %v2028 = vadd.f32 %v2027, %v1965
    %v2029 = vadd.f32 %v2028, %v1966
    %v2030 = vadd.f32 %v2029, %v1967
    %v2031 = vadd.f32 %v2030, %v1968
    %v2032 = vadd.f32 %v2031, %v1969
    %v2033 = vadd.f32 %v2032, %v1970
    %v2034 = vadd.f32 %v2033, %v1971
    %v2035 = vadd.f32 %v2034, %v1972
    %v2036 = vadd.f32 %v2035, %v1973
    %v2037 = vadd.f32 %v2036, %v1974
    %v2038 = vadd.f32 %v2037, %v1975
    %v2039 = vadd.f32 %v2038, %v1976
    %v2040 = vadd.f32 %v2039, %v1977
    %v2041 = vadd.f32 %v2040, %v1978
    %v2042 = vadd.f32 %v2041, %v1979
    %v2043 = vadd.f32 %v2042, %v1980
    %v2044 = vadd.f32 %v2043, %v1981
    %v2045 = vadd.f32 %v2044, %v1982
    %v2046 = vadd.f32 %v2045, %v1983
    %v2047 = vadd.f32 %v2046, %v1984
    %v2048 = vadd.f32 %v2047, %v1985
    %v2049 = vadd.f32 %v2048, %v1986
    %v2050 = vadd.f32 %v2049, %v1987
    %v2051 = vadd.f32 %v2050, %v1988
    %v2052 = vadd.f32 %v2051, %v1989
    %v2053 = vadd.f32 %v2052, %v1990
    %v2054 = vadd.f32 %v2053, %v1991
    %v2055 = vadd.f32 %v2054, %v1992
    %v2056 = vadd.f32 %v2055, %v1993
    %v2057 = vadd.f32 %v2056, %v1994
    %v2058 = vadd.f32 %v2057, %v1995
    %v2059 = vadd.f32 %v2058, %v1996
    %v2060 = vadd.f32 %v2059, %v1997
    %v2061 = vadd.f32 %v2060, %v1998
    %v2062 = vadd.f32 %v2061, %v1999
    %v2063 = vadd.f32 %v2062, %v2000
    %v2064 = vadd.f32 %v2063, %v2001
    %v2065 = vadd.f32 %v2064, %v2002
    %v2066 = vadd.f32 %v2065, %v2003
    %v2067 = vadd.f32 %v2066, %v2004
    %v2068 = vadd.f32 %v2067, %v2005
    %2069 = vadd.xlane.f32.xlu0 %v2068
    %v2070 = vpop.xlane.xlu0 %2069
    %v2071 = vadd.f32 %v1059, %v2070
    %v2072 = vld [vmem:[#allocation2 + $0x400] sm:$0xff]
    %v2073 = vld [vmem:[#allocation2 + $0x408] sm:$0xff]
    %v2074 = vld [vmem:[#allocation2 + $0x410] sm:$0xff]
    %v2075 = vld [vmem:[#allocation2 + $0x418] sm:$0xff]
    %v2076 = vld [vmem:[#allocation2 + $0x420] sm:$0xff]
    %v2077 = vld [vmem:[#allocation2 + $0x428] sm:$0xff]
    %v2078 = vld [vmem:[#allocation2 + $0x430] sm:$0xff]
    %v2079 = vld [vmem:[#allocation2 + $0x438] sm:$0xff]
    %v2080 = vld [vmem:[#allocation2 + $0x440] sm:$0xff]
    %v2081 = vld [vmem:[#allocation2 + $0x448] sm:$0xff]
    %v2082 = vld [vmem:[#allocation2 + $0x450] sm:$0xff]
    %v2083 = vld [vmem:[#allocation2 + $0x458] sm:$0xff]
    %v2084 = vld [vmem:[#allocation2 + $0x460] sm:$0xff]
    %v2085 = vld [vmem:[#allocation2 + $0x468] sm:$0xff]
    %v2086 = vld [vmem:[#allocation2 + $0x470] sm:$0xff]
    %v2087 = vld [vmem:[#allocation2 + $0x478] sm:$0xff]
    %v2088 = vld [vmem:[#allocation2 + $0x480] sm:$0xff]
    %v2089 = vld [vmem:[#allocation2 + $0x488] sm:$0xff]
    %v2090 = vld [vmem:[#allocation2 + $0x490] sm:$0xff]
    %v2091 = vld [vmem:[#allocation2 + $0x498] sm:$0xff]
    %v2092 = vld [vmem:[#allocation2 + $0x4a0] sm:$0xff]
    %v2093 = vld [vmem:[#allocation2 + $0x4a8] sm:$0xff]
    %v2094 = vld [vmem:[#allocation2 + $0x4b0] sm:$0xff]
    %v2095 = vld [vmem:[#allocation2 + $0x4b8] sm:$0xff]
    %v2096 = vld [vmem:[#allocation2 + $0x4c0] sm:$0xff]
    %v2097 = vld [vmem:[#allocation2 + $0x4c8] sm:$0xff]
    %v2098 = vld [vmem:[#allocation2 + $0x4d0] sm:$0xff]
    %v2099 = vld [vmem:[#allocation2 + $0x4d8] sm:$0xff]
    %v2100 = vld [vmem:[#allocation2 + $0x4e0] sm:$0xff]
    %v2101 = vld [vmem:[#allocation2 + $0x4e8] sm:$0xff]
    %v2102 = vld [vmem:[#allocation2 + $0x4f0] sm:$0xff]
    %v2103 = vld [vmem:[#allocation2 + $0x4f8] sm:$0xff]
    %v2104 = vld [vmem:[#allocation2 + $0x500] sm:$0xff]
    %v2105 = vld [vmem:[#allocation2 + $0x508] sm:$0xff]
    %v2106 = vld [vmem:[#allocation2 + $0x510] sm:$0xff]
    %v2107 = vld [vmem:[#allocation2 + $0x518] sm:$0xff]
    %v2108 = vld [vmem:[#allocation2 + $0x520] sm:$0xff]
    %v2109 = vld [vmem:[#allocation2 + $0x528] sm:$0xff]
    %v2110 = vld [vmem:[#allocation2 + $0x530] sm:$0xff]
    %v2111 = vld [vmem:[#allocation2 + $0x538] sm:$0xff]
    %v2112 = vld [vmem:[#allocation2 + $0x540] sm:$0xff]
    %v2113 = vld [vmem:[#allocation2 + $0x548] sm:$0xff]
    %v2114 = vld [vmem:[#allocation2 + $0x550] sm:$0xff]
    %v2115 = vld [vmem:[#allocation2 + $0x558] sm:$0xff]
    %v2116 = vld [vmem:[#allocation2 + $0x560] sm:$0xff]
    %v2117 = vld [vmem:[#allocation2 + $0x568] sm:$0xff]
    %v2118 = vld [vmem:[#allocation2 + $0x570] sm:$0xff]
    %v2119 = vld [vmem:[#allocation2 + $0x578] sm:$0xff]
    %v2120 = vld [vmem:[#allocation2 + $0x580] sm:$0xff]
    %v2121 = vld [vmem:[#allocation2 + $0x588] sm:$0xff]
    %v2122 = vld [vmem:[#allocation2 + $0x590] sm:$0xff]
    %v2123 = vld [vmem:[#allocation2 + $0x598] sm:$0xff]
    %v2124 = vld [vmem:[#allocation2 + $0x5a0] sm:$0xff]
    %v2125 = vld [vmem:[#allocation2 + $0x5a8] sm:$0xff]
    %v2126 = vld [vmem:[#allocation2 + $0x5b0] sm:$0xff]
    %v2127 = vld [vmem:[#allocation2 + $0x5b8] sm:$0xff]
    %v2128 = vld [vmem:[#allocation2 + $0x5c0] sm:$0xff]
    %v2129 = vld [vmem:[#allocation2 + $0x5c8] sm:$0xff]
    %v2130 = vld [vmem:[#allocation2 + $0x5d0] sm:$0xff]
    %v2131 = vld [vmem:[#allocation2 + $0x5d8] sm:$0xff]
    %v2132 = vld [vmem:[#allocation2 + $0x5e0] sm:$0xff]
    %v2133 = vld [vmem:[#allocation2 + $0x5e8] sm:$0xff]
    %v2134 = vld [vmem:[#allocation2 + $0x5f0] sm:$0xff]
    %v2135 = vld [vmem:[#allocation2 + $0x5f8] sm:$0xff]
    %s2136 = scalar_lea.vmem [#allocation5], 256
    %v2137 = vld [vmem:[%s2136] ss:$2 sm:$0xff]
    %s2138 = scalar_lea.vmem [#allocation5], 272
    %v2139 = vld [vmem:[%s2138] ss:$2 sm:$0xff]
    %s2140 = scalar_lea.vmem [#allocation5], 288
    %v2141 = vld [vmem:[%s2140] ss:$2 sm:$0xff]
    %s2142 = scalar_lea.vmem [#allocation5], 304
    %v2143 = vld [vmem:[%s2142] ss:$2 sm:$0xff]
    %s2144 = scalar_lea.vmem [#allocation5], 320
    %v2145 = vld [vmem:[%s2144] ss:$2 sm:$0xff]
    %s2146 = scalar_lea.vmem [#allocation5], 336
    %v2147 = vld [vmem:[%s2146] ss:$2 sm:$0xff]
    %s2148 = scalar_lea.vmem [#allocation5], 352
    %v2149 = vld [vmem:[%s2148] ss:$2 sm:$0xff]
    %s2150 = scalar_lea.vmem [#allocation5], 368
    %v2151 = vld [vmem:[%s2150] ss:$2 sm:$0xff]
    %v2160 = vlaneseq
    %v2161 = vshrl.u32 %v2160, 7
    %v2162 = vsub.s32 0, %v2161
    %v2163 = vrot.slane %v2137, %v2162
    %v2164 = vlaneseq
    %v2165 = vshrl.u32 %v2164, 7
    %v2166 = vsub.s32 1, %v2165
    %v2167 = vrot.slane %v2137, %v2166
    %v2168 = vlaneseq
    %v2169 = vshrl.u32 %v2168, 7
    %v2170 = vsub.s32 2, %v2169
    %v2171 = vrot.slane %v2137, %v2170
    %v2172 = vlaneseq
    %v2173 = vshrl.u32 %v2172, 7
    %v2174 = vsub.s32 3, %v2173
    %v2175 = vrot.slane %v2137, %v2174
    %v2176 = vlaneseq
    %v2177 = vshrl.u32 %v2176, 7
    %v2178 = vsub.s32 4, %v2177
    %v2179 = vrot.slane %v2137, %v2178
    %v2180 = vlaneseq
    %v2181 = vshrl.u32 %v2180, 7
    %v2182 = vsub.s32 5, %v2181
    %v2183 = vrot.slane %v2137, %v2182
    %v2184 = vlaneseq
    %v2185 = vshrl.u32 %v2184, 7
    %v2186 = vsub.s32 6, %v2185
    %v2187 = vrot.slane %v2137, %v2186
    %v2188 = vlaneseq
    %v2189 = vshrl.u32 %v2188, 7
    %v2190 = vsub.s32 7, %v2189
    %v2191 = vrot.slane %v2137, %v2190
    %v2192 = vlaneseq
    %v2193 = vshrl.u32 %v2192, 7
    %v2194 = vsub.s32 0, %v2193
    %v2195 = vrot.slane %v2139, %v2194
    %v2196 = vlaneseq
    %v2197 = vshrl.u32 %v2196, 7
    %v2198 = vsub.s32 1, %v2197
    %v2199 = vrot.slane %v2139, %v2198
    %v2200 = vlaneseq
    %v2201 = vshrl.u32 %v2200, 7
    %v2202 = vsub.s32 2, %v2201
    %v2203 = vrot.slane %v2139, %v2202
    %v2204 = vlaneseq
    %v2205 = vshrl.u32 %v2204, 7
    %v2206 = vsub.s32 3, %v2205
    %v2207 = vrot.slane %v2139, %v2206
    %v2208 = vlaneseq
    %v2209 = vshrl.u32 %v2208, 7
    %v2210 = vsub.s32 4, %v2209
    %v2211 = vrot.slane %v2139, %v2210
    %v2212 = vlaneseq
    %v2213 = vshrl.u32 %v2212, 7
    %v2214 = vsub.s32 5, %v2213
    %v2215 = vrot.slane %v2139, %v2214
    %v2216 = vlaneseq
    %v2217 = vshrl.u32 %v2216, 7
    %v2218 = vsub.s32 6, %v2217
    %v2219 = vrot.slane %v2139, %v2218
    %v2220 = vlaneseq
    %v2221 = vshrl.u32 %v2220, 7
    %v2222 = vsub.s32 7, %v2221
    %v2223 = vrot.slane %v2139, %v2222
    %v2224 = vlaneseq
    %v2225 = vshrl.u32 %v2224, 7
    %v2226 = vsub.s32 0, %v2225
    %v2227 = vrot.slane %v2141, %v2226
    %v2228 = vlaneseq
    %v2229 = vshrl.u32 %v2228, 7
    %v2230 = vsub.s32 1, %v2229
    %v2231 = vrot.slane %v2141, %v2230
    %v2232 = vlaneseq
    %v2233 = vshrl.u32 %v2232, 7
    %v2234 = vsub.s32 2, %v2233
    %v2235 = vrot.slane %v2141, %v2234
    %v2236 = vlaneseq
    %v2237 = vshrl.u32 %v2236, 7
    %v2238 = vsub.s32 3, %v2237
    %v2239 = vrot.slane %v2141, %v2238
    %v2240 = vlaneseq
    %v2241 = vshrl.u32 %v2240, 7
    %v2242 = vsub.s32 4, %v2241
    %v2243 = vrot.slane %v2141, %v2242
    %v2244 = vlaneseq
    %v2245 = vshrl.u32 %v2244, 7
    %v2246 = vsub.s32 5, %v2245
    %v2247 = vrot.slane %v2141, %v2246
    %v2248 = vlaneseq
    %v2249 = vshrl.u32 %v2248, 7
    %v2250 = vsub.s32 6, %v2249
    %v2251 = vrot.slane %v2141, %v2250
    %v2252 = vlaneseq
    %v2253 = vshrl.u32 %v2252, 7
    %v2254 = vsub.s32 7, %v2253
    %v2255 = vrot.slane %v2141, %v2254
    %v2256 = vlaneseq
    %v2257 = vshrl.u32 %v2256, 7
    %v2258 = vsub.s32 0, %v2257
    %v2259 = vrot.slane %v2143, %v2258
    %v2260 = vlaneseq
    %v2261 = vshrl.u32 %v2260, 7
    %v2262 = vsub.s32 1, %v2261
    %v2263 = vrot.slane %v2143, %v2262
    %v2264 = vlaneseq
    %v2265 = vshrl.u32 %v2264, 7
    %v2266 = vsub.s32 2, %v2265
    %v2267 = vrot.slane %v2143, %v2266
    %v2268 = vlaneseq
    %v2269 = vshrl.u32 %v2268, 7
    %v2270 = vsub.s32 3, %v2269
    %v2271 = vrot.slane %v2143, %v2270
    %v2272 = vlaneseq
    %v2273 = vshrl.u32 %v2272, 7
    %v2274 = vsub.s32 4, %v2273
    %v2275 = vrot.slane %v2143, %v2274
    %v2276 = vlaneseq
    %v2277 = vshrl.u32 %v2276, 7
    %v2278 = vsub.s32 5, %v2277
    %v2279 = vrot.slane %v2143, %v2278
    %v2280 = vlaneseq
    %v2281 = vshrl.u32 %v2280, 7
    %v2282 = vsub.s32 6, %v2281
    %v2283 = vrot.slane %v2143, %v2282
    %v2284 = vlaneseq
    %v2285 = vshrl.u32 %v2284, 7
    %v2286 = vsub.s32 7, %v2285
    %v2287 = vrot.slane %v2143, %v2286
    %v2288 = vlaneseq
    %v2289 = vshrl.u32 %v2288, 7
    %v2290 = vsub.s32 0, %v2289
    %v2291 = vrot.slane %v2145, %v2290
    %v2292 = vlaneseq
    %v2293 = vshrl.u32 %v2292, 7
    %v2294 = vsub.s32 1, %v2293
    %v2295 = vrot.slane %v2145, %v2294
    %v2296 = vlaneseq
    %v2297 = vshrl.u32 %v2296, 7
    %v2298 = vsub.s32 2, %v2297
    %v2299 = vrot.slane %v2145, %v2298
    %v2300 = vlaneseq
    %v2301 = vshrl.u32 %v2300, 7
    %v2302 = vsub.s32 3, %v2301
    %v2303 = vrot.slane %v2145, %v2302
    %v2304 = vlaneseq
    %v2305 = vshrl.u32 %v2304, 7
    %v2306 = vsub.s32 4, %v2305
    %v2307 = vrot.slane %v2145, %v2306
    %v2308 = vlaneseq
    %v2309 = vshrl.u32 %v2308, 7
    %v2310 = vsub.s32 5, %v2309
    %v2311 = vrot.slane %v2145, %v2310
    %v2312 = vlaneseq
    %v2313 = vshrl.u32 %v2312, 7
    %v2314 = vsub.s32 6, %v2313
    %v2315 = vrot.slane %v2145, %v2314
    %v2316 = vlaneseq
    %v2317 = vshrl.u32 %v2316, 7
    %v2318 = vsub.s32 7, %v2317
    %v2319 = vrot.slane %v2145, %v2318
    %v2320 = vlaneseq
    %v2321 = vshrl.u32 %v2320, 7
    %v2322 = vsub.s32 0, %v2321
    %v2323 = vrot.slane %v2147, %v2322
    %v2324 = vlaneseq
    %v2325 = vshrl.u32 %v2324, 7
    %v2326 = vsub.s32 1, %v2325
    %v2327 = vrot.slane %v2147, %v2326
    %v2328 = vlaneseq
    %v2329 = vshrl.u32 %v2328, 7
    %v2330 = vsub.s32 2, %v2329
    %v2331 = vrot.slane %v2147, %v2330
    %v2332 = vlaneseq
    %v2333 = vshrl.u32 %v2332, 7
    %v2334 = vsub.s32 3, %v2333
    %v2335 = vrot.slane %v2147, %v2334
    %v2336 = vlaneseq
    %v2337 = vshrl.u32 %v2336, 7
    %v2338 = vsub.s32 4, %v2337
    %v2339 = vrot.slane %v2147, %v2338
    %v2340 = vlaneseq
    %v2341 = vshrl.u32 %v2340, 7
    %v2342 = vsub.s32 5, %v2341
    %v2343 = vrot.slane %v2147, %v2342
    %v2344 = vlaneseq
    %v2345 = vshrl.u32 %v2344, 7
    %v2346 = vsub.s32 6, %v2345
    %v2347 = vrot.slane %v2147, %v2346
    %v2348 = vlaneseq
    %v2349 = vshrl.u32 %v2348, 7
    %v2350 = vsub.s32 7, %v2349
    %v2351 = vrot.slane %v2147, %v2350
    %v2352 = vlaneseq
    %v2353 = vshrl.u32 %v2352, 7
    %v2354 = vsub.s32 0, %v2353
    %v2355 = vrot.slane %v2149, %v2354
    %v2356 = vlaneseq
    %v2357 = vshrl.u32 %v2356, 7
    %v2358 = vsub.s32 1, %v2357
    %v2359 = vrot.slane %v2149, %v2358
    %v2360 = vlaneseq
    %v2361 = vshrl.u32 %v2360, 7
    %v2362 = vsub.s32 2, %v2361
    %v2363 = vrot.slane %v2149, %v2362
    %v2364 = vlaneseq
    %v2365 = vshrl.u32 %v2364, 7
    %v2366 = vsub.s32 3, %v2365
    %v2367 = vrot.slane %v2149, %v2366
    %v2368 = vlaneseq
    %v2369 = vshrl.u32 %v2368, 7
    %v2370 = vsub.s32 4, %v2369
    %v2371 = vrot.slane %v2149, %v2370
    %v2372 = vlaneseq
    %v2373 = vshrl.u32 %v2372, 7
    %v2374 = vsub.s32 5, %v2373
    %v2375 = vrot.slane %v2149, %v2374
    %v2376 = vlaneseq
    %v2377 = vshrl.u32 %v2376, 7
    %v2378 = vsub.s32 6, %v2377
    %v2379 = vrot.slane %v2149, %v2378
    %v2380 = vlaneseq
    %v2381 = vshrl.u32 %v2380, 7
    %v2382 = vsub.s32 7, %v2381
    %v2383 = vrot.slane %v2149, %v2382
    %v2384 = vlaneseq
    %v2385 = vshrl.u32 %v2384, 7
    %v2386 = vsub.s32 0, %v2385
    %v2387 = vrot.slane %v2151, %v2386
    %v2388 = vlaneseq
    %v2389 = vshrl.u32 %v2388, 7
    %v2390 = vsub.s32 1, %v2389
    %v2391 = vrot.slane %v2151, %v2390
    %v2392 = vlaneseq
    %v2393 = vshrl.u32 %v2392, 7
    %v2394 = vsub.s32 2, %v2393
    %v2395 = vrot.slane %v2151, %v2394
    %v2396 = vlaneseq
    %v2397 = vshrl.u32 %v2396, 7
    %v2398 = vsub.s32 3, %v2397
    %v2399 = vrot.slane %v2151, %v2398
    %v2400 = vlaneseq
    %v2401 = vshrl.u32 %v2400, 7
    %v2402 = vsub.s32 4, %v2401
    %v2403 = vrot.slane %v2151, %v2402
    %v2404 = vlaneseq
    %v2405 = vshrl.u32 %v2404, 7
    %v2406 = vsub.s32 5, %v2405
    %v2407 = vrot.slane %v2151, %v2406
    %v2408 = vlaneseq
    %v2409 = vshrl.u32 %v2408, 7
    %v2410 = vsub.s32 6, %v2409
    %v2411 = vrot.slane %v2151, %v2410
    %v2412 = vlaneseq
    %v2413 = vshrl.u32 %v2412, 7
    %v2414 = vsub.s32 7, %v2413
    %v2415 = vrot.slane %v2151, %v2414
    %v2480 = vmul.f32 %v2072, %v2163
    %v2481 = vmul.f32 %v2073, %v2167
    %v2482 = vmul.f32 %v2074, %v2171
    %v2483 = vmul.f32 %v2075, %v2175
    %v2484 = vmul.f32 %v2076, %v2179
    %v2485 = vmul.f32 %v2077, %v2183
    %v2486 = vmul.f32 %v2078, %v2187
    %v2487 = vmul.f32 %v2079, %v2191
    %v2488 = vmul.f32 %v2080, %v2195
    %v2489 = vmul.f32 %v2081, %v2199
    %v2490 = vmul.f32 %v2082, %v2203
    %v2491 = vmul.f32 %v2083, %v2207
    %v2492 = vmul.f32 %v2084, %v2211
    %v2493 = vmul.f32 %v2085, %v2215
    %v2494 = vmul.f32 %v2086, %v2219
    %v2495 = vmul.f32 %v2087, %v2223
    %v2496 = vmul.f32 %v2088, %v2227
    %v2497 = vmul.f32 %v2089, %v2231
    %v2498 = vmul.f32 %v2090, %v2235
    %v2499 = vmul.f32 %v2091, %v2239
    %v2500 = vmul.f32 %v2092, %v2243
    %v2501 = vmul.f32 %v2093, %v2247
    %v2502 = vmul.f32 %v2094, %v2251
    %v2503 = vmul.f32 %v2095, %v2255
    %v2504 = vmul.f32 %v2096, %v2259
    %v2505 = vmul.f32 %v2097, %v2263
    %v2506 = vmul.f32 %v2098, %v2267
    %v2507 = vmul.f32 %v2099, %v2271
    %v2508 = vmul.f32 %v2100, %v2275
    %v2509 = vmul.f32 %v2101, %v2279
    %v2510 = vmul.f32 %v2102, %v2283
    %v2511 = vmul.f32 %v2103, %v2287
    %v2512 = vmul.f32 %v2104, %v2291
    %v2513 = vmul.f32 %v2105, %v2295
    %v2514 = vmul.f32 %v2106, %v2299
    %v2515 = vmul.f32 %v2107, %v2303
    %v2516 = vmul.f32 %v2108, %v2307
    %v2517 = vmul.f32 %v2109, %v2311
    %v2518 = vmul.f32 %v2110, %v2315
    %v2519 = vmul.f32 %v2111, %v2319
    %v2520 = vmul.f32 %v2112, %v2323
    %v2521 = vmul.f32 %v2113, %v2327
    %v2522 = vmul.f32 %v2114, %v2331
    %v2523 = vmul.f32 %v2115, %v2335
    %v2524 = vmul.f32 %v2116, %v2339
    %v2525 = vmul.f32 %v2117, %v2343
    %v2526 = vmul.f32 %v2118, %v2347
    %v2527 = vmul.f32 %v2119, %v2351
    %v2528 = vmul.f32 %v2120, %v2355
    %v2529 = vmul.f32 %v2121, %v2359
    %v2530 = vmul.f32 %v2122, %v2363
    %v2531 = vmul.f32 %v2123, %v2367
    %v2532 = vmul.f32 %v2124, %v2371
    %v2533 = vmul.f32 %v2125, %v2375
    %v2534 = vmul.f32 %v2126, %v2379
    %v2535 = vmul.f32 %v2127, %v2383
    %v2536 = vmul.f32 %v2128, %v2387
    %v2537 = vmul.f32 %v2129, %v2391
    %v2538 = vmul.f32 %v2130, %v2395
    %v2539 = vmul.f32 %v2131, %v2399
    %v2540 = vmul.f32 %v2132, %v2403
    %v2541 = vmul.f32 %v2133, %v2407
    %v2542 = vmul.f32 %v2134, %v2411
    %v2543 = vmul.f32 %v2135, %v2415
    %v2544 = vadd.f32 %v2480, %v2481
    %v2545 = vadd.f32 %v2544, %v2482
    %v2546 = vadd.f32 %v2545, %v2483
    %v2547 = vadd.f32 %v2546, %v2484
    %v2548 = vadd.f32 %v2547, %v2485
    %v2549 = vadd.f32 %v2548, %v2486
    %v2550 = vadd.f32 %v2549, %v2487
    %v2551 = vadd.f32 %v2550, %v2488
    %v2552 = vadd.f32 %v2551, %v2489
    %v2553 = vadd.f32 %v2552, %v2490
    %v2554 = vadd.f32 %v2553, %v2491
    %v2555 = vadd.f32 %v2554, %v2492
    %v2556 = vadd.f32 %v2555, %v2493
    %v2557 = vadd.f32 %v2556, %v2494
    %v2558 = vadd.f32 %v2557, %v2495
    %v2559 = vadd.f32 %v2558, %v2496
    %v2560 = vadd.f32 %v2559, %v2497
    %v2561 = vadd.f32 %v2560, %v2498
    %v2562 = vadd.f32 %v2561, %v2499
    %v2563 = vadd.f32 %v2562, %v2500
    %v2564 = vadd.f32 %v2563, %v2501
    %v2565 = vadd.f32 %v2564, %v2502
    %v2566 = vadd.f32 %v2565, %v2503
    %v2567 = vadd.f32 %v2566, %v2504
    %v2568 = vadd.f32 %v2567, %v2505
    %v2569 = vadd.f32 %v2568, %v2506
    %v2570 = vadd.f32 %v2569, %v2507
    %v2571 = vadd.f32 %v2570, %v2508
    %v2572 = vadd.f32 %v2571, %v2509
    %v2573 = vadd.f32 %v2572, %v2510
    %v2574 = vadd.f32 %v2573, %v2511
    %v2575 = vadd.f32 %v2574, %v2512
    %v2576 = vadd.f32 %v2575, %v2513
    %v2577 = vadd.f32 %v2576, %v2514
    %v2578 = vadd.f32 %v2577, %v2515
    %v2579 = vadd.f32 %v2578, %v2516
    %v2580 = vadd.f32 %v2579, %v2517
    %v2581 = vadd.f32 %v2580, %v2518
    %v2582 = vadd.f32 %v2581, %v2519
    %v2583 = vadd.f32 %v2582, %v2520
    %v2584 = vadd.f32 %v2583, %v2521
    %v2585 = vadd.f32 %v2584, %v2522
    %v2586 = vadd.f32 %v2585, %v2523
    %v2587 = vadd.f32 %v2586, %v2524
    %v2588 = vadd.f32 %v2587, %v2525
    %v2589 = vadd.f32 %v2588, %v2526
    %v2590 = vadd.f32 %v2589, %v2527
    %v2591 = vadd.f32 %v2590, %v2528
    %v2592 = vadd.f32 %v2591, %v2529
    %v2593 = vadd.f32 %v2592, %v2530
    %v2594 = vadd.f32 %v2593, %v2531
    %v2595 = vadd.f32 %v2594, %v2532
    %v2596 = vadd.f32 %v2595, %v2533
    %v2597 = vadd.f32 %v2596, %v2534
    %v2598 = vadd.f32 %v2597, %v2535
    %v2599 = vadd.f32 %v2598, %v2536
    %v2600 = vadd.f32 %v2599, %v2537
    %v2601 = vadd.f32 %v2600, %v2538
    %v2602 = vadd.f32 %v2601, %v2539
    %v2603 = vadd.f32 %v2602, %v2540
    %v2604 = vadd.f32 %v2603, %v2541
    %v2605 = vadd.f32 %v2604, %v2542
    %v2606 = vadd.f32 %v2605, %v2543
    %2607 = vadd.xlane.f32.xlu0 %v2606
    %v2608 = vpop.xlane.xlu0 %2607
    %v2609 = vadd.f32 %v1597, %v2608
    %s2610 = scalar_lea.vmem [#allocation5], 257
    %v2611 = vld [vmem:[%s2610] ss:$2 sm:$0xff]
    %s2612 = scalar_lea.vmem [#allocation5], 273
    %v2613 = vld [vmem:[%s2612] ss:$2 sm:$0xff]
    %s2614 = scalar_lea.vmem [#allocation5], 289
    %v2615 = vld [vmem:[%s2614] ss:$2 sm:$0xff]
    %s2616 = scalar_lea.vmem [#allocation5], 305
    %v2617 = vld [vmem:[%s2616] ss:$2 sm:$0xff]
    %s2618 = scalar_lea.vmem [#allocation5], 321
    %v2619 = vld [vmem:[%s2618] ss:$2 sm:$0xff]
    %s2620 = scalar_lea.vmem [#allocation5], 337
    %v2621 = vld [vmem:[%s2620] ss:$2 sm:$0xff]
    %s2622 = scalar_lea.vmem [#allocation5], 353
    %v2623 = vld [vmem:[%s2622] ss:$2 sm:$0xff]
    %s2624 = scalar_lea.vmem [#allocation5], 369
    %v2625 = vld [vmem:[%s2624] ss:$2 sm:$0xff]
    %v2634 = vlaneseq
    %v2635 = vshrl.u32 %v2634, 7
    %v2636 = vsub.s32 0, %v2635
    %v2637 = vrot.slane %v2611, %v2636
    %v2638 = vlaneseq
    %v2639 = vshrl.u32 %v2638, 7
    %v2640 = vsub.s32 1, %v2639
    %v2641 = vrot.slane %v2611, %v2640
    %v2642 = vlaneseq
    %v2643 = vshrl.u32 %v2642, 7
    %v2644 = vsub.s32 2, %v2643
    %v2645 = vrot.slane %v2611, %v2644
    %v2646 = vlaneseq
    %v2647 = vshrl.u32 %v2646, 7
    %v2648 = vsub.s32 3, %v2647
    %v2649 = vrot.slane %v2611, %v2648
    %v2650 = vlaneseq
    %v2651 = vshrl.u32 %v2650, 7
    %v2652 = vsub.s32 4, %v2651
    %v2653 = vrot.slane %v2611, %v2652
    %v2654 = vlaneseq
    %v2655 = vshrl.u32 %v2654, 7
    %v2656 = vsub.s32 5, %v2655
    %v2657 = vrot.slane %v2611, %v2656
    %v2658 = vlaneseq
    %v2659 = vshrl.u32 %v2658, 7
    %v2660 = vsub.s32 6, %v2659
    %v2661 = vrot.slane %v2611, %v2660
    %v2662 = vlaneseq
    %v2663 = vshrl.u32 %v2662, 7
    %v2664 = vsub.s32 7, %v2663
    %v2665 = vrot.slane %v2611, %v2664
    %v2666 = vlaneseq
    %v2667 = vshrl.u32 %v2666, 7
    %v2668 = vsub.s32 0, %v2667
    %v2669 = vrot.slane %v2613, %v2668
    %v2670 = vlaneseq
    %v2671 = vshrl.u32 %v2670, 7
    %v2672 = vsub.s32 1, %v2671
    %v2673 = vrot.slane %v2613, %v2672
    %v2674 = vlaneseq
    %v2675 = vshrl.u32 %v2674, 7
    %v2676 = vsub.s32 2, %v2675
    %v2677 = vrot.slane %v2613, %v2676
    %v2678 = vlaneseq
    %v2679 = vshrl.u32 %v2678, 7
    %v2680 = vsub.s32 3, %v2679
    %v2681 = vrot.slane %v2613, %v2680
    %v2682 = vlaneseq
    %v2683 = vshrl.u32 %v2682, 7
    %v2684 = vsub.s32 4, %v2683
    %v2685 = vrot.slane %v2613, %v2684
    %v2686 = vlaneseq
    %v2687 = vshrl.u32 %v2686, 7
    %v2688 = vsub.s32 5, %v2687
    %v2689 = vrot.slane %v2613, %v2688
    %v2690 = vlaneseq
    %v2691 = vshrl.u32 %v2690, 7
    %v2692 = vsub.s32 6, %v2691
    %v2693 = vrot.slane %v2613, %v2692
    %v2694 = vlaneseq
    %v2695 = vshrl.u32 %v2694, 7
    %v2696 = vsub.s32 7, %v2695
    %v2697 = vrot.slane %v2613, %v2696
    %v2698 = vlaneseq
    %v2699 = vshrl.u32 %v2698, 7
    %v2700 = vsub.s32 0, %v2699
    %v2701 = vrot.slane %v2615, %v2700
    %v2702 = vlaneseq
    %v2703 = vshrl.u32 %v2702, 7
    %v2704 = vsub.s32 1, %v2703
    %v2705 = vrot.slane %v2615, %v2704
    %v2706 = vlaneseq
    %v2707 = vshrl.u32 %v2706, 7
    %v2708 = vsub.s32 2, %v2707
    %v2709 = vrot.slane %v2615, %v2708
    %v2710 = vlaneseq
    %v2711 = vshrl.u32 %v2710, 7
    %v2712 = vsub.s32 3, %v2711
    %v2713 = vrot.slane %v2615, %v2712
    %v2714 = vlaneseq
    %v2715 = vshrl.u32 %v2714, 7
    %v2716 = vsub.s32 4, %v2715
    %v2717 = vrot.slane %v2615, %v2716
    %v2718 = vlaneseq
    %v2719 = vshrl.u32 %v2718, 7
    %v2720 = vsub.s32 5, %v2719
    %v2721 = vrot.slane %v2615, %v2720
    %v2722 = vlaneseq
    %v2723 = vshrl.u32 %v2722, 7
    %v2724 = vsub.s32 6, %v2723
    %v2725 = vrot.slane %v2615, %v2724
    %v2726 = vlaneseq
    %v2727 = vshrl.u32 %v2726, 7
    %v2728 = vsub.s32 7, %v2727
    %v2729 = vrot.slane %v2615, %v2728
    %v2730 = vlaneseq
    %v2731 = vshrl.u32 %v2730, 7
    %v2732 = vsub.s32 0, %v2731
    %v2733 = vrot.slane %v2617, %v2732
    %v2734 = vlaneseq
    %v2735 = vshrl.u32 %v2734, 7
    %v2736 = vsub.s32 1, %v2735
    %v2737 = vrot.slane %v2617, %v2736
    %v2738 = vlaneseq
    %v2739 = vshrl.u32 %v2738, 7
    %v2740 = vsub.s32 2, %v2739
    %v2741 = vrot.slane %v2617, %v2740
    %v2742 = vlaneseq
    %v2743 = vshrl.u32 %v2742, 7
    %v2744 = vsub.s32 3, %v2743
    %v2745 = vrot.slane %v2617, %v2744
    %v2746 = vlaneseq
    %v2747 = vshrl.u32 %v2746, 7
    %v2748 = vsub.s32 4, %v2747
    %v2749 = vrot.slane %v2617, %v2748
    %v2750 = vlaneseq
    %v2751 = vshrl.u32 %v2750, 7
    %v2752 = vsub.s32 5, %v2751
    %v2753 = vrot.slane %v2617, %v2752
    %v2754 = vlaneseq
    %v2755 = vshrl.u32 %v2754, 7
    %v2756 = vsub.s32 6, %v2755
    %v2757 = vrot.slane %v2617, %v2756
    %v2758 = vlaneseq
    %v2759 = vshrl.u32 %v2758, 7
    %v2760 = vsub.s32 7, %v2759
    %v2761 = vrot.slane %v2617, %v2760
    %v2762 = vlaneseq
    %v2763 = vshrl.u32 %v2762, 7
    %v2764 = vsub.s32 0, %v2763
    %v2765 = vrot.slane %v2619, %v2764
    %v2766 = vlaneseq
    %v2767 = vshrl.u32 %v2766, 7
    %v2768 = vsub.s32 1, %v2767
    %v2769 = vrot.slane %v2619, %v2768
    %v2770 = vlaneseq
    %v2771 = vshrl.u32 %v2770, 7
    %v2772 = vsub.s32 2, %v2771
    %v2773 = vrot.slane %v2619, %v2772
    %v2774 = vlaneseq
    %v2775 = vshrl.u32 %v2774, 7
    %v2776 = vsub.s32 3, %v2775
    %v2777 = vrot.slane %v2619, %v2776
    %v2778 = vlaneseq
    %v2779 = vshrl.u32 %v2778, 7
    %v2780 = vsub.s32 4, %v2779
    %v2781 = vrot.slane %v2619, %v2780
    %v2782 = vlaneseq
    %v2783 = vshrl.u32 %v2782, 7
    %v2784 = vsub.s32 5, %v2783
    %v2785 = vrot.slane %v2619, %v2784
    %v2786 = vlaneseq
    %v2787 = vshrl.u32 %v2786, 7
    %v2788 = vsub.s32 6, %v2787
    %v2789 = vrot.slane %v2619, %v2788
    %v2790 = vlaneseq
    %v2791 = vshrl.u32 %v2790, 7
    %v2792 = vsub.s32 7, %v2791
    %v2793 = vrot.slane %v2619, %v2792
    %v2794 = vlaneseq
    %v2795 = vshrl.u32 %v2794, 7
    %v2796 = vsub.s32 0, %v2795
    %v2797 = vrot.slane %v2621, %v2796
    %v2798 = vlaneseq
    %v2799 = vshrl.u32 %v2798, 7
    %v2800 = vsub.s32 1, %v2799
    %v2801 = vrot.slane %v2621, %v2800
    %v2802 = vlaneseq
    %v2803 = vshrl.u32 %v2802, 7
    %v2804 = vsub.s32 2, %v2803
    %v2805 = vrot.slane %v2621, %v2804
    %v2806 = vlaneseq
    %v2807 = vshrl.u32 %v2806, 7
    %v2808 = vsub.s32 3, %v2807
    %v2809 = vrot.slane %v2621, %v2808
    %v2810 = vlaneseq
    %v2811 = vshrl.u32 %v2810, 7
    %v2812 = vsub.s32 4, %v2811
    %v2813 = vrot.slane %v2621, %v2812
    %v2814 = vlaneseq
    %v2815 = vshrl.u32 %v2814, 7
    %v2816 = vsub.s32 5, %v2815
    %v2817 = vrot.slane %v2621, %v2816
    %v2818 = vlaneseq
    %v2819 = vshrl.u32 %v2818, 7
    %v2820 = vsub.s32 6, %v2819
    %v2821 = vrot.slane %v2621, %v2820
    %v2822 = vlaneseq
    %v2823 = vshrl.u32 %v2822, 7
    %v2824 = vsub.s32 7, %v2823
    %v2825 = vrot.slane %v2621, %v2824
    %v2826 = vlaneseq
    %v2827 = vshrl.u32 %v2826, 7
    %v2828 = vsub.s32 0, %v2827
    %v2829 = vrot.slane %v2623, %v2828
    %v2830 = vlaneseq
    %v2831 = vshrl.u32 %v2830, 7
    %v2832 = vsub.s32 1, %v2831
    %v2833 = vrot.slane %v2623, %v2832
    %v2834 = vlaneseq
    %v2835 = vshrl.u32 %v2834, 7
    %v2836 = vsub.s32 2, %v2835
    %v2837 = vrot.slane %v2623, %v2836
    %v2838 = vlaneseq
    %v2839 = vshrl.u32 %v2838, 7
    %v2840 = vsub.s32 3, %v2839
    %v2841 = vrot.slane %v2623, %v2840
    %v2842 = vlaneseq
    %v2843 = vshrl.u32 %v2842, 7
    %v2844 = vsub.s32 4, %v2843
    %v2845 = vrot.slane %v2623, %v2844
    %v2846 = vlaneseq
    %v2847 = vshrl.u32 %v2846, 7
    %v2848 = vsub.s32 5, %v2847
    %v2849 = vrot.slane %v2623, %v2848
    %v2850 = vlaneseq
    %v2851 = vshrl.u32 %v2850, 7
    %v2852 = vsub.s32 6, %v2851
    %v2853 = vrot.slane %v2623, %v2852
    %v2854 = vlaneseq
    %v2855 = vshrl.u32 %v2854, 7
    %v2856 = vsub.s32 7, %v2855
    %v2857 = vrot.slane %v2623, %v2856
    %v2858 = vlaneseq
    %v2859 = vshrl.u32 %v2858, 7
    %v2860 = vsub.s32 0, %v2859
    %v2861 = vrot.slane %v2625, %v2860
    %v2862 = vlaneseq
    %v2863 = vshrl.u32 %v2862, 7
    %v2864 = vsub.s32 1, %v2863
    %v2865 = vrot.slane %v2625, %v2864
    %v2866 = vlaneseq
    %v2867 = vshrl.u32 %v2866, 7
    %v2868 = vsub.s32 2, %v2867
    %v2869 = vrot.slane %v2625, %v2868
    %v2870 = vlaneseq
    %v2871 = vshrl.u32 %v2870, 7
    %v2872 = vsub.s32 3, %v2871
    %v2873 = vrot.slane %v2625, %v2872
    %v2874 = vlaneseq
    %v2875 = vshrl.u32 %v2874, 7
    %v2876 = vsub.s32 4, %v2875
    %v2877 = vrot.slane %v2625, %v2876
    %v2878 = vlaneseq
    %v2879 = vshrl.u32 %v2878, 7
    %v2880 = vsub.s32 5, %v2879
    %v2881 = vrot.slane %v2625, %v2880
    %v2882 = vlaneseq
    %v2883 = vshrl.u32 %v2882, 7
    %v2884 = vsub.s32 6, %v2883
    %v2885 = vrot.slane %v2625, %v2884
    %v2886 = vlaneseq
    %v2887 = vshrl.u32 %v2886, 7
    %v2888 = vsub.s32 7, %v2887
    %v2889 = vrot.slane %v2625, %v2888
    %v2954 = vmul.f32 %v2072, %v2637
    %v2955 = vmul.f32 %v2073, %v2641
    %v2956 = vmul.f32 %v2074, %v2645
    %v2957 = vmul.f32 %v2075, %v2649
    %v2958 = vmul.f32 %v2076, %v2653
    %v2959 = vmul.f32 %v2077, %v2657
    %v2960 = vmul.f32 %v2078, %v2661
    %v2961 = vmul.f32 %v2079, %v2665
    %v2962 = vmul.f32 %v2080, %v2669
    %v2963 = vmul.f32 %v2081, %v2673
    %v2964 = vmul.f32 %v2082, %v2677
    %v2965 = vmul.f32 %v2083, %v2681
    %v2966 = vmul.f32 %v2084, %v2685
    %v2967 = vmul.f32 %v2085, %v2689
    %v2968 = vmul.f32 %v2086, %v2693
    %v2969 = vmul.f32 %v2087, %v2697
    %v2970 = vmul.f32 %v2088, %v2701
    %v2971 = vmul.f32 %v2089, %v2705
    %v2972 = vmul.f32 %v2090, %v2709
    %v2973 = vmul.f32 %v2091, %v2713
    %v2974 = vmul.f32 %v2092, %v2717
    %v2975 = vmul.f32 %v2093, %v2721
    %v2976 = vmul.f32 %v2094, %v2725
    %v2977 = vmul.f32 %v2095, %v2729
    %v2978 = vmul.f32 %v2096, %v2733
    %v2979 = vmul.f32 %v2097, %v2737
    %v2980 = vmul.f32 %v2098, %v2741
    %v2981 = vmul.f32 %v2099, %v2745
    %v2982 = vmul.f32 %v2100, %v2749
    %v2983 = vmul.f32 %v2101, %v2753
    %v2984 = vmul.f32 %v2102, %v2757
    %v2985 = vmul.f32 %v2103, %v2761
    %v2986 = vmul.f32 %v2104, %v2765
    %v2987 = vmul.f32 %v2105, %v2769
    %v2988 = vmul.f32 %v2106, %v2773
    %v2989 = vmul.f32 %v2107, %v2777
    %v2990 = vmul.f32 %v2108, %v2781
    %v2991 = vmul.f32 %v2109, %v2785
    %v2992 = vmul.f32 %v2110, %v2789
    %v2993 = vmul.f32 %v2111, %v2793
    %v2994 = vmul.f32 %v2112, %v2797
    %v2995 = vmul.f32 %v2113, %v2801
    %v2996 = vmul.f32 %v2114, %v2805
    %v2997 = vmul.f32 %v2115, %v2809
    %v2998 = vmul.f32 %v2116, %v2813
    %v2999 = vmul.f32 %v2117, %v2817
    %v3000 = vmul.f32 %v2118, %v2821
    %v3001 = vmul.f32 %v2119, %v2825
    %v3002 = vmul.f32 %v2120, %v2829
    %v3003 = vmul.f32 %v2121, %v2833
    %v3004 = vmul.f32 %v2122, %v2837
    %v3005 = vmul.f32 %v2123, %v2841
    %v3006 = vmul.f32 %v2124, %v2845
    %v3007 = vmul.f32 %v2125, %v2849
    %v3008 = vmul.f32 %v2126, %v2853
    %v3009 = vmul.f32 %v2127, %v2857
    %v3010 = vmul.f32 %v2128, %v2861
    %v3011 = vmul.f32 %v2129, %v2865
    %v3012 = vmul.f32 %v2130, %v2869
    %v3013 = vmul.f32 %v2131, %v2873
    %v3014 = vmul.f32 %v2132, %v2877
    %v3015 = vmul.f32 %v2133, %v2881
    %v3016 = vmul.f32 %v2134, %v2885
    %v3017 = vmul.f32 %v2135, %v2889
    %v3018 = vadd.f32 %v2954, %v2955
    %v3019 = vadd.f32 %v3018, %v2956
    %v3020 = vadd.f32 %v3019, %v2957
    %v3021 = vadd.f32 %v3020, %v2958
    %v3022 = vadd.f32 %v3021, %v2959
    %v3023 = vadd.f32 %v3022, %v2960
    %v3024 = vadd.f32 %v3023, %v2961
    %v3025 = vadd.f32 %v3024, %v2962
    %v3026 = vadd.f32 %v3025, %v2963
    %v3027 = vadd.f32 %v3026, %v2964
    %v3028 = vadd.f32 %v3027, %v2965
    %v3029 = vadd.f32 %v3028, %v2966
    %v3030 = vadd.f32 %v3029, %v2967
    %v3031 = vadd.f32 %v3030, %v2968
    %v3032 = vadd.f32 %v3031, %v2969
    %v3033 = vadd.f32 %v3032, %v2970
    %v3034 = vadd.f32 %v3033, %v2971
    %v3035 = vadd.f32 %v3034, %v2972
    %v3036 = vadd.f32 %v3035, %v2973
    %v3037 = vadd.f32 %v3036, %v2974
    %v3038 = vadd.f32 %v3037, %v2975
    %v3039 = vadd.f32 %v3038, %v2976
    %v3040 = vadd.f32 %v3039, %v2977
    %v3041 = vadd.f32 %v3040, %v2978
    %v3042 = vadd.f32 %v3041, %v2979
    %v3043 = vadd.f32 %v3042, %v2980
    %v3044 = vadd.f32 %v3043, %v2981
    %v3045 = vadd.f32 %v3044, %v2982
    %v3046 = vadd.f32 %v3045, %v2983
    %v3047 = vadd.f32 %v3046, %v2984
    %v3048 = vadd.f32 %v3047, %v2985
    %v3049 = vadd.f32 %v3048, %v2986
    %v3050 = vadd.f32 %v3049, %v2987
    %v3051 = vadd.f32 %v3050, %v2988
    %v3052 = vadd.f32 %v3051, %v2989
    %v3053 = vadd.f32 %v3052, %v2990
    %v3054 = vadd.f32 %v3053, %v2991
    %v3055 = vadd.f32 %v3054, %v2992
    %v3056 = vadd.f32 %v3055, %v2993
    %v3057 = vadd.f32 %v3056, %v2994
    %v3058 = vadd.f32 %v3057, %v2995
    %v3059 = vadd.f32 %v3058, %v2996
    %v3060 = vadd.f32 %v3059, %v2997
    %v3061 = vadd.f32 %v3060, %v2998
    %v3062 = vadd.f32 %v3061, %v2999
    %v3063 = vadd.f32 %v3062, %v3000
    %v3064 = vadd.f32 %v3063, %v3001
    %v3065 = vadd.f32 %v3064, %v3002
    %v3066 = vadd.f32 %v3065, %v3003
    %v3067 = vadd.f32 %v3066, %v3004
    %v3068 = vadd.f32 %v3067, %v3005
    %v3069 = vadd.f32 %v3068, %v3006
    %v3070 = vadd.f32 %v3069, %v3007
    %v3071 = vadd.f32 %v3070, %v3008
    %v3072 = vadd.f32 %v3071, %v3009
    %v3073 = vadd.f32 %v3072, %v3010
    %v3074 = vadd.f32 %v3073, %v3011
    %v3075 = vadd.f32 %v3074, %v3012
    %v3076 = vadd.f32 %v3075, %v3013
    %v3077 = vadd.f32 %v3076, %v3014
    %v3078 = vadd.f32 %v3077, %v3015
    %v3079 = vadd.f32 %v3078, %v3016
    %v3080 = vadd.f32 %v3079, %v3017
    %3081 = vadd.xlane.f32.xlu0 %v3080
    %v3082 = vpop.xlane.xlu0 %3081
    %v3083 = vadd.f32 %v2071, %v3082
    %v3084 = vld [vmem:[#allocation2 + $0x600] sm:$0xff]
    %v3085 = vld [vmem:[#allocation2 + $0x608] sm:$0xff]
    %v3086 = vld [vmem:[#allocation2 + $0x610] sm:$0xff]
    %v3087 = vld [vmem:[#allocation2 + $0x618] sm:$0xff]
    %v3088 = vld [vmem:[#allocation2 + $0x620] sm:$0xff]
    %v3089 = vld [vmem:[#allocation2 + $0x628] sm:$0xff]
    %v3090 = vld [vmem:[#allocation2 + $0x630] sm:$0xff]
    %v3091 = vld [vmem:[#allocation2 + $0x638] sm:$0xff]
    %v3092 = vld [vmem:[#allocation2 + $0x640] sm:$0xff]
    %v3093 = vld [vmem:[#allocation2 + $0x648] sm:$0xff]
    %v3094 = vld [vmem:[#allocation2 + $0x650] sm:$0xff]
    %v3095 = vld [vmem:[#allocation2 + $0x658] sm:$0xff]
    %v3096 = vld [vmem:[#allocation2 + $0x660] sm:$0xff]
    %v3097 = vld [vmem:[#allocation2 + $0x668] sm:$0xff]
    %v3098 = vld [vmem:[#allocation2 + $0x670] sm:$0xff]
    %v3099 = vld [vmem:[#allocation2 + $0x678] sm:$0xff]
    %v3100 = vld [vmem:[#allocation2 + $0x680] sm:$0xff]
    %v3101 = vld [vmem:[#allocation2 + $0x688] sm:$0xff]
    %v3102 = vld [vmem:[#allocation2 + $0x690] sm:$0xff]
    %v3103 = vld [vmem:[#allocation2 + $0x698] sm:$0xff]
    %v3104 = vld [vmem:[#allocation2 + $0x6a0] sm:$0xff]
    %v3105 = vld [vmem:[#allocation2 + $0x6a8] sm:$0xff]
    %v3106 = vld [vmem:[#allocation2 + $0x6b0] sm:$0xff]
    %v3107 = vld [vmem:[#allocation2 + $0x6b8] sm:$0xff]
    %v3108 = vld [vmem:[#allocation2 + $0x6c0] sm:$0xff]
    %v3109 = vld [vmem:[#allocation2 + $0x6c8] sm:$0xff]
    %v3110 = vld [vmem:[#allocation2 + $0x6d0] sm:$0xff]
    %v3111 = vld [vmem:[#allocation2 + $0x6d8] sm:$0xff]
    %v3112 = vld [vmem:[#allocation2 + $0x6e0] sm:$0xff]
    %v3113 = vld [vmem:[#allocation2 + $0x6e8] sm:$0xff]
    %v3114 = vld [vmem:[#allocation2 + $0x6f0] sm:$0xff]
    %v3115 = vld [vmem:[#allocation2 + $0x6f8] sm:$0xff]
    %v3116 = vld [vmem:[#allocation2 + $0x700] sm:$0xff]
    %v3117 = vld [vmem:[#allocation2 + $0x708] sm:$0xff]
    %v3118 = vld [vmem:[#allocation2 + $0x710] sm:$0xff]
    %v3119 = vld [vmem:[#allocation2 + $0x718] sm:$0xff]
    %v3120 = vld [vmem:[#allocation2 + $0x720] sm:$0xff]
    %v3121 = vld [vmem:[#allocation2 + $0x728] sm:$0xff]
    %v3122 = vld [vmem:[#allocation2 + $0x730] sm:$0xff]
    %v3123 = vld [vmem:[#allocation2 + $0x738] sm:$0xff]
    %v3124 = vld [vmem:[#allocation2 + $0x740] sm:$0xff]
    %v3125 = vld [vmem:[#allocation2 + $0x748] sm:$0xff]
    %v3126 = vld [vmem:[#allocation2 + $0x750] sm:$0xff]
    %v3127 = vld [vmem:[#allocation2 + $0x758] sm:$0xff]
    %v3128 = vld [vmem:[#allocation2 + $0x760] sm:$0xff]
    %v3129 = vld [vmem:[#allocation2 + $0x768] sm:$0xff]
    %v3130 = vld [vmem:[#allocation2 + $0x770] sm:$0xff]
    %v3131 = vld [vmem:[#allocation2 + $0x778] sm:$0xff]
    %v3132 = vld [vmem:[#allocation2 + $0x780] sm:$0xff]
    %v3133 = vld [vmem:[#allocation2 + $0x788] sm:$0xff]
    %v3134 = vld [vmem:[#allocation2 + $0x790] sm:$0xff]
    %v3135 = vld [vmem:[#allocation2 + $0x798] sm:$0xff]
    %v3136 = vld [vmem:[#allocation2 + $0x7a0] sm:$0xff]
    %v3137 = vld [vmem:[#allocation2 + $0x7a8] sm:$0xff]
    %v3138 = vld [vmem:[#allocation2 + $0x7b0] sm:$0xff]
    %v3139 = vld [vmem:[#allocation2 + $0x7b8] sm:$0xff]
    %v3140 = vld [vmem:[#allocation2 + $0x7c0] sm:$0xff]
    %v3141 = vld [vmem:[#allocation2 + $0x7c8] sm:$0xff]
    %v3142 = vld [vmem:[#allocation2 + $0x7d0] sm:$0xff]
    %v3143 = vld [vmem:[#allocation2 + $0x7d8] sm:$0xff]
    %v3144 = vld [vmem:[#allocation2 + $0x7e0] sm:$0xff]
    %v3145 = vld [vmem:[#allocation2 + $0x7e8] sm:$0xff]
    %v3146 = vld [vmem:[#allocation2 + $0x7f0] sm:$0xff]
    %v3147 = vld [vmem:[#allocation2 + $0x7f8] sm:$0xff]
    %s3148 = scalar_lea.vmem [#allocation5], 384
    %v3149 = vld [vmem:[%s3148] ss:$2 sm:$0xff]
    %s3150 = scalar_lea.vmem [#allocation5], 400
    %v3151 = vld [vmem:[%s3150] ss:$2 sm:$0xff]
    %s3152 = scalar_lea.vmem [#allocation5], 416
    %v3153 = vld [vmem:[%s3152] ss:$2 sm:$0xff]
    %s3154 = scalar_lea.vmem [#allocation5], 432
    %v3155 = vld [vmem:[%s3154] ss:$2 sm:$0xff]
    %s3156 = scalar_lea.vmem [#allocation5], 448
    %v3157 = vld [vmem:[%s3156] ss:$2 sm:$0xff]
    %s3158 = scalar_lea.vmem [#allocation5], 464
    %v3159 = vld [vmem:[%s3158] ss:$2 sm:$0xff]
    %s3160 = scalar_lea.vmem [#allocation5], 480
    %v3161 = vld [vmem:[%s3160] ss:$2 sm:$0xff]
    %s3162 = scalar_lea.vmem [#allocation5], 496
    %v3163 = vld [vmem:[%s3162] ss:$2 sm:$0xff]
    %v3172 = vlaneseq
    %v3173 = vshrl.u32 %v3172, 7
    %v3174 = vsub.s32 0, %v3173
    %v3175 = vrot.slane %v3149, %v3174
    %v3176 = vlaneseq
    %v3177 = vshrl.u32 %v3176, 7
    %v3178 = vsub.s32 1, %v3177
    %v3179 = vrot.slane %v3149, %v3178
    %v3180 = vlaneseq
    %v3181 = vshrl.u32 %v3180, 7
    %v3182 = vsub.s32 2, %v3181
    %v3183 = vrot.slane %v3149, %v3182
    %v3184 = vlaneseq
    %v3185 = vshrl.u32 %v3184, 7
    %v3186 = vsub.s32 3, %v3185
    %v3187 = vrot.slane %v3149, %v3186
    %v3188 = vlaneseq
    %v3189 = vshrl.u32 %v3188, 7
    %v3190 = vsub.s32 4, %v3189
    %v3191 = vrot.slane %v3149, %v3190
    %v3192 = vlaneseq
    %v3193 = vshrl.u32 %v3192, 7
    %v3194 = vsub.s32 5, %v3193
    %v3195 = vrot.slane %v3149, %v3194
    %v3196 = vlaneseq
    %v3197 = vshrl.u32 %v3196, 7
    %v3198 = vsub.s32 6, %v3197
    %v3199 = vrot.slane %v3149, %v3198
    %v3200 = vlaneseq
    %v3201 = vshrl.u32 %v3200, 7
    %v3202 = vsub.s32 7, %v3201
    %v3203 = vrot.slane %v3149, %v3202
    %v3204 = vlaneseq
    %v3205 = vshrl.u32 %v3204, 7
    %v3206 = vsub.s32 0, %v3205
    %v3207 = vrot.slane %v3151, %v3206
    %v3208 = vlaneseq
    %v3209 = vshrl.u32 %v3208, 7
    %v3210 = vsub.s32 1, %v3209
    %v3211 = vrot.slane %v3151, %v3210
    %v3212 = vlaneseq
    %v3213 = vshrl.u32 %v3212, 7
    %v3214 = vsub.s32 2, %v3213
    %v3215 = vrot.slane %v3151, %v3214
    %v3216 = vlaneseq
    %v3217 = vshrl.u32 %v3216, 7
    %v3218 = vsub.s32 3, %v3217
    %v3219 = vrot.slane %v3151, %v3218
    %v3220 = vlaneseq
    %v3221 = vshrl.u32 %v3220, 7
    %v3222 = vsub.s32 4, %v3221
    %v3223 = vrot.slane %v3151, %v3222
    %v3224 = vlaneseq
    %v3225 = vshrl.u32 %v3224, 7
    %v3226 = vsub.s32 5, %v3225
    %v3227 = vrot.slane %v3151, %v3226
    %v3228 = vlaneseq
    %v3229 = vshrl.u32 %v3228, 7
    %v3230 = vsub.s32 6, %v3229
    %v3231 = vrot.slane %v3151, %v3230
    %v3232 = vlaneseq
    %v3233 = vshrl.u32 %v3232, 7
    %v3234 = vsub.s32 7, %v3233
    %v3235 = vrot.slane %v3151, %v3234
    %v3236 = vlaneseq
    %v3237 = vshrl.u32 %v3236, 7
    %v3238 = vsub.s32 0, %v3237
    %v3239 = vrot.slane %v3153, %v3238
    %v3240 = vlaneseq
    %v3241 = vshrl.u32 %v3240, 7
    %v3242 = vsub.s32 1, %v3241
    %v3243 = vrot.slane %v3153, %v3242
    %v3244 = vlaneseq
    %v3245 = vshrl.u32 %v3244, 7
    %v3246 = vsub.s32 2, %v3245
    %v3247 = vrot.slane %v3153, %v3246
    %v3248 = vlaneseq
    %v3249 = vshrl.u32 %v3248, 7
    %v3250 = vsub.s32 3, %v3249
    %v3251 = vrot.slane %v3153, %v3250
    %v3252 = vlaneseq
    %v3253 = vshrl.u32 %v3252, 7
    %v3254 = vsub.s32 4, %v3253
    %v3255 = vrot.slane %v3153, %v3254
    %v3256 = vlaneseq
    %v3257 = vshrl.u32 %v3256, 7
    %v3258 = vsub.s32 5, %v3257
    %v3259 = vrot.slane %v3153, %v3258
    %v3260 = vlaneseq
    %v3261 = vshrl.u32 %v3260, 7
    %v3262 = vsub.s32 6, %v3261
    %v3263 = vrot.slane %v3153, %v3262
    %v3264 = vlaneseq
    %v3265 = vshrl.u32 %v3264, 7
    %v3266 = vsub.s32 7, %v3265
    %v3267 = vrot.slane %v3153, %v3266
    %v3268 = vlaneseq
    %v3269 = vshrl.u32 %v3268, 7
    %v3270 = vsub.s32 0, %v3269
    %v3271 = vrot.slane %v3155, %v3270
    %v3272 = vlaneseq
    %v3273 = vshrl.u32 %v3272, 7
    %v3274 = vsub.s32 1, %v3273
    %v3275 = vrot.slane %v3155, %v3274
    %v3276 = vlaneseq
    %v3277 = vshrl.u32 %v3276, 7
    %v3278 = vsub.s32 2, %v3277
    %v3279 = vrot.slane %v3155, %v3278
    %v3280 = vlaneseq
    %v3281 = vshrl.u32 %v3280, 7
    %v3282 = vsub.s32 3, %v3281
    %v3283 = vrot.slane %v3155, %v3282
    %v3284 = vlaneseq
    %v3285 = vshrl.u32 %v3284, 7
    %v3286 = vsub.s32 4, %v3285
    %v3287 = vrot.slane %v3155, %v3286
    %v3288 = vlaneseq
    %v3289 = vshrl.u32 %v3288, 7
    %v3290 = vsub.s32 5, %v3289
    %v3291 = vrot.slane %v3155, %v3290
    %v3292 = vlaneseq
    %v3293 = vshrl.u32 %v3292, 7
    %v3294 = vsub.s32 6, %v3293
    %v3295 = vrot.slane %v3155, %v3294
    %v3296 = vlaneseq
    %v3297 = vshrl.u32 %v3296, 7
    %v3298 = vsub.s32 7, %v3297
    %v3299 = vrot.slane %v3155, %v3298
    %v3300 = vlaneseq
    %v3301 = vshrl.u32 %v3300, 7
    %v3302 = vsub.s32 0, %v3301
    %v3303 = vrot.slane %v3157, %v3302
    %v3304 = vlaneseq
    %v3305 = vshrl.u32 %v3304, 7
    %v3306 = vsub.s32 1, %v3305
    %v3307 = vrot.slane %v3157, %v3306
    %v3308 = vlaneseq
    %v3309 = vshrl.u32 %v3308, 7
    %v3310 = vsub.s32 2, %v3309
    %v3311 = vrot.slane %v3157, %v3310
    %v3312 = vlaneseq
    %v3313 = vshrl.u32 %v3312, 7
    %v3314 = vsub.s32 3, %v3313
    %v3315 = vrot.slane %v3157, %v3314
    %v3316 = vlaneseq
    %v3317 = vshrl.u32 %v3316, 7
    %v3318 = vsub.s32 4, %v3317
    %v3319 = vrot.slane %v3157, %v3318
    %v3320 = vlaneseq
    %v3321 = vshrl.u32 %v3320, 7
    %v3322 = vsub.s32 5, %v3321
    %v3323 = vrot.slane %v3157, %v3322
    %v3324 = vlaneseq
    %v3325 = vshrl.u32 %v3324, 7
    %v3326 = vsub.s32 6, %v3325
    %v3327 = vrot.slane %v3157, %v3326
    %v3328 = vlaneseq
    %v3329 = vshrl.u32 %v3328, 7
    %v3330 = vsub.s32 7, %v3329
    %v3331 = vrot.slane %v3157, %v3330
    %v3332 = vlaneseq
    %v3333 = vshrl.u32 %v3332, 7
    %v3334 = vsub.s32 0, %v3333
    %v3335 = vrot.slane %v3159, %v3334
    %v3336 = vlaneseq
    %v3337 = vshrl.u32 %v3336, 7
    %v3338 = vsub.s32 1, %v3337
    %v3339 = vrot.slane %v3159, %v3338
    %v3340 = vlaneseq
    %v3341 = vshrl.u32 %v3340, 7
    %v3342 = vsub.s32 2, %v3341
    %v3343 = vrot.slane %v3159, %v3342
    %v3344 = vlaneseq
    %v3345 = vshrl.u32 %v3344, 7
    %v3346 = vsub.s32 3, %v3345
    %v3347 = vrot.slane %v3159, %v3346
    %v3348 = vlaneseq
    %v3349 = vshrl.u32 %v3348, 7
    %v3350 = vsub.s32 4, %v3349
    %v3351 = vrot.slane %v3159, %v3350
    %v3352 = vlaneseq
    %v3353 = vshrl.u32 %v3352, 7
    %v3354 = vsub.s32 5, %v3353
    %v3355 = vrot.slane %v3159, %v3354
    %v3356 = vlaneseq
    %v3357 = vshrl.u32 %v3356, 7
    %v3358 = vsub.s32 6, %v3357
    %v3359 = vrot.slane %v3159, %v3358
    %v3360 = vlaneseq
    %v3361 = vshrl.u32 %v3360, 7
    %v3362 = vsub.s32 7, %v3361
    %v3363 = vrot.slane %v3159, %v3362
    %v3364 = vlaneseq
    %v3365 = vshrl.u32 %v3364, 7
    %v3366 = vsub.s32 0, %v3365
    %v3367 = vrot.slane %v3161, %v3366
    %v3368 = vlaneseq
    %v3369 = vshrl.u32 %v3368, 7
    %v3370 = vsub.s32 1, %v3369
    %v3371 = vrot.slane %v3161, %v3370
    %v3372 = vlaneseq
    %v3373 = vshrl.u32 %v3372, 7
    %v3374 = vsub.s32 2, %v3373
    %v3375 = vrot.slane %v3161, %v3374
    %v3376 = vlaneseq
    %v3377 = vshrl.u32 %v3376, 7
    %v3378 = vsub.s32 3, %v3377
    %v3379 = vrot.slane %v3161, %v3378
    %v3380 = vlaneseq
    %v3381 = vshrl.u32 %v3380, 7
    %v3382 = vsub.s32 4, %v3381
    %v3383 = vrot.slane %v3161, %v3382
    %v3384 = vlaneseq
    %v3385 = vshrl.u32 %v3384, 7
    %v3386 = vsub.s32 5, %v3385
    %v3387 = vrot.slane %v3161, %v3386
    %v3388 = vlaneseq
    %v3389 = vshrl.u32 %v3388, 7
    %v3390 = vsub.s32 6, %v3389
    %v3391 = vrot.slane %v3161, %v3390
    %v3392 = vlaneseq
    %v3393 = vshrl.u32 %v3392, 7
    %v3394 = vsub.s32 7, %v3393
    %v3395 = vrot.slane %v3161, %v3394
    %v3396 = vlaneseq
    %v3397 = vshrl.u32 %v3396, 7
    %v3398 = vsub.s32 0, %v3397
    %v3399 = vrot.slane %v3163, %v3398
    %v3400 = vlaneseq
    %v3401 = vshrl.u32 %v3400, 7
    %v3402 = vsub.s32 1, %v3401
    %v3403 = vrot.slane %v3163, %v3402
    %v3404 = vlaneseq
    %v3405 = vshrl.u32 %v3404, 7
    %v3406 = vsub.s32 2, %v3405
    %v3407 = vrot.slane %v3163, %v3406
    %v3408 = vlaneseq
    %v3409 = vshrl.u32 %v3408, 7
    %v3410 = vsub.s32 3, %v3409
    %v3411 = vrot.slane %v3163, %v3410
    %v3412 = vlaneseq
    %v3413 = vshrl.u32 %v3412, 7
    %v3414 = vsub.s32 4, %v3413
    %v3415 = vrot.slane %v3163, %v3414
    %v3416 = vlaneseq
    %v3417 = vshrl.u32 %v3416, 7
    %v3418 = vsub.s32 5, %v3417
    %v3419 = vrot.slane %v3163, %v3418
    %v3420 = vlaneseq
    %v3421 = vshrl.u32 %v3420, 7
    %v3422 = vsub.s32 6, %v3421
    %v3423 = vrot.slane %v3163, %v3422
    %v3424 = vlaneseq
    %v3425 = vshrl.u32 %v3424, 7
    %v3426 = vsub.s32 7, %v3425
    %v3427 = vrot.slane %v3163, %v3426
    %v3492 = vmul.f32 %v3084, %v3175
    %v3493 = vmul.f32 %v3085, %v3179
    %v3494 = vmul.f32 %v3086, %v3183
    %v3495 = vmul.f32 %v3087, %v3187
    %v3496 = vmul.f32 %v3088, %v3191
    %v3497 = vmul.f32 %v3089, %v3195
    %v3498 = vmul.f32 %v3090, %v3199
    %v3499 = vmul.f32 %v3091, %v3203
    %v3500 = vmul.f32 %v3092, %v3207
    %v3501 = vmul.f32 %v3093, %v3211
    %v3502 = vmul.f32 %v3094, %v3215
    %v3503 = vmul.f32 %v3095, %v3219
    %v3504 = vmul.f32 %v3096, %v3223
    %v3505 = vmul.f32 %v3097, %v3227
    %v3506 = vmul.f32 %v3098, %v3231
    %v3507 = vmul.f32 %v3099, %v3235
    %v3508 = vmul.f32 %v3100, %v3239
    %v3509 = vmul.f32 %v3101, %v3243
    %v3510 = vmul.f32 %v3102, %v3247
    %v3511 = vmul.f32 %v3103, %v3251
    %v3512 = vmul.f32 %v3104, %v3255
    %v3513 = vmul.f32 %v3105, %v3259
    %v3514 = vmul.f32 %v3106, %v3263
    %v3515 = vmul.f32 %v3107, %v3267
    %v3516 = vmul.f32 %v3108, %v3271
    %v3517 = vmul.f32 %v3109, %v3275
    %v3518 = vmul.f32 %v3110, %v3279
    %v3519 = vmul.f32 %v3111, %v3283
    %v3520 = vmul.f32 %v3112, %v3287
    %v3521 = vmul.f32 %v3113, %v3291
    %v3522 = vmul.f32 %v3114, %v3295
    %v3523 = vmul.f32 %v3115, %v3299
    %v3524 = vmul.f32 %v3116, %v3303
    %v3525 = vmul.f32 %v3117, %v3307
    %v3526 = vmul.f32 %v3118, %v3311
    %v3527 = vmul.f32 %v3119, %v3315
    %v3528 = vmul.f32 %v3120, %v3319
    %v3529 = vmul.f32 %v3121, %v3323
    %v3530 = vmul.f32 %v3122, %v3327
    %v3531 = vmul.f32 %v3123, %v3331
    %v3532 = vmul.f32 %v3124, %v3335
    %v3533 = vmul.f32 %v3125, %v3339
    %v3534 = vmul.f32 %v3126, %v3343
    %v3535 = vmul.f32 %v3127, %v3347
    %v3536 = vmul.f32 %v3128, %v3351
    %v3537 = vmul.f32 %v3129, %v3355
    %v3538 = vmul.f32 %v3130, %v3359
    %v3539 = vmul.f32 %v3131, %v3363
    %v3540 = vmul.f32 %v3132, %v3367
    %v3541 = vmul.f32 %v3133, %v3371
    %v3542 = vmul.f32 %v3134, %v3375
    %v3543 = vmul.f32 %v3135, %v3379
    %v3544 = vmul.f32 %v3136, %v3383
    %v3545 = vmul.f32 %v3137, %v3387
    %v3546 = vmul.f32 %v3138, %v3391
    %v3547 = vmul.f32 %v3139, %v3395
    %v3548 = vmul.f32 %v3140, %v3399
    %v3549 = vmul.f32 %v3141, %v3403
    %v3550 = vmul.f32 %v3142, %v3407
    %v3551 = vmul.f32 %v3143, %v3411
    %v3552 = vmul.f32 %v3144, %v3415
    %v3553 = vmul.f32 %v3145, %v3419
    %v3554 = vmul.f32 %v3146, %v3423
    %v3555 = vmul.f32 %v3147, %v3427
    %v3556 = vadd.f32 %v3492, %v3493
    %v3557 = vadd.f32 %v3556, %v3494
    %v3558 = vadd.f32 %v3557, %v3495
    %v3559 = vadd.f32 %v3558, %v3496
    %v3560 = vadd.f32 %v3559, %v3497
    %v3561 = vadd.f32 %v3560, %v3498
    %v3562 = vadd.f32 %v3561, %v3499
    %v3563 = vadd.f32 %v3562, %v3500
    %v3564 = vadd.f32 %v3563, %v3501
    %v3565 = vadd.f32 %v3564, %v3502
    %v3566 = vadd.f32 %v3565, %v3503
    %v3567 = vadd.f32 %v3566, %v3504
    %v3568 = vadd.f32 %v3567, %v3505
    %v3569 = vadd.f32 %v3568, %v3506
    %v3570 = vadd.f32 %v3569, %v3507
    %v3571 = vadd.f32 %v3570, %v3508
    %v3572 = vadd.f32 %v3571, %v3509
    %v3573 = vadd.f32 %v3572, %v3510
    %v3574 = vadd.f32 %v3573, %v3511
    %v3575 = vadd.f32 %v3574, %v3512
    %v3576 = vadd.f32 %v3575, %v3513
    %v3577 = vadd.f32 %v3576, %v3514
    %v3578 = vadd.f32 %v3577, %v3515
    %v3579 = vadd.f32 %v3578, %v3516
    %v3580 = vadd.f32 %v3579, %v3517
    %v3581 = vadd.f32 %v3580, %v3518
    %v3582 = vadd.f32 %v3581, %v3519
    %v3583 = vadd.f32 %v3582, %v3520
    %v3584 = vadd.f32 %v3583, %v3521
    %v3585 = vadd.f32 %v3584, %v3522
    %v3586 = vadd.f32 %v3585, %v3523
    %v3587 = vadd.f32 %v3586, %v3524
    %v3588 = vadd.f32 %v3587, %v3525
    %v3589 = vadd.f32 %v3588, %v3526
    %v3590 = vadd.f32 %v3589, %v3527
    %v3591 = vadd.f32 %v3590, %v3528
    %v3592 = vadd.f32 %v3591, %v3529
    %v3593 = vadd.f32 %v3592, %v3530
    %v3594 = vadd.f32 %v3593, %v3531
    %v3595 = vadd.f32 %v3594, %v3532
    %v3596 = vadd.f32 %v3595, %v3533
    %v3597 = vadd.f32 %v3596, %v3534
    %v3598 = vadd.f32 %v3597, %v3535
    %v3599 = vadd.f32 %v3598, %v3536
    %v3600 = vadd.f32 %v3599, %v3537
    %v3601 = vadd.f32 %v3600, %v3538
    %v3602 = vadd.f32 %v3601, %v3539
    %v3603 = vadd.f32 %v3602, %v3540
    %v3604 = vadd.f32 %v3603, %v3541
    %v3605 = vadd.f32 %v3604, %v3542
    %v3606 = vadd.f32 %v3605, %v3543
    %v3607 = vadd.f32 %v3606, %v3544
    %v3608 = vadd.f32 %v3607, %v3545
    %v3609 = vadd.f32 %v3608, %v3546
    %v3610 = vadd.f32 %v3609, %v3547
    %v3611 = vadd.f32 %v3610, %v3548
    %v3612 = vadd.f32 %v3611, %v3549
    %v3613 = vadd.f32 %v3612, %v3550
    %v3614 = vadd.f32 %v3613, %v3551
    %v3615 = vadd.f32 %v3614, %v3552
    %v3616 = vadd.f32 %v3615, %v3553
    %v3617 = vadd.f32 %v3616, %v3554
    %v3618 = vadd.f32 %v3617, %v3555
    %3619 = vadd.xlane.f32.xlu0 %v3618
    %v3620 = vpop.xlane.xlu0 %3619
    %v3621 = vadd.f32 %v2609, %v3620
    %s3622 = scalar_lea.vmem [#allocation5], 385
    %v3623 = vld [vmem:[%s3622] ss:$2 sm:$0xff]
    %s3624 = scalar_lea.vmem [#allocation5], 401
    %v3625 = vld [vmem:[%s3624] ss:$2 sm:$0xff]
    %s3626 = scalar_lea.vmem [#allocation5], 417
    %v3627 = vld [vmem:[%s3626] ss:$2 sm:$0xff]
    %s3628 = scalar_lea.vmem [#allocation5], 433
    %v3629 = vld [vmem:[%s3628] ss:$2 sm:$0xff]
    %s3630 = scalar_lea.vmem [#allocation5], 449
    %v3631 = vld [vmem:[%s3630] ss:$2 sm:$0xff]
    %s3632 = scalar_lea.vmem [#allocation5], 465
    %v3633 = vld [vmem:[%s3632] ss:$2 sm:$0xff]
    %s3634 = scalar_lea.vmem [#allocation5], 481
    %v3635 = vld [vmem:[%s3634] ss:$2 sm:$0xff]
    %s3636 = scalar_lea.vmem [#allocation5], 497
    %v3637 = vld [vmem:[%s3636] ss:$2 sm:$0xff]
    %v3646 = vlaneseq
    %v3647 = vshrl.u32 %v3646, 7
    %v3648 = vsub.s32 0, %v3647
    %v3649 = vrot.slane %v3623, %v3648
    %v3650 = vlaneseq
    %v3651 = vshrl.u32 %v3650, 7
    %v3652 = vsub.s32 1, %v3651
    %v3653 = vrot.slane %v3623, %v3652
    %v3654 = vlaneseq
    %v3655 = vshrl.u32 %v3654, 7
    %v3656 = vsub.s32 2, %v3655
    %v3657 = vrot.slane %v3623, %v3656
    %v3658 = vlaneseq
    %v3659 = vshrl.u32 %v3658, 7
    %v3660 = vsub.s32 3, %v3659
    %v3661 = vrot.slane %v3623, %v3660
    %v3662 = vlaneseq
    %v3663 = vshrl.u32 %v3662, 7
    %v3664 = vsub.s32 4, %v3663
    %v3665 = vrot.slane %v3623, %v3664
    %v3666 = vlaneseq
    %v3667 = vshrl.u32 %v3666, 7
    %v3668 = vsub.s32 5, %v3667
    %v3669 = vrot.slane %v3623, %v3668
    %v3670 = vlaneseq
    %v3671 = vshrl.u32 %v3670, 7
    %v3672 = vsub.s32 6, %v3671
    %v3673 = vrot.slane %v3623, %v3672
    %v3674 = vlaneseq
    %v3675 = vshrl.u32 %v3674, 7
    %v3676 = vsub.s32 7, %v3675
    %v3677 = vrot.slane %v3623, %v3676
    %v3678 = vlaneseq
    %v3679 = vshrl.u32 %v3678, 7
    %v3680 = vsub.s32 0, %v3679
    %v3681 = vrot.slane %v3625, %v3680
    %v3682 = vlaneseq
    %v3683 = vshrl.u32 %v3682, 7
    %v3684 = vsub.s32 1, %v3683
    %v3685 = vrot.slane %v3625, %v3684
    %v3686 = vlaneseq
    %v3687 = vshrl.u32 %v3686, 7
    %v3688 = vsub.s32 2, %v3687
    %v3689 = vrot.slane %v3625, %v3688
    %v3690 = vlaneseq
    %v3691 = vshrl.u32 %v3690, 7
    %v3692 = vsub.s32 3, %v3691
    %v3693 = vrot.slane %v3625, %v3692
    %v3694 = vlaneseq
    %v3695 = vshrl.u32 %v3694, 7
    %v3696 = vsub.s32 4, %v3695
    %v3697 = vrot.slane %v3625, %v3696
    %v3698 = vlaneseq
    %v3699 = vshrl.u32 %v3698, 7
    %v3700 = vsub.s32 5, %v3699
    %v3701 = vrot.slane %v3625, %v3700
    %v3702 = vlaneseq
    %v3703 = vshrl.u32 %v3702, 7
    %v3704 = vsub.s32 6, %v3703
    %v3705 = vrot.slane %v3625, %v3704
    %v3706 = vlaneseq
    %v3707 = vshrl.u32 %v3706, 7
    %v3708 = vsub.s32 7, %v3707
    %v3709 = vrot.slane %v3625, %v3708
    %v3710 = vlaneseq
    %v3711 = vshrl.u32 %v3710, 7
    %v3712 = vsub.s32 0, %v3711
    %v3713 = vrot.slane %v3627, %v3712
    %v3714 = vlaneseq
    %v3715 = vshrl.u32 %v3714, 7
    %v3716 = vsub.s32 1, %v3715
    %v3717 = vrot.slane %v3627, %v3716
    %v3718 = vlaneseq
    %v3719 = vshrl.u32 %v3718, 7
    %v3720 = vsub.s32 2, %v3719
    %v3721 = vrot.slane %v3627, %v3720
    %v3722 = vlaneseq
    %v3723 = vshrl.u32 %v3722, 7
    %v3724 = vsub.s32 3, %v3723
    %v3725 = vrot.slane %v3627, %v3724
    %v3726 = vlaneseq
    %v3727 = vshrl.u32 %v3726, 7
    %v3728 = vsub.s32 4, %v3727
    %v3729 = vrot.slane %v3627, %v3728
    %v3730 = vlaneseq
    %v3731 = vshrl.u32 %v3730, 7
    %v3732 = vsub.s32 5, %v3731
    %v3733 = vrot.slane %v3627, %v3732
    %v3734 = vlaneseq
    %v3735 = vshrl.u32 %v3734, 7
    %v3736 = vsub.s32 6, %v3735
    %v3737 = vrot.slane %v3627, %v3736
    %v3738 = vlaneseq
    %v3739 = vshrl.u32 %v3738, 7
    %v3740 = vsub.s32 7, %v3739
    %v3741 = vrot.slane %v3627, %v3740
    %v3742 = vlaneseq
    %v3743 = vshrl.u32 %v3742, 7
    %v3744 = vsub.s32 0, %v3743
    %v3745 = vrot.slane %v3629, %v3744
    %v3746 = vlaneseq
    %v3747 = vshrl.u32 %v3746, 7
    %v3748 = vsub.s32 1, %v3747
    %v3749 = vrot.slane %v3629, %v3748
    %v3750 = vlaneseq
    %v3751 = vshrl.u32 %v3750, 7
    %v3752 = vsub.s32 2, %v3751
    %v3753 = vrot.slane %v3629, %v3752
    %v3754 = vlaneseq
    %v3755 = vshrl.u32 %v3754, 7
    %v3756 = vsub.s32 3, %v3755
    %v3757 = vrot.slane %v3629, %v3756
    %v3758 = vlaneseq
    %v3759 = vshrl.u32 %v3758, 7
    %v3760 = vsub.s32 4, %v3759
    %v3761 = vrot.slane %v3629, %v3760
    %v3762 = vlaneseq
    %v3763 = vshrl.u32 %v3762, 7
    %v3764 = vsub.s32 5, %v3763
    %v3765 = vrot.slane %v3629, %v3764
    %v3766 = vlaneseq
    %v3767 = vshrl.u32 %v3766, 7
    %v3768 = vsub.s32 6, %v3767
    %v3769 = vrot.slane %v3629, %v3768
    %v3770 = vlaneseq
    %v3771 = vshrl.u32 %v3770, 7
    %v3772 = vsub.s32 7, %v3771
    %v3773 = vrot.slane %v3629, %v3772
    %v3774 = vlaneseq
    %v3775 = vshrl.u32 %v3774, 7
    %v3776 = vsub.s32 0, %v3775
    %v3777 = vrot.slane %v3631, %v3776
    %v3778 = vlaneseq
    %v3779 = vshrl.u32 %v3778, 7
    %v3780 = vsub.s32 1, %v3779
    %v3781 = vrot.slane %v3631, %v3780
    %v3782 = vlaneseq
    %v3783 = vshrl.u32 %v3782, 7
    %v3784 = vsub.s32 2, %v3783
    %v3785 = vrot.slane %v3631, %v3784
    %v3786 = vlaneseq
    %v3787 = vshrl.u32 %v3786, 7
    %v3788 = vsub.s32 3, %v3787
    %v3789 = vrot.slane %v3631, %v3788
    %v3790 = vlaneseq
    %v3791 = vshrl.u32 %v3790, 7
    %v3792 = vsub.s32 4, %v3791
    %v3793 = vrot.slane %v3631, %v3792
    %v3794 = vlaneseq
    %v3795 = vshrl.u32 %v3794, 7
    %v3796 = vsub.s32 5, %v3795
    %v3797 = vrot.slane %v3631, %v3796
    %v3798 = vlaneseq
    %v3799 = vshrl.u32 %v3798, 7
    %v3800 = vsub.s32 6, %v3799
    %v3801 = vrot.slane %v3631, %v3800
    %v3802 = vlaneseq
    %v3803 = vshrl.u32 %v3802, 7
    %v3804 = vsub.s32 7, %v3803
    %v3805 = vrot.slane %v3631, %v3804
    %v3806 = vlaneseq
    %v3807 = vshrl.u32 %v3806, 7
    %v3808 = vsub.s32 0, %v3807
    %v3809 = vrot.slane %v3633, %v3808
    %v3810 = vlaneseq
    %v3811 = vshrl.u32 %v3810, 7
    %v3812 = vsub.s32 1, %v3811
    %v3813 = vrot.slane %v3633, %v3812
    %v3814 = vlaneseq
    %v3815 = vshrl.u32 %v3814, 7
    %v3816 = vsub.s32 2, %v3815
    %v3817 = vrot.slane %v3633, %v3816
    %v3818 = vlaneseq
    %v3819 = vshrl.u32 %v3818, 7
    %v3820 = vsub.s32 3, %v3819
    %v3821 = vrot.slane %v3633, %v3820
    %v3822 = vlaneseq
    %v3823 = vshrl.u32 %v3822, 7
    %v3824 = vsub.s32 4, %v3823
    %v3825 = vrot.slane %v3633, %v3824
    %v3826 = vlaneseq
    %v3827 = vshrl.u32 %v3826, 7
    %v3828 = vsub.s32 5, %v3827
    %v3829 = vrot.slane %v3633, %v3828
    %v3830 = vlaneseq
    %v3831 = vshrl.u32 %v3830, 7
    %v3832 = vsub.s32 6, %v3831
    %v3833 = vrot.slane %v3633, %v3832
    %v3834 = vlaneseq
    %v3835 = vshrl.u32 %v3834, 7
    %v3836 = vsub.s32 7, %v3835
    %v3837 = vrot.slane %v3633, %v3836
    %v3838 = vlaneseq
    %v3839 = vshrl.u32 %v3838, 7
    %v3840 = vsub.s32 0, %v3839
    %v3841 = vrot.slane %v3635, %v3840
    %v3842 = vlaneseq
    %v3843 = vshrl.u32 %v3842, 7
    %v3844 = vsub.s32 1, %v3843
    %v3845 = vrot.slane %v3635, %v3844
    %v3846 = vlaneseq
    %v3847 = vshrl.u32 %v3846, 7
    %v3848 = vsub.s32 2, %v3847
    %v3849 = vrot.slane %v3635, %v3848
    %v3850 = vlaneseq
    %v3851 = vshrl.u32 %v3850, 7
    %v3852 = vsub.s32 3, %v3851
    %v3853 = vrot.slane %v3635, %v3852
    %v3854 = vlaneseq
    %v3855 = vshrl.u32 %v3854, 7
    %v3856 = vsub.s32 4, %v3855
    %v3857 = vrot.slane %v3635, %v3856
    %v3858 = vlaneseq
    %v3859 = vshrl.u32 %v3858, 7
    %v3860 = vsub.s32 5, %v3859
    %v3861 = vrot.slane %v3635, %v3860
    %v3862 = vlaneseq
    %v3863 = vshrl.u32 %v3862, 7
    %v3864 = vsub.s32 6, %v3863
    %v3865 = vrot.slane %v3635, %v3864
    %v3866 = vlaneseq
    %v3867 = vshrl.u32 %v3866, 7
    %v3868 = vsub.s32 7, %v3867
    %v3869 = vrot.slane %v3635, %v3868
    %v3870 = vlaneseq
    %v3871 = vshrl.u32 %v3870, 7
    %v3872 = vsub.s32 0, %v3871
    %v3873 = vrot.slane %v3637, %v3872
    %v3874 = vlaneseq
    %v3875 = vshrl.u32 %v3874, 7
    %v3876 = vsub.s32 1, %v3875
    %v3877 = vrot.slane %v3637, %v3876
    %v3878 = vlaneseq
    %v3879 = vshrl.u32 %v3878, 7
    %v3880 = vsub.s32 2, %v3879
    %v3881 = vrot.slane %v3637, %v3880
    %v3882 = vlaneseq
    %v3883 = vshrl.u32 %v3882, 7
    %v3884 = vsub.s32 3, %v3883
    %v3885 = vrot.slane %v3637, %v3884
    %v3886 = vlaneseq
    %v3887 = vshrl.u32 %v3886, 7
    %v3888 = vsub.s32 4, %v3887
    %v3889 = vrot.slane %v3637, %v3888
    %v3890 = vlaneseq
    %v3891 = vshrl.u32 %v3890, 7
    %v3892 = vsub.s32 5, %v3891
    %v3893 = vrot.slane %v3637, %v3892
    %v3894 = vlaneseq
    %v3895 = vshrl.u32 %v3894, 7
    %v3896 = vsub.s32 6, %v3895
    %v3897 = vrot.slane %v3637, %v3896
    %v3898 = vlaneseq
    %v3899 = vshrl.u32 %v3898, 7
    %v3900 = vsub.s32 7, %v3899
    %v3901 = vrot.slane %v3637, %v3900
    %v3966 = vmul.f32 %v3084, %v3649
    %v3967 = vmul.f32 %v3085, %v3653
    %v3968 = vmul.f32 %v3086, %v3657
    %v3969 = vmul.f32 %v3087, %v3661
    %v3970 = vmul.f32 %v3088, %v3665
    %v3971 = vmul.f32 %v3089, %v3669
    %v3972 = vmul.f32 %v3090, %v3673
    %v3973 = vmul.f32 %v3091, %v3677
    %v3974 = vmul.f32 %v3092, %v3681
    %v3975 = vmul.f32 %v3093, %v3685
    %v3976 = vmul.f32 %v3094, %v3689
    %v3977 = vmul.f32 %v3095, %v3693
    %v3978 = vmul.f32 %v3096, %v3697
    %v3979 = vmul.f32 %v3097, %v3701
    %v3980 = vmul.f32 %v3098, %v3705
    %v3981 = vmul.f32 %v3099, %v3709
    %v3982 = vmul.f32 %v3100, %v3713
    %v3983 = vmul.f32 %v3101, %v3717
    %v3984 = vmul.f32 %v3102, %v3721
    %v3985 = vmul.f32 %v3103, %v3725
    %v3986 = vmul.f32 %v3104, %v3729
    %v3987 = vmul.f32 %v3105, %v3733
    %v3988 = vmul.f32 %v3106, %v3737
    %v3989 = vmul.f32 %v3107, %v3741
    %v3990 = vmul.f32 %v3108, %v3745
    %v3991 = vmul.f32 %v3109, %v3749
    %v3992 = vmul.f32 %v3110, %v3753
    %v3993 = vmul.f32 %v3111, %v3757
    %v3994 = vmul.f32 %v3112, %v3761
    %v3995 = vmul.f32 %v3113, %v3765
    %v3996 = vmul.f32 %v3114, %v3769
    %v3997 = vmul.f32 %v3115, %v3773
    %v3998 = vmul.f32 %v3116, %v3777
    %v3999 = vmul.f32 %v3117, %v3781
    %v4000 = vmul.f32 %v3118, %v3785
    %v4001 = vmul.f32 %v3119, %v3789
    %v4002 = vmul.f32 %v3120, %v3793
    %v4003 = vmul.f32 %v3121, %v3797
    %v4004 = vmul.f32 %v3122, %v3801
    %v4005 = vmul.f32 %v3123, %v3805
    %v4006 = vmul.f32 %v3124, %v3809
    %v4007 = vmul.f32 %v3125, %v3813
    %v4008 = vmul.f32 %v3126, %v3817
    %v4009 = vmul.f32 %v3127, %v3821
    %v4010 = vmul.f32 %v3128, %v3825
    %v4011 = vmul.f32 %v3129, %v3829
    %v4012 = vmul.f32 %v3130, %v3833
    %v4013 = vmul.f32 %v3131, %v3837
    %v4014 = vmul.f32 %v3132, %v3841
    %v4015 = vmul.f32 %v3133, %v3845
    %v4016 = vmul.f32 %v3134, %v3849
    %v4017 = vmul.f32 %v3135, %v3853
    %v4018 = vmul.f32 %v3136, %v3857
    %v4019 = vmul.f32 %v3137, %v3861
    %v4020 = vmul.f32 %v3138, %v3865
    %v4021 = vmul.f32 %v3139, %v3869
    %v4022 = vmul.f32 %v3140, %v3873
    %v4023 = vmul.f32 %v3141, %v3877
    %v4024 = vmul.f32 %v3142, %v3881
    %v4025 = vmul.f32 %v3143, %v3885
    %v4026 = vmul.f32 %v3144, %v3889
    %v4027 = vmul.f32 %v3145, %v3893
    %v4028 = vmul.f32 %v3146, %v3897
    %v4029 = vmul.f32 %v3147, %v3901
    %v4030 = vadd.f32 %v3966, %v3967
    %v4031 = vadd.f32 %v4030, %v3968
    %v4032 = vadd.f32 %v4031, %v3969
    %v4033 = vadd.f32 %v4032, %v3970
    %v4034 = vadd.f32 %v4033, %v3971
    %v4035 = vadd.f32 %v4034, %v3972
    %v4036 = vadd.f32 %v4035, %v3973
    %v4037 = vadd.f32 %v4036, %v3974
    %v4038 = vadd.f32 %v4037, %v3975
    %v4039 = vadd.f32 %v4038, %v3976
    %v4040 = vadd.f32 %v4039, %v3977
    %v4041 = vadd.f32 %v4040, %v3978
    %v4042 = vadd.f32 %v4041, %v3979
    %v4043 = vadd.f32 %v4042, %v3980
    %v4044 = vadd.f32 %v4043, %v3981
    %v4045 = vadd.f32 %v4044, %v3982
    %v4046 = vadd.f32 %v4045, %v3983
    %v4047 = vadd.f32 %v4046, %v3984
    %v4048 = vadd.f32 %v4047, %v3985
    %v4049 = vadd.f32 %v4048, %v3986
    %v4050 = vadd.f32 %v4049, %v3987
    %v4051 = vadd.f32 %v4050, %v3988
    %v4052 = vadd.f32 %v4051, %v3989
    %v4053 = vadd.f32 %v4052, %v3990
    %v4054 = vadd.f32 %v4053, %v3991
    %v4055 = vadd.f32 %v4054, %v3992
    %v4056 = vadd.f32 %v4055, %v3993
    %v4057 = vadd.f32 %v4056, %v3994
    %v4058 = vadd.f32 %v4057, %v3995
    %v4059 = vadd.f32 %v4058, %v3996
    %v4060 = vadd.f32 %v4059, %v3997
    %v4061 = vadd.f32 %v4060, %v3998
    %v4062 = vadd.f32 %v4061, %v3999
    %v4063 = vadd.f32 %v4062, %v4000
    %v4064 = vadd.f32 %v4063, %v4001
    %v4065 = vadd.f32 %v4064, %v4002
    %v4066 = vadd.f32 %v4065, %v4003
    %v4067 = vadd.f32 %v4066, %v4004
    %v4068 = vadd.f32 %v4067, %v4005
    %v4069 = vadd.f32 %v4068, %v4006
    %v4070 = vadd.f32 %v4069, %v4007
    %v4071 = vadd.f32 %v4070, %v4008
    %v4072 = vadd.f32 %v4071, %v4009
    %v4073 = vadd.f32 %v4072, %v4010
    %v4074 = vadd.f32 %v4073, %v4011
    %v4075 = vadd.f32 %v4074, %v4012
    %v4076 = vadd.f32 %v4075, %v4013
    %v4077 = vadd.f32 %v4076, %v4014
    %v4078 = vadd.f32 %v4077, %v4015
    %v4079 = vadd.f32 %v4078, %v4016
    %v4080 = vadd.f32 %v4079, %v4017
    %v4081 = vadd.f32 %v4080, %v4018
    %v4082 = vadd.f32 %v4081, %v4019
    %v4083 = vadd.f32 %v4082, %v4020
    %v4084 = vadd.f32 %v4083, %v4021
    %v4085 = vadd.f32 %v4084, %v4022
    %v4086 = vadd.f32 %v4085, %v4023
    %v4087 = vadd.f32 %v4086, %v4024
    %v4088 = vadd.f32 %v4087, %v4025
    %v4089 = vadd.f32 %v4088, %v4026
    %v4090 = vadd.f32 %v4089, %v4027
    %v4091 = vadd.f32 %v4090, %v4028
    %v4092 = vadd.f32 %v4091, %v4029
    %4093 = vadd.xlane.f32.xlu0 %v4092
    %v4094 = vpop.xlane.xlu0 %4093
    %v4095 = vadd.f32 %v3083, %v4094
    %v4096 = vld [vmem:[#allocation2 + $0x800] sm:$0xff]
    %v4097 = vld [vmem:[#allocation2 + $0x808] sm:$0xff]
    %v4098 = vld [vmem:[#allocation2 + $0x810] sm:$0xff]
    %v4099 = vld [vmem:[#allocation2 + $0x818] sm:$0xff]
    %v4100 = vld [vmem:[#allocation2 + $0x820] sm:$0xff]
    %v4101 = vld [vmem:[#allocation2 + $0x828] sm:$0xff]
    %v4102 = vld [vmem:[#allocation2 + $0x830] sm:$0xff]
    %v4103 = vld [vmem:[#allocation2 + $0x838] sm:$0xff]
    %v4104 = vld [vmem:[#allocation2 + $0x840] sm:$0xff]
    %v4105 = vld [vmem:[#allocation2 + $0x848] sm:$0xff]
    %v4106 = vld [vmem:[#allocation2 + $0x850] sm:$0xff]
    %v4107 = vld [vmem:[#allocation2 + $0x858] sm:$0xff]
    %v4108 = vld [vmem:[#allocation2 + $0x860] sm:$0xff]
    %v4109 = vld [vmem:[#allocation2 + $0x868] sm:$0xff]
    %v4110 = vld [vmem:[#allocation2 + $0x870] sm:$0xff]
    %v4111 = vld [vmem:[#allocation2 + $0x878] sm:$0xff]
    %v4112 = vld [vmem:[#allocation2 + $0x880] sm:$0xff]
    %v4113 = vld [vmem:[#allocation2 + $0x888] sm:$0xff]
    %v4114 = vld [vmem:[#allocation2 + $0x890] sm:$0xff]
    %v4115 = vld [vmem:[#allocation2 + $0x898] sm:$0xff]
    %v4116 = vld [vmem:[#allocation2 + $0x8a0] sm:$0xff]
    %v4117 = vld [vmem:[#allocation2 + $0x8a8] sm:$0xff]
    %v4118 = vld [vmem:[#allocation2 + $0x8b0] sm:$0xff]
    %v4119 = vld [vmem:[#allocation2 + $0x8b8] sm:$0xff]
    %v4120 = vld [vmem:[#allocation2 + $0x8c0] sm:$0xff]
    %v4121 = vld [vmem:[#allocation2 + $0x8c8] sm:$0xff]
    %v4122 = vld [vmem:[#allocation2 + $0x8d0] sm:$0xff]
    %v4123 = vld [vmem:[#allocation2 + $0x8d8] sm:$0xff]
    %v4124 = vld [vmem:[#allocation2 + $0x8e0] sm:$0xff]
    %v4125 = vld [vmem:[#allocation2 + $0x8e8] sm:$0xff]
    %v4126 = vld [vmem:[#allocation2 + $0x8f0] sm:$0xff]
    %v4127 = vld [vmem:[#allocation2 + $0x8f8] sm:$0xff]
    %v4128 = vld [vmem:[#allocation2 + $0x900] sm:$0xff]
    %v4129 = vld [vmem:[#allocation2 + $0x908] sm:$0xff]
    %v4130 = vld [vmem:[#allocation2 + $0x910] sm:$0xff]
    %v4131 = vld [vmem:[#allocation2 + $0x918] sm:$0xff]
    %v4132 = vld [vmem:[#allocation2 + $0x920] sm:$0xff]
    %v4133 = vld [vmem:[#allocation2 + $0x928] sm:$0xff]
    %v4134 = vld [vmem:[#allocation2 + $0x930] sm:$0xff]
    %v4135 = vld [vmem:[#allocation2 + $0x938] sm:$0xff]
    %v4136 = vld [vmem:[#allocation2 + $0x940] sm:$0xff]
    %v4137 = vld [vmem:[#allocation2 + $0x948] sm:$0xff]
    %v4138 = vld [vmem:[#allocation2 + $0x950] sm:$0xff]
    %v4139 = vld [vmem:[#allocation2 + $0x958] sm:$0xff]
    %v4140 = vld [vmem:[#allocation2 + $0x960] sm:$0xff]
    %v4141 = vld [vmem:[#allocation2 + $0x968] sm:$0xff]
    %v4142 = vld [vmem:[#allocation2 + $0x970] sm:$0xff]
    %v4143 = vld [vmem:[#allocation2 + $0x978] sm:$0xff]
    %v4144 = vld [vmem:[#allocation2 + $0x980] sm:$0xff]
    %v4145 = vld [vmem:[#allocation2 + $0x988] sm:$0xff]
    %v4146 = vld [vmem:[#allocation2 + $0x990] sm:$0xff]
    %v4147 = vld [vmem:[#allocation2 + $0x998] sm:$0xff]
    %v4148 = vld [vmem:[#allocation2 + $0x9a0] sm:$0xff]
    %v4149 = vld [vmem:[#allocation2 + $0x9a8] sm:$0xff]
    %v4150 = vld [vmem:[#allocation2 + $0x9b0] sm:$0xff]
    %v4151 = vld [vmem:[#allocation2 + $0x9b8] sm:$0xff]
    %v4152 = vld [vmem:[#allocation2 + $0x9c0] sm:$0xff]
    %v4153 = vld [vmem:[#allocation2 + $0x9c8] sm:$0xff]
    %v4154 = vld [vmem:[#allocation2 + $0x9d0] sm:$0xff]
    %v4155 = vld [vmem:[#allocation2 + $0x9d8] sm:$0xff]
    %v4156 = vld [vmem:[#allocation2 + $0x9e0] sm:$0xff]
    %v4157 = vld [vmem:[#allocation2 + $0x9e8] sm:$0xff]
    %v4158 = vld [vmem:[#allocation2 + $0x9f0] sm:$0xff]
    %v4159 = vld [vmem:[#allocation2 + $0x9f8] sm:$0xff]
    %s4160 = scalar_lea.vmem [#allocation5], 512
    %v4161 = vld [vmem:[%s4160] ss:$2 sm:$0xff]
    %s4162 = scalar_lea.vmem [#allocation5], 528
    %v4163 = vld [vmem:[%s4162] ss:$2 sm:$0xff]
    %s4164 = scalar_lea.vmem [#allocation5], 544
    %v4165 = vld [vmem:[%s4164] ss:$2 sm:$0xff]
    %s4166 = scalar_lea.vmem [#allocation5], 560
    %v4167 = vld [vmem:[%s4166] ss:$2 sm:$0xff]
    %s4168 = scalar_lea.vmem [#allocation5], 576
    %v4169 = vld [vmem:[%s4168] ss:$2 sm:$0xff]
    %s4170 = scalar_lea.vmem [#allocation5], 592
    %v4171 = vld [vmem:[%s4170] ss:$2 sm:$0xff]
    %s4172 = scalar_lea.vmem [#allocation5], 608
    %v4173 = vld [vmem:[%s4172] ss:$2 sm:$0xff]
    %s4174 = scalar_lea.vmem [#allocation5], 624
    %v4175 = vld [vmem:[%s4174] ss:$2 sm:$0xff]
    %v4184 = vlaneseq
    %v4185 = vshrl.u32 %v4184, 7
    %v4186 = vsub.s32 0, %v4185
    %v4187 = vrot.slane %v4161, %v4186
    %v4188 = vlaneseq
    %v4189 = vshrl.u32 %v4188, 7
    %v4190 = vsub.s32 1, %v4189
    %v4191 = vrot.slane %v4161, %v4190
    %v4192 = vlaneseq
    %v4193 = vshrl.u32 %v4192, 7
    %v4194 = vsub.s32 2, %v4193
    %v4195 = vrot.slane %v4161, %v4194
    %v4196 = vlaneseq
    %v4197 = vshrl.u32 %v4196, 7
    %v4198 = vsub.s32 3, %v4197
    %v4199 = vrot.slane %v4161, %v4198
    %v4200 = vlaneseq
    %v4201 = vshrl.u32 %v4200, 7
    %v4202 = vsub.s32 4, %v4201
    %v4203 = vrot.slane %v4161, %v4202
    %v4204 = vlaneseq
    %v4205 = vshrl.u32 %v4204, 7
    %v4206 = vsub.s32 5, %v4205
    %v4207 = vrot.slane %v4161, %v4206
    %v4208 = vlaneseq
    %v4209 = vshrl.u32 %v4208, 7
    %v4210 = vsub.s32 6, %v4209
    %v4211 = vrot.slane %v4161, %v4210
    %v4212 = vlaneseq
    %v4213 = vshrl.u32 %v4212, 7
    %v4214 = vsub.s32 7, %v4213
    %v4215 = vrot.slane %v4161, %v4214
    %v4216 = vlaneseq
    %v4217 = vshrl.u32 %v4216, 7
    %v4218 = vsub.s32 0, %v4217
    %v4219 = vrot.slane %v4163, %v4218
    %v4220 = vlaneseq
    %v4221 = vshrl.u32 %v4220, 7
    %v4222 = vsub.s32 1, %v4221
    %v4223 = vrot.slane %v4163, %v4222
    %v4224 = vlaneseq
    %v4225 = vshrl.u32 %v4224, 7
    %v4226 = vsub.s32 2, %v4225
    %v4227 = vrot.slane %v4163, %v4226
    %v4228 = vlaneseq
    %v4229 = vshrl.u32 %v4228, 7
    %v4230 = vsub.s32 3, %v4229
    %v4231 = vrot.slane %v4163, %v4230
    %v4232 = vlaneseq
    %v4233 = vshrl.u32 %v4232, 7
    %v4234 = vsub.s32 4, %v4233
    %v4235 = vrot.slane %v4163, %v4234
    %v4236 = vlaneseq
    %v4237 = vshrl.u32 %v4236, 7
    %v4238 = vsub.s32 5, %v4237
    %v4239 = vrot.slane %v4163, %v4238
    %v4240 = vlaneseq
    %v4241 = vshrl.u32 %v4240, 7
    %v4242 = vsub.s32 6, %v4241
    %v4243 = vrot.slane %v4163, %v4242
    %v4244 = vlaneseq
    %v4245 = vshrl.u32 %v4244, 7
    %v4246 = vsub.s32 7, %v4245
    %v4247 = vrot.slane %v4163, %v4246
    %v4248 = vlaneseq
    %v4249 = vshrl.u32 %v4248, 7
    %v4250 = vsub.s32 0, %v4249
    %v4251 = vrot.slane %v4165, %v4250
    %v4252 = vlaneseq
    %v4253 = vshrl.u32 %v4252, 7
    %v4254 = vsub.s32 1, %v4253
    %v4255 = vrot.slane %v4165, %v4254
    %v4256 = vlaneseq
    %v4257 = vshrl.u32 %v4256, 7
    %v4258 = vsub.s32 2, %v4257
    %v4259 = vrot.slane %v4165, %v4258
    %v4260 = vlaneseq
    %v4261 = vshrl.u32 %v4260, 7
    %v4262 = vsub.s32 3, %v4261
    %v4263 = vrot.slane %v4165, %v4262
    %v4264 = vlaneseq
    %v4265 = vshrl.u32 %v4264, 7
    %v4266 = vsub.s32 4, %v4265
    %v4267 = vrot.slane %v4165, %v4266
    %v4268 = vlaneseq
    %v4269 = vshrl.u32 %v4268, 7
    %v4270 = vsub.s32 5, %v4269
    %v4271 = vrot.slane %v4165, %v4270
    %v4272 = vlaneseq
    %v4273 = vshrl.u32 %v4272, 7
    %v4274 = vsub.s32 6, %v4273
    %v4275 = vrot.slane %v4165, %v4274
    %v4276 = vlaneseq
    %v4277 = vshrl.u32 %v4276, 7
    %v4278 = vsub.s32 7, %v4277
    %v4279 = vrot.slane %v4165, %v4278
    %v4280 = vlaneseq
    %v4281 = vshrl.u32 %v4280, 7
    %v4282 = vsub.s32 0, %v4281
    %v4283 = vrot.slane %v4167, %v4282
    %v4284 = vlaneseq
    %v4285 = vshrl.u32 %v4284, 7
    %v4286 = vsub.s32 1, %v4285
    %v4287 = vrot.slane %v4167, %v4286
    %v4288 = vlaneseq
    %v4289 = vshrl.u32 %v4288, 7
    %v4290 = vsub.s32 2, %v4289
    %v4291 = vrot.slane %v4167, %v4290
    %v4292 = vlaneseq
    %v4293 = vshrl.u32 %v4292, 7
    %v4294 = vsub.s32 3, %v4293
    %v4295 = vrot.slane %v4167, %v4294
    %v4296 = vlaneseq
    %v4297 = vshrl.u32 %v4296, 7
    %v4298 = vsub.s32 4, %v4297
    %v4299 = vrot.slane %v4167, %v4298
    %v4300 = vlaneseq
    %v4301 = vshrl.u32 %v4300, 7
    %v4302 = vsub.s32 5, %v4301
    %v4303 = vrot.slane %v4167, %v4302
    %v4304 = vlaneseq
    %v4305 = vshrl.u32 %v4304, 7
    %v4306 = vsub.s32 6, %v4305
    %v4307 = vrot.slane %v4167, %v4306
    %v4308 = vlaneseq
    %v4309 = vshrl.u32 %v4308, 7
    %v4310 = vsub.s32 7, %v4309
    %v4311 = vrot.slane %v4167, %v4310
    %v4312 = vlaneseq
    %v4313 = vshrl.u32 %v4312, 7
    %v4314 = vsub.s32 0, %v4313
    %v4315 = vrot.slane %v4169, %v4314
    %v4316 = vlaneseq
    %v4317 = vshrl.u32 %v4316, 7
    %v4318 = vsub.s32 1, %v4317
    %v4319 = vrot.slane %v4169, %v4318
    %v4320 = vlaneseq
    %v4321 = vshrl.u32 %v4320, 7
    %v4322 = vsub.s32 2, %v4321
    %v4323 = vrot.slane %v4169, %v4322
    %v4324 = vlaneseq
    %v4325 = vshrl.u32 %v4324, 7
    %v4326 = vsub.s32 3, %v4325
    %v4327 = vrot.slane %v4169, %v4326
    %v4328 = vlaneseq
    %v4329 = vshrl.u32 %v4328, 7
    %v4330 = vsub.s32 4, %v4329
    %v4331 = vrot.slane %v4169, %v4330
    %v4332 = vlaneseq
    %v4333 = vshrl.u32 %v4332, 7
    %v4334 = vsub.s32 5, %v4333
    %v4335 = vrot.slane %v4169, %v4334
    %v4336 = vlaneseq
    %v4337 = vshrl.u32 %v4336, 7
    %v4338 = vsub.s32 6, %v4337
    %v4339 = vrot.slane %v4169, %v4338
    %v4340 = vlaneseq
    %v4341 = vshrl.u32 %v4340, 7
    %v4342 = vsub.s32 7, %v4341
    %v4343 = vrot.slane %v4169, %v4342
    %v4344 = vlaneseq
    %v4345 = vshrl.u32 %v4344, 7
    %v4346 = vsub.s32 0, %v4345
    %v4347 = vrot.slane %v4171, %v4346
    %v4348 = vlaneseq
    %v4349 = vshrl.u32 %v4348, 7
    %v4350 = vsub.s32 1, %v4349
    %v4351 = vrot.slane %v4171, %v4350
    %v4352 = vlaneseq
    %v4353 = vshrl.u32 %v4352, 7
    %v4354 = vsub.s32 2, %v4353
    %v4355 = vrot.slane %v4171, %v4354
    %v4356 = vlaneseq
    %v4357 = vshrl.u32 %v4356, 7
    %v4358 = vsub.s32 3, %v4357
    %v4359 = vrot.slane %v4171, %v4358
    %v4360 = vlaneseq
    %v4361 = vshrl.u32 %v4360, 7
    %v4362 = vsub.s32 4, %v4361
    %v4363 = vrot.slane %v4171, %v4362
    %v4364 = vlaneseq
    %v4365 = vshrl.u32 %v4364, 7
    %v4366 = vsub.s32 5, %v4365
    %v4367 = vrot.slane %v4171, %v4366
    %v4368 = vlaneseq
    %v4369 = vshrl.u32 %v4368, 7
    %v4370 = vsub.s32 6, %v4369
    %v4371 = vrot.slane %v4171, %v4370
    %v4372 = vlaneseq
    %v4373 = vshrl.u32 %v4372, 7
    %v4374 = vsub.s32 7, %v4373
    %v4375 = vrot.slane %v4171, %v4374
    %v4376 = vlaneseq
    %v4377 = vshrl.u32 %v4376, 7
    %v4378 = vsub.s32 0, %v4377
    %v4379 = vrot.slane %v4173, %v4378
    %v4380 = vlaneseq
    %v4381 = vshrl.u32 %v4380, 7
    %v4382 = vsub.s32 1, %v4381
    %v4383 = vrot.slane %v4173, %v4382
    %v4384 = vlaneseq
    %v4385 = vshrl.u32 %v4384, 7
    %v4386 = vsub.s32 2, %v4385
    %v4387 = vrot.slane %v4173, %v4386
    %v4388 = vlaneseq
    %v4389 = vshrl.u32 %v4388, 7
    %v4390 = vsub.s32 3, %v4389
    %v4391 = vrot.slane %v4173, %v4390
    %v4392 = vlaneseq
    %v4393 = vshrl.u32 %v4392, 7
    %v4394 = vsub.s32 4, %v4393
    %v4395 = vrot.slane %v4173, %v4394
    %v4396 = vlaneseq
    %v4397 = vshrl.u32 %v4396, 7
    %v4398 = vsub.s32 5, %v4397
    %v4399 = vrot.slane %v4173, %v4398
    %v4400 = vlaneseq
    %v4401 = vshrl.u32 %v4400, 7
    %v4402 = vsub.s32 6, %v4401
    %v4403 = vrot.slane %v4173, %v4402
    %v4404 = vlaneseq
    %v4405 = vshrl.u32 %v4404, 7
    %v4406 = vsub.s32 7, %v4405
    %v4407 = vrot.slane %v4173, %v4406
    %v4408 = vlaneseq
    %v4409 = vshrl.u32 %v4408, 7
    %v4410 = vsub.s32 0, %v4409
    %v4411 = vrot.slane %v4175, %v4410
    %v4412 = vlaneseq
    %v4413 = vshrl.u32 %v4412, 7
    %v4414 = vsub.s32 1, %v4413
    %v4415 = vrot.slane %v4175, %v4414
    %v4416 = vlaneseq
    %v4417 = vshrl.u32 %v4416, 7
    %v4418 = vsub.s32 2, %v4417
    %v4419 = vrot.slane %v4175, %v4418
    %v4420 = vlaneseq
    %v4421 = vshrl.u32 %v4420, 7
    %v4422 = vsub.s32 3, %v4421
    %v4423 = vrot.slane %v4175, %v4422
    %v4424 = vlaneseq
    %v4425 = vshrl.u32 %v4424, 7
    %v4426 = vsub.s32 4, %v4425
    %v4427 = vrot.slane %v4175, %v4426
    %v4428 = vlaneseq
    %v4429 = vshrl.u32 %v4428, 7
    %v4430 = vsub.s32 5, %v4429
    %v4431 = vrot.slane %v4175, %v4430
    %v4432 = vlaneseq
    %v4433 = vshrl.u32 %v4432, 7
    %v4434 = vsub.s32 6, %v4433
    %v4435 = vrot.slane %v4175, %v4434
    %v4436 = vlaneseq
    %v4437 = vshrl.u32 %v4436, 7
    %v4438 = vsub.s32 7, %v4437
    %v4439 = vrot.slane %v4175, %v4438
    %v4504 = vmul.f32 %v4096, %v4187
    %v4505 = vmul.f32 %v4097, %v4191
    %v4506 = vmul.f32 %v4098, %v4195
    %v4507 = vmul.f32 %v4099, %v4199
    %v4508 = vmul.f32 %v4100, %v4203
    %v4509 = vmul.f32 %v4101, %v4207
    %v4510 = vmul.f32 %v4102, %v4211
    %v4511 = vmul.f32 %v4103, %v4215
    %v4512 = vmul.f32 %v4104, %v4219
    %v4513 = vmul.f32 %v4105, %v4223
    %v4514 = vmul.f32 %v4106, %v4227
    %v4515 = vmul.f32 %v4107, %v4231
    %v4516 = vmul.f32 %v4108, %v4235
    %v4517 = vmul.f32 %v4109, %v4239
    %v4518 = vmul.f32 %v4110, %v4243
    %v4519 = vmul.f32 %v4111, %v4247
    %v4520 = vmul.f32 %v4112, %v4251
    %v4521 = vmul.f32 %v4113, %v4255
    %v4522 = vmul.f32 %v4114, %v4259
    %v4523 = vmul.f32 %v4115, %v4263
    %v4524 = vmul.f32 %v4116, %v4267
    %v4525 = vmul.f32 %v4117, %v4271
    %v4526 = vmul.f32 %v4118, %v4275
    %v4527 = vmul.f32 %v4119, %v4279
    %v4528 = vmul.f32 %v4120, %v4283
    %v4529 = vmul.f32 %v4121, %v4287
    %v4530 = vmul.f32 %v4122, %v4291
    %v4531 = vmul.f32 %v4123, %v4295
    %v4532 = vmul.f32 %v4124, %v4299
    %v4533 = vmul.f32 %v4125, %v4303
    %v4534 = vmul.f32 %v4126, %v4307
    %v4535 = vmul.f32 %v4127, %v4311
    %v4536 = vmul.f32 %v4128, %v4315
    %v4537 = vmul.f32 %v4129, %v4319
    %v4538 = vmul.f32 %v4130, %v4323
    %v4539 = vmul.f32 %v4131, %v4327
    %v4540 = vmul.f32 %v4132, %v4331
    %v4541 = vmul.f32 %v4133, %v4335
    %v4542 = vmul.f32 %v4134, %v4339
    %v4543 = vmul.f32 %v4135, %v4343
    %v4544 = vmul.f32 %v4136, %v4347
    %v4545 = vmul.f32 %v4137, %v4351
    %v4546 = vmul.f32 %v4138, %v4355
    %v4547 = vmul.f32 %v4139, %v4359
    %v4548 = vmul.f32 %v4140, %v4363
    %v4549 = vmul.f32 %v4141, %v4367
    %v4550 = vmul.f32 %v4142, %v4371
    %v4551 = vmul.f32 %v4143, %v4375
    %v4552 = vmul.f32 %v4144, %v4379
    %v4553 = vmul.f32 %v4145, %v4383
    %v4554 = vmul.f32 %v4146, %v4387
    %v4555 = vmul.f32 %v4147, %v4391
    %v4556 = vmul.f32 %v4148, %v4395
    %v4557 = vmul.f32 %v4149, %v4399
    %v4558 = vmul.f32 %v4150, %v4403
    %v4559 = vmul.f32 %v4151, %v4407
    %v4560 = vmul.f32 %v4152, %v4411
    %v4561 = vmul.f32 %v4153, %v4415
    %v4562 = vmul.f32 %v4154, %v4419
    %v4563 = vmul.f32 %v4155, %v4423
    %v4564 = vmul.f32 %v4156, %v4427
    %v4565 = vmul.f32 %v4157, %v4431
    %v4566 = vmul.f32 %v4158, %v4435
    %v4567 = vmul.f32 %v4159, %v4439
    %v4568 = vadd.f32 %v4504, %v4505
    %v4569 = vadd.f32 %v4568, %v4506
    %v4570 = vadd.f32 %v4569, %v4507
    %v4571 = vadd.f32 %v4570, %v4508
    %v4572 = vadd.f32 %v4571, %v4509
    %v4573 = vadd.f32 %v4572, %v4510
    %v4574 = vadd.f32 %v4573, %v4511
    %v4575 = vadd.f32 %v4574, %v4512
    %v4576 = vadd.f32 %v4575, %v4513
    %v4577 = vadd.f32 %v4576, %v4514
    %v4578 = vadd.f32 %v4577, %v4515
    %v4579 = vadd.f32 %v4578, %v4516
    %v4580 = vadd.f32 %v4579, %v4517
    %v4581 = vadd.f32 %v4580, %v4518
    %v4582 = vadd.f32 %v4581, %v4519
    %v4583 = vadd.f32 %v4582, %v4520
    %v4584 = vadd.f32 %v4583, %v4521
    %v4585 = vadd.f32 %v4584, %v4522
    %v4586 = vadd.f32 %v4585, %v4523
    %v4587 = vadd.f32 %v4586, %v4524
    %v4588 = vadd.f32 %v4587, %v4525
    %v4589 = vadd.f32 %v4588, %v4526
    %v4590 = vadd.f32 %v4589, %v4527
    %v4591 = vadd.f32 %v4590, %v4528
    %v4592 = vadd.f32 %v4591, %v4529
    %v4593 = vadd.f32 %v4592, %v4530
    %v4594 = vadd.f32 %v4593, %v4531
    %v4595 = vadd.f32 %v4594, %v4532
    %v4596 = vadd.f32 %v4595, %v4533
    %v4597 = vadd.f32 %v4596, %v4534
    %v4598 = vadd.f32 %v4597, %v4535
    %v4599 = vadd.f32 %v4598, %v4536
    %v4600 = vadd.f32 %v4599, %v4537
    %v4601 = vadd.f32 %v4600, %v4538
    %v4602 = vadd.f32 %v4601, %v4539
    %v4603 = vadd.f32 %v4602, %v4540
    %v4604 = vadd.f32 %v4603, %v4541
    %v4605 = vadd.f32 %v4604, %v4542
    %v4606 = vadd.f32 %v4605, %v4543
    %v4607 = vadd.f32 %v4606, %v4544
    %v4608 = vadd.f32 %v4607, %v4545
    %v4609 = vadd.f32 %v4608, %v4546
    %v4610 = vadd.f32 %v4609, %v4547
    %v4611 = vadd.f32 %v4610, %v4548
    %v4612 = vadd.f32 %v4611, %v4549
    %v4613 = vadd.f32 %v4612, %v4550
    %v4614 = vadd.f32 %v4613, %v4551
    %v4615 = vadd.f32 %v4614, %v4552
    %v4616 = vadd.f32 %v4615, %v4553
    %v4617 = vadd.f32 %v4616, %v4554
    %v4618 = vadd.f32 %v4617, %v4555
    %v4619 = vadd.f32 %v4618, %v4556
    %v4620 = vadd.f32 %v4619, %v4557
    %v4621 = vadd.f32 %v4620, %v4558
    %v4622 = vadd.f32 %v4621, %v4559
    %v4623 = vadd.f32 %v4622, %v4560
    %v4624 = vadd.f32 %v4623, %v4561
    %v4625 = vadd.f32 %v4624, %v4562
    %v4626 = vadd.f32 %v4625, %v4563
    %v4627 = vadd.f32 %v4626, %v4564
    %v4628 = vadd.f32 %v4627, %v4565
    %v4629 = vadd.f32 %v4628, %v4566
    %v4630 = vadd.f32 %v4629, %v4567
    %4631 = vadd.xlane.f32.xlu0 %v4630
    %v4632 = vpop.xlane.xlu0 %4631
    %v4633 = vadd.f32 %v3621, %v4632
    %s4634 = scalar_lea.vmem [#allocation5], 513
    %v4635 = vld [vmem:[%s4634] ss:$2 sm:$0xff]
    %s4636 = scalar_lea.vmem [#allocation5], 529
    %v4637 = vld [vmem:[%s4636] ss:$2 sm:$0xff]
    %s4638 = scalar_lea.vmem [#allocation5], 545
    %v4639 = vld [vmem:[%s4638] ss:$2 sm:$0xff]
    %s4640 = scalar_lea.vmem [#allocation5], 561
    %v4641 = vld [vmem:[%s4640] ss:$2 sm:$0xff]
    %s4642 = scalar_lea.vmem [#allocation5], 577
    %v4643 = vld [vmem:[%s4642] ss:$2 sm:$0xff]
    %s4644 = scalar_lea.vmem [#allocation5], 593
    %v4645 = vld [vmem:[%s4644] ss:$2 sm:$0xff]
    %s4646 = scalar_lea.vmem [#allocation5], 609
    %v4647 = vld [vmem:[%s4646] ss:$2 sm:$0xff]
    %s4648 = scalar_lea.vmem [#allocation5], 625
    %v4649 = vld [vmem:[%s4648] ss:$2 sm:$0xff]
    %v4658 = vlaneseq
    %v4659 = vshrl.u32 %v4658, 7
    %v4660 = vsub.s32 0, %v4659
    %v4661 = vrot.slane %v4635, %v4660
    %v4662 = vlaneseq
    %v4663 = vshrl.u32 %v4662, 7
    %v4664 = vsub.s32 1, %v4663
    %v4665 = vrot.slane %v4635, %v4664
    %v4666 = vlaneseq
    %v4667 = vshrl.u32 %v4666, 7
    %v4668 = vsub.s32 2, %v4667
    %v4669 = vrot.slane %v4635, %v4668
    %v4670 = vlaneseq
    %v4671 = vshrl.u32 %v4670, 7
    %v4672 = vsub.s32 3, %v4671
    %v4673 = vrot.slane %v4635, %v4672
    %v4674 = vlaneseq
    %v4675 = vshrl.u32 %v4674, 7
    %v4676 = vsub.s32 4, %v4675
    %v4677 = vrot.slane %v4635, %v4676
    %v4678 = vlaneseq
    %v4679 = vshrl.u32 %v4678, 7
    %v4680 = vsub.s32 5, %v4679
    %v4681 = vrot.slane %v4635, %v4680
    %v4682 = vlaneseq
    %v4683 = vshrl.u32 %v4682, 7
    %v4684 = vsub.s32 6, %v4683
    %v4685 = vrot.slane %v4635, %v4684
    %v4686 = vlaneseq
    %v4687 = vshrl.u32 %v4686, 7
    %v4688 = vsub.s32 7, %v4687
    %v4689 = vrot.slane %v4635, %v4688
    %v4690 = vlaneseq
    %v4691 = vshrl.u32 %v4690, 7
    %v4692 = vsub.s32 0, %v4691
    %v4693 = vrot.slane %v4637, %v4692
    %v4694 = vlaneseq
    %v4695 = vshrl.u32 %v4694, 7
    %v4696 = vsub.s32 1, %v4695
    %v4697 = vrot.slane %v4637, %v4696
    %v4698 = vlaneseq
    %v4699 = vshrl.u32 %v4698, 7
    %v4700 = vsub.s32 2, %v4699
    %v4701 = vrot.slane %v4637, %v4700
    %v4702 = vlaneseq
    %v4703 = vshrl.u32 %v4702, 7
    %v4704 = vsub.s32 3, %v4703
    %v4705 = vrot.slane %v4637, %v4704
    %v4706 = vlaneseq
    %v4707 = vshrl.u32 %v4706, 7
    %v4708 = vsub.s32 4, %v4707
    %v4709 = vrot.slane %v4637, %v4708
    %v4710 = vlaneseq
    %v4711 = vshrl.u32 %v4710, 7
    %v4712 = vsub.s32 5, %v4711
    %v4713 = vrot.slane %v4637, %v4712
    %v4714 = vlaneseq
    %v4715 = vshrl.u32 %v4714, 7
    %v4716 = vsub.s32 6, %v4715
    %v4717 = vrot.slane %v4637, %v4716
    %v4718 = vlaneseq
    %v4719 = vshrl.u32 %v4718, 7
    %v4720 = vsub.s32 7, %v4719
    %v4721 = vrot.slane %v4637, %v4720
    %v4722 = vlaneseq
    %v4723 = vshrl.u32 %v4722, 7
    %v4724 = vsub.s32 0, %v4723
    %v4725 = vrot.slane %v4639, %v4724
    %v4726 = vlaneseq
    %v4727 = vshrl.u32 %v4726, 7
    %v4728 = vsub.s32 1, %v4727
    %v4729 = vrot.slane %v4639, %v4728
    %v4730 = vlaneseq
    %v4731 = vshrl.u32 %v4730, 7
    %v4732 = vsub.s32 2, %v4731
    %v4733 = vrot.slane %v4639, %v4732
    %v4734 = vlaneseq
    %v4735 = vshrl.u32 %v4734, 7
    %v4736 = vsub.s32 3, %v4735
    %v4737 = vrot.slane %v4639, %v4736
    %v4738 = vlaneseq
    %v4739 = vshrl.u32 %v4738, 7
    %v4740 = vsub.s32 4, %v4739
    %v4741 = vrot.slane %v4639, %v4740
    %v4742 = vlaneseq
    %v4743 = vshrl.u32 %v4742, 7
    %v4744 = vsub.s32 5, %v4743
    %v4745 = vrot.slane %v4639, %v4744
    %v4746 = vlaneseq
    %v4747 = vshrl.u32 %v4746, 7
    %v4748 = vsub.s32 6, %v4747
    %v4749 = vrot.slane %v4639, %v4748
    %v4750 = vlaneseq
    %v4751 = vshrl.u32 %v4750, 7
    %v4752 = vsub.s32 7, %v4751
    %v4753 = vrot.slane %v4639, %v4752
    %v4754 = vlaneseq
    %v4755 = vshrl.u32 %v4754, 7
    %v4756 = vsub.s32 0, %v4755
    %v4757 = vrot.slane %v4641, %v4756
    %v4758 = vlaneseq
    %v4759 = vshrl.u32 %v4758, 7
    %v4760 = vsub.s32 1, %v4759
    %v4761 = vrot.slane %v4641, %v4760
    %v4762 = vlaneseq
    %v4763 = vshrl.u32 %v4762, 7
    %v4764 = vsub.s32 2, %v4763
    %v4765 = vrot.slane %v4641, %v4764
    %v4766 = vlaneseq
    %v4767 = vshrl.u32 %v4766, 7
    %v4768 = vsub.s32 3, %v4767
    %v4769 = vrot.slane %v4641, %v4768
    %v4770 = vlaneseq
    %v4771 = vshrl.u32 %v4770, 7
    %v4772 = vsub.s32 4, %v4771
    %v4773 = vrot.slane %v4641, %v4772
    %v4774 = vlaneseq
    %v4775 = vshrl.u32 %v4774, 7
    %v4776 = vsub.s32 5, %v4775
    %v4777 = vrot.slane %v4641, %v4776
    %v4778 = vlaneseq
    %v4779 = vshrl.u32 %v4778, 7
    %v4780 = vsub.s32 6, %v4779
    %v4781 = vrot.slane %v4641, %v4780
    %v4782 = vlaneseq
    %v4783 = vshrl.u32 %v4782, 7
    %v4784 = vsub.s32 7, %v4783
    %v4785 = vrot.slane %v4641, %v4784
    %v4786 = vlaneseq
    %v4787 = vshrl.u32 %v4786, 7
    %v4788 = vsub.s32 0, %v4787
    %v4789 = vrot.slane %v4643, %v4788
    %v4790 = vlaneseq
    %v4791 = vshrl.u32 %v4790, 7
    %v4792 = vsub.s32 1, %v4791
    %v4793 = vrot.slane %v4643, %v4792
    %v4794 = vlaneseq
    %v4795 = vshrl.u32 %v4794, 7
    %v4796 = vsub.s32 2, %v4795
    %v4797 = vrot.slane %v4643, %v4796
    %v4798 = vlaneseq
    %v4799 = vshrl.u32 %v4798, 7
    %v4800 = vsub.s32 3, %v4799
    %v4801 = vrot.slane %v4643, %v4800
    %v4802 = vlaneseq
    %v4803 = vshrl.u32 %v4802, 7
    %v4804 = vsub.s32 4, %v4803
    %v4805 = vrot.slane %v4643, %v4804
    %v4806 = vlaneseq
    %v4807 = vshrl.u32 %v4806, 7
    %v4808 = vsub.s32 5, %v4807
    %v4809 = vrot.slane %v4643, %v4808
    %v4810 = vlaneseq
    %v4811 = vshrl.u32 %v4810, 7
    %v4812 = vsub.s32 6, %v4811
    %v4813 = vrot.slane %v4643, %v4812
    %v4814 = vlaneseq
    %v4815 = vshrl.u32 %v4814, 7
    %v4816 = vsub.s32 7, %v4815
    %v4817 = vrot.slane %v4643, %v4816
    %v4818 = vlaneseq
    %v4819 = vshrl.u32 %v4818, 7
    %v4820 = vsub.s32 0, %v4819
    %v4821 = vrot.slane %v4645, %v4820
    %v4822 = vlaneseq
    %v4823 = vshrl.u32 %v4822, 7
    %v4824 = vsub.s32 1, %v4823
    %v4825 = vrot.slane %v4645, %v4824
    %v4826 = vlaneseq
    %v4827 = vshrl.u32 %v4826, 7
    %v4828 = vsub.s32 2, %v4827
    %v4829 = vrot.slane %v4645, %v4828
    %v4830 = vlaneseq
    %v4831 = vshrl.u32 %v4830, 7
    %v4832 = vsub.s32 3, %v4831
    %v4833 = vrot.slane %v4645, %v4832
    %v4834 = vlaneseq
    %v4835 = vshrl.u32 %v4834, 7
    %v4836 = vsub.s32 4, %v4835
    %v4837 = vrot.slane %v4645, %v4836
    %v4838 = vlaneseq
    %v4839 = vshrl.u32 %v4838, 7
    %v4840 = vsub.s32 5, %v4839
    %v4841 = vrot.slane %v4645, %v4840
    %v4842 = vlaneseq
    %v4843 = vshrl.u32 %v4842, 7
    %v4844 = vsub.s32 6, %v4843
    %v4845 = vrot.slane %v4645, %v4844
    %v4846 = vlaneseq
    %v4847 = vshrl.u32 %v4846, 7
    %v4848 = vsub.s32 7, %v4847
    %v4849 = vrot.slane %v4645, %v4848
    %v4850 = vlaneseq
    %v4851 = vshrl.u32 %v4850, 7
    %v4852 = vsub.s32 0, %v4851
    %v4853 = vrot.slane %v4647, %v4852
    %v4854 = vlaneseq
    %v4855 = vshrl.u32 %v4854, 7
    %v4856 = vsub.s32 1, %v4855
    %v4857 = vrot.slane %v4647, %v4856
    %v4858 = vlaneseq
    %v4859 = vshrl.u32 %v4858, 7
    %v4860 = vsub.s32 2, %v4859
    %v4861 = vrot.slane %v4647, %v4860
    %v4862 = vlaneseq
    %v4863 = vshrl.u32 %v4862, 7
    %v4864 = vsub.s32 3, %v4863
    %v4865 = vrot.slane %v4647, %v4864
    %v4866 = vlaneseq
    %v4867 = vshrl.u32 %v4866, 7
    %v4868 = vsub.s32 4, %v4867
    %v4869 = vrot.slane %v4647, %v4868
    %v4870 = vlaneseq
    %v4871 = vshrl.u32 %v4870, 7
    %v4872 = vsub.s32 5, %v4871
    %v4873 = vrot.slane %v4647, %v4872
    %v4874 = vlaneseq
    %v4875 = vshrl.u32 %v4874, 7
    %v4876 = vsub.s32 6, %v4875
    %v4877 = vrot.slane %v4647, %v4876
    %v4878 = vlaneseq
    %v4879 = vshrl.u32 %v4878, 7
    %v4880 = vsub.s32 7, %v4879
    %v4881 = vrot.slane %v4647, %v4880
    %v4882 = vlaneseq
    %v4883 = vshrl.u32 %v4882, 7
    %v4884 = vsub.s32 0, %v4883
    %v4885 = vrot.slane %v4649, %v4884
    %v4886 = vlaneseq
    %v4887 = vshrl.u32 %v4886, 7
    %v4888 = vsub.s32 1, %v4887
    %v4889 = vrot.slane %v4649, %v4888
    %v4890 = vlaneseq
    %v4891 = vshrl.u32 %v4890, 7
    %v4892 = vsub.s32 2, %v4891
    %v4893 = vrot.slane %v4649, %v4892
    %v4894 = vlaneseq
    %v4895 = vshrl.u32 %v4894, 7
    %v4896 = vsub.s32 3, %v4895
    %v4897 = vrot.slane %v4649, %v4896
    %v4898 = vlaneseq
    %v4899 = vshrl.u32 %v4898, 7
    %v4900 = vsub.s32 4, %v4899
    %v4901 = vrot.slane %v4649, %v4900
    %v4902 = vlaneseq
    %v4903 = vshrl.u32 %v4902, 7
    %v4904 = vsub.s32 5, %v4903
    %v4905 = vrot.slane %v4649, %v4904
    %v4906 = vlaneseq
    %v4907 = vshrl.u32 %v4906, 7
    %v4908 = vsub.s32 6, %v4907
    %v4909 = vrot.slane %v4649, %v4908
    %v4910 = vlaneseq
    %v4911 = vshrl.u32 %v4910, 7
    %v4912 = vsub.s32 7, %v4911
    %v4913 = vrot.slane %v4649, %v4912
    %v4978 = vmul.f32 %v4096, %v4661
    %v4979 = vmul.f32 %v4097, %v4665
    %v4980 = vmul.f32 %v4098, %v4669
    %v4981 = vmul.f32 %v4099, %v4673
    %v4982 = vmul.f32 %v4100, %v4677
    %v4983 = vmul.f32 %v4101, %v4681
    %v4984 = vmul.f32 %v4102, %v4685
    %v4985 = vmul.f32 %v4103, %v4689
    %v4986 = vmul.f32 %v4104, %v4693
    %v4987 = vmul.f32 %v4105, %v4697
    %v4988 = vmul.f32 %v4106, %v4701
    %v4989 = vmul.f32 %v4107, %v4705
    %v4990 = vmul.f32 %v4108, %v4709
    %v4991 = vmul.f32 %v4109, %v4713
    %v4992 = vmul.f32 %v4110, %v4717
    %v4993 = vmul.f32 %v4111, %v4721
    %v4994 = vmul.f32 %v4112, %v4725
    %v4995 = vmul.f32 %v4113, %v4729
    %v4996 = vmul.f32 %v4114, %v4733
    %v4997 = vmul.f32 %v4115, %v4737
    %v4998 = vmul.f32 %v4116, %v4741
    %v4999 = vmul.f32 %v4117, %v4745
    %v5000 = vmul.f32 %v4118, %v4749
    %v5001 = vmul.f32 %v4119, %v4753
    %v5002 = vmul.f32 %v4120, %v4757
    %v5003 = vmul.f32 %v4121, %v4761
    %v5004 = vmul.f32 %v4122, %v4765
    %v5005 = vmul.f32 %v4123, %v4769
    %v5006 = vmul.f32 %v4124, %v4773
    %v5007 = vmul.f32 %v4125, %v4777
    %v5008 = vmul.f32 %v4126, %v4781
    %v5009 = vmul.f32 %v4127, %v4785
    %v5010 = vmul.f32 %v4128, %v4789
    %v5011 = vmul.f32 %v4129, %v4793
    %v5012 = vmul.f32 %v4130, %v4797
    %v5013 = vmul.f32 %v4131, %v4801
    %v5014 = vmul.f32 %v4132, %v4805
    %v5015 = vmul.f32 %v4133, %v4809
    %v5016 = vmul.f32 %v4134, %v4813
    %v5017 = vmul.f32 %v4135, %v4817
    %v5018 = vmul.f32 %v4136, %v4821
    %v5019 = vmul.f32 %v4137, %v4825
    %v5020 = vmul.f32 %v4138, %v4829
    %v5021 = vmul.f32 %v4139, %v4833
    %v5022 = vmul.f32 %v4140, %v4837
    %v5023 = vmul.f32 %v4141, %v4841
    %v5024 = vmul.f32 %v4142, %v4845
    %v5025 = vmul.f32 %v4143, %v4849
    %v5026 = vmul.f32 %v4144, %v4853
    %v5027 = vmul.f32 %v4145, %v4857
    %v5028 = vmul.f32 %v4146, %v4861
    %v5029 = vmul.f32 %v4147, %v4865
    %v5030 = vmul.f32 %v4148, %v4869
    %v5031 = vmul.f32 %v4149, %v4873
    %v5032 = vmul.f32 %v4150, %v4877
    %v5033 = vmul.f32 %v4151, %v4881
    %v5034 = vmul.f32 %v4152, %v4885
    %v5035 = vmul.f32 %v4153, %v4889
    %v5036 = vmul.f32 %v4154, %v4893
    %v5037 = vmul.f32 %v4155, %v4897
    %v5038 = vmul.f32 %v4156, %v4901
    %v5039 = vmul.f32 %v4157, %v4905
    %v5040 = vmul.f32 %v4158, %v4909
    %v5041 = vmul.f32 %v4159, %v4913
    %v5042 = vadd.f32 %v4978, %v4979
    %v5043 = vadd.f32 %v5042, %v4980
    %v5044 = vadd.f32 %v5043, %v4981
    %v5045 = vadd.f32 %v5044, %v4982
    %v5046 = vadd.f32 %v5045, %v4983
    %v5047 = vadd.f32 %v5046, %v4984
    %v5048 = vadd.f32 %v5047, %v4985
    %v5049 = vadd.f32 %v5048, %v4986
    %v5050 = vadd.f32 %v5049, %v4987
    %v5051 = vadd.f32 %v5050, %v4988
    %v5052 = vadd.f32 %v5051, %v4989
    %v5053 = vadd.f32 %v5052, %v4990
    %v5054 = vadd.f32 %v5053, %v4991
    %v5055 = vadd.f32 %v5054, %v4992
    %v5056 = vadd.f32 %v5055, %v4993
    %v5057 = vadd.f32 %v5056, %v4994
    %v5058 = vadd.f32 %v5057, %v4995
    %v5059 = vadd.f32 %v5058, %v4996
    %v5060 = vadd.f32 %v5059, %v4997
    %v5061 = vadd.f32 %v5060, %v4998
    %v5062 = vadd.f32 %v5061, %v4999
    %v5063 = vadd.f32 %v5062, %v5000
    %v5064 = vadd.f32 %v5063, %v5001
    %v5065 = vadd.f32 %v5064, %v5002
    %v5066 = vadd.f32 %v5065, %v5003
    %v5067 = vadd.f32 %v5066, %v5004
    %v5068 = vadd.f32 %v5067, %v5005
    %v5069 = vadd.f32 %v5068, %v5006
    %v5070 = vadd.f32 %v5069, %v5007
    %v5071 = vadd.f32 %v5070, %v5008
    %v5072 = vadd.f32 %v5071, %v5009
    %v5073 = vadd.f32 %v5072, %v5010
    %v5074 = vadd.f32 %v5073, %v5011
    %v5075 = vadd.f32 %v5074, %v5012
    %v5076 = vadd.f32 %v5075, %v5013
    %v5077 = vadd.f32 %v5076, %v5014
    %v5078 = vadd.f32 %v5077, %v5015
    %v5079 = vadd.f32 %v5078, %v5016
    %v5080 = vadd.f32 %v5079, %v5017
    %v5081 = vadd.f32 %v5080, %v5018
    %v5082 = vadd.f32 %v5081, %v5019
    %v5083 = vadd.f32 %v5082, %v5020
    %v5084 = vadd.f32 %v5083, %v5021
    %v5085 = vadd.f32 %v5084, %v5022
    %v5086 = vadd.f32 %v5085, %v5023
    %v5087 = vadd.f32 %v5086, %v5024
    %v5088 = vadd.f32 %v5087, %v5025
    %v5089 = vadd.f32 %v5088, %v5026
    %v5090 = vadd.f32 %v5089, %v5027
    %v5091 = vadd.f32 %v5090, %v5028
    %v5092 = vadd.f32 %v5091, %v5029
    %v5093 = vadd.f32 %v5092, %v5030
    %v5094 = vadd.f32 %v5093, %v5031
    %v5095 = vadd.f32 %v5094, %v5032
    %v5096 = vadd.f32 %v5095, %v5033
    %v5097 = vadd.f32 %v5096, %v5034
    %v5098 = vadd.f32 %v5097, %v5035
    %v5099 = vadd.f32 %v5098, %v5036
    %v5100 = vadd.f32 %v5099, %v5037
    %v5101 = vadd.f32 %v5100, %v5038
    %v5102 = vadd.f32 %v5101, %v5039
    %v5103 = vadd.f32 %v5102, %v5040
    %v5104 = vadd.f32 %v5103, %v5041
    %5105 = vadd.xlane.f32.xlu0 %v5104
    %v5106 = vpop.xlane.xlu0 %5105
    %v5107 = vadd.f32 %v4095, %v5106
    %v5108 = vld [vmem:[#allocation2 + $0xa00] sm:$0xff]
    %v5109 = vld [vmem:[#allocation2 + $0xa08] sm:$0xff]
    %v5110 = vld [vmem:[#allocation2 + $0xa10] sm:$0xff]
    %v5111 = vld [vmem:[#allocation2 + $0xa18] sm:$0xff]
    %v5112 = vld [vmem:[#allocation2 + $0xa20] sm:$0xff]
    %v5113 = vld [vmem:[#allocation2 + $0xa28] sm:$0xff]
    %v5114 = vld [vmem:[#allocation2 + $0xa30] sm:$0xff]
    %v5115 = vld [vmem:[#allocation2 + $0xa38] sm:$0xff]
    %v5116 = vld [vmem:[#allocation2 + $0xa40] sm:$0xff]
    %v5117 = vld [vmem:[#allocation2 + $0xa48] sm:$0xff]
    %v5118 = vld [vmem:[#allocation2 + $0xa50] sm:$0xff]
    %v5119 = vld [vmem:[#allocation2 + $0xa58] sm:$0xff]
    %v5120 = vld [vmem:[#allocation2 + $0xa60] sm:$0xff]
    %v5121 = vld [vmem:[#allocation2 + $0xa68] sm:$0xff]
    %v5122 = vld [vmem:[#allocation2 + $0xa70] sm:$0xff]
    %v5123 = vld [vmem:[#allocation2 + $0xa78] sm:$0xff]
    %v5124 = vld [vmem:[#allocation2 + $0xa80] sm:$0xff]
    %v5125 = vld [vmem:[#allocation2 + $0xa88] sm:$0xff]
    %v5126 = vld [vmem:[#allocation2 + $0xa90] sm:$0xff]
    %v5127 = vld [vmem:[#allocation2 + $0xa98] sm:$0xff]
    %v5128 = vld [vmem:[#allocation2 + $0xaa0] sm:$0xff]
    %v5129 = vld [vmem:[#allocation2 + $0xaa8] sm:$0xff]
    %v5130 = vld [vmem:[#allocation2 + $0xab0] sm:$0xff]
    %v5131 = vld [vmem:[#allocation2 + $0xab8] sm:$0xff]
    %v5132 = vld [vmem:[#allocation2 + $0xac0] sm:$0xff]
    %v5133 = vld [vmem:[#allocation2 + $0xac8] sm:$0xff]
    %v5134 = vld [vmem:[#allocation2 + $0xad0] sm:$0xff]
    %v5135 = vld [vmem:[#allocation2 + $0xad8] sm:$0xff]
    %v5136 = vld [vmem:[#allocation2 + $0xae0] sm:$0xff]
    %v5137 = vld [vmem:[#allocation2 + $0xae8] sm:$0xff]
    %v5138 = vld [vmem:[#allocation2 + $0xaf0] sm:$0xff]
    %v5139 = vld [vmem:[#allocation2 + $0xaf8] sm:$0xff]
    %v5140 = vld [vmem:[#allocation2 + $0xb00] sm:$0xff]
    %v5141 = vld [vmem:[#allocation2 + $0xb08] sm:$0xff]
    %v5142 = vld [vmem:[#allocation2 + $0xb10] sm:$0xff]
    %v5143 = vld [vmem:[#allocation2 + $0xb18] sm:$0xff]
    %v5144 = vld [vmem:[#allocation2 + $0xb20] sm:$0xff]
    %v5145 = vld [vmem:[#allocation2 + $0xb28] sm:$0xff]
    %v5146 = vld [vmem:[#allocation2 + $0xb30] sm:$0xff]
    %v5147 = vld [vmem:[#allocation2 + $0xb38] sm:$0xff]
    %v5148 = vld [vmem:[#allocation2 + $0xb40] sm:$0xff]
    %v5149 = vld [vmem:[#allocation2 + $0xb48] sm:$0xff]
    %v5150 = vld [vmem:[#allocation2 + $0xb50] sm:$0xff]
    %v5151 = vld [vmem:[#allocation2 + $0xb58] sm:$0xff]
    %v5152 = vld [vmem:[#allocation2 + $0xb60] sm:$0xff]
    %v5153 = vld [vmem:[#allocation2 + $0xb68] sm:$0xff]
    %v5154 = vld [vmem:[#allocation2 + $0xb70] sm:$0xff]
    %v5155 = vld [vmem:[#allocation2 + $0xb78] sm:$0xff]
    %v5156 = vld [vmem:[#allocation2 + $0xb80] sm:$0xff]
    %v5157 = vld [vmem:[#allocation2 + $0xb88] sm:$0xff]
    %v5158 = vld [vmem:[#allocation2 + $0xb90] sm:$0xff]
    %v5159 = vld [vmem:[#allocation2 + $0xb98] sm:$0xff]
    %v5160 = vld [vmem:[#allocation2 + $0xba0] sm:$0xff]
    %v5161 = vld [vmem:[#allocation2 + $0xba8] sm:$0xff]
    %v5162 = vld [vmem:[#allocation2 + $0xbb0] sm:$0xff]
    %v5163 = vld [vmem:[#allocation2 + $0xbb8] sm:$0xff]
    %v5164 = vld [vmem:[#allocation2 + $0xbc0] sm:$0xff]
    %v5165 = vld [vmem:[#allocation2 + $0xbc8] sm:$0xff]
    %v5166 = vld [vmem:[#allocation2 + $0xbd0] sm:$0xff]
    %v5167 = vld [vmem:[#allocation2 + $0xbd8] sm:$0xff]
    %v5168 = vld [vmem:[#allocation2 + $0xbe0] sm:$0xff]
    %v5169 = vld [vmem:[#allocation2 + $0xbe8] sm:$0xff]
    %v5170 = vld [vmem:[#allocation2 + $0xbf0] sm:$0xff]
    %v5171 = vld [vmem:[#allocation2 + $0xbf8] sm:$0xff]
    %s5172 = scalar_lea.vmem [#allocation5], 640
    %v5173 = vld [vmem:[%s5172] ss:$2 sm:$0xff]
    %s5174 = scalar_lea.vmem [#allocation5], 656
    %v5175 = vld [vmem:[%s5174] ss:$2 sm:$0xff]
    %s5176 = scalar_lea.vmem [#allocation5], 672
    %v5177 = vld [vmem:[%s5176] ss:$2 sm:$0xff]
    %s5178 = scalar_lea.vmem [#allocation5], 688
    %v5179 = vld [vmem:[%s5178] ss:$2 sm:$0xff]
    %s5180 = scalar_lea.vmem [#allocation5], 704
    %v5181 = vld [vmem:[%s5180] ss:$2 sm:$0xff]
    %s5182 = scalar_lea.vmem [#allocation5], 720
    %v5183 = vld [vmem:[%s5182] ss:$2 sm:$0xff]
    %s5184 = scalar_lea.vmem [#allocation5], 736
    %v5185 = vld [vmem:[%s5184] ss:$2 sm:$0xff]
    %s5186 = scalar_lea.vmem [#allocation5], 752
    %v5187 = vld [vmem:[%s5186] ss:$2 sm:$0xff]
    %v5196 = vlaneseq
    %v5197 = vshrl.u32 %v5196, 7
    %v5198 = vsub.s32 0, %v5197
    %v5199 = vrot.slane %v5173, %v5198
    %v5200 = vlaneseq
    %v5201 = vshrl.u32 %v5200, 7
    %v5202 = vsub.s32 1, %v5201
    %v5203 = vrot.slane %v5173, %v5202
    %v5204 = vlaneseq
    %v5205 = vshrl.u32 %v5204, 7
    %v5206 = vsub.s32 2, %v5205
    %v5207 = vrot.slane %v5173, %v5206
    %v5208 = vlaneseq
    %v5209 = vshrl.u32 %v5208, 7
    %v5210 = vsub.s32 3, %v5209
    %v5211 = vrot.slane %v5173, %v5210
    %v5212 = vlaneseq
    %v5213 = vshrl.u32 %v5212, 7
    %v5214 = vsub.s32 4, %v5213
    %v5215 = vrot.slane %v5173, %v5214
    %v5216 = vlaneseq
    %v5217 = vshrl.u32 %v5216, 7
    %v5218 = vsub.s32 5, %v5217
    %v5219 = vrot.slane %v5173, %v5218
    %v5220 = vlaneseq
    %v5221 = vshrl.u32 %v5220, 7
    %v5222 = vsub.s32 6, %v5221
    %v5223 = vrot.slane %v5173, %v5222
    %v5224 = vlaneseq
    %v5225 = vshrl.u32 %v5224, 7
    %v5226 = vsub.s32 7, %v5225
    %v5227 = vrot.slane %v5173, %v5226
    %v5228 = vlaneseq
    %v5229 = vshrl.u32 %v5228, 7
    %v5230 = vsub.s32 0, %v5229
    %v5231 = vrot.slane %v5175, %v5230
    %v5232 = vlaneseq
    %v5233 = vshrl.u32 %v5232, 7
    %v5234 = vsub.s32 1, %v5233
    %v5235 = vrot.slane %v5175, %v5234
    %v5236 = vlaneseq
    %v5237 = vshrl.u32 %v5236, 7
    %v5238 = vsub.s32 2, %v5237
    %v5239 = vrot.slane %v5175, %v5238
    %v5240 = vlaneseq
    %v5241 = vshrl.u32 %v5240, 7
    %v5242 = vsub.s32 3, %v5241
    %v5243 = vrot.slane %v5175, %v5242
    %v5244 = vlaneseq
    %v5245 = vshrl.u32 %v5244, 7
    %v5246 = vsub.s32 4, %v5245
    %v5247 = vrot.slane %v5175, %v5246
    %v5248 = vlaneseq
    %v5249 = vshrl.u32 %v5248, 7
    %v5250 = vsub.s32 5, %v5249
    %v5251 = vrot.slane %v5175, %v5250
    %v5252 = vlaneseq
    %v5253 = vshrl.u32 %v5252, 7
    %v5254 = vsub.s32 6, %v5253
    %v5255 = vrot.slane %v5175, %v5254
    %v5256 = vlaneseq
    %v5257 = vshrl.u32 %v5256, 7
    %v5258 = vsub.s32 7, %v5257
    %v5259 = vrot.slane %v5175, %v5258
    %v5260 = vlaneseq
    %v5261 = vshrl.u32 %v5260, 7
    %v5262 = vsub.s32 0, %v5261
    %v5263 = vrot.slane %v5177, %v5262
    %v5264 = vlaneseq
    %v5265 = vshrl.u32 %v5264, 7
    %v5266 = vsub.s32 1, %v5265
    %v5267 = vrot.slane %v5177, %v5266
    %v5268 = vlaneseq
    %v5269 = vshrl.u32 %v5268, 7
    %v5270 = vsub.s32 2, %v5269
    %v5271 = vrot.slane %v5177, %v5270
    %v5272 = vlaneseq
    %v5273 = vshrl.u32 %v5272, 7
    %v5274 = vsub.s32 3, %v5273
    %v5275 = vrot.slane %v5177, %v5274
    %v5276 = vlaneseq
    %v5277 = vshrl.u32 %v5276, 7
    %v5278 = vsub.s32 4, %v5277
    %v5279 = vrot.slane %v5177, %v5278
    %v5280 = vlaneseq
    %v5281 = vshrl.u32 %v5280, 7
    %v5282 = vsub.s32 5, %v5281
    %v5283 = vrot.slane %v5177, %v5282
    %v5284 = vlaneseq
    %v5285 = vshrl.u32 %v5284, 7
    %v5286 = vsub.s32 6, %v5285
    %v5287 = vrot.slane %v5177, %v5286
    %v5288 = vlaneseq
    %v5289 = vshrl.u32 %v5288, 7
    %v5290 = vsub.s32 7, %v5289
    %v5291 = vrot.slane %v5177, %v5290
    %v5292 = vlaneseq
    %v5293 = vshrl.u32 %v5292, 7
    %v5294 = vsub.s32 0, %v5293
    %v5295 = vrot.slane %v5179, %v5294
    %v5296 = vlaneseq
    %v5297 = vshrl.u32 %v5296, 7
    %v5298 = vsub.s32 1, %v5297
    %v5299 = vrot.slane %v5179, %v5298
    %v5300 = vlaneseq
    %v5301 = vshrl.u32 %v5300, 7
    %v5302 = vsub.s32 2, %v5301
    %v5303 = vrot.slane %v5179, %v5302
    %v5304 = vlaneseq
    %v5305 = vshrl.u32 %v5304, 7
    %v5306 = vsub.s32 3, %v5305
    %v5307 = vrot.slane %v5179, %v5306
    %v5308 = vlaneseq
    %v5309 = vshrl.u32 %v5308, 7
    %v5310 = vsub.s32 4, %v5309
    %v5311 = vrot.slane %v5179, %v5310
    %v5312 = vlaneseq
    %v5313 = vshrl.u32 %v5312, 7
    %v5314 = vsub.s32 5, %v5313
    %v5315 = vrot.slane %v5179, %v5314
    %v5316 = vlaneseq
    %v5317 = vshrl.u32 %v5316, 7
    %v5318 = vsub.s32 6, %v5317
    %v5319 = vrot.slane %v5179, %v5318
    %v5320 = vlaneseq
    %v5321 = vshrl.u32 %v5320, 7
    %v5322 = vsub.s32 7, %v5321
    %v5323 = vrot.slane %v5179, %v5322
    %v5324 = vlaneseq
    %v5325 = vshrl.u32 %v5324, 7
    %v5326 = vsub.s32 0, %v5325
    %v5327 = vrot.slane %v5181, %v5326
    %v5328 = vlaneseq
    %v5329 = vshrl.u32 %v5328, 7
    %v5330 = vsub.s32 1, %v5329
    %v5331 = vrot.slane %v5181, %v5330
    %v5332 = vlaneseq
    %v5333 = vshrl.u32 %v5332, 7
    %v5334 = vsub.s32 2, %v5333
    %v5335 = vrot.slane %v5181, %v5334
    %v5336 = vlaneseq
    %v5337 = vshrl.u32 %v5336, 7
    %v5338 = vsub.s32 3, %v5337
    %v5339 = vrot.slane %v5181, %v5338
    %v5340 = vlaneseq
    %v5341 = vshrl.u32 %v5340, 7
    %v5342 = vsub.s32 4, %v5341
    %v5343 = vrot.slane %v5181, %v5342
    %v5344 = vlaneseq
    %v5345 = vshrl.u32 %v5344, 7
    %v5346 = vsub.s32 5, %v5345
    %v5347 = vrot.slane %v5181, %v5346
    %v5348 = vlaneseq
    %v5349 = vshrl.u32 %v5348, 7
    %v5350 = vsub.s32 6, %v5349
    %v5351 = vrot.slane %v5181, %v5350
    %v5352 = vlaneseq
    %v5353 = vshrl.u32 %v5352, 7
    %v5354 = vsub.s32 7, %v5353
    %v5355 = vrot.slane %v5181, %v5354
    %v5356 = vlaneseq
    %v5357 = vshrl.u32 %v5356, 7
    %v5358 = vsub.s32 0, %v5357
    %v5359 = vrot.slane %v5183, %v5358
    %v5360 = vlaneseq
    %v5361 = vshrl.u32 %v5360, 7
    %v5362 = vsub.s32 1, %v5361
    %v5363 = vrot.slane %v5183, %v5362
    %v5364 = vlaneseq
    %v5365 = vshrl.u32 %v5364, 7
    %v5366 = vsub.s32 2, %v5365
    %v5367 = vrot.slane %v5183, %v5366
    %v5368 = vlaneseq
    %v5369 = vshrl.u32 %v5368, 7
    %v5370 = vsub.s32 3, %v5369
    %v5371 = vrot.slane %v5183, %v5370
    %v5372 = vlaneseq
    %v5373 = vshrl.u32 %v5372, 7
    %v5374 = vsub.s32 4, %v5373
    %v5375 = vrot.slane %v5183, %v5374
    %v5376 = vlaneseq
    %v5377 = vshrl.u32 %v5376, 7
    %v5378 = vsub.s32 5, %v5377
    %v5379 = vrot.slane %v5183, %v5378
    %v5380 = vlaneseq
    %v5381 = vshrl.u32 %v5380, 7
    %v5382 = vsub.s32 6, %v5381
    %v5383 = vrot.slane %v5183, %v5382
    %v5384 = vlaneseq
    %v5385 = vshrl.u32 %v5384, 7
    %v5386 = vsub.s32 7, %v5385
    %v5387 = vrot.slane %v5183, %v5386
    %v5388 = vlaneseq
    %v5389 = vshrl.u32 %v5388, 7
    %v5390 = vsub.s32 0, %v5389
    %v5391 = vrot.slane %v5185, %v5390
    %v5392 = vlaneseq
    %v5393 = vshrl.u32 %v5392, 7
    %v5394 = vsub.s32 1, %v5393
    %v5395 = vrot.slane %v5185, %v5394
    %v5396 = vlaneseq
    %v5397 = vshrl.u32 %v5396, 7
    %v5398 = vsub.s32 2, %v5397
    %v5399 = vrot.slane %v5185, %v5398
    %v5400 = vlaneseq
    %v5401 = vshrl.u32 %v5400, 7
    %v5402 = vsub.s32 3, %v5401
    %v5403 = vrot.slane %v5185, %v5402
    %v5404 = vlaneseq
    %v5405 = vshrl.u32 %v5404, 7
    %v5406 = vsub.s32 4, %v5405
    %v5407 = vrot.slane %v5185, %v5406
    %v5408 = vlaneseq
    %v5409 = vshrl.u32 %v5408, 7
    %v5410 = vsub.s32 5, %v5409
    %v5411 = vrot.slane %v5185, %v5410
    %v5412 = vlaneseq
    %v5413 = vshrl.u32 %v5412, 7
    %v5414 = vsub.s32 6, %v5413
    %v5415 = vrot.slane %v5185, %v5414
    %v5416 = vlaneseq
    %v5417 = vshrl.u32 %v5416, 7
    %v5418 = vsub.s32 7, %v5417
    %v5419 = vrot.slane %v5185, %v5418
    %v5420 = vlaneseq
    %v5421 = vshrl.u32 %v5420, 7
    %v5422 = vsub.s32 0, %v5421
    %v5423 = vrot.slane %v5187, %v5422
    %v5424 = vlaneseq
    %v5425 = vshrl.u32 %v5424, 7
    %v5426 = vsub.s32 1, %v5425
    %v5427 = vrot.slane %v5187, %v5426
    %v5428 = vlaneseq
    %v5429 = vshrl.u32 %v5428, 7
    %v5430 = vsub.s32 2, %v5429
    %v5431 = vrot.slane %v5187, %v5430
    %v5432 = vlaneseq
    %v5433 = vshrl.u32 %v5432, 7
    %v5434 = vsub.s32 3, %v5433
    %v5435 = vrot.slane %v5187, %v5434
    %v5436 = vlaneseq
    %v5437 = vshrl.u32 %v5436, 7
    %v5438 = vsub.s32 4, %v5437
    %v5439 = vrot.slane %v5187, %v5438
    %v5440 = vlaneseq
    %v5441 = vshrl.u32 %v5440, 7
    %v5442 = vsub.s32 5, %v5441
    %v5443 = vrot.slane %v5187, %v5442
    %v5444 = vlaneseq
    %v5445 = vshrl.u32 %v5444, 7
    %v5446 = vsub.s32 6, %v5445
    %v5447 = vrot.slane %v5187, %v5446
    %v5448 = vlaneseq
    %v5449 = vshrl.u32 %v5448, 7
    %v5450 = vsub.s32 7, %v5449
    %v5451 = vrot.slane %v5187, %v5450
    %v5516 = vmul.f32 %v5108, %v5199
    %v5517 = vmul.f32 %v5109, %v5203
    %v5518 = vmul.f32 %v5110, %v5207
    %v5519 = vmul.f32 %v5111, %v5211
    %v5520 = vmul.f32 %v5112, %v5215
    %v5521 = vmul.f32 %v5113, %v5219
    %v5522 = vmul.f32 %v5114, %v5223
    %v5523 = vmul.f32 %v5115, %v5227
    %v5524 = vmul.f32 %v5116, %v5231
    %v5525 = vmul.f32 %v5117, %v5235
    %v5526 = vmul.f32 %v5118, %v5239
    %v5527 = vmul.f32 %v5119, %v5243
    %v5528 = vmul.f32 %v5120, %v5247
    %v5529 = vmul.f32 %v5121, %v5251
    %v5530 = vmul.f32 %v5122, %v5255
    %v5531 = vmul.f32 %v5123, %v5259
    %v5532 = vmul.f32 %v5124, %v5263
    %v5533 = vmul.f32 %v5125, %v5267
    %v5534 = vmul.f32 %v5126, %v5271
    %v5535 = vmul.f32 %v5127, %v5275
    %v5536 = vmul.f32 %v5128, %v5279
    %v5537 = vmul.f32 %v5129, %v5283
    %v5538 = vmul.f32 %v5130, %v5287
    %v5539 = vmul.f32 %v5131, %v5291
    %v5540 = vmul.f32 %v5132, %v5295
    %v5541 = vmul.f32 %v5133, %v5299
    %v5542 = vmul.f32 %v5134, %v5303
    %v5543 = vmul.f32 %v5135, %v5307
    %v5544 = vmul.f32 %v5136, %v5311
    %v5545 = vmul.f32 %v5137, %v5315
    %v5546 = vmul.f32 %v5138, %v5319
    %v5547 = vmul.f32 %v5139, %v5323
    %v5548 = vmul.f32 %v5140, %v5327
    %v5549 = vmul.f32 %v5141, %v5331
    %v5550 = vmul.f32 %v5142, %v5335
    %v5551 = vmul.f32 %v5143, %v5339
    %v5552 = vmul.f32 %v5144, %v5343
    %v5553 = vmul.f32 %v5145, %v5347
    %v5554 = vmul.f32 %v5146, %v5351
    %v5555 = vmul.f32 %v5147, %v5355
    %v5556 = vmul.f32 %v5148, %v5359
    %v5557 = vmul.f32 %v5149, %v5363
    %v5558 = vmul.f32 %v5150, %v5367
    %v5559 = vmul.f32 %v5151, %v5371
    %v5560 = vmul.f32 %v5152, %v5375
    %v5561 = vmul.f32 %v5153, %v5379
    %v5562 = vmul.f32 %v5154, %v5383
    %v5563 = vmul.f32 %v5155, %v5387
    %v5564 = vmul.f32 %v5156, %v5391
    %v5565 = vmul.f32 %v5157, %v5395
    %v5566 = vmul.f32 %v5158, %v5399
    %v5567 = vmul.f32 %v5159, %v5403
    %v5568 = vmul.f32 %v5160, %v5407
    %v5569 = vmul.f32 %v5161, %v5411
    %v5570 = vmul.f32 %v5162, %v5415
    %v5571 = vmul.f32 %v5163, %v5419
    %v5572 = vmul.f32 %v5164, %v5423
    %v5573 = vmul.f32 %v5165, %v5427
    %v5574 = vmul.f32 %v5166, %v5431
    %v5575 = vmul.f32 %v5167, %v5435
    %v5576 = vmul.f32 %v5168, %v5439
    %v5577 = vmul.f32 %v5169, %v5443
    %v5578 = vmul.f32 %v5170, %v5447
    %v5579 = vmul.f32 %v5171, %v5451
    %v5580 = vadd.f32 %v5516, %v5517
    %v5581 = vadd.f32 %v5580, %v5518
    %v5582 = vadd.f32 %v5581, %v5519
    %v5583 = vadd.f32 %v5582, %v5520
    %v5584 = vadd.f32 %v5583, %v5521
    %v5585 = vadd.f32 %v5584, %v5522
    %v5586 = vadd.f32 %v5585, %v5523
    %v5587 = vadd.f32 %v5586, %v5524
    %v5588 = vadd.f32 %v5587, %v5525
    %v5589 = vadd.f32 %v5588, %v5526
    %v5590 = vadd.f32 %v5589, %v5527
    %v5591 = vadd.f32 %v5590, %v5528
    %v5592 = vadd.f32 %v5591, %v5529
    %v5593 = vadd.f32 %v5592, %v5530
    %v5594 = vadd.f32 %v5593, %v5531
    %v5595 = vadd.f32 %v5594, %v5532
    %v5596 = vadd.f32 %v5595, %v5533
    %v5597 = vadd.f32 %v5596, %v5534
    %v5598 = vadd.f32 %v5597, %v5535
    %v5599 = vadd.f32 %v5598, %v5536
    %v5600 = vadd.f32 %v5599, %v5537
    %v5601 = vadd.f32 %v5600, %v5538
    %v5602 = vadd.f32 %v5601, %v5539
    %v5603 = vadd.f32 %v5602, %v5540
    %v5604 = vadd.f32 %v5603, %v5541
    %v5605 = vadd.f32 %v5604, %v5542
    %v5606 = vadd.f32 %v5605, %v5543
    %v5607 = vadd.f32 %v5606, %v5544
    %v5608 = vadd.f32 %v5607, %v5545
    %v5609 = vadd.f32 %v5608, %v5546
    %v5610 = vadd.f32 %v5609, %v5547
    %v5611 = vadd.f32 %v5610, %v5548
    %v5612 = vadd.f32 %v5611, %v5549
    %v5613 = vadd.f32 %v5612, %v5550
    %v5614 = vadd.f32 %v5613, %v5551
    %v5615 = vadd.f32 %v5614, %v5552
    %v5616 = vadd.f32 %v5615, %v5553
    %v5617 = vadd.f32 %v5616, %v5554
    %v5618 = vadd.f32 %v5617, %v5555
    %v5619 = vadd.f32 %v5618, %v5556
    %v5620 = vadd.f32 %v5619, %v5557
    %v5621 = vadd.f32 %v5620, %v5558
    %v5622 = vadd.f32 %v5621, %v5559
    %v5623 = vadd.f32 %v5622, %v5560
    %v5624 = vadd.f32 %v5623, %v5561
    %v5625 = vadd.f32 %v5624, %v5562
    %v5626 = vadd.f32 %v5625, %v5563
    %v5627 = vadd.f32 %v5626, %v5564
    %v5628 = vadd.f32 %v5627, %v5565
    %v5629 = vadd.f32 %v5628, %v5566
    %v5630 = vadd.f32 %v5629, %v5567
    %v5631 = vadd.f32 %v5630, %v5568
    %v5632 = vadd.f32 %v5631, %v5569
    %v5633 = vadd.f32 %v5632, %v5570
    %v5634 = vadd.f32 %v5633, %v5571
    %v5635 = vadd.f32 %v5634, %v5572
    %v5636 = vadd.f32 %v5635, %v5573
    %v5637 = vadd.f32 %v5636, %v5574
    %v5638 = vadd.f32 %v5637, %v5575
    %v5639 = vadd.f32 %v5638, %v5576
    %v5640 = vadd.f32 %v5639, %v5577
    %v5641 = vadd.f32 %v5640, %v5578
    %v5642 = vadd.f32 %v5641, %v5579
    %5643 = vadd.xlane.f32.xlu0 %v5642
    %v5644 = vpop.xlane.xlu0 %5643
    %v5645 = vadd.f32 %v4633, %v5644
    %s5646 = scalar_lea.vmem [#allocation5], 641
    %v5647 = vld [vmem:[%s5646] ss:$2 sm:$0xff]
    %s5648 = scalar_lea.vmem [#allocation5], 657
    %v5649 = vld [vmem:[%s5648] ss:$2 sm:$0xff]
    %s5650 = scalar_lea.vmem [#allocation5], 673
    %v5651 = vld [vmem:[%s5650] ss:$2 sm:$0xff]
    %s5652 = scalar_lea.vmem [#allocation5], 689
    %v5653 = vld [vmem:[%s5652] ss:$2 sm:$0xff]
    %s5654 = scalar_lea.vmem [#allocation5], 705
    %v5655 = vld [vmem:[%s5654] ss:$2 sm:$0xff]
    %s5656 = scalar_lea.vmem [#allocation5], 721
    %v5657 = vld [vmem:[%s5656] ss:$2 sm:$0xff]
    %s5658 = scalar_lea.vmem [#allocation5], 737
    %v5659 = vld [vmem:[%s5658] ss:$2 sm:$0xff]
    %s5660 = scalar_lea.vmem [#allocation5], 753
    %v5661 = vld [vmem:[%s5660] ss:$2 sm:$0xff]
    %v5670 = vlaneseq
    %v5671 = vshrl.u32 %v5670, 7
    %v5672 = vsub.s32 0, %v5671
    %v5673 = vrot.slane %v5647, %v5672
    %v5674 = vlaneseq
    %v5675 = vshrl.u32 %v5674, 7
    %v5676 = vsub.s32 1, %v5675
    %v5677 = vrot.slane %v5647, %v5676
    %v5678 = vlaneseq
    %v5679 = vshrl.u32 %v5678, 7
    %v5680 = vsub.s32 2, %v5679
    %v5681 = vrot.slane %v5647, %v5680
    %v5682 = vlaneseq
    %v5683 = vshrl.u32 %v5682, 7
    %v5684 = vsub.s32 3, %v5683
    %v5685 = vrot.slane %v5647, %v5684
    %v5686 = vlaneseq
    %v5687 = vshrl.u32 %v5686, 7
    %v5688 = vsub.s32 4, %v5687
    %v5689 = vrot.slane %v5647, %v5688
    %v5690 = vlaneseq
    %v5691 = vshrl.u32 %v5690, 7
    %v5692 = vsub.s32 5, %v5691
    %v5693 = vrot.slane %v5647, %v5692
    %v5694 = vlaneseq
    %v5695 = vshrl.u32 %v5694, 7
    %v5696 = vsub.s32 6, %v5695
    %v5697 = vrot.slane %v5647, %v5696
    %v5698 = vlaneseq
    %v5699 = vshrl.u32 %v5698, 7
    %v5700 = vsub.s32 7, %v5699
    %v5701 = vrot.slane %v5647, %v5700
    %v5702 = vlaneseq
    %v5703 = vshrl.u32 %v5702, 7
    %v5704 = vsub.s32 0, %v5703
    %v5705 = vrot.slane %v5649, %v5704
    %v5706 = vlaneseq
    %v5707 = vshrl.u32 %v5706, 7
    %v5708 = vsub.s32 1, %v5707
    %v5709 = vrot.slane %v5649, %v5708
    %v5710 = vlaneseq
    %v5711 = vshrl.u32 %v5710, 7
    %v5712 = vsub.s32 2, %v5711
    %v5713 = vrot.slane %v5649, %v5712
    %v5714 = vlaneseq
    %v5715 = vshrl.u32 %v5714, 7
    %v5716 = vsub.s32 3, %v5715
    %v5717 = vrot.slane %v5649, %v5716
    %v5718 = vlaneseq
    %v5719 = vshrl.u32 %v5718, 7
    %v5720 = vsub.s32 4, %v5719
    %v5721 = vrot.slane %v5649, %v5720
    %v5722 = vlaneseq
    %v5723 = vshrl.u32 %v5722, 7
    %v5724 = vsub.s32 5, %v5723
    %v5725 = vrot.slane %v5649, %v5724
    %v5726 = vlaneseq
    %v5727 = vshrl.u32 %v5726, 7
    %v5728 = vsub.s32 6, %v5727
    %v5729 = vrot.slane %v5649, %v5728
    %v5730 = vlaneseq
    %v5731 = vshrl.u32 %v5730, 7
    %v5732 = vsub.s32 7, %v5731
    %v5733 = vrot.slane %v5649, %v5732
    %v5734 = vlaneseq
    %v5735 = vshrl.u32 %v5734, 7
    %v5736 = vsub.s32 0, %v5735
    %v5737 = vrot.slane %v5651, %v5736
    %v5738 = vlaneseq
    %v5739 = vshrl.u32 %v5738, 7
    %v5740 = vsub.s32 1, %v5739
    %v5741 = vrot.slane %v5651, %v5740
    %v5742 = vlaneseq
    %v5743 = vshrl.u32 %v5742, 7
    %v5744 = vsub.s32 2, %v5743
    %v5745 = vrot.slane %v5651, %v5744
    %v5746 = vlaneseq
    %v5747 = vshrl.u32 %v5746, 7
    %v5748 = vsub.s32 3, %v5747
    %v5749 = vrot.slane %v5651, %v5748
    %v5750 = vlaneseq
    %v5751 = vshrl.u32 %v5750, 7
    %v5752 = vsub.s32 4, %v5751
    %v5753 = vrot.slane %v5651, %v5752
    %v5754 = vlaneseq
    %v5755 = vshrl.u32 %v5754, 7
    %v5756 = vsub.s32 5, %v5755
    %v5757 = vrot.slane %v5651, %v5756
    %v5758 = vlaneseq
    %v5759 = vshrl.u32 %v5758, 7
    %v5760 = vsub.s32 6, %v5759
    %v5761 = vrot.slane %v5651, %v5760
    %v5762 = vlaneseq
    %v5763 = vshrl.u32 %v5762, 7
    %v5764 = vsub.s32 7, %v5763
    %v5765 = vrot.slane %v5651, %v5764
    %v5766 = vlaneseq
    %v5767 = vshrl.u32 %v5766, 7
    %v5768 = vsub.s32 0, %v5767
    %v5769 = vrot.slane %v5653, %v5768
    %v5770 = vlaneseq
    %v5771 = vshrl.u32 %v5770, 7
    %v5772 = vsub.s32 1, %v5771
    %v5773 = vrot.slane %v5653, %v5772
    %v5774 = vlaneseq
    %v5775 = vshrl.u32 %v5774, 7
    %v5776 = vsub.s32 2, %v5775
    %v5777 = vrot.slane %v5653, %v5776
    %v5778 = vlaneseq
    %v5779 = vshrl.u32 %v5778, 7
    %v5780 = vsub.s32 3, %v5779
    %v5781 = vrot.slane %v5653, %v5780
    %v5782 = vlaneseq
    %v5783 = vshrl.u32 %v5782, 7
    %v5784 = vsub.s32 4, %v5783
    %v5785 = vrot.slane %v5653, %v5784
    %v5786 = vlaneseq
    %v5787 = vshrl.u32 %v5786, 7
    %v5788 = vsub.s32 5, %v5787
    %v5789 = vrot.slane %v5653, %v5788
    %v5790 = vlaneseq
    %v5791 = vshrl.u32 %v5790, 7
    %v5792 = vsub.s32 6, %v5791
    %v5793 = vrot.slane %v5653, %v5792
    %v5794 = vlaneseq
    %v5795 = vshrl.u32 %v5794, 7
    %v5796 = vsub.s32 7, %v5795
    %v5797 = vrot.slane %v5653, %v5796
    %v5798 = vlaneseq
    %v5799 = vshrl.u32 %v5798, 7
    %v5800 = vsub.s32 0, %v5799
    %v5801 = vrot.slane %v5655, %v5800
    %v5802 = vlaneseq
    %v5803 = vshrl.u32 %v5802, 7
    %v5804 = vsub.s32 1, %v5803
    %v5805 = vrot.slane %v5655, %v5804
    %v5806 = vlaneseq
    %v5807 = vshrl.u32 %v5806, 7
    %v5808 = vsub.s32 2, %v5807
    %v5809 = vrot.slane %v5655, %v5808
    %v5810 = vlaneseq
    %v5811 = vshrl.u32 %v5810, 7
    %v5812 = vsub.s32 3, %v5811
    %v5813 = vrot.slane %v5655, %v5812
    %v5814 = vlaneseq
    %v5815 = vshrl.u32 %v5814, 7
    %v5816 = vsub.s32 4, %v5815
    %v5817 = vrot.slane %v5655, %v5816
    %v5818 = vlaneseq
    %v5819 = vshrl.u32 %v5818, 7
    %v5820 = vsub.s32 5, %v5819
    %v5821 = vrot.slane %v5655, %v5820
    %v5822 = vlaneseq
    %v5823 = vshrl.u32 %v5822, 7
    %v5824 = vsub.s32 6, %v5823
    %v5825 = vrot.slane %v5655, %v5824
    %v5826 = vlaneseq
    %v5827 = vshrl.u32 %v5826, 7
    %v5828 = vsub.s32 7, %v5827
    %v5829 = vrot.slane %v5655, %v5828
    %v5830 = vlaneseq
    %v5831 = vshrl.u32 %v5830, 7
    %v5832 = vsub.s32 0, %v5831
    %v5833 = vrot.slane %v5657, %v5832
    %v5834 = vlaneseq
    %v5835 = vshrl.u32 %v5834, 7
    %v5836 = vsub.s32 1, %v5835
    %v5837 = vrot.slane %v5657, %v5836
    %v5838 = vlaneseq
    %v5839 = vshrl.u32 %v5838, 7
    %v5840 = vsub.s32 2, %v5839
    %v5841 = vrot.slane %v5657, %v5840
    %v5842 = vlaneseq
    %v5843 = vshrl.u32 %v5842, 7
    %v5844 = vsub.s32 3, %v5843
    %v5845 = vrot.slane %v5657, %v5844
    %v5846 = vlaneseq
    %v5847 = vshrl.u32 %v5846, 7
    %v5848 = vsub.s32 4, %v5847
    %v5849 = vrot.slane %v5657, %v5848
    %v5850 = vlaneseq
    %v5851 = vshrl.u32 %v5850, 7
    %v5852 = vsub.s32 5, %v5851
    %v5853 = vrot.slane %v5657, %v5852
    %v5854 = vlaneseq
    %v5855 = vshrl.u32 %v5854, 7
    %v5856 = vsub.s32 6, %v5855
    %v5857 = vrot.slane %v5657, %v5856
    %v5858 = vlaneseq
    %v5859 = vshrl.u32 %v5858, 7
    %v5860 = vsub.s32 7, %v5859
    %v5861 = vrot.slane %v5657, %v5860
    %v5862 = vlaneseq
    %v5863 = vshrl.u32 %v5862, 7
    %v5864 = vsub.s32 0, %v5863
    %v5865 = vrot.slane %v5659, %v5864
    %v5866 = vlaneseq
    %v5867 = vshrl.u32 %v5866, 7
    %v5868 = vsub.s32 1, %v5867
    %v5869 = vrot.slane %v5659, %v5868
    %v5870 = vlaneseq
    %v5871 = vshrl.u32 %v5870, 7
    %v5872 = vsub.s32 2, %v5871
    %v5873 = vrot.slane %v5659, %v5872
    %v5874 = vlaneseq
    %v5875 = vshrl.u32 %v5874, 7
    %v5876 = vsub.s32 3, %v5875
    %v5877 = vrot.slane %v5659, %v5876
    %v5878 = vlaneseq
    %v5879 = vshrl.u32 %v5878, 7
    %v5880 = vsub.s32 4, %v5879
    %v5881 = vrot.slane %v5659, %v5880
    %v5882 = vlaneseq
    %v5883 = vshrl.u32 %v5882, 7
    %v5884 = vsub.s32 5, %v5883
    %v5885 = vrot.slane %v5659, %v5884
    %v5886 = vlaneseq
    %v5887 = vshrl.u32 %v5886, 7
    %v5888 = vsub.s32 6, %v5887
    %v5889 = vrot.slane %v5659, %v5888
    %v5890 = vlaneseq
    %v5891 = vshrl.u32 %v5890, 7
    %v5892 = vsub.s32 7, %v5891
    %v5893 = vrot.slane %v5659, %v5892
    %v5894 = vlaneseq
    %v5895 = vshrl.u32 %v5894, 7
    %v5896 = vsub.s32 0, %v5895
    %v5897 = vrot.slane %v5661, %v5896
    %v5898 = vlaneseq
    %v5899 = vshrl.u32 %v5898, 7
    %v5900 = vsub.s32 1, %v5899
    %v5901 = vrot.slane %v5661, %v5900
    %v5902 = vlaneseq
    %v5903 = vshrl.u32 %v5902, 7
    %v5904 = vsub.s32 2, %v5903
    %v5905 = vrot.slane %v5661, %v5904
    %v5906 = vlaneseq
    %v5907 = vshrl.u32 %v5906, 7
    %v5908 = vsub.s32 3, %v5907
    %v5909 = vrot.slane %v5661, %v5908
    %v5910 = vlaneseq
    %v5911 = vshrl.u32 %v5910, 7
    %v5912 = vsub.s32 4, %v5911
    %v5913 = vrot.slane %v5661, %v5912
    %v5914 = vlaneseq
    %v5915 = vshrl.u32 %v5914, 7
    %v5916 = vsub.s32 5, %v5915
    %v5917 = vrot.slane %v5661, %v5916
    %v5918 = vlaneseq
    %v5919 = vshrl.u32 %v5918, 7
    %v5920 = vsub.s32 6, %v5919
    %v5921 = vrot.slane %v5661, %v5920
    %v5922 = vlaneseq
    %v5923 = vshrl.u32 %v5922, 7
    %v5924 = vsub.s32 7, %v5923
    %v5925 = vrot.slane %v5661, %v5924
    %v5990 = vmul.f32 %v5108, %v5673
    %v5991 = vmul.f32 %v5109, %v5677
    %v5992 = vmul.f32 %v5110, %v5681
    %v5993 = vmul.f32 %v5111, %v5685
    %v5994 = vmul.f32 %v5112, %v5689
    %v5995 = vmul.f32 %v5113, %v5693
    %v5996 = vmul.f32 %v5114, %v5697
    %v5997 = vmul.f32 %v5115, %v5701
    %v5998 = vmul.f32 %v5116, %v5705
    %v5999 = vmul.f32 %v5117, %v5709
    %v6000 = vmul.f32 %v5118, %v5713
    %v6001 = vmul.f32 %v5119, %v5717
    %v6002 = vmul.f32 %v5120, %v5721
    %v6003 = vmul.f32 %v5121, %v5725
    %v6004 = vmul.f32 %v5122, %v5729
    %v6005 = vmul.f32 %v5123, %v5733
    %v6006 = vmul.f32 %v5124, %v5737
    %v6007 = vmul.f32 %v5125, %v5741
    %v6008 = vmul.f32 %v5126, %v5745
    %v6009 = vmul.f32 %v5127, %v5749
    %v6010 = vmul.f32 %v5128, %v5753
    %v6011 = vmul.f32 %v5129, %v5757
    %v6012 = vmul.f32 %v5130, %v5761
    %v6013 = vmul.f32 %v5131, %v5765
    %v6014 = vmul.f32 %v5132, %v5769
    %v6015 = vmul.f32 %v5133, %v5773
    %v6016 = vmul.f32 %v5134, %v5777
    %v6017 = vmul.f32 %v5135, %v5781
    %v6018 = vmul.f32 %v5136, %v5785
    %v6019 = vmul.f32 %v5137, %v5789
    %v6020 = vmul.f32 %v5138, %v5793
    %v6021 = vmul.f32 %v5139, %v5797
    %v6022 = vmul.f32 %v5140, %v5801
    %v6023 = vmul.f32 %v5141, %v5805
    %v6024 = vmul.f32 %v5142, %v5809
    %v6025 = vmul.f32 %v5143, %v5813
    %v6026 = vmul.f32 %v5144, %v5817
    %v6027 = vmul.f32 %v5145, %v5821
    %v6028 = vmul.f32 %v5146, %v5825
    %v6029 = vmul.f32 %v5147, %v5829
    %v6030 = vmul.f32 %v5148, %v5833
    %v6031 = vmul.f32 %v5149, %v5837
    %v6032 = vmul.f32 %v5150, %v5841
    %v6033 = vmul.f32 %v5151, %v5845
    %v6034 = vmul.f32 %v5152, %v5849
    %v6035 = vmul.f32 %v5153, %v5853
    %v6036 = vmul.f32 %v5154, %v5857
    %v6037 = vmul.f32 %v5155, %v5861
    %v6038 = vmul.f32 %v5156, %v5865
    %v6039 = vmul.f32 %v5157, %v5869
    %v6040 = vmul.f32 %v5158, %v5873
    %v6041 = vmul.f32 %v5159, %v5877
    %v6042 = vmul.f32 %v5160, %v5881
    %v6043 = vmul.f32 %v5161, %v5885
    %v6044 = vmul.f32 %v5162, %v5889
    %v6045 = vmul.f32 %v5163, %v5893
    %v6046 = vmul.f32 %v5164, %v5897
    %v6047 = vmul.f32 %v5165, %v5901
    %v6048 = vmul.f32 %v5166, %v5905
    %v6049 = vmul.f32 %v5167, %v5909
    %v6050 = vmul.f32 %v5168, %v5913
    %v6051 = vmul.f32 %v5169, %v5917
    %v6052 = vmul.f32 %v5170, %v5921
    %v6053 = vmul.f32 %v5171, %v5925
    %v6054 = vadd.f32 %v5990, %v5991
    %v6055 = vadd.f32 %v6054, %v5992
    %v6056 = vadd.f32 %v6055, %v5993
    %v6057 = vadd.f32 %v6056, %v5994
    %v6058 = vadd.f32 %v6057, %v5995
    %v6059 = vadd.f32 %v6058, %v5996
    %v6060 = vadd.f32 %v6059, %v5997
    %v6061 = vadd.f32 %v6060, %v5998
    %v6062 = vadd.f32 %v6061, %v5999
    %v6063 = vadd.f32 %v6062, %v6000
    %v6064 = vadd.f32 %v6063, %v6001
    %v6065 = vadd.f32 %v6064, %v6002
    %v6066 = vadd.f32 %v6065, %v6003
    %v6067 = vadd.f32 %v6066, %v6004
    %v6068 = vadd.f32 %v6067, %v6005
    %v6069 = vadd.f32 %v6068, %v6006
    %v6070 = vadd.f32 %v6069, %v6007
    %v6071 = vadd.f32 %v6070, %v6008
    %v6072 = vadd.f32 %v6071, %v6009
    %v6073 = vadd.f32 %v6072, %v6010
    %v6074 = vadd.f32 %v6073, %v6011
    %v6075 = vadd.f32 %v6074, %v6012
    %v6076 = vadd.f32 %v6075, %v6013
    %v6077 = vadd.f32 %v6076, %v6014
    %v6078 = vadd.f32 %v6077, %v6015
    %v6079 = vadd.f32 %v6078, %v6016
    %v6080 = vadd.f32 %v6079, %v6017
    %v6081 = vadd.f32 %v6080, %v6018
    %v6082 = vadd.f32 %v6081, %v6019
    %v6083 = vadd.f32 %v6082, %v6020
    %v6084 = vadd.f32 %v6083, %v6021
    %v6085 = vadd.f32 %v6084, %v6022
    %v6086 = vadd.f32 %v6085, %v6023
    %v6087 = vadd.f32 %v6086, %v6024
    %v6088 = vadd.f32 %v6087, %v6025
    %v6089 = vadd.f32 %v6088, %v6026
    %v6090 = vadd.f32 %v6089, %v6027
    %v6091 = vadd.f32 %v6090, %v6028
    %v6092 = vadd.f32 %v6091, %v6029
    %v6093 = vadd.f32 %v6092, %v6030
    %v6094 = vadd.f32 %v6093, %v6031
    %v6095 = vadd.f32 %v6094, %v6032
    %v6096 = vadd.f32 %v6095, %v6033
    %v6097 = vadd.f32 %v6096, %v6034
    %v6098 = vadd.f32 %v6097, %v6035
    %v6099 = vadd.f32 %v6098, %v6036
    %v6100 = vadd.f32 %v6099, %v6037
    %v6101 = vadd.f32 %v6100, %v6038
    %v6102 = vadd.f32 %v6101, %v6039
    %v6103 = vadd.f32 %v6102, %v6040
    %v6104 = vadd.f32 %v6103, %v6041
    %v6105 = vadd.f32 %v6104, %v6042
    %v6106 = vadd.f32 %v6105, %v6043
    %v6107 = vadd.f32 %v6106, %v6044
    %v6108 = vadd.f32 %v6107, %v6045
    %v6109 = vadd.f32 %v6108, %v6046
    %v6110 = vadd.f32 %v6109, %v6047
    %v6111 = vadd.f32 %v6110, %v6048
    %v6112 = vadd.f32 %v6111, %v6049
    %v6113 = vadd.f32 %v6112, %v6050
    %v6114 = vadd.f32 %v6113, %v6051
    %v6115 = vadd.f32 %v6114, %v6052
    %v6116 = vadd.f32 %v6115, %v6053
    %6117 = vadd.xlane.f32.xlu0 %v6116
    %v6118 = vpop.xlane.xlu0 %6117
    %v6119 = vadd.f32 %v5107, %v6118
    %v6120 = vld [vmem:[#allocation2 + $0xc00] sm:$0xff]
    %v6121 = vld [vmem:[#allocation2 + $0xc08] sm:$0xff]
    %v6122 = vld [vmem:[#allocation2 + $0xc10] sm:$0xff]
    %v6123 = vld [vmem:[#allocation2 + $0xc18] sm:$0xff]
    %v6124 = vld [vmem:[#allocation2 + $0xc20] sm:$0xff]
    %v6125 = vld [vmem:[#allocation2 + $0xc28] sm:$0xff]
    %v6126 = vld [vmem:[#allocation2 + $0xc30] sm:$0xff]
    %v6127 = vld [vmem:[#allocation2 + $0xc38] sm:$0xff]
    %v6128 = vld [vmem:[#allocation2 + $0xc40] sm:$0xff]
    %v6129 = vld [vmem:[#allocation2 + $0xc48] sm:$0xff]
    %v6130 = vld [vmem:[#allocation2 + $0xc50] sm:$0xff]
    %v6131 = vld [vmem:[#allocation2 + $0xc58] sm:$0xff]
    %v6132 = vld [vmem:[#allocation2 + $0xc60] sm:$0xff]
    %v6133 = vld [vmem:[#allocation2 + $0xc68] sm:$0xff]
    %v6134 = vld [vmem:[#allocation2 + $0xc70] sm:$0xff]
    %v6135 = vld [vmem:[#allocation2 + $0xc78] sm:$0xff]
    %v6136 = vld [vmem:[#allocation2 + $0xc80] sm:$0xff]
    %v6137 = vld [vmem:[#allocation2 + $0xc88] sm:$0xff]
    %v6138 = vld [vmem:[#allocation2 + $0xc90] sm:$0xff]
    %v6139 = vld [vmem:[#allocation2 + $0xc98] sm:$0xff]
    %v6140 = vld [vmem:[#allocation2 + $0xca0] sm:$0xff]
    %v6141 = vld [vmem:[#allocation2 + $0xca8] sm:$0xff]
    %v6142 = vld [vmem:[#allocation2 + $0xcb0] sm:$0xff]
    %v6143 = vld [vmem:[#allocation2 + $0xcb8] sm:$0xff]
    %v6144 = vld [vmem:[#allocation2 + $0xcc0] sm:$0xff]
    %v6145 = vld [vmem:[#allocation2 + $0xcc8] sm:$0xff]
    %v6146 = vld [vmem:[#allocation2 + $0xcd0] sm:$0xff]
    %v6147 = vld [vmem:[#allocation2 + $0xcd8] sm:$0xff]
    %v6148 = vld [vmem:[#allocation2 + $0xce0] sm:$0xff]
    %v6149 = vld [vmem:[#allocation2 + $0xce8] sm:$0xff]
    %v6150 = vld [vmem:[#allocation2 + $0xcf0] sm:$0xff]
    %v6151 = vld [vmem:[#allocation2 + $0xcf8] sm:$0xff]
    %v6152 = vld [vmem:[#allocation2 + $0xd00] sm:$0xff]
    %v6153 = vld [vmem:[#allocation2 + $0xd08] sm:$0xff]
    %v6154 = vld [vmem:[#allocation2 + $0xd10] sm:$0xff]
    %v6155 = vld [vmem:[#allocation2 + $0xd18] sm:$0xff]
    %v6156 = vld [vmem:[#allocation2 + $0xd20] sm:$0xff]
    %v6157 = vld [vmem:[#allocation2 + $0xd28] sm:$0xff]
    %v6158 = vld [vmem:[#allocation2 + $0xd30] sm:$0xff]
    %v6159 = vld [vmem:[#allocation2 + $0xd38] sm:$0xff]
    %v6160 = vld [vmem:[#allocation2 + $0xd40] sm:$0xff]
    %v6161 = vld [vmem:[#allocation2 + $0xd48] sm:$0xff]
    %v6162 = vld [vmem:[#allocation2 + $0xd50] sm:$0xff]
    %v6163 = vld [vmem:[#allocation2 + $0xd58] sm:$0xff]
    %v6164 = vld [vmem:[#allocation2 + $0xd60] sm:$0xff]
    %v6165 = vld [vmem:[#allocation2 + $0xd68] sm:$0xff]
    %v6166 = vld [vmem:[#allocation2 + $0xd70] sm:$0xff]
    %v6167 = vld [vmem:[#allocation2 + $0xd78] sm:$0xff]
    %v6168 = vld [vmem:[#allocation2 + $0xd80] sm:$0xff]
    %v6169 = vld [vmem:[#allocation2 + $0xd88] sm:$0xff]
    %v6170 = vld [vmem:[#allocation2 + $0xd90] sm:$0xff]
    %v6171 = vld [vmem:[#allocation2 + $0xd98] sm:$0xff]
    %v6172 = vld [vmem:[#allocation2 + $0xda0] sm:$0xff]
    %v6173 = vld [vmem:[#allocation2 + $0xda8] sm:$0xff]
    %v6174 = vld [vmem:[#allocation2 + $0xdb0] sm:$0xff]
    %v6175 = vld [vmem:[#allocation2 + $0xdb8] sm:$0xff]
    %v6176 = vld [vmem:[#allocation2 + $0xdc0] sm:$0xff]
    %v6177 = vld [vmem:[#allocation2 + $0xdc8] sm:$0xff]
    %v6178 = vld [vmem:[#allocation2 + $0xdd0] sm:$0xff]
    %v6179 = vld [vmem:[#allocation2 + $0xdd8] sm:$0xff]
    %v6180 = vld [vmem:[#allocation2 + $0xde0] sm:$0xff]
    %v6181 = vld [vmem:[#allocation2 + $0xde8] sm:$0xff]
    %v6182 = vld [vmem:[#allocation2 + $0xdf0] sm:$0xff]
    %v6183 = vld [vmem:[#allocation2 + $0xdf8] sm:$0xff]
    %s6184 = scalar_lea.vmem [#allocation5], 768
    %v6185 = vld [vmem:[%s6184] ss:$2 sm:$0xff]
    %s6186 = scalar_lea.vmem [#allocation5], 784
    %v6187 = vld [vmem:[%s6186] ss:$2 sm:$0xff]
    %s6188 = scalar_lea.vmem [#allocation5], 800
    %v6189 = vld [vmem:[%s6188] ss:$2 sm:$0xff]
    %s6190 = scalar_lea.vmem [#allocation5], 816
    %v6191 = vld [vmem:[%s6190] ss:$2 sm:$0xff]
    %s6192 = scalar_lea.vmem [#allocation5], 832
    %v6193 = vld [vmem:[%s6192] ss:$2 sm:$0xff]
    %s6194 = scalar_lea.vmem [#allocation5], 848
    %v6195 = vld [vmem:[%s6194] ss:$2 sm:$0xff]
    %s6196 = scalar_lea.vmem [#allocation5], 864
    %v6197 = vld [vmem:[%s6196] ss:$2 sm:$0xff]
    %s6198 = scalar_lea.vmem [#allocation5], 880
    %v6199 = vld [vmem:[%s6198] ss:$2 sm:$0xff]
    %v6208 = vlaneseq
    %v6209 = vshrl.u32 %v6208, 7
    %v6210 = vsub.s32 0, %v6209
    %v6211 = vrot.slane %v6185, %v6210
    %v6212 = vlaneseq
    %v6213 = vshrl.u32 %v6212, 7
    %v6214 = vsub.s32 1, %v6213
    %v6215 = vrot.slane %v6185, %v6214
    %v6216 = vlaneseq
    %v6217 = vshrl.u32 %v6216, 7
    %v6218 = vsub.s32 2, %v6217
    %v6219 = vrot.slane %v6185, %v6218
    %v6220 = vlaneseq
    %v6221 = vshrl.u32 %v6220, 7
    %v6222 = vsub.s32 3, %v6221
    %v6223 = vrot.slane %v6185, %v6222
    %v6224 = vlaneseq
    %v6225 = vshrl.u32 %v6224, 7
    %v6226 = vsub.s32 4, %v6225
    %v6227 = vrot.slane %v6185, %v6226
    %v6228 = vlaneseq
    %v6229 = vshrl.u32 %v6228, 7
    %v6230 = vsub.s32 5, %v6229
    %v6231 = vrot.slane %v6185, %v6230
    %v6232 = vlaneseq
    %v6233 = vshrl.u32 %v6232, 7
    %v6234 = vsub.s32 6, %v6233
    %v6235 = vrot.slane %v6185, %v6234
    %v6236 = vlaneseq
    %v6237 = vshrl.u32 %v6236, 7
    %v6238 = vsub.s32 7, %v6237
    %v6239 = vrot.slane %v6185, %v6238
    %v6240 = vlaneseq
    %v6241 = vshrl.u32 %v6240, 7
    %v6242 = vsub.s32 0, %v6241
    %v6243 = vrot.slane %v6187, %v6242
    %v6244 = vlaneseq
    %v6245 = vshrl.u32 %v6244, 7
    %v6246 = vsub.s32 1, %v6245
    %v6247 = vrot.slane %v6187, %v6246
    %v6248 = vlaneseq
    %v6249 = vshrl.u32 %v6248, 7
    %v6250 = vsub.s32 2, %v6249
    %v6251 = vrot.slane %v6187, %v6250
    %v6252 = vlaneseq
    %v6253 = vshrl.u32 %v6252, 7
    %v6254 = vsub.s32 3, %v6253
    %v6255 = vrot.slane %v6187, %v6254
    %v6256 = vlaneseq
    %v6257 = vshrl.u32 %v6256, 7
    %v6258 = vsub.s32 4, %v6257
    %v6259 = vrot.slane %v6187, %v6258
    %v6260 = vlaneseq
    %v6261 = vshrl.u32 %v6260, 7
    %v6262 = vsub.s32 5, %v6261
    %v6263 = vrot.slane %v6187, %v6262
    %v6264 = vlaneseq
    %v6265 = vshrl.u32 %v6264, 7
    %v6266 = vsub.s32 6, %v6265
    %v6267 = vrot.slane %v6187, %v6266
    %v6268 = vlaneseq
    %v6269 = vshrl.u32 %v6268, 7
    %v6270 = vsub.s32 7, %v6269
    %v6271 = vrot.slane %v6187, %v6270
    %v6272 = vlaneseq
    %v6273 = vshrl.u32 %v6272, 7
    %v6274 = vsub.s32 0, %v6273
    %v6275 = vrot.slane %v6189, %v6274
    %v6276 = vlaneseq
    %v6277 = vshrl.u32 %v6276, 7
    %v6278 = vsub.s32 1, %v6277
    %v6279 = vrot.slane %v6189, %v6278
    %v6280 = vlaneseq
    %v6281 = vshrl.u32 %v6280, 7
    %v6282 = vsub.s32 2, %v6281
    %v6283 = vrot.slane %v6189, %v6282
    %v6284 = vlaneseq
    %v6285 = vshrl.u32 %v6284, 7
    %v6286 = vsub.s32 3, %v6285
    %v6287 = vrot.slane %v6189, %v6286
    %v6288 = vlaneseq
    %v6289 = vshrl.u32 %v6288, 7
    %v6290 = vsub.s32 4, %v6289
    %v6291 = vrot.slane %v6189, %v6290
    %v6292 = vlaneseq
    %v6293 = vshrl.u32 %v6292, 7
    %v6294 = vsub.s32 5, %v6293
    %v6295 = vrot.slane %v6189, %v6294
    %v6296 = vlaneseq
    %v6297 = vshrl.u32 %v6296, 7
    %v6298 = vsub.s32 6, %v6297
    %v6299 = vrot.slane %v6189, %v6298
    %v6300 = vlaneseq
    %v6301 = vshrl.u32 %v6300, 7
    %v6302 = vsub.s32 7, %v6301
    %v6303 = vrot.slane %v6189, %v6302
    %v6304 = vlaneseq
    %v6305 = vshrl.u32 %v6304, 7
    %v6306 = vsub.s32 0, %v6305
    %v6307 = vrot.slane %v6191, %v6306
    %v6308 = vlaneseq
    %v6309 = vshrl.u32 %v6308, 7
    %v6310 = vsub.s32 1, %v6309
    %v6311 = vrot.slane %v6191, %v6310
    %v6312 = vlaneseq
    %v6313 = vshrl.u32 %v6312, 7
    %v6314 = vsub.s32 2, %v6313
    %v6315 = vrot.slane %v6191, %v6314
    %v6316 = vlaneseq
    %v6317 = vshrl.u32 %v6316, 7
    %v6318 = vsub.s32 3, %v6317
    %v6319 = vrot.slane %v6191, %v6318
    %v6320 = vlaneseq
    %v6321 = vshrl.u32 %v6320, 7
    %v6322 = vsub.s32 4, %v6321
    %v6323 = vrot.slane %v6191, %v6322
    %v6324 = vlaneseq
    %v6325 = vshrl.u32 %v6324, 7
    %v6326 = vsub.s32 5, %v6325
    %v6327 = vrot.slane %v6191, %v6326
    %v6328 = vlaneseq
    %v6329 = vshrl.u32 %v6328, 7
    %v6330 = vsub.s32 6, %v6329
    %v6331 = vrot.slane %v6191, %v6330
    %v6332 = vlaneseq
    %v6333 = vshrl.u32 %v6332, 7
    %v6334 = vsub.s32 7, %v6333
    %v6335 = vrot.slane %v6191, %v6334
    %v6336 = vlaneseq
    %v6337 = vshrl.u32 %v6336, 7
    %v6338 = vsub.s32 0, %v6337
    %v6339 = vrot.slane %v6193, %v6338
    %v6340 = vlaneseq
    %v6341 = vshrl.u32 %v6340, 7
    %v6342 = vsub.s32 1, %v6341
    %v6343 = vrot.slane %v6193, %v6342
    %v6344 = vlaneseq
    %v6345 = vshrl.u32 %v6344, 7
    %v6346 = vsub.s32 2, %v6345
    %v6347 = vrot.slane %v6193, %v6346
    %v6348 = vlaneseq
    %v6349 = vshrl.u32 %v6348, 7
    %v6350 = vsub.s32 3, %v6349
    %v6351 = vrot.slane %v6193, %v6350
    %v6352 = vlaneseq
    %v6353 = vshrl.u32 %v6352, 7
    %v6354 = vsub.s32 4, %v6353
    %v6355 = vrot.slane %v6193, %v6354
    %v6356 = vlaneseq
    %v6357 = vshrl.u32 %v6356, 7
    %v6358 = vsub.s32 5, %v6357
    %v6359 = vrot.slane %v6193, %v6358
    %v6360 = vlaneseq
    %v6361 = vshrl.u32 %v6360, 7
    %v6362 = vsub.s32 6, %v6361
    %v6363 = vrot.slane %v6193, %v6362
    %v6364 = vlaneseq
    %v6365 = vshrl.u32 %v6364, 7
    %v6366 = vsub.s32 7, %v6365
    %v6367 = vrot.slane %v6193, %v6366
    %v6368 = vlaneseq
    %v6369 = vshrl.u32 %v6368, 7
    %v6370 = vsub.s32 0, %v6369
    %v6371 = vrot.slane %v6195, %v6370
    %v6372 = vlaneseq
    %v6373 = vshrl.u32 %v6372, 7
    %v6374 = vsub.s32 1, %v6373
    %v6375 = vrot.slane %v6195, %v6374
    %v6376 = vlaneseq
    %v6377 = vshrl.u32 %v6376, 7
    %v6378 = vsub.s32 2, %v6377
    %v6379 = vrot.slane %v6195, %v6378
    %v6380 = vlaneseq
    %v6381 = vshrl.u32 %v6380, 7
    %v6382 = vsub.s32 3, %v6381
    %v6383 = vrot.slane %v6195, %v6382
    %v6384 = vlaneseq
    %v6385 = vshrl.u32 %v6384, 7
    %v6386 = vsub.s32 4, %v6385
    %v6387 = vrot.slane %v6195, %v6386
    %v6388 = vlaneseq
    %v6389 = vshrl.u32 %v6388, 7
    %v6390 = vsub.s32 5, %v6389
    %v6391 = vrot.slane %v6195, %v6390
    %v6392 = vlaneseq
    %v6393 = vshrl.u32 %v6392, 7
    %v6394 = vsub.s32 6, %v6393
    %v6395 = vrot.slane %v6195, %v6394
    %v6396 = vlaneseq
    %v6397 = vshrl.u32 %v6396, 7
    %v6398 = vsub.s32 7, %v6397
    %v6399 = vrot.slane %v6195, %v6398
    %v6400 = vlaneseq
    %v6401 = vshrl.u32 %v6400, 7
    %v6402 = vsub.s32 0, %v6401
    %v6403 = vrot.slane %v6197, %v6402
    %v6404 = vlaneseq
    %v6405 = vshrl.u32 %v6404, 7
    %v6406 = vsub.s32 1, %v6405
    %v6407 = vrot.slane %v6197, %v6406
    %v6408 = vlaneseq
    %v6409 = vshrl.u32 %v6408, 7
    %v6410 = vsub.s32 2, %v6409
    %v6411 = vrot.slane %v6197, %v6410
    %v6412 = vlaneseq
    %v6413 = vshrl.u32 %v6412, 7
    %v6414 = vsub.s32 3, %v6413
    %v6415 = vrot.slane %v6197, %v6414
    %v6416 = vlaneseq
    %v6417 = vshrl.u32 %v6416, 7
    %v6418 = vsub.s32 4, %v6417
    %v6419 = vrot.slane %v6197, %v6418
    %v6420 = vlaneseq
    %v6421 = vshrl.u32 %v6420, 7
    %v6422 = vsub.s32 5, %v6421
    %v6423 = vrot.slane %v6197, %v6422
    %v6424 = vlaneseq
    %v6425 = vshrl.u32 %v6424, 7
    %v6426 = vsub.s32 6, %v6425
    %v6427 = vrot.slane %v6197, %v6426
    %v6428 = vlaneseq
    %v6429 = vshrl.u32 %v6428, 7
    %v6430 = vsub.s32 7, %v6429
    %v6431 = vrot.slane %v6197, %v6430
    %v6432 = vlaneseq
    %v6433 = vshrl.u32 %v6432, 7
    %v6434 = vsub.s32 0, %v6433
    %v6435 = vrot.slane %v6199, %v6434
    %v6436 = vlaneseq
    %v6437 = vshrl.u32 %v6436, 7
    %v6438 = vsub.s32 1, %v6437
    %v6439 = vrot.slane %v6199, %v6438
    %v6440 = vlaneseq
    %v6441 = vshrl.u32 %v6440, 7
    %v6442 = vsub.s32 2, %v6441
    %v6443 = vrot.slane %v6199, %v6442
    %v6444 = vlaneseq
    %v6445 = vshrl.u32 %v6444, 7
    %v6446 = vsub.s32 3, %v6445
    %v6447 = vrot.slane %v6199, %v6446
    %v6448 = vlaneseq
    %v6449 = vshrl.u32 %v6448, 7
    %v6450 = vsub.s32 4, %v6449
    %v6451 = vrot.slane %v6199, %v6450
    %v6452 = vlaneseq
    %v6453 = vshrl.u32 %v6452, 7
    %v6454 = vsub.s32 5, %v6453
    %v6455 = vrot.slane %v6199, %v6454
    %v6456 = vlaneseq
    %v6457 = vshrl.u32 %v6456, 7
    %v6458 = vsub.s32 6, %v6457
    %v6459 = vrot.slane %v6199, %v6458
    %v6460 = vlaneseq
    %v6461 = vshrl.u32 %v6460, 7
    %v6462 = vsub.s32 7, %v6461
    %v6463 = vrot.slane %v6199, %v6462
    %v6528 = vmul.f32 %v6120, %v6211
    %v6529 = vmul.f32 %v6121, %v6215
    %v6530 = vmul.f32 %v6122, %v6219
    %v6531 = vmul.f32 %v6123, %v6223
    %v6532 = vmul.f32 %v6124, %v6227
    %v6533 = vmul.f32 %v6125, %v6231
    %v6534 = vmul.f32 %v6126, %v6235
    %v6535 = vmul.f32 %v6127, %v6239
    %v6536 = vmul.f32 %v6128, %v6243
    %v6537 = vmul.f32 %v6129, %v6247
    %v6538 = vmul.f32 %v6130, %v6251
    %v6539 = vmul.f32 %v6131, %v6255
    %v6540 = vmul.f32 %v6132, %v6259
    %v6541 = vmul.f32 %v6133, %v6263
    %v6542 = vmul.f32 %v6134, %v6267
    %v6543 = vmul.f32 %v6135, %v6271
    %v6544 = vmul.f32 %v6136, %v6275
    %v6545 = vmul.f32 %v6137, %v6279
    %v6546 = vmul.f32 %v6138, %v6283
    %v6547 = vmul.f32 %v6139, %v6287
    %v6548 = vmul.f32 %v6140, %v6291
    %v6549 = vmul.f32 %v6141, %v6295
    %v6550 = vmul.f32 %v6142, %v6299
    %v6551 = vmul.f32 %v6143, %v6303
    %v6552 = vmul.f32 %v6144, %v6307
    %v6553 = vmul.f32 %v6145, %v6311
    %v6554 = vmul.f32 %v6146, %v6315
    %v6555 = vmul.f32 %v6147, %v6319
    %v6556 = vmul.f32 %v6148, %v6323
    %v6557 = vmul.f32 %v6149, %v6327
    %v6558 = vmul.f32 %v6150, %v6331
    %v6559 = vmul.f32 %v6151, %v6335
    %v6560 = vmul.f32 %v6152, %v6339
    %v6561 = vmul.f32 %v6153, %v6343
    %v6562 = vmul.f32 %v6154, %v6347
    %v6563 = vmul.f32 %v6155, %v6351
    %v6564 = vmul.f32 %v6156, %v6355
    %v6565 = vmul.f32 %v6157, %v6359
    %v6566 = vmul.f32 %v6158, %v6363
    %v6567 = vmul.f32 %v6159, %v6367
    %v6568 = vmul.f32 %v6160, %v6371
    %v6569 = vmul.f32 %v6161, %v6375
    %v6570 = vmul.f32 %v6162, %v6379
    %v6571 = vmul.f32 %v6163, %v6383
    %v6572 = vmul.f32 %v6164, %v6387
    %v6573 = vmul.f32 %v6165, %v6391
    %v6574 = vmul.f32 %v6166, %v6395
    %v6575 = vmul.f32 %v6167, %v6399
    %v6576 = vmul.f32 %v6168, %v6403
    %v6577 = vmul.f32 %v6169, %v6407
    %v6578 = vmul.f32 %v6170, %v6411
    %v6579 = vmul.f32 %v6171, %v6415
    %v6580 = vmul.f32 %v6172, %v6419
    %v6581 = vmul.f32 %v6173, %v6423
    %v6582 = vmul.f32 %v6174, %v6427
    %v6583 = vmul.f32 %v6175, %v6431
    %v6584 = vmul.f32 %v6176, %v6435
    %v6585 = vmul.f32 %v6177, %v6439
    %v6586 = vmul.f32 %v6178, %v6443
    %v6587 = vmul.f32 %v6179, %v6447
    %v6588 = vmul.f32 %v6180, %v6451
    %v6589 = vmul.f32 %v6181, %v6455
    %v6590 = vmul.f32 %v6182, %v6459
    %v6591 = vmul.f32 %v6183, %v6463
    %v6592 = vadd.f32 %v6528, %v6529
    %v6593 = vadd.f32 %v6592, %v6530
    %v6594 = vadd.f32 %v6593, %v6531
    %v6595 = vadd.f32 %v6594, %v6532
    %v6596 = vadd.f32 %v6595, %v6533
    %v6597 = vadd.f32 %v6596, %v6534
    %v6598 = vadd.f32 %v6597, %v6535
    %v6599 = vadd.f32 %v6598, %v6536
    %v6600 = vadd.f32 %v6599, %v6537
    %v6601 = vadd.f32 %v6600, %v6538
    %v6602 = vadd.f32 %v6601, %v6539
    %v6603 = vadd.f32 %v6602, %v6540
    %v6604 = vadd.f32 %v6603, %v6541
    %v6605 = vadd.f32 %v6604, %v6542
    %v6606 = vadd.f32 %v6605, %v6543
    %v6607 = vadd.f32 %v6606, %v6544
    %v6608 = vadd.f32 %v6607, %v6545
    %v6609 = vadd.f32 %v6608, %v6546
    %v6610 = vadd.f32 %v6609, %v6547
    %v6611 = vadd.f32 %v6610, %v6548
    %v6612 = vadd.f32 %v6611, %v6549
    %v6613 = vadd.f32 %v6612, %v6550
    %v6614 = vadd.f32 %v6613, %v6551
    %v6615 = vadd.f32 %v6614, %v6552
    %v6616 = vadd.f32 %v6615, %v6553
    %v6617 = vadd.f32 %v6616, %v6554
    %v6618 = vadd.f32 %v6617, %v6555
    %v6619 = vadd.f32 %v6618, %v6556
    %v6620 = vadd.f32 %v6619, %v6557
    %v6621 = vadd.f32 %v6620, %v6558
    %v6622 = vadd.f32 %v6621, %v6559
    %v6623 = vadd.f32 %v6622, %v6560
    %v6624 = vadd.f32 %v6623, %v6561
    %v6625 = vadd.f32 %v6624, %v6562
    %v6626 = vadd.f32 %v6625, %v6563
    %v6627 = vadd.f32 %v6626, %v6564
    %v6628 = vadd.f32 %v6627, %v6565
    %v6629 = vadd.f32 %v6628, %v6566
    %v6630 = vadd.f32 %v6629, %v6567
    %v6631 = vadd.f32 %v6630, %v6568
    %v6632 = vadd.f32 %v6631, %v6569
    %v6633 = vadd.f32 %v6632, %v6570
    %v6634 = vadd.f32 %v6633, %v6571
    %v6635 = vadd.f32 %v6634, %v6572
    %v6636 = vadd.f32 %v6635, %v6573
    %v6637 = vadd.f32 %v6636, %v6574
    %v6638 = vadd.f32 %v6637, %v6575
    %v6639 = vadd.f32 %v6638, %v6576
    %v6640 = vadd.f32 %v6639, %v6577
    %v6641 = vadd.f32 %v6640, %v6578
    %v6642 = vadd.f32 %v6641, %v6579
    %v6643 = vadd.f32 %v6642, %v6580
    %v6644 = vadd.f32 %v6643, %v6581
    %v6645 = vadd.f32 %v6644, %v6582
    %v6646 = vadd.f32 %v6645, %v6583
    %v6647 = vadd.f32 %v6646, %v6584
    %v6648 = vadd.f32 %v6647, %v6585
    %v6649 = vadd.f32 %v6648, %v6586
    %v6650 = vadd.f32 %v6649, %v6587
    %v6651 = vadd.f32 %v6650, %v6588
    %v6652 = vadd.f32 %v6651, %v6589
    %v6653 = vadd.f32 %v6652, %v6590
    %v6654 = vadd.f32 %v6653, %v6591
    %6655 = vadd.xlane.f32.xlu0 %v6654
    %v6656 = vpop.xlane.xlu0 %6655
    %v6657 = vadd.f32 %v5645, %v6656
    %s6658 = scalar_lea.vmem [#allocation5], 769
    %v6659 = vld [vmem:[%s6658] ss:$2 sm:$0xff]
    %s6660 = scalar_lea.vmem [#allocation5], 785
    %v6661 = vld [vmem:[%s6660] ss:$2 sm:$0xff]
    %s6662 = scalar_lea.vmem [#allocation5], 801
    %v6663 = vld [vmem:[%s6662] ss:$2 sm:$0xff]
    %s6664 = scalar_lea.vmem [#allocation5], 817
    %v6665 = vld [vmem:[%s6664] ss:$2 sm:$0xff]
    %s6666 = scalar_lea.vmem [#allocation5], 833
    %v6667 = vld [vmem:[%s6666] ss:$2 sm:$0xff]
    %s6668 = scalar_lea.vmem [#allocation5], 849
    %v6669 = vld [vmem:[%s6668] ss:$2 sm:$0xff]
    %s6670 = scalar_lea.vmem [#allocation5], 865
    %v6671 = vld [vmem:[%s6670] ss:$2 sm:$0xff]
    %s6672 = scalar_lea.vmem [#allocation5], 881
    %v6673 = vld [vmem:[%s6672] ss:$2 sm:$0xff]
    %v6682 = vlaneseq
    %v6683 = vshrl.u32 %v6682, 7
    %v6684 = vsub.s32 0, %v6683
    %v6685 = vrot.slane %v6659, %v6684
    %v6686 = vlaneseq
    %v6687 = vshrl.u32 %v6686, 7
    %v6688 = vsub.s32 1, %v6687
    %v6689 = vrot.slane %v6659, %v6688
    %v6690 = vlaneseq
    %v6691 = vshrl.u32 %v6690, 7
    %v6692 = vsub.s32 2, %v6691
    %v6693 = vrot.slane %v6659, %v6692
    %v6694 = vlaneseq
    %v6695 = vshrl.u32 %v6694, 7
    %v6696 = vsub.s32 3, %v6695
    %v6697 = vrot.slane %v6659, %v6696
    %v6698 = vlaneseq
    %v6699 = vshrl.u32 %v6698, 7
    %v6700 = vsub.s32 4, %v6699
    %v6701 = vrot.slane %v6659, %v6700
    %v6702 = vlaneseq
    %v6703 = vshrl.u32 %v6702, 7
    %v6704 = vsub.s32 5, %v6703
    %v6705 = vrot.slane %v6659, %v6704
    %v6706 = vlaneseq
    %v6707 = vshrl.u32 %v6706, 7
    %v6708 = vsub.s32 6, %v6707
    %v6709 = vrot.slane %v6659, %v6708
    %v6710 = vlaneseq
    %v6711 = vshrl.u32 %v6710, 7
    %v6712 = vsub.s32 7, %v6711
    %v6713 = vrot.slane %v6659, %v6712
    %v6714 = vlaneseq
    %v6715 = vshrl.u32 %v6714, 7
    %v6716 = vsub.s32 0, %v6715
    %v6717 = vrot.slane %v6661, %v6716
    %v6718 = vlaneseq
    %v6719 = vshrl.u32 %v6718, 7
    %v6720 = vsub.s32 1, %v6719
    %v6721 = vrot.slane %v6661, %v6720
    %v6722 = vlaneseq
    %v6723 = vshrl.u32 %v6722, 7
    %v6724 = vsub.s32 2, %v6723
    %v6725 = vrot.slane %v6661, %v6724
    %v6726 = vlaneseq
    %v6727 = vshrl.u32 %v6726, 7
    %v6728 = vsub.s32 3, %v6727
    %v6729 = vrot.slane %v6661, %v6728
    %v6730 = vlaneseq
    %v6731 = vshrl.u32 %v6730, 7
    %v6732 = vsub.s32 4, %v6731
    %v6733 = vrot.slane %v6661, %v6732
    %v6734 = vlaneseq
    %v6735 = vshrl.u32 %v6734, 7
    %v6736 = vsub.s32 5, %v6735
    %v6737 = vrot.slane %v6661, %v6736
    %v6738 = vlaneseq
    %v6739 = vshrl.u32 %v6738, 7
    %v6740 = vsub.s32 6, %v6739
    %v6741 = vrot.slane %v6661, %v6740
    %v6742 = vlaneseq
    %v6743 = vshrl.u32 %v6742, 7
    %v6744 = vsub.s32 7, %v6743
    %v6745 = vrot.slane %v6661, %v6744
    %v6746 = vlaneseq
    %v6747 = vshrl.u32 %v6746, 7
    %v6748 = vsub.s32 0, %v6747
    %v6749 = vrot.slane %v6663, %v6748
    %v6750 = vlaneseq
    %v6751 = vshrl.u32 %v6750, 7
    %v6752 = vsub.s32 1, %v6751
    %v6753 = vrot.slane %v6663, %v6752
    %v6754 = vlaneseq
    %v6755 = vshrl.u32 %v6754, 7
    %v6756 = vsub.s32 2, %v6755
    %v6757 = vrot.slane %v6663, %v6756
    %v6758 = vlaneseq
    %v6759 = vshrl.u32 %v6758, 7
    %v6760 = vsub.s32 3, %v6759
    %v6761 = vrot.slane %v6663, %v6760
    %v6762 = vlaneseq
    %v6763 = vshrl.u32 %v6762, 7
    %v6764 = vsub.s32 4, %v6763
    %v6765 = vrot.slane %v6663, %v6764
    %v6766 = vlaneseq
    %v6767 = vshrl.u32 %v6766, 7
    %v6768 = vsub.s32 5, %v6767
    %v6769 = vrot.slane %v6663, %v6768
    %v6770 = vlaneseq
    %v6771 = vshrl.u32 %v6770, 7
    %v6772 = vsub.s32 6, %v6771
    %v6773 = vrot.slane %v6663, %v6772
    %v6774 = vlaneseq
    %v6775 = vshrl.u32 %v6774, 7
    %v6776 = vsub.s32 7, %v6775
    %v6777 = vrot.slane %v6663, %v6776
    %v6778 = vlaneseq
    %v6779 = vshrl.u32 %v6778, 7
    %v6780 = vsub.s32 0, %v6779
    %v6781 = vrot.slane %v6665, %v6780
    %v6782 = vlaneseq
    %v6783 = vshrl.u32 %v6782, 7
    %v6784 = vsub.s32 1, %v6783
    %v6785 = vrot.slane %v6665, %v6784
    %v6786 = vlaneseq
    %v6787 = vshrl.u32 %v6786, 7
    %v6788 = vsub.s32 2, %v6787
    %v6789 = vrot.slane %v6665, %v6788
    %v6790 = vlaneseq
    %v6791 = vshrl.u32 %v6790, 7
    %v6792 = vsub.s32 3, %v6791
    %v6793 = vrot.slane %v6665, %v6792
    %v6794 = vlaneseq
    %v6795 = vshrl.u32 %v6794, 7
    %v6796 = vsub.s32 4, %v6795
    %v6797 = vrot.slane %v6665, %v6796
    %v6798 = vlaneseq
    %v6799 = vshrl.u32 %v6798, 7
    %v6800 = vsub.s32 5, %v6799
    %v6801 = vrot.slane %v6665, %v6800
    %v6802 = vlaneseq
    %v6803 = vshrl.u32 %v6802, 7
    %v6804 = vsub.s32 6, %v6803
    %v6805 = vrot.slane %v6665, %v6804
    %v6806 = vlaneseq
    %v6807 = vshrl.u32 %v6806, 7
    %v6808 = vsub.s32 7, %v6807
    %v6809 = vrot.slane %v6665, %v6808
    %v6810 = vlaneseq
    %v6811 = vshrl.u32 %v6810, 7
    %v6812 = vsub.s32 0, %v6811
    %v6813 = vrot.slane %v6667, %v6812
    %v6814 = vlaneseq
    %v6815 = vshrl.u32 %v6814, 7
    %v6816 = vsub.s32 1, %v6815
    %v6817 = vrot.slane %v6667, %v6816
    %v6818 = vlaneseq
    %v6819 = vshrl.u32 %v6818, 7
    %v6820 = vsub.s32 2, %v6819
    %v6821 = vrot.slane %v6667, %v6820
    %v6822 = vlaneseq
    %v6823 = vshrl.u32 %v6822, 7
    %v6824 = vsub.s32 3, %v6823
    %v6825 = vrot.slane %v6667, %v6824
    %v6826 = vlaneseq
    %v6827 = vshrl.u32 %v6826, 7
    %v6828 = vsub.s32 4, %v6827
    %v6829 = vrot.slane %v6667, %v6828
    %v6830 = vlaneseq
    %v6831 = vshrl.u32 %v6830, 7
    %v6832 = vsub.s32 5, %v6831
    %v6833 = vrot.slane %v6667, %v6832
    %v6834 = vlaneseq
    %v6835 = vshrl.u32 %v6834, 7
    %v6836 = vsub.s32 6, %v6835
    %v6837 = vrot.slane %v6667, %v6836
    %v6838 = vlaneseq
    %v6839 = vshrl.u32 %v6838, 7
    %v6840 = vsub.s32 7, %v6839
    %v6841 = vrot.slane %v6667, %v6840
    %v6842 = vlaneseq
    %v6843 = vshrl.u32 %v6842, 7
    %v6844 = vsub.s32 0, %v6843
    %v6845 = vrot.slane %v6669, %v6844
    %v6846 = vlaneseq
    %v6847 = vshrl.u32 %v6846, 7
    %v6848 = vsub.s32 1, %v6847
    %v6849 = vrot.slane %v6669, %v6848
    %v6850 = vlaneseq
    %v6851 = vshrl.u32 %v6850, 7
    %v6852 = vsub.s32 2, %v6851
    %v6853 = vrot.slane %v6669, %v6852
    %v6854 = vlaneseq
    %v6855 = vshrl.u32 %v6854, 7
    %v6856 = vsub.s32 3, %v6855
    %v6857 = vrot.slane %v6669, %v6856
    %v6858 = vlaneseq
    %v6859 = vshrl.u32 %v6858, 7
    %v6860 = vsub.s32 4, %v6859
    %v6861 = vrot.slane %v6669, %v6860
    %v6862 = vlaneseq
    %v6863 = vshrl.u32 %v6862, 7
    %v6864 = vsub.s32 5, %v6863
    %v6865 = vrot.slane %v6669, %v6864
    %v6866 = vlaneseq
    %v6867 = vshrl.u32 %v6866, 7
    %v6868 = vsub.s32 6, %v6867
    %v6869 = vrot.slane %v6669, %v6868
    %v6870 = vlaneseq
    %v6871 = vshrl.u32 %v6870, 7
    %v6872 = vsub.s32 7, %v6871
    %v6873 = vrot.slane %v6669, %v6872
    %v6874 = vlaneseq
    %v6875 = vshrl.u32 %v6874, 7
    %v6876 = vsub.s32 0, %v6875
    %v6877 = vrot.slane %v6671, %v6876
    %v6878 = vlaneseq
    %v6879 = vshrl.u32 %v6878, 7
    %v6880 = vsub.s32 1, %v6879
    %v6881 = vrot.slane %v6671, %v6880
    %v6882 = vlaneseq
    %v6883 = vshrl.u32 %v6882, 7
    %v6884 = vsub.s32 2, %v6883
    %v6885 = vrot.slane %v6671, %v6884
    %v6886 = vlaneseq
    %v6887 = vshrl.u32 %v6886, 7
    %v6888 = vsub.s32 3, %v6887
    %v6889 = vrot.slane %v6671, %v6888
    %v6890 = vlaneseq
    %v6891 = vshrl.u32 %v6890, 7
    %v6892 = vsub.s32 4, %v6891
    %v6893 = vrot.slane %v6671, %v6892
    %v6894 = vlaneseq
    %v6895 = vshrl.u32 %v6894, 7
    %v6896 = vsub.s32 5, %v6895
    %v6897 = vrot.slane %v6671, %v6896
    %v6898 = vlaneseq
    %v6899 = vshrl.u32 %v6898, 7
    %v6900 = vsub.s32 6, %v6899
    %v6901 = vrot.slane %v6671, %v6900
    %v6902 = vlaneseq
    %v6903 = vshrl.u32 %v6902, 7
    %v6904 = vsub.s32 7, %v6903
    %v6905 = vrot.slane %v6671, %v6904
    %v6906 = vlaneseq
    %v6907 = vshrl.u32 %v6906, 7
    %v6908 = vsub.s32 0, %v6907
    %v6909 = vrot.slane %v6673, %v6908
    %v6910 = vlaneseq
    %v6911 = vshrl.u32 %v6910, 7
    %v6912 = vsub.s32 1, %v6911
    %v6913 = vrot.slane %v6673, %v6912
    %v6914 = vlaneseq
    %v6915 = vshrl.u32 %v6914, 7
    %v6916 = vsub.s32 2, %v6915
    %v6917 = vrot.slane %v6673, %v6916
    %v6918 = vlaneseq
    %v6919 = vshrl.u32 %v6918, 7
    %v6920 = vsub.s32 3, %v6919
    %v6921 = vrot.slane %v6673, %v6920
    %v6922 = vlaneseq
    %v6923 = vshrl.u32 %v6922, 7
    %v6924 = vsub.s32 4, %v6923
    %v6925 = vrot.slane %v6673, %v6924
    %v6926 = vlaneseq
    %v6927 = vshrl.u32 %v6926, 7
    %v6928 = vsub.s32 5, %v6927
    %v6929 = vrot.slane %v6673, %v6928
    %v6930 = vlaneseq
    %v6931 = vshrl.u32 %v6930, 7
    %v6932 = vsub.s32 6, %v6931
    %v6933 = vrot.slane %v6673, %v6932
    %v6934 = vlaneseq
    %v6935 = vshrl.u32 %v6934, 7
    %v6936 = vsub.s32 7, %v6935
    %v6937 = vrot.slane %v6673, %v6936
    %v7002 = vmul.f32 %v6120, %v6685
    %v7003 = vmul.f32 %v6121, %v6689
    %v7004 = vmul.f32 %v6122, %v6693
    %v7005 = vmul.f32 %v6123, %v6697
    %v7006 = vmul.f32 %v6124, %v6701
    %v7007 = vmul.f32 %v6125, %v6705
    %v7008 = vmul.f32 %v6126, %v6709
    %v7009 = vmul.f32 %v6127, %v6713
    %v7010 = vmul.f32 %v6128, %v6717
    %v7011 = vmul.f32 %v6129, %v6721
    %v7012 = vmul.f32 %v6130, %v6725
    %v7013 = vmul.f32 %v6131, %v6729
    %v7014 = vmul.f32 %v6132, %v6733
    %v7015 = vmul.f32 %v6133, %v6737
    %v7016 = vmul.f32 %v6134, %v6741
    %v7017 = vmul.f32 %v6135, %v6745
    %v7018 = vmul.f32 %v6136, %v6749
    %v7019 = vmul.f32 %v6137, %v6753
    %v7020 = vmul.f32 %v6138, %v6757
    %v7021 = vmul.f32 %v6139, %v6761
    %v7022 = vmul.f32 %v6140, %v6765
    %v7023 = vmul.f32 %v6141, %v6769
    %v7024 = vmul.f32 %v6142, %v6773
    %v7025 = vmul.f32 %v6143, %v6777
    %v7026 = vmul.f32 %v6144, %v6781
    %v7027 = vmul.f32 %v6145, %v6785
    %v7028 = vmul.f32 %v6146, %v6789
    %v7029 = vmul.f32 %v6147, %v6793
    %v7030 = vmul.f32 %v6148, %v6797
    %v7031 = vmul.f32 %v6149, %v6801
    %v7032 = vmul.f32 %v6150, %v6805
    %v7033 = vmul.f32 %v6151, %v6809
    %v7034 = vmul.f32 %v6152, %v6813
    %v7035 = vmul.f32 %v6153, %v6817
    %v7036 = vmul.f32 %v6154, %v6821
    %v7037 = vmul.f32 %v6155, %v6825
    %v7038 = vmul.f32 %v6156, %v6829
    %v7039 = vmul.f32 %v6157, %v6833
    %v7040 = vmul.f32 %v6158, %v6837
    %v7041 = vmul.f32 %v6159, %v6841
    %v7042 = vmul.f32 %v6160, %v6845
    %v7043 = vmul.f32 %v6161, %v6849
    %v7044 = vmul.f32 %v6162, %v6853
    %v7045 = vmul.f32 %v6163, %v6857
    %v7046 = vmul.f32 %v6164, %v6861
    %v7047 = vmul.f32 %v6165, %v6865
    %v7048 = vmul.f32 %v6166, %v6869
    %v7049 = vmul.f32 %v6167, %v6873
    %v7050 = vmul.f32 %v6168, %v6877
    %v7051 = vmul.f32 %v6169, %v6881
    %v7052 = vmul.f32 %v6170, %v6885
    %v7053 = vmul.f32 %v6171, %v6889
    %v7054 = vmul.f32 %v6172, %v6893
    %v7055 = vmul.f32 %v6173, %v6897
    %v7056 = vmul.f32 %v6174, %v6901
    %v7057 = vmul.f32 %v6175, %v6905
    %v7058 = vmul.f32 %v6176, %v6909
    %v7059 = vmul.f32 %v6177, %v6913
    %v7060 = vmul.f32 %v6178, %v6917
    %v7061 = vmul.f32 %v6179, %v6921
    %v7062 = vmul.f32 %v6180, %v6925
    %v7063 = vmul.f32 %v6181, %v6929
    %v7064 = vmul.f32 %v6182, %v6933
    %v7065 = vmul.f32 %v6183, %v6937
    %v7066 = vadd.f32 %v7002, %v7003
    %v7067 = vadd.f32 %v7066, %v7004
    %v7068 = vadd.f32 %v7067, %v7005
    %v7069 = vadd.f32 %v7068, %v7006
    %v7070 = vadd.f32 %v7069, %v7007
    %v7071 = vadd.f32 %v7070, %v7008
    %v7072 = vadd.f32 %v7071, %v7009
    %v7073 = vadd.f32 %v7072, %v7010
    %v7074 = vadd.f32 %v7073, %v7011
    %v7075 = vadd.f32 %v7074, %v7012
    %v7076 = vadd.f32 %v7075, %v7013
    %v7077 = vadd.f32 %v7076, %v7014
    %v7078 = vadd.f32 %v7077, %v7015
    %v7079 = vadd.f32 %v7078, %v7016
    %v7080 = vadd.f32 %v7079, %v7017
    %v7081 = vadd.f32 %v7080, %v7018
    %v7082 = vadd.f32 %v7081, %v7019
    %v7083 = vadd.f32 %v7082, %v7020
    %v7084 = vadd.f32 %v7083, %v7021
    %v7085 = vadd.f32 %v7084, %v7022
    %v7086 = vadd.f32 %v7085, %v7023
    %v7087 = vadd.f32 %v7086, %v7024
    %v7088 = vadd.f32 %v7087, %v7025
    %v7089 = vadd.f32 %v7088, %v7026
    %v7090 = vadd.f32 %v7089, %v7027
    %v7091 = vadd.f32 %v7090, %v7028
    %v7092 = vadd.f32 %v7091, %v7029
    %v7093 = vadd.f32 %v7092, %v7030
    %v7094 = vadd.f32 %v7093, %v7031
    %v7095 = vadd.f32 %v7094, %v7032
    %v7096 = vadd.f32 %v7095, %v7033
    %v7097 = vadd.f32 %v7096, %v7034
    %v7098 = vadd.f32 %v7097, %v7035
    %v7099 = vadd.f32 %v7098, %v7036
    %v7100 = vadd.f32 %v7099, %v7037
    %v7101 = vadd.f32 %v7100, %v7038
    %v7102 = vadd.f32 %v7101, %v7039
    %v7103 = vadd.f32 %v7102, %v7040
    %v7104 = vadd.f32 %v7103, %v7041
    %v7105 = vadd.f32 %v7104, %v7042
    %v7106 = vadd.f32 %v7105, %v7043
    %v7107 = vadd.f32 %v7106, %v7044
    %v7108 = vadd.f32 %v7107, %v7045
    %v7109 = vadd.f32 %v7108, %v7046
    %v7110 = vadd.f32 %v7109, %v7047
    %v7111 = vadd.f32 %v7110, %v7048
    %v7112 = vadd.f32 %v7111, %v7049
    %v7113 = vadd.f32 %v7112, %v7050
    %v7114 = vadd.f32 %v7113, %v7051
    %v7115 = vadd.f32 %v7114, %v7052
    %v7116 = vadd.f32 %v7115, %v7053
    %v7117 = vadd.f32 %v7116, %v7054
    %v7118 = vadd.f32 %v7117, %v7055
    %v7119 = vadd.f32 %v7118, %v7056
    %v7120 = vadd.f32 %v7119, %v7057
    %v7121 = vadd.f32 %v7120, %v7058
    %v7122 = vadd.f32 %v7121, %v7059
    %v7123 = vadd.f32 %v7122, %v7060
    %v7124 = vadd.f32 %v7123, %v7061
    %v7125 = vadd.f32 %v7124, %v7062
    %v7126 = vadd.f32 %v7125, %v7063
    %v7127 = vadd.f32 %v7126, %v7064
    %v7128 = vadd.f32 %v7127, %v7065
    %7129 = vadd.xlane.f32.xlu0 %v7128
    %v7130 = vpop.xlane.xlu0 %7129
    %v7131 = vadd.f32 %v6119, %v7130
    %v7132 = vld [vmem:[#allocation2 + $0xe00] sm:$0xff]
    %v7133 = vld [vmem:[#allocation2 + $0xe08] sm:$0xff]
    %v7134 = vld [vmem:[#allocation2 + $0xe10] sm:$0xff]
    %v7135 = vld [vmem:[#allocation2 + $0xe18] sm:$0xff]
    %v7136 = vld [vmem:[#allocation2 + $0xe20] sm:$0xff]
    %v7137 = vld [vmem:[#allocation2 + $0xe28] sm:$0xff]
    %v7138 = vld [vmem:[#allocation2 + $0xe30] sm:$0xff]
    %v7139 = vld [vmem:[#allocation2 + $0xe38] sm:$0xff]
    %v7140 = vld [vmem:[#allocation2 + $0xe40] sm:$0xff]
    %v7141 = vld [vmem:[#allocation2 + $0xe48] sm:$0xff]
    %v7142 = vld [vmem:[#allocation2 + $0xe50] sm:$0xff]
    %v7143 = vld [vmem:[#allocation2 + $0xe58] sm:$0xff]
    %v7144 = vld [vmem:[#allocation2 + $0xe60] sm:$0xff]
    %v7145 = vld [vmem:[#allocation2 + $0xe68] sm:$0xff]
    %v7146 = vld [vmem:[#allocation2 + $0xe70] sm:$0xff]
    %v7147 = vld [vmem:[#allocation2 + $0xe78] sm:$0xff]
    %v7148 = vld [vmem:[#allocation2 + $0xe80] sm:$0xff]
    %v7149 = vld [vmem:[#allocation2 + $0xe88] sm:$0xff]
    %v7150 = vld [vmem:[#allocation2 + $0xe90] sm:$0xff]
    %v7151 = vld [vmem:[#allocation2 + $0xe98] sm:$0xff]
    %v7152 = vld [vmem:[#allocation2 + $0xea0] sm:$0xff]
    %v7153 = vld [vmem:[#allocation2 + $0xea8] sm:$0xff]
    %v7154 = vld [vmem:[#allocation2 + $0xeb0] sm:$0xff]
    %v7155 = vld [vmem:[#allocation2 + $0xeb8] sm:$0xff]
    %v7156 = vld [vmem:[#allocation2 + $0xec0] sm:$0xff]
    %v7157 = vld [vmem:[#allocation2 + $0xec8] sm:$0xff]
    %v7158 = vld [vmem:[#allocation2 + $0xed0] sm:$0xff]
    %v7159 = vld [vmem:[#allocation2 + $0xed8] sm:$0xff]
    %v7160 = vld [vmem:[#allocation2 + $0xee0] sm:$0xff]
    %v7161 = vld [vmem:[#allocation2 + $0xee8] sm:$0xff]
    %v7162 = vld [vmem:[#allocation2 + $0xef0] sm:$0xff]
    %v7163 = vld [vmem:[#allocation2 + $0xef8] sm:$0xff]
    %v7164 = vld [vmem:[#allocation2 + $0xf00] sm:$0xff]
    %v7165 = vld [vmem:[#allocation2 + $0xf08] sm:$0xff]
    %v7166 = vld [vmem:[#allocation2 + $0xf10] sm:$0xff]
    %v7167 = vld [vmem:[#allocation2 + $0xf18] sm:$0xff]
    %v7168 = vld [vmem:[#allocation2 + $0xf20] sm:$0xff]
    %v7169 = vld [vmem:[#allocation2 + $0xf28] sm:$0xff]
    %v7170 = vld [vmem:[#allocation2 + $0xf30] sm:$0xff]
    %v7171 = vld [vmem:[#allocation2 + $0xf38] sm:$0xff]
    %v7172 = vld [vmem:[#allocation2 + $0xf40] sm:$0xff]
    %v7173 = vld [vmem:[#allocation2 + $0xf48] sm:$0xff]
    %v7174 = vld [vmem:[#allocation2 + $0xf50] sm:$0xff]
    %v7175 = vld [vmem:[#allocation2 + $0xf58] sm:$0xff]
    %v7176 = vld [vmem:[#allocation2 + $0xf60] sm:$0xff]
    %v7177 = vld [vmem:[#allocation2 + $0xf68] sm:$0xff]
    %v7178 = vld [vmem:[#allocation2 + $0xf70] sm:$0xff]
    %v7179 = vld [vmem:[#allocation2 + $0xf78] sm:$0xff]
    %v7180 = vld [vmem:[#allocation2 + $0xf80] sm:$0xff]
    %v7181 = vld [vmem:[#allocation2 + $0xf88] sm:$0xff]
    %v7182 = vld [vmem:[#allocation2 + $0xf90] sm:$0xff]
    %v7183 = vld [vmem:[#allocation2 + $0xf98] sm:$0xff]
    %v7184 = vld [vmem:[#allocation2 + $0xfa0] sm:$0xff]
    %v7185 = vld [vmem:[#allocation2 + $0xfa8] sm:$0xff]
    %v7186 = vld [vmem:[#allocation2 + $0xfb0] sm:$0xff]
    %v7187 = vld [vmem:[#allocation2 + $0xfb8] sm:$0xff]
    %v7188 = vld [vmem:[#allocation2 + $0xfc0] sm:$0xff]
    %v7189 = vld [vmem:[#allocation2 + $0xfc8] sm:$0xff]
    %v7190 = vld [vmem:[#allocation2 + $0xfd0] sm:$0xff]
    %v7191 = vld [vmem:[#allocation2 + $0xfd8] sm:$0xff]
    %v7192 = vld [vmem:[#allocation2 + $0xfe0] sm:$0xff]
    %v7193 = vld [vmem:[#allocation2 + $0xfe8] sm:$0xff]
    %v7194 = vld [vmem:[#allocation2 + $0xff0] sm:$0xff]
    %v7195 = vld [vmem:[#allocation2 + $0xff8] sm:$0xff]
    %s7196 = scalar_lea.vmem [#allocation5], 896
    %v7197 = vld [vmem:[%s7196] ss:$2 sm:$0xff]
    %s7198 = scalar_lea.vmem [#allocation5], 912
    %v7199 = vld [vmem:[%s7198] ss:$2 sm:$0xff]
    %s7200 = scalar_lea.vmem [#allocation5], 928
    %v7201 = vld [vmem:[%s7200] ss:$2 sm:$0xff]
    %s7202 = scalar_lea.vmem [#allocation5], 944
    %v7203 = vld [vmem:[%s7202] ss:$2 sm:$0xff]
    %s7204 = scalar_lea.vmem [#allocation5], 960
    %v7205 = vld [vmem:[%s7204] ss:$2 sm:$0xff]
    %s7206 = scalar_lea.vmem [#allocation5], 976
    %v7207 = vld [vmem:[%s7206] ss:$2 sm:$0xff]
    %s7208 = scalar_lea.vmem [#allocation5], 992
    %v7209 = vld [vmem:[%s7208] ss:$2 sm:$0xff]
    %s7210 = scalar_lea.vmem [#allocation5], 1008
    %v7211 = vld [vmem:[%s7210] ss:$2 sm:$0xff]
    %v7220 = vlaneseq
    %v7221 = vshrl.u32 %v7220, 7
    %v7222 = vsub.s32 0, %v7221
    %v7223 = vrot.slane %v7197, %v7222
    %v7224 = vlaneseq
    %v7225 = vshrl.u32 %v7224, 7
    %v7226 = vsub.s32 1, %v7225
    %v7227 = vrot.slane %v7197, %v7226
    %v7228 = vlaneseq
    %v7229 = vshrl.u32 %v7228, 7
    %v7230 = vsub.s32 2, %v7229
    %v7231 = vrot.slane %v7197, %v7230
    %v7232 = vlaneseq
    %v7233 = vshrl.u32 %v7232, 7
    %v7234 = vsub.s32 3, %v7233
    %v7235 = vrot.slane %v7197, %v7234
    %v7236 = vlaneseq
    %v7237 = vshrl.u32 %v7236, 7
    %v7238 = vsub.s32 4, %v7237
    %v7239 = vrot.slane %v7197, %v7238
    %v7240 = vlaneseq
    %v7241 = vshrl.u32 %v7240, 7
    %v7242 = vsub.s32 5, %v7241
    %v7243 = vrot.slane %v7197, %v7242
    %v7244 = vlaneseq
    %v7245 = vshrl.u32 %v7244, 7
    %v7246 = vsub.s32 6, %v7245
    %v7247 = vrot.slane %v7197, %v7246
    %v7248 = vlaneseq
    %v7249 = vshrl.u32 %v7248, 7
    %v7250 = vsub.s32 7, %v7249
    %v7251 = vrot.slane %v7197, %v7250
    %v7252 = vlaneseq
    %v7253 = vshrl.u32 %v7252, 7
    %v7254 = vsub.s32 0, %v7253
    %v7255 = vrot.slane %v7199, %v7254
    %v7256 = vlaneseq
    %v7257 = vshrl.u32 %v7256, 7
    %v7258 = vsub.s32 1, %v7257
    %v7259 = vrot.slane %v7199, %v7258
    %v7260 = vlaneseq
    %v7261 = vshrl.u32 %v7260, 7
    %v7262 = vsub.s32 2, %v7261
    %v7263 = vrot.slane %v7199, %v7262
    %v7264 = vlaneseq
    %v7265 = vshrl.u32 %v7264, 7
    %v7266 = vsub.s32 3, %v7265
    %v7267 = vrot.slane %v7199, %v7266
    %v7268 = vlaneseq
    %v7269 = vshrl.u32 %v7268, 7
    %v7270 = vsub.s32 4, %v7269
    %v7271 = vrot.slane %v7199, %v7270
    %v7272 = vlaneseq
    %v7273 = vshrl.u32 %v7272, 7
    %v7274 = vsub.s32 5, %v7273
    %v7275 = vrot.slane %v7199, %v7274
    %v7276 = vlaneseq
    %v7277 = vshrl.u32 %v7276, 7
    %v7278 = vsub.s32 6, %v7277
    %v7279 = vrot.slane %v7199, %v7278
    %v7280 = vlaneseq
    %v7281 = vshrl.u32 %v7280, 7
    %v7282 = vsub.s32 7, %v7281
    %v7283 = vrot.slane %v7199, %v7282
    %v7284 = vlaneseq
    %v7285 = vshrl.u32 %v7284, 7
    %v7286 = vsub.s32 0, %v7285
    %v7287 = vrot.slane %v7201, %v7286
    %v7288 = vlaneseq
    %v7289 = vshrl.u32 %v7288, 7
    %v7290 = vsub.s32 1, %v7289
    %v7291 = vrot.slane %v7201, %v7290
    %v7292 = vlaneseq
    %v7293 = vshrl.u32 %v7292, 7
    %v7294 = vsub.s32 2, %v7293
    %v7295 = vrot.slane %v7201, %v7294
    %v7296 = vlaneseq
    %v7297 = vshrl.u32 %v7296, 7
    %v7298 = vsub.s32 3, %v7297
    %v7299 = vrot.slane %v7201, %v7298
    %v7300 = vlaneseq
    %v7301 = vshrl.u32 %v7300, 7
    %v7302 = vsub.s32 4, %v7301
    %v7303 = vrot.slane %v7201, %v7302
    %v7304 = vlaneseq
    %v7305 = vshrl.u32 %v7304, 7
    %v7306 = vsub.s32 5, %v7305
    %v7307 = vrot.slane %v7201, %v7306
    %v7308 = vlaneseq
    %v7309 = vshrl.u32 %v7308, 7
    %v7310 = vsub.s32 6, %v7309
    %v7311 = vrot.slane %v7201, %v7310
    %v7312 = vlaneseq
    %v7313 = vshrl.u32 %v7312, 7
    %v7314 = vsub.s32 7, %v7313
    %v7315 = vrot.slane %v7201, %v7314
    %v7316 = vlaneseq
    %v7317 = vshrl.u32 %v7316, 7
    %v7318 = vsub.s32 0, %v7317
    %v7319 = vrot.slane %v7203, %v7318
    %v7320 = vlaneseq
    %v7321 = vshrl.u32 %v7320, 7
    %v7322 = vsub.s32 1, %v7321
    %v7323 = vrot.slane %v7203, %v7322
    %v7324 = vlaneseq
    %v7325 = vshrl.u32 %v7324, 7
    %v7326 = vsub.s32 2, %v7325
    %v7327 = vrot.slane %v7203, %v7326
    %v7328 = vlaneseq
    %v7329 = vshrl.u32 %v7328, 7
    %v7330 = vsub.s32 3, %v7329
    %v7331 = vrot.slane %v7203, %v7330
    %v7332 = vlaneseq
    %v7333 = vshrl.u32 %v7332, 7
    %v7334 = vsub.s32 4, %v7333
    %v7335 = vrot.slane %v7203, %v7334
    %v7336 = vlaneseq
    %v7337 = vshrl.u32 %v7336, 7
    %v7338 = vsub.s32 5, %v7337
    %v7339 = vrot.slane %v7203, %v7338
    %v7340 = vlaneseq
    %v7341 = vshrl.u32 %v7340, 7
    %v7342 = vsub.s32 6, %v7341
    %v7343 = vrot.slane %v7203, %v7342
    %v7344 = vlaneseq
    %v7345 = vshrl.u32 %v7344, 7
    %v7346 = vsub.s32 7, %v7345
    %v7347 = vrot.slane %v7203, %v7346
    %v7348 = vlaneseq
    %v7349 = vshrl.u32 %v7348, 7
    %v7350 = vsub.s32 0, %v7349
    %v7351 = vrot.slane %v7205, %v7350
    %v7352 = vlaneseq
    %v7353 = vshrl.u32 %v7352, 7
    %v7354 = vsub.s32 1, %v7353
    %v7355 = vrot.slane %v7205, %v7354
    %v7356 = vlaneseq
    %v7357 = vshrl.u32 %v7356, 7
    %v7358 = vsub.s32 2, %v7357
    %v7359 = vrot.slane %v7205, %v7358
    %v7360 = vlaneseq
    %v7361 = vshrl.u32 %v7360, 7
    %v7362 = vsub.s32 3, %v7361
    %v7363 = vrot.slane %v7205, %v7362
    %v7364 = vlaneseq
    %v7365 = vshrl.u32 %v7364, 7
    %v7366 = vsub.s32 4, %v7365
    %v7367 = vrot.slane %v7205, %v7366
    %v7368 = vlaneseq
    %v7369 = vshrl.u32 %v7368, 7
    %v7370 = vsub.s32 5, %v7369
    %v7371 = vrot.slane %v7205, %v7370
    %v7372 = vlaneseq
    %v7373 = vshrl.u32 %v7372, 7
    %v7374 = vsub.s32 6, %v7373
    %v7375 = vrot.slane %v7205, %v7374
    %v7376 = vlaneseq
    %v7377 = vshrl.u32 %v7376, 7
    %v7378 = vsub.s32 7, %v7377
    %v7379 = vrot.slane %v7205, %v7378
    %v7380 = vlaneseq
    %v7381 = vshrl.u32 %v7380, 7
    %v7382 = vsub.s32 0, %v7381
    %v7383 = vrot.slane %v7207, %v7382
    %v7384 = vlaneseq
    %v7385 = vshrl.u32 %v7384, 7
    %v7386 = vsub.s32 1, %v7385
    %v7387 = vrot.slane %v7207, %v7386
    %v7388 = vlaneseq
    %v7389 = vshrl.u32 %v7388, 7
    %v7390 = vsub.s32 2, %v7389
    %v7391 = vrot.slane %v7207, %v7390
    %v7392 = vlaneseq
    %v7393 = vshrl.u32 %v7392, 7
    %v7394 = vsub.s32 3, %v7393
    %v7395 = vrot.slane %v7207, %v7394
    %v7396 = vlaneseq
    %v7397 = vshrl.u32 %v7396, 7
    %v7398 = vsub.s32 4, %v7397
    %v7399 = vrot.slane %v7207, %v7398
    %v7400 = vlaneseq
    %v7401 = vshrl.u32 %v7400, 7
    %v7402 = vsub.s32 5, %v7401
    %v7403 = vrot.slane %v7207, %v7402
    %v7404 = vlaneseq
    %v7405 = vshrl.u32 %v7404, 7
    %v7406 = vsub.s32 6, %v7405
    %v7407 = vrot.slane %v7207, %v7406
    %v7408 = vlaneseq
    %v7409 = vshrl.u32 %v7408, 7
    %v7410 = vsub.s32 7, %v7409
    %v7411 = vrot.slane %v7207, %v7410
    %v7412 = vlaneseq
    %v7413 = vshrl.u32 %v7412, 7
    %v7414 = vsub.s32 0, %v7413
    %v7415 = vrot.slane %v7209, %v7414
    %v7416 = vlaneseq
    %v7417 = vshrl.u32 %v7416, 7
    %v7418 = vsub.s32 1, %v7417
    %v7419 = vrot.slane %v7209, %v7418
    %v7420 = vlaneseq
    %v7421 = vshrl.u32 %v7420, 7
    %v7422 = vsub.s32 2, %v7421
    %v7423 = vrot.slane %v7209, %v7422
    %v7424 = vlaneseq
    %v7425 = vshrl.u32 %v7424, 7
    %v7426 = vsub.s32 3, %v7425
    %v7427 = vrot.slane %v7209, %v7426
    %v7428 = vlaneseq
    %v7429 = vshrl.u32 %v7428, 7
    %v7430 = vsub.s32 4, %v7429
    %v7431 = vrot.slane %v7209, %v7430
    %v7432 = vlaneseq
    %v7433 = vshrl.u32 %v7432, 7
    %v7434 = vsub.s32 5, %v7433
    %v7435 = vrot.slane %v7209, %v7434
    %v7436 = vlaneseq
    %v7437 = vshrl.u32 %v7436, 7
    %v7438 = vsub.s32 6, %v7437
    %v7439 = vrot.slane %v7209, %v7438
    %v7440 = vlaneseq
    %v7441 = vshrl.u32 %v7440, 7
    %v7442 = vsub.s32 7, %v7441
    %v7443 = vrot.slane %v7209, %v7442
    %v7444 = vlaneseq
    %v7445 = vshrl.u32 %v7444, 7
    %v7446 = vsub.s32 0, %v7445
    %v7447 = vrot.slane %v7211, %v7446
    %v7448 = vlaneseq
    %v7449 = vshrl.u32 %v7448, 7
    %v7450 = vsub.s32 1, %v7449
    %v7451 = vrot.slane %v7211, %v7450
    %v7452 = vlaneseq
    %v7453 = vshrl.u32 %v7452, 7
    %v7454 = vsub.s32 2, %v7453
    %v7455 = vrot.slane %v7211, %v7454
    %v7456 = vlaneseq
    %v7457 = vshrl.u32 %v7456, 7
    %v7458 = vsub.s32 3, %v7457
    %v7459 = vrot.slane %v7211, %v7458
    %v7460 = vlaneseq
    %v7461 = vshrl.u32 %v7460, 7
    %v7462 = vsub.s32 4, %v7461
    %v7463 = vrot.slane %v7211, %v7462
    %v7464 = vlaneseq
    %v7465 = vshrl.u32 %v7464, 7
    %v7466 = vsub.s32 5, %v7465
    %v7467 = vrot.slane %v7211, %v7466
    %v7468 = vlaneseq
    %v7469 = vshrl.u32 %v7468, 7
    %v7470 = vsub.s32 6, %v7469
    %v7471 = vrot.slane %v7211, %v7470
    %v7472 = vlaneseq
    %v7473 = vshrl.u32 %v7472, 7
    %v7474 = vsub.s32 7, %v7473
    %v7475 = vrot.slane %v7211, %v7474
    %v7540 = vmul.f32 %v7132, %v7223
    %v7541 = vmul.f32 %v7133, %v7227
    %v7542 = vmul.f32 %v7134, %v7231
    %v7543 = vmul.f32 %v7135, %v7235
    %v7544 = vmul.f32 %v7136, %v7239
    %v7545 = vmul.f32 %v7137, %v7243
    %v7546 = vmul.f32 %v7138, %v7247
    %v7547 = vmul.f32 %v7139, %v7251
    %v7548 = vmul.f32 %v7140, %v7255
    %v7549 = vmul.f32 %v7141, %v7259
    %v7550 = vmul.f32 %v7142, %v7263
    %v7551 = vmul.f32 %v7143, %v7267
    %v7552 = vmul.f32 %v7144, %v7271
    %v7553 = vmul.f32 %v7145, %v7275
    %v7554 = vmul.f32 %v7146, %v7279
    %v7555 = vmul.f32 %v7147, %v7283
    %v7556 = vmul.f32 %v7148, %v7287
    %v7557 = vmul.f32 %v7149, %v7291
    %v7558 = vmul.f32 %v7150, %v7295
    %v7559 = vmul.f32 %v7151, %v7299
    %v7560 = vmul.f32 %v7152, %v7303
    %v7561 = vmul.f32 %v7153, %v7307
    %v7562 = vmul.f32 %v7154, %v7311
    %v7563 = vmul.f32 %v7155, %v7315
    %v7564 = vmul.f32 %v7156, %v7319
    %v7565 = vmul.f32 %v7157, %v7323
    %v7566 = vmul.f32 %v7158, %v7327
    %v7567 = vmul.f32 %v7159, %v7331
    %v7568 = vmul.f32 %v7160, %v7335
    %v7569 = vmul.f32 %v7161, %v7339
    %v7570 = vmul.f32 %v7162, %v7343
    %v7571 = vmul.f32 %v7163, %v7347
    %v7572 = vmul.f32 %v7164, %v7351
    %v7573 = vmul.f32 %v7165, %v7355
    %v7574 = vmul.f32 %v7166, %v7359
    %v7575 = vmul.f32 %v7167, %v7363
    %v7576 = vmul.f32 %v7168, %v7367
    %v7577 = vmul.f32 %v7169, %v7371
    %v7578 = vmul.f32 %v7170, %v7375
    %v7579 = vmul.f32 %v7171, %v7379
    %v7580 = vmul.f32 %v7172, %v7383
    %v7581 = vmul.f32 %v7173, %v7387
    %v7582 = vmul.f32 %v7174, %v7391
    %v7583 = vmul.f32 %v7175, %v7395
    %v7584 = vmul.f32 %v7176, %v7399
    %v7585 = vmul.f32 %v7177, %v7403
    %v7586 = vmul.f32 %v7178, %v7407
    %v7587 = vmul.f32 %v7179, %v7411
    %v7588 = vmul.f32 %v7180, %v7415
    %v7589 = vmul.f32 %v7181, %v7419
    %v7590 = vmul.f32 %v7182, %v7423
    %v7591 = vmul.f32 %v7183, %v7427
    %v7592 = vmul.f32 %v7184, %v7431
    %v7593 = vmul.f32 %v7185, %v7435
    %v7594 = vmul.f32 %v7186, %v7439
    %v7595 = vmul.f32 %v7187, %v7443
    %v7596 = vmul.f32 %v7188, %v7447
    %v7597 = vmul.f32 %v7189, %v7451
    %v7598 = vmul.f32 %v7190, %v7455
    %v7599 = vmul.f32 %v7191, %v7459
    %v7600 = vmul.f32 %v7192, %v7463
    %v7601 = vmul.f32 %v7193, %v7467
    %v7602 = vmul.f32 %v7194, %v7471
    %v7603 = vmul.f32 %v7195, %v7475
    %v7604 = vadd.f32 %v7540, %v7541
    %v7605 = vadd.f32 %v7604, %v7542
    %v7606 = vadd.f32 %v7605, %v7543
    %v7607 = vadd.f32 %v7606, %v7544
    %v7608 = vadd.f32 %v7607, %v7545
    %v7609 = vadd.f32 %v7608, %v7546
    %v7610 = vadd.f32 %v7609, %v7547
    %v7611 = vadd.f32 %v7610, %v7548
    %v7612 = vadd.f32 %v7611, %v7549
    %v7613 = vadd.f32 %v7612, %v7550
    %v7614 = vadd.f32 %v7613, %v7551
    %v7615 = vadd.f32 %v7614, %v7552
    %v7616 = vadd.f32 %v7615, %v7553
    %v7617 = vadd.f32 %v7616, %v7554
    %v7618 = vadd.f32 %v7617, %v7555
    %v7619 = vadd.f32 %v7618, %v7556
    %v7620 = vadd.f32 %v7619, %v7557
    %v7621 = vadd.f32 %v7620, %v7558
    %v7622 = vadd.f32 %v7621, %v7559
    %v7623 = vadd.f32 %v7622, %v7560
    %v7624 = vadd.f32 %v7623, %v7561
    %v7625 = vadd.f32 %v7624, %v7562
    %v7626 = vadd.f32 %v7625, %v7563
    %v7627 = vadd.f32 %v7626, %v7564
    %v7628 = vadd.f32 %v7627, %v7565
    %v7629 = vadd.f32 %v7628, %v7566
    %v7630 = vadd.f32 %v7629, %v7567
    %v7631 = vadd.f32 %v7630, %v7568
    %v7632 = vadd.f32 %v7631, %v7569
    %v7633 = vadd.f32 %v7632, %v7570
    %v7634 = vadd.f32 %v7633, %v7571
    %v7635 = vadd.f32 %v7634, %v7572
    %v7636 = vadd.f32 %v7635, %v7573
    %v7637 = vadd.f32 %v7636, %v7574
    %v7638 = vadd.f32 %v7637, %v7575
    %v7639 = vadd.f32 %v7638, %v7576
    %v7640 = vadd.f32 %v7639, %v7577
    %v7641 = vadd.f32 %v7640, %v7578
    %v7642 = vadd.f32 %v7641, %v7579
    %v7643 = vadd.f32 %v7642, %v7580
    %v7644 = vadd.f32 %v7643, %v7581
    %v7645 = vadd.f32 %v7644, %v7582
    %v7646 = vadd.f32 %v7645, %v7583
    %v7647 = vadd.f32 %v7646, %v7584
    %v7648 = vadd.f32 %v7647, %v7585
    %v7649 = vadd.f32 %v7648, %v7586
    %v7650 = vadd.f32 %v7649, %v7587
    %v7651 = vadd.f32 %v7650, %v7588
    %v7652 = vadd.f32 %v7651, %v7589
    %v7653 = vadd.f32 %v7652, %v7590
    %v7654 = vadd.f32 %v7653, %v7591
    %v7655 = vadd.f32 %v7654, %v7592
    %v7656 = vadd.f32 %v7655, %v7593
    %v7657 = vadd.f32 %v7656, %v7594
    %v7658 = vadd.f32 %v7657, %v7595
    %v7659 = vadd.f32 %v7658, %v7596
    %v7660 = vadd.f32 %v7659, %v7597
    %v7661 = vadd.f32 %v7660, %v7598
    %v7662 = vadd.f32 %v7661, %v7599
    %v7663 = vadd.f32 %v7662, %v7600
    %v7664 = vadd.f32 %v7663, %v7601
    %v7665 = vadd.f32 %v7664, %v7602
    %v7666 = vadd.f32 %v7665, %v7603
    %7667 = vadd.xlane.f32.xlu0 %v7666
    %v7668 = vpop.xlane.xlu0 %7667
    %v7669 = vadd.f32 %v6657, %v7668
    %s7670 = scalar_lea.vmem [#allocation5], 897
    %v7671 = vld [vmem:[%s7670] ss:$2 sm:$0xff]
    %s7672 = scalar_lea.vmem [#allocation5], 913
    %v7673 = vld [vmem:[%s7672] ss:$2 sm:$0xff]
    %s7674 = scalar_lea.vmem [#allocation5], 929
    %v7675 = vld [vmem:[%s7674] ss:$2 sm:$0xff]
    %s7676 = scalar_lea.vmem [#allocation5], 945
    %v7677 = vld [vmem:[%s7676] ss:$2 sm:$0xff]
    %s7678 = scalar_lea.vmem [#allocation5], 961
    %v7679 = vld [vmem:[%s7678] ss:$2 sm:$0xff]
    %s7680 = scalar_lea.vmem [#allocation5], 977
    %v7681 = vld [vmem:[%s7680] ss:$2 sm:$0xff]
    %s7682 = scalar_lea.vmem [#allocation5], 993
    %v7683 = vld [vmem:[%s7682] ss:$2 sm:$0xff]
    %s7684 = scalar_lea.vmem [#allocation5], 1009
    %v7685 = vld [vmem:[%s7684] ss:$2 sm:$0xff]
    %v7694 = vlaneseq
    %v7695 = vshrl.u32 %v7694, 7
    %v7696 = vsub.s32 0, %v7695
    %v7697 = vrot.slane %v7671, %v7696
    %v7698 = vlaneseq
    %v7699 = vshrl.u32 %v7698, 7
    %v7700 = vsub.s32 1, %v7699
    %v7701 = vrot.slane %v7671, %v7700
    %v7702 = vlaneseq
    %v7703 = vshrl.u32 %v7702, 7
    %v7704 = vsub.s32 2, %v7703
    %v7705 = vrot.slane %v7671, %v7704
    %v7706 = vlaneseq
    %v7707 = vshrl.u32 %v7706, 7
    %v7708 = vsub.s32 3, %v7707
    %v7709 = vrot.slane %v7671, %v7708
    %v7710 = vlaneseq
    %v7711 = vshrl.u32 %v7710, 7
    %v7712 = vsub.s32 4, %v7711
    %v7713 = vrot.slane %v7671, %v7712
    %v7714 = vlaneseq
    %v7715 = vshrl.u32 %v7714, 7
    %v7716 = vsub.s32 5, %v7715
    %v7717 = vrot.slane %v7671, %v7716
    %v7718 = vlaneseq
    %v7719 = vshrl.u32 %v7718, 7
    %v7720 = vsub.s32 6, %v7719
    %v7721 = vrot.slane %v7671, %v7720
    %v7722 = vlaneseq
    %v7723 = vshrl.u32 %v7722, 7
    %v7724 = vsub.s32 7, %v7723
    %v7725 = vrot.slane %v7671, %v7724
    %v7726 = vlaneseq
    %v7727 = vshrl.u32 %v7726, 7
    %v7728 = vsub.s32 0, %v7727
    %v7729 = vrot.slane %v7673, %v7728
    %v7730 = vlaneseq
    %v7731 = vshrl.u32 %v7730, 7
    %v7732 = vsub.s32 1, %v7731
    %v7733 = vrot.slane %v7673, %v7732
    %v7734 = vlaneseq
    %v7735 = vshrl.u32 %v7734, 7
    %v7736 = vsub.s32 2, %v7735
    %v7737 = vrot.slane %v7673, %v7736
    %v7738 = vlaneseq
    %v7739 = vshrl.u32 %v7738, 7
    %v7740 = vsub.s32 3, %v7739
    %v7741 = vrot.slane %v7673, %v7740
    %v7742 = vlaneseq
    %v7743 = vshrl.u32 %v7742, 7
    %v7744 = vsub.s32 4, %v7743
    %v7745 = vrot.slane %v7673, %v7744
    %v7746 = vlaneseq
    %v7747 = vshrl.u32 %v7746, 7
    %v7748 = vsub.s32 5, %v7747
    %v7749 = vrot.slane %v7673, %v7748
    %v7750 = vlaneseq
    %v7751 = vshrl.u32 %v7750, 7
    %v7752 = vsub.s32 6, %v7751
    %v7753 = vrot.slane %v7673, %v7752
    %v7754 = vlaneseq
    %v7755 = vshrl.u32 %v7754, 7
    %v7756 = vsub.s32 7, %v7755
    %v7757 = vrot.slane %v7673, %v7756
    %v7758 = vlaneseq
    %v7759 = vshrl.u32 %v7758, 7
    %v7760 = vsub.s32 0, %v7759
    %v7761 = vrot.slane %v7675, %v7760
    %v7762 = vlaneseq
    %v7763 = vshrl.u32 %v7762, 7
    %v7764 = vsub.s32 1, %v7763
    %v7765 = vrot.slane %v7675, %v7764
    %v7766 = vlaneseq
    %v7767 = vshrl.u32 %v7766, 7
    %v7768 = vsub.s32 2, %v7767
    %v7769 = vrot.slane %v7675, %v7768
    %v7770 = vlaneseq
    %v7771 = vshrl.u32 %v7770, 7
    %v7772 = vsub.s32 3, %v7771
    %v7773 = vrot.slane %v7675, %v7772
    %v7774 = vlaneseq
    %v7775 = vshrl.u32 %v7774, 7
    %v7776 = vsub.s32 4, %v7775
    %v7777 = vrot.slane %v7675, %v7776
    %v7778 = vlaneseq
    %v7779 = vshrl.u32 %v7778, 7
    %v7780 = vsub.s32 5, %v7779
    %v7781 = vrot.slane %v7675, %v7780
    %v7782 = vlaneseq
    %v7783 = vshrl.u32 %v7782, 7
    %v7784 = vsub.s32 6, %v7783
    %v7785 = vrot.slane %v7675, %v7784
    %v7786 = vlaneseq
    %v7787 = vshrl.u32 %v7786, 7
    %v7788 = vsub.s32 7, %v7787
    %v7789 = vrot.slane %v7675, %v7788
    %v7790 = vlaneseq
    %v7791 = vshrl.u32 %v7790, 7
    %v7792 = vsub.s32 0, %v7791
    %v7793 = vrot.slane %v7677, %v7792
    %v7794 = vlaneseq
    %v7795 = vshrl.u32 %v7794, 7
    %v7796 = vsub.s32 1, %v7795
    %v7797 = vrot.slane %v7677, %v7796
    %v7798 = vlaneseq
    %v7799 = vshrl.u32 %v7798, 7
    %v7800 = vsub.s32 2, %v7799
    %v7801 = vrot.slane %v7677, %v7800
    %v7802 = vlaneseq
    %v7803 = vshrl.u32 %v7802, 7
    %v7804 = vsub.s32 3, %v7803
    %v7805 = vrot.slane %v7677, %v7804
    %v7806 = vlaneseq
    %v7807 = vshrl.u32 %v7806, 7
    %v7808 = vsub.s32 4, %v7807
    %v7809 = vrot.slane %v7677, %v7808
    %v7810 = vlaneseq
    %v7811 = vshrl.u32 %v7810, 7
    %v7812 = vsub.s32 5, %v7811
    %v7813 = vrot.slane %v7677, %v7812
    %v7814 = vlaneseq
    %v7815 = vshrl.u32 %v7814, 7
    %v7816 = vsub.s32 6, %v7815
    %v7817 = vrot.slane %v7677, %v7816
    %v7818 = vlaneseq
    %v7819 = vshrl.u32 %v7818, 7
    %v7820 = vsub.s32 7, %v7819
    %v7821 = vrot.slane %v7677, %v7820
    %v7822 = vlaneseq
    %v7823 = vshrl.u32 %v7822, 7
    %v7824 = vsub.s32 0, %v7823
    %v7825 = vrot.slane %v7679, %v7824
    %v7826 = vlaneseq
    %v7827 = vshrl.u32 %v7826, 7
    %v7828 = vsub.s32 1, %v7827
    %v7829 = vrot.slane %v7679, %v7828
    %v7830 = vlaneseq
    %v7831 = vshrl.u32 %v7830, 7
    %v7832 = vsub.s32 2, %v7831
    %v7833 = vrot.slane %v7679, %v7832
    %v7834 = vlaneseq
    %v7835 = vshrl.u32 %v7834, 7
    %v7836 = vsub.s32 3, %v7835
    %v7837 = vrot.slane %v7679, %v7836
    %v7838 = vlaneseq
    %v7839 = vshrl.u32 %v7838, 7
    %v7840 = vsub.s32 4, %v7839
    %v7841 = vrot.slane %v7679, %v7840
    %v7842 = vlaneseq
    %v7843 = vshrl.u32 %v7842, 7
    %v7844 = vsub.s32 5, %v7843
    %v7845 = vrot.slane %v7679, %v7844
    %v7846 = vlaneseq
    %v7847 = vshrl.u32 %v7846, 7
    %v7848 = vsub.s32 6, %v7847
    %v7849 = vrot.slane %v7679, %v7848
    %v7850 = vlaneseq
    %v7851 = vshrl.u32 %v7850, 7
    %v7852 = vsub.s32 7, %v7851
    %v7853 = vrot.slane %v7679, %v7852
    %v7854 = vlaneseq
    %v7855 = vshrl.u32 %v7854, 7
    %v7856 = vsub.s32 0, %v7855
    %v7857 = vrot.slane %v7681, %v7856
    %v7858 = vlaneseq
    %v7859 = vshrl.u32 %v7858, 7
    %v7860 = vsub.s32 1, %v7859
    %v7861 = vrot.slane %v7681, %v7860
    %v7862 = vlaneseq
    %v7863 = vshrl.u32 %v7862, 7
    %v7864 = vsub.s32 2, %v7863
    %v7865 = vrot.slane %v7681, %v7864
    %v7866 = vlaneseq
    %v7867 = vshrl.u32 %v7866, 7
    %v7868 = vsub.s32 3, %v7867
    %v7869 = vrot.slane %v7681, %v7868
    %v7870 = vlaneseq
    %v7871 = vshrl.u32 %v7870, 7
    %v7872 = vsub.s32 4, %v7871
    %v7873 = vrot.slane %v7681, %v7872
    %v7874 = vlaneseq
    %v7875 = vshrl.u32 %v7874, 7
    %v7876 = vsub.s32 5, %v7875
    %v7877 = vrot.slane %v7681, %v7876
    %v7878 = vlaneseq
    %v7879 = vshrl.u32 %v7878, 7
    %v7880 = vsub.s32 6, %v7879
    %v7881 = vrot.slane %v7681, %v7880
    %v7882 = vlaneseq
    %v7883 = vshrl.u32 %v7882, 7
    %v7884 = vsub.s32 7, %v7883
    %v7885 = vrot.slane %v7681, %v7884
    %v7886 = vlaneseq
    %v7887 = vshrl.u32 %v7886, 7
    %v7888 = vsub.s32 0, %v7887
    %v7889 = vrot.slane %v7683, %v7888
    %v7890 = vlaneseq
    %v7891 = vshrl.u32 %v7890, 7
    %v7892 = vsub.s32 1, %v7891
    %v7893 = vrot.slane %v7683, %v7892
    %v7894 = vlaneseq
    %v7895 = vshrl.u32 %v7894, 7
    %v7896 = vsub.s32 2, %v7895
    %v7897 = vrot.slane %v7683, %v7896
    %v7898 = vlaneseq
    %v7899 = vshrl.u32 %v7898, 7
    %v7900 = vsub.s32 3, %v7899
    %v7901 = vrot.slane %v7683, %v7900
    %v7902 = vlaneseq
    %v7903 = vshrl.u32 %v7902, 7
    %v7904 = vsub.s32 4, %v7903
    %v7905 = vrot.slane %v7683, %v7904
    %v7906 = vlaneseq
    %v7907 = vshrl.u32 %v7906, 7
    %v7908 = vsub.s32 5, %v7907
    %v7909 = vrot.slane %v7683, %v7908
    %v7910 = vlaneseq
    %v7911 = vshrl.u32 %v7910, 7
    %v7912 = vsub.s32 6, %v7911
    %v7913 = vrot.slane %v7683, %v7912
    %v7914 = vlaneseq
    %v7915 = vshrl.u32 %v7914, 7
    %v7916 = vsub.s32 7, %v7915
    %v7917 = vrot.slane %v7683, %v7916
    %v7918 = vlaneseq
    %v7919 = vshrl.u32 %v7918, 7
    %v7920 = vsub.s32 0, %v7919
    %v7921 = vrot.slane %v7685, %v7920
    %v7922 = vlaneseq
    %v7923 = vshrl.u32 %v7922, 7
    %v7924 = vsub.s32 1, %v7923
    %v7925 = vrot.slane %v7685, %v7924
    %v7926 = vlaneseq
    %v7927 = vshrl.u32 %v7926, 7
    %v7928 = vsub.s32 2, %v7927
    %v7929 = vrot.slane %v7685, %v7928
    %v7930 = vlaneseq
    %v7931 = vshrl.u32 %v7930, 7
    %v7932 = vsub.s32 3, %v7931
    %v7933 = vrot.slane %v7685, %v7932
    %v7934 = vlaneseq
    %v7935 = vshrl.u32 %v7934, 7
    %v7936 = vsub.s32 4, %v7935
    %v7937 = vrot.slane %v7685, %v7936
    %v7938 = vlaneseq
    %v7939 = vshrl.u32 %v7938, 7
    %v7940 = vsub.s32 5, %v7939
    %v7941 = vrot.slane %v7685, %v7940
    %v7942 = vlaneseq
    %v7943 = vshrl.u32 %v7942, 7
    %v7944 = vsub.s32 6, %v7943
    %v7945 = vrot.slane %v7685, %v7944
    %v7946 = vlaneseq
    %v7947 = vshrl.u32 %v7946, 7
    %v7948 = vsub.s32 7, %v7947
    %v7949 = vrot.slane %v7685, %v7948
    %v8014 = vmul.f32 %v7132, %v7697
    %v8015 = vmul.f32 %v7133, %v7701
    %v8016 = vmul.f32 %v7134, %v7705
    %v8017 = vmul.f32 %v7135, %v7709
    %v8018 = vmul.f32 %v7136, %v7713
    %v8019 = vmul.f32 %v7137, %v7717
    %v8020 = vmul.f32 %v7138, %v7721
    %v8021 = vmul.f32 %v7139, %v7725
    %v8022 = vmul.f32 %v7140, %v7729
    %v8023 = vmul.f32 %v7141, %v7733
    %v8024 = vmul.f32 %v7142, %v7737
    %v8025 = vmul.f32 %v7143, %v7741
    %v8026 = vmul.f32 %v7144, %v7745
    %v8027 = vmul.f32 %v7145, %v7749
    %v8028 = vmul.f32 %v7146, %v7753
    %v8029 = vmul.f32 %v7147, %v7757
    %v8030 = vmul.f32 %v7148, %v7761
    %v8031 = vmul.f32 %v7149, %v7765
    %v8032 = vmul.f32 %v7150, %v7769
    %v8033 = vmul.f32 %v7151, %v7773
    %v8034 = vmul.f32 %v7152, %v7777
    %v8035 = vmul.f32 %v7153, %v7781
    %v8036 = vmul.f32 %v7154, %v7785
    %v8037 = vmul.f32 %v7155, %v7789
    %v8038 = vmul.f32 %v7156, %v7793
    %v8039 = vmul.f32 %v7157, %v7797
    %v8040 = vmul.f32 %v7158, %v7801
    %v8041 = vmul.f32 %v7159, %v7805
    %v8042 = vmul.f32 %v7160, %v7809
    %v8043 = vmul.f32 %v7161, %v7813
    %v8044 = vmul.f32 %v7162, %v7817
    %v8045 = vmul.f32 %v7163, %v7821
    %v8046 = vmul.f32 %v7164, %v7825
    %v8047 = vmul.f32 %v7165, %v7829
    %v8048 = vmul.f32 %v7166, %v7833
    %v8049 = vmul.f32 %v7167, %v7837
    %v8050 = vmul.f32 %v7168, %v7841
    %v8051 = vmul.f32 %v7169, %v7845
    %v8052 = vmul.f32 %v7170, %v7849
    %v8053 = vmul.f32 %v7171, %v7853
    %v8054 = vmul.f32 %v7172, %v7857
    %v8055 = vmul.f32 %v7173, %v7861
    %v8056 = vmul.f32 %v7174, %v7865
    %v8057 = vmul.f32 %v7175, %v7869
    %v8058 = vmul.f32 %v7176, %v7873
    %v8059 = vmul.f32 %v7177, %v7877
    %v8060 = vmul.f32 %v7178, %v7881
    %v8061 = vmul.f32 %v7179, %v7885
    %v8062 = vmul.f32 %v7180, %v7889
    %v8063 = vmul.f32 %v7181, %v7893
    %v8064 = vmul.f32 %v7182, %v7897
    %v8065 = vmul.f32 %v7183, %v7901
    %v8066 = vmul.f32 %v7184, %v7905
    %v8067 = vmul.f32 %v7185, %v7909
    %v8068 = vmul.f32 %v7186, %v7913
    %v8069 = vmul.f32 %v7187, %v7917
    %v8070 = vmul.f32 %v7188, %v7921
    %v8071 = vmul.f32 %v7189, %v7925
    %v8072 = vmul.f32 %v7190, %v7929
    %v8073 = vmul.f32 %v7191, %v7933
    %v8074 = vmul.f32 %v7192, %v7937
    %v8075 = vmul.f32 %v7193, %v7941
    %v8076 = vmul.f32 %v7194, %v7945
    %v8077 = vmul.f32 %v7195, %v7949
    %v8078 = vadd.f32 %v8014, %v8015
    %v8079 = vadd.f32 %v8078, %v8016
    %v8080 = vadd.f32 %v8079, %v8017
    %v8081 = vadd.f32 %v8080, %v8018
    %v8082 = vadd.f32 %v8081, %v8019
    %v8083 = vadd.f32 %v8082, %v8020
    %v8084 = vadd.f32 %v8083, %v8021
    %v8085 = vadd.f32 %v8084, %v8022
    %v8086 = vadd.f32 %v8085, %v8023
    %v8087 = vadd.f32 %v8086, %v8024
    %v8088 = vadd.f32 %v8087, %v8025
    %v8089 = vadd.f32 %v8088, %v8026
    %v8090 = vadd.f32 %v8089, %v8027
    %v8091 = vadd.f32 %v8090, %v8028
    %v8092 = vadd.f32 %v8091, %v8029
    %v8093 = vadd.f32 %v8092, %v8030
    %v8094 = vadd.f32 %v8093, %v8031
    %v8095 = vadd.f32 %v8094, %v8032
    %v8096 = vadd.f32 %v8095, %v8033
    %v8097 = vadd.f32 %v8096, %v8034
    %v8098 = vadd.f32 %v8097, %v8035
    %v8099 = vadd.f32 %v8098, %v8036
    %v8100 = vadd.f32 %v8099, %v8037
    %v8101 = vadd.f32 %v8100, %v8038
    %v8102 = vadd.f32 %v8101, %v8039
    %v8103 = vadd.f32 %v8102, %v8040
    %v8104 = vadd.f32 %v8103, %v8041
    %v8105 = vadd.f32 %v8104, %v8042
    %v8106 = vadd.f32 %v8105, %v8043
    %v8107 = vadd.f32 %v8106, %v8044
    %v8108 = vadd.f32 %v8107, %v8045
    %v8109 = vadd.f32 %v8108, %v8046
    %v8110 = vadd.f32 %v8109, %v8047
    %v8111 = vadd.f32 %v8110, %v8048
    %v8112 = vadd.f32 %v8111, %v8049
    %v8113 = vadd.f32 %v8112, %v8050
    %v8114 = vadd.f32 %v8113, %v8051
    %v8115 = vadd.f32 %v8114, %v8052
    %v8116 = vadd.f32 %v8115, %v8053
    %v8117 = vadd.f32 %v8116, %v8054
    %v8118 = vadd.f32 %v8117, %v8055
    %v8119 = vadd.f32 %v8118, %v8056
    %v8120 = vadd.f32 %v8119, %v8057
    %v8121 = vadd.f32 %v8120, %v8058
    %v8122 = vadd.f32 %v8121, %v8059
    %v8123 = vadd.f32 %v8122, %v8060
    %v8124 = vadd.f32 %v8123, %v8061
    %v8125 = vadd.f32 %v8124, %v8062
    %v8126 = vadd.f32 %v8125, %v8063
    %v8127 = vadd.f32 %v8126, %v8064
    %v8128 = vadd.f32 %v8127, %v8065
    %v8129 = vadd.f32 %v8128, %v8066
    %v8130 = vadd.f32 %v8129, %v8067
    %v8131 = vadd.f32 %v8130, %v8068
    %v8132 = vadd.f32 %v8131, %v8069
    %v8133 = vadd.f32 %v8132, %v8070
    %v8134 = vadd.f32 %v8133, %v8071
    %v8135 = vadd.f32 %v8134, %v8072
    %v8136 = vadd.f32 %v8135, %v8073
    %v8137 = vadd.f32 %v8136, %v8074
    %v8138 = vadd.f32 %v8137, %v8075
    %v8139 = vadd.f32 %v8138, %v8076
    %v8140 = vadd.f32 %v8139, %v8077
    %8141 = vadd.xlane.f32.xlu0 %v8140
    %v8142 = vpop.xlane.xlu0 %8141
    %v8143 = vadd.f32 %v7131, %v8142
    %v8144 = vld [vmem:[#allocation2 + $0x1000] sm:$0xff]
    %v8145 = vld [vmem:[#allocation2 + $0x1008] sm:$0xff]
    %v8146 = vld [vmem:[#allocation2 + $0x1010] sm:$0xff]
    %v8147 = vld [vmem:[#allocation2 + $0x1018] sm:$0xff]
    %v8148 = vld [vmem:[#allocation2 + $0x1020] sm:$0xff]
    %v8149 = vld [vmem:[#allocation2 + $0x1028] sm:$0xff]
    %v8150 = vld [vmem:[#allocation2 + $0x1030] sm:$0xff]
    %v8151 = vld [vmem:[#allocation2 + $0x1038] sm:$0xff]
    %v8152 = vld [vmem:[#allocation2 + $0x1040] sm:$0xff]
    %v8153 = vld [vmem:[#allocation2 + $0x1048] sm:$0xff]
    %v8154 = vld [vmem:[#allocation2 + $0x1050] sm:$0xff]
    %v8155 = vld [vmem:[#allocation2 + $0x1058] sm:$0xff]
    %v8156 = vld [vmem:[#allocation2 + $0x1060] sm:$0xff]
    %v8157 = vld [vmem:[#allocation2 + $0x1068] sm:$0xff]
    %v8158 = vld [vmem:[#allocation2 + $0x1070] sm:$0xff]
    %v8159 = vld [vmem:[#allocation2 + $0x1078] sm:$0xff]
    %v8160 = vld [vmem:[#allocation2 + $0x1080] sm:$0xff]
    %v8161 = vld [vmem:[#allocation2 + $0x1088] sm:$0xff]
    %v8162 = vld [vmem:[#allocation2 + $0x1090] sm:$0xff]
    %v8163 = vld [vmem:[#allocation2 + $0x1098] sm:$0xff]
    %v8164 = vld [vmem:[#allocation2 + $0x10a0] sm:$0xff]
    %v8165 = vld [vmem:[#allocation2 + $0x10a8] sm:$0xff]
    %v8166 = vld [vmem:[#allocation2 + $0x10b0] sm:$0xff]
    %v8167 = vld [vmem:[#allocation2 + $0x10b8] sm:$0xff]
    %v8168 = vld [vmem:[#allocation2 + $0x10c0] sm:$0xff]
    %v8169 = vld [vmem:[#allocation2 + $0x10c8] sm:$0xff]
    %v8170 = vld [vmem:[#allocation2 + $0x10d0] sm:$0xff]
    %v8171 = vld [vmem:[#allocation2 + $0x10d8] sm:$0xff]
    %v8172 = vld [vmem:[#allocation2 + $0x10e0] sm:$0xff]
    %v8173 = vld [vmem:[#allocation2 + $0x10e8] sm:$0xff]
    %v8174 = vld [vmem:[#allocation2 + $0x10f0] sm:$0xff]
    %v8175 = vld [vmem:[#allocation2 + $0x10f8] sm:$0xff]
    %v8176 = vld [vmem:[#allocation2 + $0x1100] sm:$0xff]
    %v8177 = vld [vmem:[#allocation2 + $0x1108] sm:$0xff]
    %v8178 = vld [vmem:[#allocation2 + $0x1110] sm:$0xff]
    %v8179 = vld [vmem:[#allocation2 + $0x1118] sm:$0xff]
    %v8180 = vld [vmem:[#allocation2 + $0x1120] sm:$0xff]
    %v8181 = vld [vmem:[#allocation2 + $0x1128] sm:$0xff]
    %v8182 = vld [vmem:[#allocation2 + $0x1130] sm:$0xff]
    %v8183 = vld [vmem:[#allocation2 + $0x1138] sm:$0xff]
    %v8184 = vld [vmem:[#allocation2 + $0x1140] sm:$0xff]
    %v8185 = vld [vmem:[#allocation2 + $0x1148] sm:$0xff]
    %v8186 = vld [vmem:[#allocation2 + $0x1150] sm:$0xff]
    %v8187 = vld [vmem:[#allocation2 + $0x1158] sm:$0xff]
    %v8188 = vld [vmem:[#allocation2 + $0x1160] sm:$0xff]
    %v8189 = vld [vmem:[#allocation2 + $0x1168] sm:$0xff]
    %v8190 = vld [vmem:[#allocation2 + $0x1170] sm:$0xff]
    %v8191 = vld [vmem:[#allocation2 + $0x1178] sm:$0xff]
    %v8192 = vld [vmem:[#allocation2 + $0x1180] sm:$0xff]
    %v8193 = vld [vmem:[#allocation2 + $0x1188] sm:$0xff]
    %v8194 = vld [vmem:[#allocation2 + $0x1190] sm:$0xff]
    %v8195 = vld [vmem:[#allocation2 + $0x1198] sm:$0xff]
    %v8196 = vld [vmem:[#allocation2 + $0x11a0] sm:$0xff]
    %v8197 = vld [vmem:[#allocation2 + $0x11a8] sm:$0xff]
    %v8198 = vld [vmem:[#allocation2 + $0x11b0] sm:$0xff]
    %v8199 = vld [vmem:[#allocation2 + $0x11b8] sm:$0xff]
    %v8200 = vld [vmem:[#allocation2 + $0x11c0] sm:$0xff]
    %v8201 = vld [vmem:[#allocation2 + $0x11c8] sm:$0xff]
    %v8202 = vld [vmem:[#allocation2 + $0x11d0] sm:$0xff]
    %v8203 = vld [vmem:[#allocation2 + $0x11d8] sm:$0xff]
    %v8204 = vld [vmem:[#allocation2 + $0x11e0] sm:$0xff]
    %v8205 = vld [vmem:[#allocation2 + $0x11e8] sm:$0xff]
    %v8206 = vld [vmem:[#allocation2 + $0x11f0] sm:$0xff]
    %v8207 = vld [vmem:[#allocation2 + $0x11f8] sm:$0xff]
    %s8208 = scalar_lea.vmem [#allocation5], 1024
    %v8209 = vld [vmem:[%s8208] ss:$2 sm:$0xff]
    %s8210 = scalar_lea.vmem [#allocation5], 1040
    %v8211 = vld [vmem:[%s8210] ss:$2 sm:$0xff]
    %s8212 = scalar_lea.vmem [#allocation5], 1056
    %v8213 = vld [vmem:[%s8212] ss:$2 sm:$0xff]
    %s8214 = scalar_lea.vmem [#allocation5], 1072
    %v8215 = vld [vmem:[%s8214] ss:$2 sm:$0xff]
    %s8216 = scalar_lea.vmem [#allocation5], 1088
    %v8217 = vld [vmem:[%s8216] ss:$2 sm:$0xff]
    %s8218 = scalar_lea.vmem [#allocation5], 1104
    %v8219 = vld [vmem:[%s8218] ss:$2 sm:$0xff]
    %s8220 = scalar_lea.vmem [#allocation5], 1120
    %v8221 = vld [vmem:[%s8220] ss:$2 sm:$0xff]
    %s8222 = scalar_lea.vmem [#allocation5], 1136
    %v8223 = vld [vmem:[%s8222] ss:$2 sm:$0xff]
    %v8232 = vlaneseq
    %v8233 = vshrl.u32 %v8232, 7
    %v8234 = vsub.s32 0, %v8233
    %v8235 = vrot.slane %v8209, %v8234
    %v8236 = vlaneseq
    %v8237 = vshrl.u32 %v8236, 7
    %v8238 = vsub.s32 1, %v8237
    %v8239 = vrot.slane %v8209, %v8238
    %v8240 = vlaneseq
    %v8241 = vshrl.u32 %v8240, 7
    %v8242 = vsub.s32 2, %v8241
    %v8243 = vrot.slane %v8209, %v8242
    %v8244 = vlaneseq
    %v8245 = vshrl.u32 %v8244, 7
    %v8246 = vsub.s32 3, %v8245
    %v8247 = vrot.slane %v8209, %v8246
    %v8248 = vlaneseq
    %v8249 = vshrl.u32 %v8248, 7
    %v8250 = vsub.s32 4, %v8249
    %v8251 = vrot.slane %v8209, %v8250
    %v8252 = vlaneseq
    %v8253 = vshrl.u32 %v8252, 7
    %v8254 = vsub.s32 5, %v8253
    %v8255 = vrot.slane %v8209, %v8254
    %v8256 = vlaneseq
    %v8257 = vshrl.u32 %v8256, 7
    %v8258 = vsub.s32 6, %v8257
    %v8259 = vrot.slane %v8209, %v8258
    %v8260 = vlaneseq
    %v8261 = vshrl.u32 %v8260, 7
    %v8262 = vsub.s32 7, %v8261
    %v8263 = vrot.slane %v8209, %v8262
    %v8264 = vlaneseq
    %v8265 = vshrl.u32 %v8264, 7
    %v8266 = vsub.s32 0, %v8265
    %v8267 = vrot.slane %v8211, %v8266
    %v8268 = vlaneseq
    %v8269 = vshrl.u32 %v8268, 7
    %v8270 = vsub.s32 1, %v8269
    %v8271 = vrot.slane %v8211, %v8270
    %v8272 = vlaneseq
    %v8273 = vshrl.u32 %v8272, 7
    %v8274 = vsub.s32 2, %v8273
    %v8275 = vrot.slane %v8211, %v8274
    %v8276 = vlaneseq
    %v8277 = vshrl.u32 %v8276, 7
    %v8278 = vsub.s32 3, %v8277
    %v8279 = vrot.slane %v8211, %v8278
    %v8280 = vlaneseq
    %v8281 = vshrl.u32 %v8280, 7
    %v8282 = vsub.s32 4, %v8281
    %v8283 = vrot.slane %v8211, %v8282
    %v8284 = vlaneseq
    %v8285 = vshrl.u32 %v8284, 7
    %v8286 = vsub.s32 5, %v8285
    %v8287 = vrot.slane %v8211, %v8286
    %v8288 = vlaneseq
    %v8289 = vshrl.u32 %v8288, 7
    %v8290 = vsub.s32 6, %v8289
    %v8291 = vrot.slane %v8211, %v8290
    %v8292 = vlaneseq
    %v8293 = vshrl.u32 %v8292, 7
    %v8294 = vsub.s32 7, %v8293
    %v8295 = vrot.slane %v8211, %v8294
    %v8296 = vlaneseq
    %v8297 = vshrl.u32 %v8296, 7
    %v8298 = vsub.s32 0, %v8297
    %v8299 = vrot.slane %v8213, %v8298
    %v8300 = vlaneseq
    %v8301 = vshrl.u32 %v8300, 7
    %v8302 = vsub.s32 1, %v8301
    %v8303 = vrot.slane %v8213, %v8302
    %v8304 = vlaneseq
    %v8305 = vshrl.u32 %v8304, 7
    %v8306 = vsub.s32 2, %v8305
    %v8307 = vrot.slane %v8213, %v8306
    %v8308 = vlaneseq
    %v8309 = vshrl.u32 %v8308, 7
    %v8310 = vsub.s32 3, %v8309
    %v8311 = vrot.slane %v8213, %v8310
    %v8312 = vlaneseq
    %v8313 = vshrl.u32 %v8312, 7
    %v8314 = vsub.s32 4, %v8313
    %v8315 = vrot.slane %v8213, %v8314
    %v8316 = vlaneseq
    %v8317 = vshrl.u32 %v8316, 7
    %v8318 = vsub.s32 5, %v8317
    %v8319 = vrot.slane %v8213, %v8318
    %v8320 = vlaneseq
    %v8321 = vshrl.u32 %v8320, 7
    %v8322 = vsub.s32 6, %v8321
    %v8323 = vrot.slane %v8213, %v8322
    %v8324 = vlaneseq
    %v8325 = vshrl.u32 %v8324, 7
    %v8326 = vsub.s32 7, %v8325
    %v8327 = vrot.slane %v8213, %v8326
    %v8328 = vlaneseq
    %v8329 = vshrl.u32 %v8328, 7
    %v8330 = vsub.s32 0, %v8329
    %v8331 = vrot.slane %v8215, %v8330
    %v8332 = vlaneseq
    %v8333 = vshrl.u32 %v8332, 7
    %v8334 = vsub.s32 1, %v8333
    %v8335 = vrot.slane %v8215, %v8334
    %v8336 = vlaneseq
    %v8337 = vshrl.u32 %v8336, 7
    %v8338 = vsub.s32 2, %v8337
    %v8339 = vrot.slane %v8215, %v8338
    %v8340 = vlaneseq
    %v8341 = vshrl.u32 %v8340, 7
    %v8342 = vsub.s32 3, %v8341
    %v8343 = vrot.slane %v8215, %v8342
    %v8344 = vlaneseq
    %v8345 = vshrl.u32 %v8344, 7
    %v8346 = vsub.s32 4, %v8345
    %v8347 = vrot.slane %v8215, %v8346
    %v8348 = vlaneseq
    %v8349 = vshrl.u32 %v8348, 7
    %v8350 = vsub.s32 5, %v8349
    %v8351 = vrot.slane %v8215, %v8350
    %v8352 = vlaneseq
    %v8353 = vshrl.u32 %v8352, 7
    %v8354 = vsub.s32 6, %v8353
    %v8355 = vrot.slane %v8215, %v8354
    %v8356 = vlaneseq
    %v8357 = vshrl.u32 %v8356, 7
    %v8358 = vsub.s32 7, %v8357
    %v8359 = vrot.slane %v8215, %v8358
    %v8360 = vlaneseq
    %v8361 = vshrl.u32 %v8360, 7
    %v8362 = vsub.s32 0, %v8361
    %v8363 = vrot.slane %v8217, %v8362
    %v8364 = vlaneseq
    %v8365 = vshrl.u32 %v8364, 7
    %v8366 = vsub.s32 1, %v8365
    %v8367 = vrot.slane %v8217, %v8366
    %v8368 = vlaneseq
    %v8369 = vshrl.u32 %v8368, 7
    %v8370 = vsub.s32 2, %v8369
    %v8371 = vrot.slane %v8217, %v8370
    %v8372 = vlaneseq
    %v8373 = vshrl.u32 %v8372, 7
    %v8374 = vsub.s32 3, %v8373
    %v8375 = vrot.slane %v8217, %v8374
    %v8376 = vlaneseq
    %v8377 = vshrl.u32 %v8376, 7
    %v8378 = vsub.s32 4, %v8377
    %v8379 = vrot.slane %v8217, %v8378
    %v8380 = vlaneseq
    %v8381 = vshrl.u32 %v8380, 7
    %v8382 = vsub.s32 5, %v8381
    %v8383 = vrot.slane %v8217, %v8382
    %v8384 = vlaneseq
    %v8385 = vshrl.u32 %v8384, 7
    %v8386 = vsub.s32 6, %v8385
    %v8387 = vrot.slane %v8217, %v8386
    %v8388 = vlaneseq
    %v8389 = vshrl.u32 %v8388, 7
    %v8390 = vsub.s32 7, %v8389
    %v8391 = vrot.slane %v8217, %v8390
    %v8392 = vlaneseq
    %v8393 = vshrl.u32 %v8392, 7
    %v8394 = vsub.s32 0, %v8393
    %v8395 = vrot.slane %v8219, %v8394
    %v8396 = vlaneseq
    %v8397 = vshrl.u32 %v8396, 7
    %v8398 = vsub.s32 1, %v8397
    %v8399 = vrot.slane %v8219, %v8398
    %v8400 = vlaneseq
    %v8401 = vshrl.u32 %v8400, 7
    %v8402 = vsub.s32 2, %v8401
    %v8403 = vrot.slane %v8219, %v8402
    %v8404 = vlaneseq
    %v8405 = vshrl.u32 %v8404, 7
    %v8406 = vsub.s32 3, %v8405
    %v8407 = vrot.slane %v8219, %v8406
    %v8408 = vlaneseq
    %v8409 = vshrl.u32 %v8408, 7
    %v8410 = vsub.s32 4, %v8409
    %v8411 = vrot.slane %v8219, %v8410
    %v8412 = vlaneseq
    %v8413 = vshrl.u32 %v8412, 7
    %v8414 = vsub.s32 5, %v8413
    %v8415 = vrot.slane %v8219, %v8414
    %v8416 = vlaneseq
    %v8417 = vshrl.u32 %v8416, 7
    %v8418 = vsub.s32 6, %v8417
    %v8419 = vrot.slane %v8219, %v8418
    %v8420 = vlaneseq
    %v8421 = vshrl.u32 %v8420, 7
    %v8422 = vsub.s32 7, %v8421
    %v8423 = vrot.slane %v8219, %v8422
    %v8424 = vlaneseq
    %v8425 = vshrl.u32 %v8424, 7
    %v8426 = vsub.s32 0, %v8425
    %v8427 = vrot.slane %v8221, %v8426
    %v8428 = vlaneseq
    %v8429 = vshrl.u32 %v8428, 7
    %v8430 = vsub.s32 1, %v8429
    %v8431 = vrot.slane %v8221, %v8430
    %v8432 = vlaneseq
    %v8433 = vshrl.u32 %v8432, 7
    %v8434 = vsub.s32 2, %v8433
    %v8435 = vrot.slane %v8221, %v8434
    %v8436 = vlaneseq
    %v8437 = vshrl.u32 %v8436, 7
    %v8438 = vsub.s32 3, %v8437
    %v8439 = vrot.slane %v8221, %v8438
    %v8440 = vlaneseq
    %v8441 = vshrl.u32 %v8440, 7
    %v8442 = vsub.s32 4, %v8441
    %v8443 = vrot.slane %v8221, %v8442
    %v8444 = vlaneseq
    %v8445 = vshrl.u32 %v8444, 7
    %v8446 = vsub.s32 5, %v8445
    %v8447 = vrot.slane %v8221, %v8446
    %v8448 = vlaneseq
    %v8449 = vshrl.u32 %v8448, 7
    %v8450 = vsub.s32 6, %v8449
    %v8451 = vrot.slane %v8221, %v8450
    %v8452 = vlaneseq
    %v8453 = vshrl.u32 %v8452, 7
    %v8454 = vsub.s32 7, %v8453
    %v8455 = vrot.slane %v8221, %v8454
    %v8456 = vlaneseq
    %v8457 = vshrl.u32 %v8456, 7
    %v8458 = vsub.s32 0, %v8457
    %v8459 = vrot.slane %v8223, %v8458
    %v8460 = vlaneseq
    %v8461 = vshrl.u32 %v8460, 7
    %v8462 = vsub.s32 1, %v8461
    %v8463 = vrot.slane %v8223, %v8462
    %v8464 = vlaneseq
    %v8465 = vshrl.u32 %v8464, 7
    %v8466 = vsub.s32 2, %v8465
    %v8467 = vrot.slane %v8223, %v8466
    %v8468 = vlaneseq
    %v8469 = vshrl.u32 %v8468, 7
    %v8470 = vsub.s32 3, %v8469
    %v8471 = vrot.slane %v8223, %v8470
    %v8472 = vlaneseq
    %v8473 = vshrl.u32 %v8472, 7
    %v8474 = vsub.s32 4, %v8473
    %v8475 = vrot.slane %v8223, %v8474
    %v8476 = vlaneseq
    %v8477 = vshrl.u32 %v8476, 7
    %v8478 = vsub.s32 5, %v8477
    %v8479 = vrot.slane %v8223, %v8478
    %v8480 = vlaneseq
    %v8481 = vshrl.u32 %v8480, 7
    %v8482 = vsub.s32 6, %v8481
    %v8483 = vrot.slane %v8223, %v8482
    %v8484 = vlaneseq
    %v8485 = vshrl.u32 %v8484, 7
    %v8486 = vsub.s32 7, %v8485
    %v8487 = vrot.slane %v8223, %v8486
    %v8552 = vmul.f32 %v8144, %v8235
    %v8553 = vmul.f32 %v8145, %v8239
    %v8554 = vmul.f32 %v8146, %v8243
    %v8555 = vmul.f32 %v8147, %v8247
    %v8556 = vmul.f32 %v8148, %v8251
    %v8557 = vmul.f32 %v8149, %v8255
    %v8558 = vmul.f32 %v8150, %v8259
    %v8559 = vmul.f32 %v8151, %v8263
    %v8560 = vmul.f32 %v8152, %v8267
    %v8561 = vmul.f32 %v8153, %v8271
    %v8562 = vmul.f32 %v8154, %v8275
    %v8563 = vmul.f32 %v8155, %v8279
    %v8564 = vmul.f32 %v8156, %v8283
    %v8565 = vmul.f32 %v8157, %v8287
    %v8566 = vmul.f32 %v8158, %v8291
    %v8567 = vmul.f32 %v8159, %v8295
    %v8568 = vmul.f32 %v8160, %v8299
    %v8569 = vmul.f32 %v8161, %v8303
    %v8570 = vmul.f32 %v8162, %v8307
    %v8571 = vmul.f32 %v8163, %v8311
    %v8572 = vmul.f32 %v8164, %v8315
    %v8573 = vmul.f32 %v8165, %v8319
    %v8574 = vmul.f32 %v8166, %v8323
    %v8575 = vmul.f32 %v8167, %v8327
    %v8576 = vmul.f32 %v8168, %v8331
    %v8577 = vmul.f32 %v8169, %v8335
    %v8578 = vmul.f32 %v8170, %v8339
    %v8579 = vmul.f32 %v8171, %v8343
    %v8580 = vmul.f32 %v8172, %v8347
    %v8581 = vmul.f32 %v8173, %v8351
    %v8582 = vmul.f32 %v8174, %v8355
    %v8583 = vmul.f32 %v8175, %v8359
    %v8584 = vmul.f32 %v8176, %v8363
    %v8585 = vmul.f32 %v8177, %v8367
    %v8586 = vmul.f32 %v8178, %v8371
    %v8587 = vmul.f32 %v8179, %v8375
    %v8588 = vmul.f32 %v8180, %v8379
    %v8589 = vmul.f32 %v8181, %v8383
    %v8590 = vmul.f32 %v8182, %v8387
    %v8591 = vmul.f32 %v8183, %v8391
    %v8592 = vmul.f32 %v8184, %v8395
    %v8593 = vmul.f32 %v8185, %v8399
    %v8594 = vmul.f32 %v8186, %v8403
    %v8595 = vmul.f32 %v8187, %v8407
    %v8596 = vmul.f32 %v8188, %v8411
    %v8597 = vmul.f32 %v8189, %v8415
    %v8598 = vmul.f32 %v8190, %v8419
    %v8599 = vmul.f32 %v8191, %v8423
    %v8600 = vmul.f32 %v8192, %v8427
    %v8601 = vmul.f32 %v8193, %v8431
    %v8602 = vmul.f32 %v8194, %v8435
    %v8603 = vmul.f32 %v8195, %v8439
    %v8604 = vmul.f32 %v8196, %v8443
    %v8605 = vmul.f32 %v8197, %v8447
    %v8606 = vmul.f32 %v8198, %v8451
    %v8607 = vmul.f32 %v8199, %v8455
    %v8608 = vmul.f32 %v8200, %v8459
    %v8609 = vmul.f32 %v8201, %v8463
    %v8610 = vmul.f32 %v8202, %v8467
    %v8611 = vmul.f32 %v8203, %v8471
    %v8612 = vmul.f32 %v8204, %v8475
    %v8613 = vmul.f32 %v8205, %v8479
    %v8614 = vmul.f32 %v8206, %v8483
    %v8615 = vmul.f32 %v8207, %v8487
    %v8616 = vadd.f32 %v8552, %v8553
    %v8617 = vadd.f32 %v8616, %v8554
    %v8618 = vadd.f32 %v8617, %v8555
    %v8619 = vadd.f32 %v8618, %v8556
    %v8620 = vadd.f32 %v8619, %v8557
    %v8621 = vadd.f32 %v8620, %v8558
    %v8622 = vadd.f32 %v8621, %v8559
    %v8623 = vadd.f32 %v8622, %v8560
    %v8624 = vadd.f32 %v8623, %v8561
    %v8625 = vadd.f32 %v8624, %v8562
    %v8626 = vadd.f32 %v8625, %v8563
    %v8627 = vadd.f32 %v8626, %v8564
    %v8628 = vadd.f32 %v8627, %v8565
    %v8629 = vadd.f32 %v8628, %v8566
    %v8630 = vadd.f32 %v8629, %v8567
    %v8631 = vadd.f32 %v8630, %v8568
    %v8632 = vadd.f32 %v8631, %v8569
    %v8633 = vadd.f32 %v8632, %v8570
    %v8634 = vadd.f32 %v8633, %v8571
    %v8635 = vadd.f32 %v8634, %v8572
    %v8636 = vadd.f32 %v8635, %v8573
    %v8637 = vadd.f32 %v8636, %v8574
    %v8638 = vadd.f32 %v8637, %v8575
    %v8639 = vadd.f32 %v8638, %v8576
    %v8640 = vadd.f32 %v8639, %v8577
    %v8641 = vadd.f32 %v8640, %v8578
    %v8642 = vadd.f32 %v8641, %v8579
    %v8643 = vadd.f32 %v8642, %v8580
    %v8644 = vadd.f32 %v8643, %v8581
    %v8645 = vadd.f32 %v8644, %v8582
    %v8646 = vadd.f32 %v8645, %v8583
    %v8647 = vadd.f32 %v8646, %v8584
    %v8648 = vadd.f32 %v8647, %v8585
    %v8649 = vadd.f32 %v8648, %v8586
    %v8650 = vadd.f32 %v8649, %v8587
    %v8651 = vadd.f32 %v8650, %v8588
    %v8652 = vadd.f32 %v8651, %v8589
    %v8653 = vadd.f32 %v8652, %v8590
    %v8654 = vadd.f32 %v8653, %v8591
    %v8655 = vadd.f32 %v8654, %v8592
    %v8656 = vadd.f32 %v8655, %v8593
    %v8657 = vadd.f32 %v8656, %v8594
    %v8658 = vadd.f32 %v8657, %v8595
    %v8659 = vadd.f32 %v8658, %v8596
    %v8660 = vadd.f32 %v8659, %v8597
    %v8661 = vadd.f32 %v8660, %v8598
    %v8662 = vadd.f32 %v8661, %v8599
    %v8663 = vadd.f32 %v8662, %v8600
    %v8664 = vadd.f32 %v8663, %v8601
    %v8665 = vadd.f32 %v8664, %v8602
    %v8666 = vadd.f32 %v8665, %v8603
    %v8667 = vadd.f32 %v8666, %v8604
    %v8668 = vadd.f32 %v8667, %v8605
    %v8669 = vadd.f32 %v8668, %v8606
    %v8670 = vadd.f32 %v8669, %v8607
    %v8671 = vadd.f32 %v8670, %v8608
    %v8672 = vadd.f32 %v8671, %v8609
    %v8673 = vadd.f32 %v8672, %v8610
    %v8674 = vadd.f32 %v8673, %v8611
    %v8675 = vadd.f32 %v8674, %v8612
    %v8676 = vadd.f32 %v8675, %v8613
    %v8677 = vadd.f32 %v8676, %v8614
    %v8678 = vadd.f32 %v8677, %v8615
    %8679 = vadd.xlane.f32.xlu0 %v8678
    %v8680 = vpop.xlane.xlu0 %8679
    %v8681 = vadd.f32 %v7669, %v8680
    %s8682 = scalar_lea.vmem [#allocation5], 1025
    %v8683 = vld [vmem:[%s8682] ss:$2 sm:$0xff]
    %s8684 = scalar_lea.vmem [#allocation5], 1041
    %v8685 = vld [vmem:[%s8684] ss:$2 sm:$0xff]
    %s8686 = scalar_lea.vmem [#allocation5], 1057
    %v8687 = vld [vmem:[%s8686] ss:$2 sm:$0xff]
    %s8688 = scalar_lea.vmem [#allocation5], 1073
    %v8689 = vld [vmem:[%s8688] ss:$2 sm:$0xff]
    %s8690 = scalar_lea.vmem [#allocation5], 1089
    %v8691 = vld [vmem:[%s8690] ss:$2 sm:$0xff]
    %s8692 = scalar_lea.vmem [#allocation5], 1105
    %v8693 = vld [vmem:[%s8692] ss:$2 sm:$0xff]
    %s8694 = scalar_lea.vmem [#allocation5], 1121
    %v8695 = vld [vmem:[%s8694] ss:$2 sm:$0xff]
    %s8696 = scalar_lea.vmem [#allocation5], 1137
    %v8697 = vld [vmem:[%s8696] ss:$2 sm:$0xff]
    %v8706 = vlaneseq
    %v8707 = vshrl.u32 %v8706, 7
    %v8708 = vsub.s32 0, %v8707
    %v8709 = vrot.slane %v8683, %v8708
    %v8710 = vlaneseq
    %v8711 = vshrl.u32 %v8710, 7
    %v8712 = vsub.s32 1, %v8711
    %v8713 = vrot.slane %v8683, %v8712
    %v8714 = vlaneseq
    %v8715 = vshrl.u32 %v8714, 7
    %v8716 = vsub.s32 2, %v8715
    %v8717 = vrot.slane %v8683, %v8716
    %v8718 = vlaneseq
    %v8719 = vshrl.u32 %v8718, 7
    %v8720 = vsub.s32 3, %v8719
    %v8721 = vrot.slane %v8683, %v8720
    %v8722 = vlaneseq
    %v8723 = vshrl.u32 %v8722, 7
    %v8724 = vsub.s32 4, %v8723
    %v8725 = vrot.slane %v8683, %v8724
    %v8726 = vlaneseq
    %v8727 = vshrl.u32 %v8726, 7
    %v8728 = vsub.s32 5, %v8727
    %v8729 = vrot.slane %v8683, %v8728
    %v8730 = vlaneseq
    %v8731 = vshrl.u32 %v8730, 7
    %v8732 = vsub.s32 6, %v8731
    %v8733 = vrot.slane %v8683, %v8732
    %v8734 = vlaneseq
    %v8735 = vshrl.u32 %v8734, 7
    %v8736 = vsub.s32 7, %v8735
    %v8737 = vrot.slane %v8683, %v8736
    %v8738 = vlaneseq
    %v8739 = vshrl.u32 %v8738, 7
    %v8740 = vsub.s32 0, %v8739
    %v8741 = vrot.slane %v8685, %v8740
    %v8742 = vlaneseq
    %v8743 = vshrl.u32 %v8742, 7
    %v8744 = vsub.s32 1, %v8743
    %v8745 = vrot.slane %v8685, %v8744
    %v8746 = vlaneseq
    %v8747 = vshrl.u32 %v8746, 7
    %v8748 = vsub.s32 2, %v8747
    %v8749 = vrot.slane %v8685, %v8748
    %v8750 = vlaneseq
    %v8751 = vshrl.u32 %v8750, 7
    %v8752 = vsub.s32 3, %v8751
    %v8753 = vrot.slane %v8685, %v8752
    %v8754 = vlaneseq
    %v8755 = vshrl.u32 %v8754, 7
    %v8756 = vsub.s32 4, %v8755
    %v8757 = vrot.slane %v8685, %v8756
    %v8758 = vlaneseq
    %v8759 = vshrl.u32 %v8758, 7
    %v8760 = vsub.s32 5, %v8759
    %v8761 = vrot.slane %v8685, %v8760
    %v8762 = vlaneseq
    %v8763 = vshrl.u32 %v8762, 7
    %v8764 = vsub.s32 6, %v8763
    %v8765 = vrot.slane %v8685, %v8764
    %v8766 = vlaneseq
    %v8767 = vshrl.u32 %v8766, 7
    %v8768 = vsub.s32 7, %v8767
    %v8769 = vrot.slane %v8685, %v8768
    %v8770 = vlaneseq
    %v8771 = vshrl.u32 %v8770, 7
    %v8772 = vsub.s32 0, %v8771
    %v8773 = vrot.slane %v8687, %v8772
    %v8774 = vlaneseq
    %v8775 = vshrl.u32 %v8774, 7
    %v8776 = vsub.s32 1, %v8775
    %v8777 = vrot.slane %v8687, %v8776
    %v8778 = vlaneseq
    %v8779 = vshrl.u32 %v8778, 7
    %v8780 = vsub.s32 2, %v8779
    %v8781 = vrot.slane %v8687, %v8780
    %v8782 = vlaneseq
    %v8783 = vshrl.u32 %v8782, 7
    %v8784 = vsub.s32 3, %v8783
    %v8785 = vrot.slane %v8687, %v8784
    %v8786 = vlaneseq
    %v8787 = vshrl.u32 %v8786, 7
    %v8788 = vsub.s32 4, %v8787
    %v8789 = vrot.slane %v8687, %v8788
    %v8790 = vlaneseq
    %v8791 = vshrl.u32 %v8790, 7
    %v8792 = vsub.s32 5, %v8791
    %v8793 = vrot.slane %v8687, %v8792
    %v8794 = vlaneseq
    %v8795 = vshrl.u32 %v8794, 7
    %v8796 = vsub.s32 6, %v8795
    %v8797 = vrot.slane %v8687, %v8796
    %v8798 = vlaneseq
    %v8799 = vshrl.u32 %v8798, 7
    %v8800 = vsub.s32 7, %v8799
    %v8801 = vrot.slane %v8687, %v8800
    %v8802 = vlaneseq
    %v8803 = vshrl.u32 %v8802, 7
    %v8804 = vsub.s32 0, %v8803
    %v8805 = vrot.slane %v8689, %v8804
    %v8806 = vlaneseq
    %v8807 = vshrl.u32 %v8806, 7
    %v8808 = vsub.s32 1, %v8807
    %v8809 = vrot.slane %v8689, %v8808
    %v8810 = vlaneseq
    %v8811 = vshrl.u32 %v8810, 7
    %v8812 = vsub.s32 2, %v8811
    %v8813 = vrot.slane %v8689, %v8812
    %v8814 = vlaneseq
    %v8815 = vshrl.u32 %v8814, 7
    %v8816 = vsub.s32 3, %v8815
    %v8817 = vrot.slane %v8689, %v8816
    %v8818 = vlaneseq
    %v8819 = vshrl.u32 %v8818, 7
    %v8820 = vsub.s32 4, %v8819
    %v8821 = vrot.slane %v8689, %v8820
    %v8822 = vlaneseq
    %v8823 = vshrl.u32 %v8822, 7
    %v8824 = vsub.s32 5, %v8823
    %v8825 = vrot.slane %v8689, %v8824
    %v8826 = vlaneseq
    %v8827 = vshrl.u32 %v8826, 7
    %v8828 = vsub.s32 6, %v8827
    %v8829 = vrot.slane %v8689, %v8828
    %v8830 = vlaneseq
    %v8831 = vshrl.u32 %v8830, 7
    %v8832 = vsub.s32 7, %v8831
    %v8833 = vrot.slane %v8689, %v8832
    %v8834 = vlaneseq
    %v8835 = vshrl.u32 %v8834, 7
    %v8836 = vsub.s32 0, %v8835
    %v8837 = vrot.slane %v8691, %v8836
    %v8838 = vlaneseq
    %v8839 = vshrl.u32 %v8838, 7
    %v8840 = vsub.s32 1, %v8839
    %v8841 = vrot.slane %v8691, %v8840
    %v8842 = vlaneseq
    %v8843 = vshrl.u32 %v8842, 7
    %v8844 = vsub.s32 2, %v8843
    %v8845 = vrot.slane %v8691, %v8844
    %v8846 = vlaneseq
    %v8847 = vshrl.u32 %v8846, 7
    %v8848 = vsub.s32 3, %v8847
    %v8849 = vrot.slane %v8691, %v8848
    %v8850 = vlaneseq
    %v8851 = vshrl.u32 %v8850, 7
    %v8852 = vsub.s32 4, %v8851
    %v8853 = vrot.slane %v8691, %v8852
    %v8854 = vlaneseq
    %v8855 = vshrl.u32 %v8854, 7
    %v8856 = vsub.s32 5, %v8855
    %v8857 = vrot.slane %v8691, %v8856
    %v8858 = vlaneseq
    %v8859 = vshrl.u32 %v8858, 7
    %v8860 = vsub.s32 6, %v8859
    %v8861 = vrot.slane %v8691, %v8860
    %v8862 = vlaneseq
    %v8863 = vshrl.u32 %v8862, 7
    %v8864 = vsub.s32 7, %v8863
    %v8865 = vrot.slane %v8691, %v8864
    %v8866 = vlaneseq
    %v8867 = vshrl.u32 %v8866, 7
    %v8868 = vsub.s32 0, %v8867
    %v8869 = vrot.slane %v8693, %v8868
    %v8870 = vlaneseq
    %v8871 = vshrl.u32 %v8870, 7
    %v8872 = vsub.s32 1, %v8871
    %v8873 = vrot.slane %v8693, %v8872
    %v8874 = vlaneseq
    %v8875 = vshrl.u32 %v8874, 7
    %v8876 = vsub.s32 2, %v8875
    %v8877 = vrot.slane %v8693, %v8876
    %v8878 = vlaneseq
    %v8879 = vshrl.u32 %v8878, 7
    %v8880 = vsub.s32 3, %v8879
    %v8881 = vrot.slane %v8693, %v8880
    %v8882 = vlaneseq
    %v8883 = vshrl.u32 %v8882, 7
    %v8884 = vsub.s32 4, %v8883
    %v8885 = vrot.slane %v8693, %v8884
    %v8886 = vlaneseq
    %v8887 = vshrl.u32 %v8886, 7
    %v8888 = vsub.s32 5, %v8887
    %v8889 = vrot.slane %v8693, %v8888
    %v8890 = vlaneseq
    %v8891 = vshrl.u32 %v8890, 7
    %v8892 = vsub.s32 6, %v8891
    %v8893 = vrot.slane %v8693, %v8892
    %v8894 = vlaneseq
    %v8895 = vshrl.u32 %v8894, 7
    %v8896 = vsub.s32 7, %v8895
    %v8897 = vrot.slane %v8693, %v8896
    %v8898 = vlaneseq
    %v8899 = vshrl.u32 %v8898, 7
    %v8900 = vsub.s32 0, %v8899
    %v8901 = vrot.slane %v8695, %v8900
    %v8902 = vlaneseq
    %v8903 = vshrl.u32 %v8902, 7
    %v8904 = vsub.s32 1, %v8903
    %v8905 = vrot.slane %v8695, %v8904
    %v8906 = vlaneseq
    %v8907 = vshrl.u32 %v8906, 7
    %v8908 = vsub.s32 2, %v8907
    %v8909 = vrot.slane %v8695, %v8908
    %v8910 = vlaneseq
    %v8911 = vshrl.u32 %v8910, 7
    %v8912 = vsub.s32 3, %v8911
    %v8913 = vrot.slane %v8695, %v8912
    %v8914 = vlaneseq
    %v8915 = vshrl.u32 %v8914, 7
    %v8916 = vsub.s32 4, %v8915
    %v8917 = vrot.slane %v8695, %v8916
    %v8918 = vlaneseq
    %v8919 = vshrl.u32 %v8918, 7
    %v8920 = vsub.s32 5, %v8919
    %v8921 = vrot.slane %v8695, %v8920
    %v8922 = vlaneseq
    %v8923 = vshrl.u32 %v8922, 7
    %v8924 = vsub.s32 6, %v8923
    %v8925 = vrot.slane %v8695, %v8924
    %v8926 = vlaneseq
    %v8927 = vshrl.u32 %v8926, 7
    %v8928 = vsub.s32 7, %v8927
    %v8929 = vrot.slane %v8695, %v8928
    %v8930 = vlaneseq
    %v8931 = vshrl.u32 %v8930, 7
    %v8932 = vsub.s32 0, %v8931
    %v8933 = vrot.slane %v8697, %v8932
    %v8934 = vlaneseq
    %v8935 = vshrl.u32 %v8934, 7
    %v8936 = vsub.s32 1, %v8935
    %v8937 = vrot.slane %v8697, %v8936
    %v8938 = vlaneseq
    %v8939 = vshrl.u32 %v8938, 7
    %v8940 = vsub.s32 2, %v8939
    %v8941 = vrot.slane %v8697, %v8940
    %v8942 = vlaneseq
    %v8943 = vshrl.u32 %v8942, 7
    %v8944 = vsub.s32 3, %v8943
    %v8945 = vrot.slane %v8697, %v8944
    %v8946 = vlaneseq
    %v8947 = vshrl.u32 %v8946, 7
    %v8948 = vsub.s32 4, %v8947
    %v8949 = vrot.slane %v8697, %v8948
    %v8950 = vlaneseq
    %v8951 = vshrl.u32 %v8950, 7
    %v8952 = vsub.s32 5, %v8951
    %v8953 = vrot.slane %v8697, %v8952
    %v8954 = vlaneseq
    %v8955 = vshrl.u32 %v8954, 7
    %v8956 = vsub.s32 6, %v8955
    %v8957 = vrot.slane %v8697, %v8956
    %v8958 = vlaneseq
    %v8959 = vshrl.u32 %v8958, 7
    %v8960 = vsub.s32 7, %v8959
    %v8961 = vrot.slane %v8697, %v8960
    %v9026 = vmul.f32 %v8144, %v8709
    %v9027 = vmul.f32 %v8145, %v8713
    %v9028 = vmul.f32 %v8146, %v8717
    %v9029 = vmul.f32 %v8147, %v8721
    %v9030 = vmul.f32 %v8148, %v8725
    %v9031 = vmul.f32 %v8149, %v8729
    %v9032 = vmul.f32 %v8150, %v8733
    %v9033 = vmul.f32 %v8151, %v8737
    %v9034 = vmul.f32 %v8152, %v8741
    %v9035 = vmul.f32 %v8153, %v8745
    %v9036 = vmul.f32 %v8154, %v8749
    %v9037 = vmul.f32 %v8155, %v8753
    %v9038 = vmul.f32 %v8156, %v8757
    %v9039 = vmul.f32 %v8157, %v8761
    %v9040 = vmul.f32 %v8158, %v8765
    %v9041 = vmul.f32 %v8159, %v8769
    %v9042 = vmul.f32 %v8160, %v8773
    %v9043 = vmul.f32 %v8161, %v8777
    %v9044 = vmul.f32 %v8162, %v8781
    %v9045 = vmul.f32 %v8163, %v8785
    %v9046 = vmul.f32 %v8164, %v8789
    %v9047 = vmul.f32 %v8165, %v8793
    %v9048 = vmul.f32 %v8166, %v8797
    %v9049 = vmul.f32 %v8167, %v8801
    %v9050 = vmul.f32 %v8168, %v8805
    %v9051 = vmul.f32 %v8169, %v8809
    %v9052 = vmul.f32 %v8170, %v8813
    %v9053 = vmul.f32 %v8171, %v8817
    %v9054 = vmul.f32 %v8172, %v8821
    %v9055 = vmul.f32 %v8173, %v8825
    %v9056 = vmul.f32 %v8174, %v8829
    %v9057 = vmul.f32 %v8175, %v8833
    %v9058 = vmul.f32 %v8176, %v8837
    %v9059 = vmul.f32 %v8177, %v8841
    %v9060 = vmul.f32 %v8178, %v8845
    %v9061 = vmul.f32 %v8179, %v8849
    %v9062 = vmul.f32 %v8180, %v8853
    %v9063 = vmul.f32 %v8181, %v8857
    %v9064 = vmul.f32 %v8182, %v8861
    %v9065 = vmul.f32 %v8183, %v8865
    %v9066 = vmul.f32 %v8184, %v8869
    %v9067 = vmul.f32 %v8185, %v8873
    %v9068 = vmul.f32 %v8186, %v8877
    %v9069 = vmul.f32 %v8187, %v8881
    %v9070 = vmul.f32 %v8188, %v8885
    %v9071 = vmul.f32 %v8189, %v8889
    %v9072 = vmul.f32 %v8190, %v8893
    %v9073 = vmul.f32 %v8191, %v8897
    %v9074 = vmul.f32 %v8192, %v8901
    %v9075 = vmul.f32 %v8193, %v8905
    %v9076 = vmul.f32 %v8194, %v8909
    %v9077 = vmul.f32 %v8195, %v8913
    %v9078 = vmul.f32 %v8196, %v8917
    %v9079 = vmul.f32 %v8197, %v8921
    %v9080 = vmul.f32 %v8198, %v8925
    %v9081 = vmul.f32 %v8199, %v8929
    %v9082 = vmul.f32 %v8200, %v8933
    %v9083 = vmul.f32 %v8201, %v8937
    %v9084 = vmul.f32 %v8202, %v8941
    %v9085 = vmul.f32 %v8203, %v8945
    %v9086 = vmul.f32 %v8204, %v8949
    %v9087 = vmul.f32 %v8205, %v8953
    %v9088 = vmul.f32 %v8206, %v8957
    %v9089 = vmul.f32 %v8207, %v8961
    %v9090 = vadd.f32 %v9026, %v9027
    %v9091 = vadd.f32 %v9090, %v9028
    %v9092 = vadd.f32 %v9091, %v9029
    %v9093 = vadd.f32 %v9092, %v9030
    %v9094 = vadd.f32 %v9093, %v9031
    %v9095 = vadd.f32 %v9094, %v9032
    %v9096 = vadd.f32 %v9095, %v9033
    %v9097 = vadd.f32 %v9096, %v9034
    %v9098 = vadd.f32 %v9097, %v9035
    %v9099 = vadd.f32 %v9098, %v9036
    %v9100 = vadd.f32 %v9099, %v9037
    %v9101 = vadd.f32 %v9100, %v9038
    %v9102 = vadd.f32 %v9101, %v9039
    %v9103 = vadd.f32 %v9102, %v9040
    %v9104 = vadd.f32 %v9103, %v9041
    %v9105 = vadd.f32 %v9104, %v9042
    %v9106 = vadd.f32 %v9105, %v9043
    %v9107 = vadd.f32 %v9106, %v9044
    %v9108 = vadd.f32 %v9107, %v9045
    %v9109 = vadd.f32 %v9108, %v9046
    %v9110 = vadd.f32 %v9109, %v9047
    %v9111 = vadd.f32 %v9110, %v9048
    %v9112 = vadd.f32 %v9111, %v9049
    %v9113 = vadd.f32 %v9112, %v9050
    %v9114 = vadd.f32 %v9113, %v9051
    %v9115 = vadd.f32 %v9114, %v9052
    %v9116 = vadd.f32 %v9115, %v9053
    %v9117 = vadd.f32 %v9116, %v9054
    %v9118 = vadd.f32 %v9117, %v9055
    %v9119 = vadd.f32 %v9118, %v9056
    %v9120 = vadd.f32 %v9119, %v9057
    %v9121 = vadd.f32 %v9120, %v9058
    %v9122 = vadd.f32 %v9121, %v9059
    %v9123 = vadd.f32 %v9122, %v9060
    %v9124 = vadd.f32 %v9123, %v9061
    %v9125 = vadd.f32 %v9124, %v9062
    %v9126 = vadd.f32 %v9125, %v9063
    %v9127 = vadd.f32 %v9126, %v9064
    %v9128 = vadd.f32 %v9127, %v9065
    %v9129 = vadd.f32 %v9128, %v9066
    %v9130 = vadd.f32 %v9129, %v9067
    %v9131 = vadd.f32 %v9130, %v9068
    %v9132 = vadd.f32 %v9131, %v9069
    %v9133 = vadd.f32 %v9132, %v9070
    %v9134 = vadd.f32 %v9133, %v9071
    %v9135 = vadd.f32 %v9134, %v9072
    %v9136 = vadd.f32 %v9135, %v9073
    %v9137 = vadd.f32 %v9136, %v9074
    %v9138 = vadd.f32 %v9137, %v9075
    %v9139 = vadd.f32 %v9138, %v9076
    %v9140 = vadd.f32 %v9139, %v9077
    %v9141 = vadd.f32 %v9140, %v9078
    %v9142 = vadd.f32 %v9141, %v9079
    %v9143 = vadd.f32 %v9142, %v9080
    %v9144 = vadd.f32 %v9143, %v9081
    %v9145 = vadd.f32 %v9144, %v9082
    %v9146 = vadd.f32 %v9145, %v9083
    %v9147 = vadd.f32 %v9146, %v9084
    %v9148 = vadd.f32 %v9147, %v9085
    %v9149 = vadd.f32 %v9148, %v9086
    %v9150 = vadd.f32 %v9149, %v9087
    %v9151 = vadd.f32 %v9150, %v9088
    %v9152 = vadd.f32 %v9151, %v9089
    %9153 = vadd.xlane.f32.xlu0 %v9152
    %v9154 = vpop.xlane.xlu0 %9153
    %v9155 = vadd.f32 %v8143, %v9154
    %v9156 = vld [vmem:[#allocation2 + $0x1200] sm:$0xff]
    %v9157 = vld [vmem:[#allocation2 + $0x1208] sm:$0xff]
    %v9158 = vld [vmem:[#allocation2 + $0x1210] sm:$0xff]
    %v9159 = vld [vmem:[#allocation2 + $0x1218] sm:$0xff]
    %v9160 = vld [vmem:[#allocation2 + $0x1220] sm:$0xff]
    %v9161 = vld [vmem:[#allocation2 + $0x1228] sm:$0xff]
    %v9162 = vld [vmem:[#allocation2 + $0x1230] sm:$0xff]
    %v9163 = vld [vmem:[#allocation2 + $0x1238] sm:$0xff]
    %v9164 = vld [vmem:[#allocation2 + $0x1240] sm:$0xff]
    %v9165 = vld [vmem:[#allocation2 + $0x1248] sm:$0xff]
    %v9166 = vld [vmem:[#allocation2 + $0x1250] sm:$0xff]
    %v9167 = vld [vmem:[#allocation2 + $0x1258] sm:$0xff]
    %v9168 = vld [vmem:[#allocation2 + $0x1260] sm:$0xff]
    %v9169 = vld [vmem:[#allocation2 + $0x1268] sm:$0xff]
    %v9170 = vld [vmem:[#allocation2 + $0x1270] sm:$0xff]
    %v9171 = vld [vmem:[#allocation2 + $0x1278] sm:$0xff]
    %v9172 = vld [vmem:[#allocation2 + $0x1280] sm:$0xff]
    %v9173 = vld [vmem:[#allocation2 + $0x1288] sm:$0xff]
    %v9174 = vld [vmem:[#allocation2 + $0x1290] sm:$0xff]
    %v9175 = vld [vmem:[#allocation2 + $0x1298] sm:$0xff]
    %v9176 = vld [vmem:[#allocation2 + $0x12a0] sm:$0xff]
    %v9177 = vld [vmem:[#allocation2 + $0x12a8] sm:$0xff]
    %v9178 = vld [vmem:[#allocation2 + $0x12b0] sm:$0xff]
    %v9179 = vld [vmem:[#allocation2 + $0x12b8] sm:$0xff]
    %v9180 = vld [vmem:[#allocation2 + $0x12c0] sm:$0xff]
    %v9181 = vld [vmem:[#allocation2 + $0x12c8] sm:$0xff]
    %v9182 = vld [vmem:[#allocation2 + $0x12d0] sm:$0xff]
    %v9183 = vld [vmem:[#allocation2 + $0x12d8] sm:$0xff]
    %v9184 = vld [vmem:[#allocation2 + $0x12e0] sm:$0xff]
    %v9185 = vld [vmem:[#allocation2 + $0x12e8] sm:$0xff]
    %v9186 = vld [vmem:[#allocation2 + $0x12f0] sm:$0xff]
    %v9187 = vld [vmem:[#allocation2 + $0x12f8] sm:$0xff]
    %v9188 = vld [vmem:[#allocation2 + $0x1300] sm:$0xff]
    %v9189 = vld [vmem:[#allocation2 + $0x1308] sm:$0xff]
    %v9190 = vld [vmem:[#allocation2 + $0x1310] sm:$0xff]
    %v9191 = vld [vmem:[#allocation2 + $0x1318] sm:$0xff]
    %v9192 = vld [vmem:[#allocation2 + $0x1320] sm:$0xff]
    %s9193 = scalar_lea.vmem [#allocation5], 1152
    %v9194 = vld [vmem:[%s9193] ss:$2 sm:$0xff]
    %s9195 = scalar_lea.vmem [#allocation5], 1168
    %v9196 = vld [vmem:[%s9195] ss:$2 sm:$0xff]
    %s9197 = scalar_lea.vmem [#allocation5], 1184
    %v9198 = vld [vmem:[%s9197] ss:$2 sm:$0xff]
    %s9199 = scalar_lea.vmem [#allocation5], 1200
    %v9200 = vld [vmem:[%s9199] ss:$2 sm:$0xff]
    %s9201 = scalar_lea.vmem [#allocation5], 1216
    %v9202 = vld [vmem:[%s9201] ss:$2 sm:$0x1f]
    %v9208 = vlaneseq
    %v9209 = vshrl.u32 %v9208, 7
    %v9210 = vsub.s32 0, %v9209
    %v9211 = vrot.slane %v9194, %v9210
    %v9212 = vlaneseq
    %v9213 = vshrl.u32 %v9212, 7
    %v9214 = vsub.s32 1, %v9213
    %v9215 = vrot.slane %v9194, %v9214
    %v9216 = vlaneseq
    %v9217 = vshrl.u32 %v9216, 7
    %v9218 = vsub.s32 2, %v9217
    %v9219 = vrot.slane %v9194, %v9218
    %v9220 = vlaneseq
    %v9221 = vshrl.u32 %v9220, 7
    %v9222 = vsub.s32 3, %v9221
    %v9223 = vrot.slane %v9194, %v9222
    %v9224 = vlaneseq
    %v9225 = vshrl.u32 %v9224, 7
    %v9226 = vsub.s32 4, %v9225
    %v9227 = vrot.slane %v9194, %v9226
    %v9228 = vlaneseq
    %v9229 = vshrl.u32 %v9228, 7
    %v9230 = vsub.s32 5, %v9229
    %v9231 = vrot.slane %v9194, %v9230
    %v9232 = vlaneseq
    %v9233 = vshrl.u32 %v9232, 7
    %v9234 = vsub.s32 6, %v9233
    %v9235 = vrot.slane %v9194, %v9234
    %v9236 = vlaneseq
    %v9237 = vshrl.u32 %v9236, 7
    %v9238 = vsub.s32 7, %v9237
    %v9239 = vrot.slane %v9194, %v9238
    %v9240 = vlaneseq
    %v9241 = vshrl.u32 %v9240, 7
    %v9242 = vsub.s32 0, %v9241
    %v9243 = vrot.slane %v9196, %v9242
    %v9244 = vlaneseq
    %v9245 = vshrl.u32 %v9244, 7
    %v9246 = vsub.s32 1, %v9245
    %v9247 = vrot.slane %v9196, %v9246
    %v9248 = vlaneseq
    %v9249 = vshrl.u32 %v9248, 7
    %v9250 = vsub.s32 2, %v9249
    %v9251 = vrot.slane %v9196, %v9250
    %v9252 = vlaneseq
    %v9253 = vshrl.u32 %v9252, 7
    %v9254 = vsub.s32 3, %v9253
    %v9255 = vrot.slane %v9196, %v9254
    %v9256 = vlaneseq
    %v9257 = vshrl.u32 %v9256, 7
    %v9258 = vsub.s32 4, %v9257
    %v9259 = vrot.slane %v9196, %v9258
    %v9260 = vlaneseq
    %v9261 = vshrl.u32 %v9260, 7
    %v9262 = vsub.s32 5, %v9261
    %v9263 = vrot.slane %v9196, %v9262
    %v9264 = vlaneseq
    %v9265 = vshrl.u32 %v9264, 7
    %v9266 = vsub.s32 6, %v9265
    %v9267 = vrot.slane %v9196, %v9266
    %v9268 = vlaneseq
    %v9269 = vshrl.u32 %v9268, 7
    %v9270 = vsub.s32 7, %v9269
    %v9271 = vrot.slane %v9196, %v9270
    %v9272 = vlaneseq
    %v9273 = vshrl.u32 %v9272, 7
    %v9274 = vsub.s32 0, %v9273
    %v9275 = vrot.slane %v9198, %v9274
    %v9276 = vlaneseq
    %v9277 = vshrl.u32 %v9276, 7
    %v9278 = vsub.s32 1, %v9277
    %v9279 = vrot.slane %v9198, %v9278
    %v9280 = vlaneseq
    %v9281 = vshrl.u32 %v9280, 7
    %v9282 = vsub.s32 2, %v9281
    %v9283 = vrot.slane %v9198, %v9282
    %v9284 = vlaneseq
    %v9285 = vshrl.u32 %v9284, 7
    %v9286 = vsub.s32 3, %v9285
    %v9287 = vrot.slane %v9198, %v9286
    %v9288 = vlaneseq
    %v9289 = vshrl.u32 %v9288, 7
    %v9290 = vsub.s32 4, %v9289
    %v9291 = vrot.slane %v9198, %v9290
    %v9292 = vlaneseq
    %v9293 = vshrl.u32 %v9292, 7
    %v9294 = vsub.s32 5, %v9293
    %v9295 = vrot.slane %v9198, %v9294
    %v9296 = vlaneseq
    %v9297 = vshrl.u32 %v9296, 7
    %v9298 = vsub.s32 6, %v9297
    %v9299 = vrot.slane %v9198, %v9298
    %v9300 = vlaneseq
    %v9301 = vshrl.u32 %v9300, 7
    %v9302 = vsub.s32 7, %v9301
    %v9303 = vrot.slane %v9198, %v9302
    %v9304 = vlaneseq
    %v9305 = vshrl.u32 %v9304, 7
    %v9306 = vsub.s32 0, %v9305
    %v9307 = vrot.slane %v9200, %v9306
    %v9308 = vlaneseq
    %v9309 = vshrl.u32 %v9308, 7
    %v9310 = vsub.s32 1, %v9309
    %v9311 = vrot.slane %v9200, %v9310
    %v9312 = vlaneseq
    %v9313 = vshrl.u32 %v9312, 7
    %v9314 = vsub.s32 2, %v9313
    %v9315 = vrot.slane %v9200, %v9314
    %v9316 = vlaneseq
    %v9317 = vshrl.u32 %v9316, 7
    %v9318 = vsub.s32 3, %v9317
    %v9319 = vrot.slane %v9200, %v9318
    %v9320 = vlaneseq
    %v9321 = vshrl.u32 %v9320, 7
    %v9322 = vsub.s32 4, %v9321
    %v9323 = vrot.slane %v9200, %v9322
    %v9324 = vlaneseq
    %v9325 = vshrl.u32 %v9324, 7
    %v9326 = vsub.s32 5, %v9325
    %v9327 = vrot.slane %v9200, %v9326
    %v9328 = vlaneseq
    %v9329 = vshrl.u32 %v9328, 7
    %v9330 = vsub.s32 6, %v9329
    %v9331 = vrot.slane %v9200, %v9330
    %v9332 = vlaneseq
    %v9333 = vshrl.u32 %v9332, 7
    %v9334 = vsub.s32 7, %v9333
    %v9335 = vrot.slane %v9200, %v9334
    %v9336 = vlaneseq
    %v9337 = vshrl.u32 %v9336, 7
    %v9338 = vsub.s32 0, %v9337
    %v9339 = vrot.slane %v9202, %v9338
    %v9340 = vlaneseq
    %v9341 = vshrl.u32 %v9340, 7
    %v9342 = vsub.s32 1, %v9341
    %v9343 = vrot.slane %v9202, %v9342
    %v9344 = vlaneseq
    %v9345 = vshrl.u32 %v9344, 7
    %v9346 = vsub.s32 2, %v9345
    %v9347 = vrot.slane %v9202, %v9346
    %v9348 = vlaneseq
    %v9349 = vshrl.u32 %v9348, 7
    %v9350 = vsub.s32 3, %v9349
    %v9351 = vrot.slane %v9202, %v9350
    %v9352 = vlaneseq
    %v9353 = vshrl.u32 %v9352, 7
    %v9354 = vsub.s32 4, %v9353
    %v9355 = vrot.slane %v9202, %v9354
    %v9393 = vmul.f32 %v9156, %v9211
    %v9394 = vmul.f32 %v9157, %v9215
    %v9395 = vmul.f32 %v9158, %v9219
    %v9396 = vmul.f32 %v9159, %v9223
    %v9397 = vmul.f32 %v9160, %v9227
    %v9398 = vmul.f32 %v9161, %v9231
    %v9399 = vmul.f32 %v9162, %v9235
    %v9400 = vmul.f32 %v9163, %v9239
    %v9401 = vmul.f32 %v9164, %v9243
    %v9402 = vmul.f32 %v9165, %v9247
    %v9403 = vmul.f32 %v9166, %v9251
    %v9404 = vmul.f32 %v9167, %v9255
    %v9405 = vmul.f32 %v9168, %v9259
    %v9406 = vmul.f32 %v9169, %v9263
    %v9407 = vmul.f32 %v9170, %v9267
    %v9408 = vmul.f32 %v9171, %v9271
    %v9409 = vmul.f32 %v9172, %v9275
    %v9410 = vmul.f32 %v9173, %v9279
    %v9411 = vmul.f32 %v9174, %v9283
    %v9412 = vmul.f32 %v9175, %v9287
    %v9413 = vmul.f32 %v9176, %v9291
    %v9414 = vmul.f32 %v9177, %v9295
    %v9415 = vmul.f32 %v9178, %v9299
    %v9416 = vmul.f32 %v9179, %v9303
    %v9417 = vmul.f32 %v9180, %v9307
    %v9418 = vmul.f32 %v9181, %v9311
    %v9419 = vmul.f32 %v9182, %v9315
    %v9420 = vmul.f32 %v9183, %v9319
    %v9421 = vmul.f32 %v9184, %v9323
    %v9422 = vmul.f32 %v9185, %v9327
    %v9423 = vmul.f32 %v9186, %v9331
    %v9424 = vmul.f32 %v9187, %v9335
    %v9425 = vmul.f32 %v9188, %v9339
    %v9426 = vmul.f32 %v9189, %v9343
    %v9427 = vmul.f32 %v9190, %v9347
    %v9428 = vmul.f32 %v9191, %v9351
    %v9429 = vmul.f32 %v9192, %v9355
    %v9430 = vadd.f32 %v9393, %v9394
    %v9431 = vadd.f32 %v9430, %v9395
    %v9432 = vadd.f32 %v9431, %v9396
    %v9433 = vadd.f32 %v9432, %v9397
    %v9434 = vadd.f32 %v9433, %v9398
    %v9435 = vadd.f32 %v9434, %v9399
    %v9436 = vadd.f32 %v9435, %v9400
    %v9437 = vadd.f32 %v9436, %v9401
    %v9438 = vadd.f32 %v9437, %v9402
    %v9439 = vadd.f32 %v9438, %v9403
    %v9440 = vadd.f32 %v9439, %v9404
    %v9441 = vadd.f32 %v9440, %v9405
    %v9442 = vadd.f32 %v9441, %v9406
    %v9443 = vadd.f32 %v9442, %v9407
    %v9444 = vadd.f32 %v9443, %v9408
    %v9445 = vadd.f32 %v9444, %v9409
    %v9446 = vadd.f32 %v9445, %v9410
    %v9447 = vadd.f32 %v9446, %v9411
    %v9448 = vadd.f32 %v9447, %v9412
    %v9449 = vadd.f32 %v9448, %v9413
    %v9450 = vadd.f32 %v9449, %v9414
    %v9451 = vadd.f32 %v9450, %v9415
    %v9452 = vadd.f32 %v9451, %v9416
    %v9453 = vadd.f32 %v9452, %v9417
    %v9454 = vadd.f32 %v9453, %v9418
    %v9455 = vadd.f32 %v9454, %v9419
    %v9456 = vadd.f32 %v9455, %v9420
    %v9457 = vadd.f32 %v9456, %v9421
    %v9458 = vadd.f32 %v9457, %v9422
    %v9459 = vadd.f32 %v9458, %v9423
    %v9460 = vadd.f32 %v9459, %v9424
    %v9461 = vadd.f32 %v9460, %v9425
    %v9462 = vadd.f32 %v9461, %v9426
    %v9463 = vadd.f32 %v9462, %v9427
    %v9464 = vadd.f32 %v9463, %v9428
    %vm9465 = vcmask 916480
    %v9466 = vsel %vm9465, %v9429, 0.0
    %v9467 = vadd.f32 %v9464, %v9466
    %9468 = vadd.xlane.f32.xlu0 %v9467
    %v9469 = vpop.xlane.xlu0 %9468
    %v9470 = vadd.f32 %v8681, %v9469
    %s9471 = scalar_lea.vmem [#allocation5], 1153
    %v9472 = vld [vmem:[%s9471] ss:$2 sm:$0xff]
    %s9473 = scalar_lea.vmem [#allocation5], 1169
    %v9474 = vld [vmem:[%s9473] ss:$2 sm:$0xff]
    %s9475 = scalar_lea.vmem [#allocation5], 1185
    %v9476 = vld [vmem:[%s9475] ss:$2 sm:$0xff]
    %s9477 = scalar_lea.vmem [#allocation5], 1201
    %v9478 = vld [vmem:[%s9477] ss:$2 sm:$0xff]
    %s9479 = scalar_lea.vmem [#allocation5], 1217
    %v9480 = vld [vmem:[%s9479] ss:$2 sm:$0x1f]
    %v9486 = vlaneseq
    %v9487 = vshrl.u32 %v9486, 7
    %v9488 = vsub.s32 0, %v9487
    %v9489 = vrot.slane %v9472, %v9488
    %v9490 = vlaneseq
    %v9491 = vshrl.u32 %v9490, 7
    %v9492 = vsub.s32 1, %v9491
    %v9493 = vrot.slane %v9472, %v9492
    %v9494 = vlaneseq
    %v9495 = vshrl.u32 %v9494, 7
    %v9496 = vsub.s32 2, %v9495
    %v9497 = vrot.slane %v9472, %v9496
    %v9498 = vlaneseq
    %v9499 = vshrl.u32 %v9498, 7
    %v9500 = vsub.s32 3, %v9499
    %v9501 = vrot.slane %v9472, %v9500
    %v9502 = vlaneseq
    %v9503 = vshrl.u32 %v9502, 7
    %v9504 = vsub.s32 4, %v9503
    %v9505 = vrot.slane %v9472, %v9504
    %v9506 = vlaneseq
    %v9507 = vshrl.u32 %v9506, 7
    %v9508 = vsub.s32 5, %v9507
    %v9509 = vrot.slane %v9472, %v9508
    %v9510 = vlaneseq
    %v9511 = vshrl.u32 %v9510, 7
    %v9512 = vsub.s32 6, %v9511
    %v9513 = vrot.slane %v9472, %v9512
    %v9514 = vlaneseq
    %v9515 = vshrl.u32 %v9514, 7
    %v9516 = vsub.s32 7, %v9515
    %v9517 = vrot.slane %v9472, %v9516
    %v9518 = vlaneseq
    %v9519 = vshrl.u32 %v9518, 7
    %v9520 = vsub.s32 0, %v9519
    %v9521 = vrot.slane %v9474, %v9520
    %v9522 = vlaneseq
    %v9523 = vshrl.u32 %v9522, 7
    %v9524 = vsub.s32 1, %v9523
    %v9525 = vrot.slane %v9474, %v9524
    %v9526 = vlaneseq
    %v9527 = vshrl.u32 %v9526, 7
    %v9528 = vsub.s32 2, %v9527
    %v9529 = vrot.slane %v9474, %v9528
    %v9530 = vlaneseq
    %v9531 = vshrl.u32 %v9530, 7
    %v9532 = vsub.s32 3, %v9531
    %v9533 = vrot.slane %v9474, %v9532
    %v9534 = vlaneseq
    %v9535 = vshrl.u32 %v9534, 7
    %v9536 = vsub.s32 4, %v9535
    %v9537 = vrot.slane %v9474, %v9536
    %v9538 = vlaneseq
    %v9539 = vshrl.u32 %v9538, 7
    %v9540 = vsub.s32 5, %v9539
    %v9541 = vrot.slane %v9474, %v9540
    %v9542 = vlaneseq
    %v9543 = vshrl.u32 %v9542, 7
    %v9544 = vsub.s32 6, %v9543
    %v9545 = vrot.slane %v9474, %v9544
    %v9546 = vlaneseq
    %v9547 = vshrl.u32 %v9546, 7
    %v9548 = vsub.s32 7, %v9547
    %v9549 = vrot.slane %v9474, %v9548
    %v9550 = vlaneseq
    %v9551 = vshrl.u32 %v9550, 7
    %v9552 = vsub.s32 0, %v9551
    %v9553 = vrot.slane %v9476, %v9552
    %v9554 = vlaneseq
    %v9555 = vshrl.u32 %v9554, 7
    %v9556 = vsub.s32 1, %v9555
    %v9557 = vrot.slane %v9476, %v9556
    %v9558 = vlaneseq
    %v9559 = vshrl.u32 %v9558, 7
    %v9560 = vsub.s32 2, %v9559
    %v9561 = vrot.slane %v9476, %v9560
    %v9562 = vlaneseq
    %v9563 = vshrl.u32 %v9562, 7
    %v9564 = vsub.s32 3, %v9563
    %v9565 = vrot.slane %v9476, %v9564
    %v9566 = vlaneseq
    %v9567 = vshrl.u32 %v9566, 7
    %v9568 = vsub.s32 4, %v9567
    %v9569 = vrot.slane %v9476, %v9568
    %v9570 = vlaneseq
    %v9571 = vshrl.u32 %v9570, 7
    %v9572 = vsub.s32 5, %v9571
    %v9573 = vrot.slane %v9476, %v9572
    %v9574 = vlaneseq
    %v9575 = vshrl.u32 %v9574, 7
    %v9576 = vsub.s32 6, %v9575
    %v9577 = vrot.slane %v9476, %v9576
    %v9578 = vlaneseq
    %v9579 = vshrl.u32 %v9578, 7
    %v9580 = vsub.s32 7, %v9579
    %v9581 = vrot.slane %v9476, %v9580
    %v9582 = vlaneseq
    %v9583 = vshrl.u32 %v9582, 7
    %v9584 = vsub.s32 0, %v9583
    %v9585 = vrot.slane %v9478, %v9584
    %v9586 = vlaneseq
    %v9587 = vshrl.u32 %v9586, 7
    %v9588 = vsub.s32 1, %v9587
    %v9589 = vrot.slane %v9478, %v9588
    %v9590 = vlaneseq
    %v9591 = vshrl.u32 %v9590, 7
    %v9592 = vsub.s32 2, %v9591
    %v9593 = vrot.slane %v9478, %v9592
    %v9594 = vlaneseq
    %v9595 = vshrl.u32 %v9594, 7
    %v9596 = vsub.s32 3, %v9595
    %v9597 = vrot.slane %v9478, %v9596
    %v9598 = vlaneseq
    %v9599 = vshrl.u32 %v9598, 7
    %v9600 = vsub.s32 4, %v9599
    %v9601 = vrot.slane %v9478, %v9600
    %v9602 = vlaneseq
    %v9603 = vshrl.u32 %v9602, 7
    %v9604 = vsub.s32 5, %v9603
    %v9605 = vrot.slane %v9478, %v9604
    %v9606 = vlaneseq
    %v9607 = vshrl.u32 %v9606, 7
    %v9608 = vsub.s32 6, %v9607
    %v9609 = vrot.slane %v9478, %v9608
    %v9610 = vlaneseq
    %v9611 = vshrl.u32 %v9610, 7
    %v9612 = vsub.s32 7, %v9611
    %v9613 = vrot.slane %v9478, %v9612
    %v9614 = vlaneseq
    %v9615 = vshrl.u32 %v9614, 7
    %v9616 = vsub.s32 0, %v9615
    %v9617 = vrot.slane %v9480, %v9616
    %v9618 = vlaneseq
    %v9619 = vshrl.u32 %v9618, 7
    %v9620 = vsub.s32 1, %v9619
    %v9621 = vrot.slane %v9480, %v9620
    %v9622 = vlaneseq
    %v9623 = vshrl.u32 %v9622, 7
    %v9624 = vsub.s32 2, %v9623
    %v9625 = vrot.slane %v9480, %v9624
    %v9626 = vlaneseq
    %v9627 = vshrl.u32 %v9626, 7
    %v9628 = vsub.s32 3, %v9627
    %v9629 = vrot.slane %v9480, %v9628
    %v9630 = vlaneseq
    %v9631 = vshrl.u32 %v9630, 7
    %v9632 = vsub.s32 4, %v9631
    %v9633 = vrot.slane %v9480, %v9632
    %v9671 = vmul.f32 %v9156, %v9489
    %v9672 = vmul.f32 %v9157, %v9493
    %v9673 = vmul.f32 %v9158, %v9497
    %v9674 = vmul.f32 %v9159, %v9501
    %v9675 = vmul.f32 %v9160, %v9505
    %v9676 = vmul.f32 %v9161, %v9509
    %v9677 = vmul.f32 %v9162, %v9513
    %v9678 = vmul.f32 %v9163, %v9517
    %v9679 = vmul.f32 %v9164, %v9521
    %v9680 = vmul.f32 %v9165, %v9525
    %v9681 = vmul.f32 %v9166, %v9529
    %v9682 = vmul.f32 %v9167, %v9533
    %v9683 = vmul.f32 %v9168, %v9537
    %v9684 = vmul.f32 %v9169, %v9541
    %v9685 = vmul.f32 %v9170, %v9545
    %v9686 = vmul.f32 %v9171, %v9549
    %v9687 = vmul.f32 %v9172, %v9553
    %v9688 = vmul.f32 %v9173, %v9557
    %v9689 = vmul.f32 %v9174, %v9561
    %v9690 = vmul.f32 %v9175, %v9565
    %v9691 = vmul.f32 %v9176, %v9569
    %v9692 = vmul.f32 %v9177, %v9573
    %v9693 = vmul.f32 %v9178, %v9577
    %v9694 = vmul.f32 %v9179, %v9581
    %v9695 = vmul.f32 %v9180, %v9585
    %v9696 = vmul.f32 %v9181, %v9589
    %v9697 = vmul.f32 %v9182, %v9593
    %v9698 = vmul.f32 %v9183, %v9597
    %v9699 = vmul.f32 %v9184, %v9601
    %v9700 = vmul.f32 %v9185, %v9605
    %v9701 = vmul.f32 %v9186, %v9609
    %v9702 = vmul.f32 %v9187, %v9613
    %v9703 = vmul.f32 %v9188, %v9617
    %v9704 = vmul.f32 %v9189, %v9621
    %v9705 = vmul.f32 %v9190, %v9625
    %v9706 = vmul.f32 %v9191, %v9629
    %v9707 = vmul.f32 %v9192, %v9633
    %v9708 = vadd.f32 %v9671, %v9672
    %v9709 = vadd.f32 %v9708, %v9673
    %v9710 = vadd.f32 %v9709, %v9674
    %v9711 = vadd.f32 %v9710, %v9675
    %v9712 = vadd.f32 %v9711, %v9676
    %v9713 = vadd.f32 %v9712, %v9677
    %v9714 = vadd.f32 %v9713, %v9678
    %v9715 = vadd.f32 %v9714, %v9679
    %v9716 = vadd.f32 %v9715, %v9680
    %v9717 = vadd.f32 %v9716, %v9681
    %v9718 = vadd.f32 %v9717, %v9682
    %v9719 = vadd.f32 %v9718, %v9683
    %v9720 = vadd.f32 %v9719, %v9684
    %v9721 = vadd.f32 %v9720, %v9685
    %v9722 = vadd.f32 %v9721, %v9686
    %v9723 = vadd.f32 %v9722, %v9687
    %v9724 = vadd.f32 %v9723, %v9688
    %v9725 = vadd.f32 %v9724, %v9689
    %v9726 = vadd.f32 %v9725, %v9690
    %v9727 = vadd.f32 %v9726, %v9691
    %v9728 = vadd.f32 %v9727, %v9692
    %v9729 = vadd.f32 %v9728, %v9693
    %v9730 = vadd.f32 %v9729, %v9694
    %v9731 = vadd.f32 %v9730, %v9695
    %v9732 = vadd.f32 %v9731, %v9696
    %v9733 = vadd.f32 %v9732, %v9697
    %v9734 = vadd.f32 %v9733, %v9698
    %v9735 = vadd.f32 %v9734, %v9699
    %v9736 = vadd.f32 %v9735, %v9700
    %v9737 = vadd.f32 %v9736, %v9701
    %v9738 = vadd.f32 %v9737, %v9702
    %v9739 = vadd.f32 %v9738, %v9703
    %v9740 = vadd.f32 %v9739, %v9704
    %v9741 = vadd.f32 %v9740, %v9705
    %v9742 = vadd.f32 %v9741, %v9706
    %v9743 = vsel %vm9465, %v9707, 0.0
    %v9744 = vadd.f32 %v9742, %v9743
    %9745 = vadd.xlane.f32.xlu0 %v9744
    %v9746 = vpop.xlane.xlu0 %9745
    %v9747 = vadd.f32 %v9155, %v9746
    %s9748 = sld [smem:[#allocation7]]
    %v9749 = vstv %s9748
    %v9750 = vadd.f32 %v9470, %v9749
    %s9751 = sld [smem:[#allocation7 + $0x1]]
    %v9752 = vstv %s9751
    %v9753 = vadd.f32 %v9747, %v9752
    %v9754 = vmax.f32 %v9750, %v9753
    %v9755 = vsub.f32 %v9750, %v9754
    %v9756 = vmul.f32 %v9755, 1.442695
    %v9757 = vpow.pop %v9756
    %v9758 = vsub.f32 %v9753, %v9754
    %v9759 = vmul.f32 %v9758, 1.442695
    %v9760 = vpow.pop %v9759
    %v9761 = vadd.f32 %v9757, %v9760
    %v9762 = vrcp.pop %v9761
    %v9763 = vmul.f32 %v9757, %v9762
    %vm9764 = vcmask 7168
    %9765 = vst.msk [vmem:[%s3] sm:$0xff] %vm9764, %v9763
    %v9766 = vmul.f32 %v9760, %v9762
    %vm9767 = vcmask 15368
    %9768 = vst.msk [vmem:[%s3] sm:$0xff] %vm9767, %v9766
    // Predicated region
    $region26: #{net_forward.1} parent=1 // pred_check
      _
    $region27: #{net_forward.1} parent=1 // pred_check_branch
      %9770 = sbr.rel (0) target = $region29
    $region28: #{net_forward.1} parent=1 // pred_region
      _
    $region29: #{net_forward.1} parent=1 // pred_fallthru
      _
    // Predicated region
    $region30: #{net_forward.1} parent=1 // pred_check
      _
    $region31: #{net_forward.1} parent=1 // pred_check_branch
      %9772 = sbr.rel (0) target = $region33
    $region32: #{net_forward.1} parent=1 // pred_region
      _
    $region33: #{net_forward.1} parent=1 // pred_fallthru
      _
    %9773 = vsyncpa [#allocation3], 1
    %9774 = vsyncpa [#allocation6], 1
    %9775 = vsyncpa [#allocation4], 1

</llo_original>
